<compile_context>
chip_gen: v7x
topology: tpu7x:2x2x1
jax: 0.10.0
libtpu: 0.0.40
codegen_flags: <defaults>
</compile_context>

<pallas_src>
import math

import jax
import jax.numpy as jnp
from jax import lax
from jax.experimental import pallas as pl
from jax.experimental.pallas import tpu as pltpu

IMG_H, IMG_W, IN_CHANS = 64, 60, 3
C1, C2, C3 = 64, 128, 256
NUM_CLASSES = 2
NEG_SLOPE = 0.01          # nn.LeakyReLU default negative_slope
BN_EPS = 1e-5             # nn.BatchNorm2d default eps


def _round_up(x, n):
    return (x + n - 1) // n * n


T1, T2, T3 = IMG_H // 4, IMG_H // 16, IMG_H // 64        # pooled heights 16, 4, 1
K1 = _round_up(5 * 3 * IN_CHANS, 128)                    # 45   -> 128
K2 = _round_up(5 * 3 * C1, 128)                          # 960  -> 1024
K3 = _round_up(5 * 3 * C2, 128)                          # 1920 -> 1920
M3 = _round_up(T3 * IMG_W, 8)                            # 60   -> 64 rows


# ------------------------------ Pallas kernels -------------------------------

def _conv_block_kernel(x_ref, w_ref, b_ref, o_ref):
    """Conv(5x3, s=(2,1), p=(2,1)) + folded BN + LeakyReLU + MaxPool((2,1)).

    x_ref: (1, 2, M, K) bf16 im2col patches; axis 1 = conv-row parity inside
           each pooled output row (conv rows 2t / 2t+1).
    w_ref: (K, Cout) bf16 folded conv+BN weights.
    b_ref: (1, Cout) f32 folded bias.
    o_ref: (1, M, Cout) pooled activation (bf16), row index = t*W + w.
    """
    w = w_ref[...]
    acc_a = jnp.dot(x_ref[0, 0], w, preferred_element_type=jnp.float32)
    acc_b = jnp.dot(x_ref[0, 1], w, preferred_element_type=jnp.float32)
    # MaxPool((2,1)) commutes with the monotone bias-add + LeakyReLU.
    z = jnp.maximum(acc_a, acc_b) + b_ref[...]
    o_ref[0] = jnp.maximum(z, NEG_SLOPE * z).astype(o_ref.dtype)


def _conv_fc_softmax_kernel(x_ref, w_ref, b_ref, v_ref, fcb_ref, o_ref):
    """Last conv block fused with flatten + Linear(15360, 2) + Softmax(dim=1).

    v_ref:   (2, M, C3) f32 fc weight, v[k, w, c] = fc_w[k, c*W + w]
             (zero rows on the M padding).
    fcb_ref: (1, 2) f32 fc bias.
    o_ref:   (1, 1, 2) softmax probabilities for this batch element.
    """
    w = w_ref[...]
    acc_a = jnp.dot(x_ref[0, 0], w, preferred_element_type=jnp.float32)
    acc_b = jnp.dot(x_ref[0, 1], w, preferred_element_type=jnp.float32)
    z = jnp.maximum(acc_a, acc_b) + b_ref[...]
    act = jnp.maximum(z, NEG_SLOPE * z)                        # (M, C3) f32

    # TODO(synk): nn.Dropout(p=0.1) implemented as inference-mode identity.
    s0 = jnp.sum(jnp.sum(act * v_ref[0], axis=0, keepdims=True),
                 axis=1, keepdims=True)                        # (1, 1)
    s1 = jnp.sum(jnp.sum(act * v_ref[1], axis=0, keepdims=True),
                 axis=1, keepdims=True)                        # (1, 1)
    col = lax.broadcasted_iota(jnp.int32, (1, NUM_CLASSES), 1)
    logits = jnp.where(col == 0, s0, s1) + fcb_ref[...]        # (1, 2)

    # Softmax(dim=1), exact reciprocal (2 classes -> essentially free).
    mx = jnp.max(logits, axis=1, keepdims=True)
    e = jnp.exp(logits - mx)
    o_ref[0] = (e / jnp.sum(e, axis=1, keepdims=True)).astype(o_ref.dtype)


# ------------------------------ wrapper glue ----------------------------------

def _im2col_pooled(x_nhwc, k_pad, pad_rows_to=None):
    """im2col for Conv(5x3, stride (2,1), pad (2,1)) fused with MaxPool((2,1)).

    Returns a (B, 2, T*W, k_pad) bf16 slab where T = H//4 pooled rows,
    row index = t*W + w, and axis 1 selects conv row 2t (parity 0) / 2t+1.
    K ordering is kh*(3*C) + kw*C + c, matching the folded weight layout.
    """
    x = x_nhwc.astype(jnp.bfloat16)
    bsz, h, w, c = x.shape
    assert h % 4 == 0, h
    t = h // 4
    xp = jnp.pad(x, ((0, 0), (2, 2), (1, 1), (0, 0)))          # (B, H+4, W+2, C)
    cols = jnp.concatenate([xp[:, :, j:j + w, :] for j in range(3)], axis=-1)
    # conv row 2t' reads padded rows 4t'+i; conv row 2t'+1 reads 4t'+2+i.
    rows_a = jnp.concatenate([cols[:, i:i + 4 * t:4] for i in range(5)], axis=-1)
    rows_b = jnp.concatenate([cols[:, i + 2:i + 2 + 4 * t:4] for i in range(5)],
                             axis=-1)
    k = 5 * 3 * c
    slab = jnp.stack([rows_a, rows_b], axis=1).reshape(bsz, 2, t * w, k)
    rows = t * w if pad_rows_to is None else pad_rows_to
    return jnp.pad(slab, ((0, 0), (0, 0), (0, rows - t * w), (0, k_pad - k)))


def _conv_block(x_slab, w_taps, bias, *, tile_rows):
    """Gridded conv+BN+LeakyReLU+MaxPool block: grid = (batch, row tiles)."""
    bsz, _, m_total, k_pad = x_slab.shape
    cout = w_taps.shape[1]
    assert m_total % tile_rows == 0
    return pl.pallas_call(
        _conv_block_kernel,
        out_shape=jax.ShapeDtypeStruct((bsz, m_total, cout), jnp.bfloat16),
        grid=(bsz, m_total // tile_rows),
        in_specs=[
            pl.BlockSpec((1, 2, tile_rows, k_pad), lambda b, t: (b, 0, t, 0)),
            pl.BlockSpec((k_pad, cout), lambda b, t: (0, 0)),
            pl.BlockSpec((1, cout), lambda b, t: (0, 0)),
        ],
        out_specs=pl.BlockSpec((1, tile_rows, cout), lambda b, t: (b, t, 0)),
        compiler_params=pltpu.CompilerParams(
            dimension_semantics=("parallel", "parallel")),
    )(x_slab, w_taps, bias)


def _conv_fc_block(x_slab, w_taps, bias, v_fc, fc_bias):
    """Last conv block fused with the fc + softmax head; grid over batch."""
    bsz, _, m, k_pad = x_slab.shape
    cout = w_taps.shape[1]
    out = pl.pallas_call(
        _conv_fc_softmax_kernel,
        out_shape=jax.ShapeDtypeStruct((bsz, 1, NUM_CLASSES), jnp.float32),
        grid=(bsz,),
        in_specs=[
            pl.BlockSpec((1, 2, m, k_pad), lambda b: (b, 0, 0, 0)),
            pl.BlockSpec((k_pad, cout), lambda b: (0, 0)),
            pl.BlockSpec((1, cout), lambda b: (0, 0)),
            pl.BlockSpec((NUM_CLASSES, m, cout), lambda b: (0, 0, 0)),
            pl.BlockSpec((1, NUM_CLASSES), lambda b: (0, 0)),
        ],
        out_specs=pl.BlockSpec((1, 1, NUM_CLASSES), lambda b: (b, 0, 0)),
        compiler_params=pltpu.CompilerParams(
            dimension_semantics=("parallel",)),
    )(x_slab, w_taps, bias, v_fc, fc_bias)
    return out.reshape(bsz, NUM_CLASSES)


def cnn20_forward(params, x):
    """CNN_20 forward pass (inference / eval mode)."""
    x = x.reshape(-1, IN_CHANS, IMG_H, IMG_W)                  # as in the module
    x = jnp.transpose(x, (0, 2, 3, 1))                         # NHWC
    bsz = x.shape[0]
    s1 = _im2col_pooled(x, K1)                                 # (B, 2, 960, 128)
    y1 = _conv_block(s1, params["w1"], params["b1"], tile_rows=4 * IMG_W)
    s2 = _im2col_pooled(y1.reshape(bsz, T1, IMG_W, C1), K2)    # (B, 2, 240, 1024)
    y2 = _conv_block(s2, params["w2"], params["b2"], tile_rows=2 * IMG_W)
    s3 = _im2col_pooled(y2.reshape(bsz, T2, IMG_W, C2), K3,
                        pad_rows_to=M3)                        # (B, 2, 64, 1920)
    return _conv_fc_block(s3, params["w3"], params["b3"],
                          params["v_fc"], params["b_fc"])      # (B, 2)


# ------------------------- parameter prep / init ------------------------------

def _fold_conv_bn(w_oikk, bias, gamma, beta, mean, var, k_pad):
    """Fold eval-mode BatchNorm into the conv, flatten taps to (K, Cout) bf16."""
    scale = gamma / jnp.sqrt(var + BN_EPS)
    w_f = w_oikk * scale[:, None, None, None]
    b_f = (bias - mean) * scale + beta
    o, c, kh, kw = w_f.shape
    taps = jnp.transpose(w_f, (2, 3, 1, 0)).reshape(kh * kw * c, o)
    taps = jnp.pad(taps, ((0, k_pad - kh * kw * c), (0, 0)))
    return taps.astype(jnp.bfloat16), b_f.reshape(1, -1).astype(jnp.float32)


def prepare_params(raw):
    """One-time weight preparation (BN fold, im2col layout, bf16 cast)."""
    # TODO(synk): BatchNorm2d folded with eval-mode running statistics; the
    # training-mode batch-statistics path is not implemented.
    p = {}
    p["w1"], p["b1"] = _fold_conv_bn(raw["conv1_w"], raw["conv1_b"], raw["bn1_g"],
                                     raw["bn1_b"], raw["bn1_m"], raw["bn1_v"], K1)
    p["w2"], p["b2"] = _fold_conv_bn(raw["conv2_w"], raw["conv2_b"], raw["bn2_g"],
                                     raw["bn2_b"], raw["bn2_m"], raw["bn2_v"], K2)
    p["w3"], p["b3"] = _fold_conv_bn(raw["conv3_w"], raw["conv3_b"], raw["bn3_g"],
                                     raw["bn3_b"], raw["bn3_m"], raw["bn3_v"], K3)
    # fc weight (2, 15360) over PyTorch flatten order (c, h=1, w) -> (2, W, C3),
    # zero-padded on the W axis to match the kernel's M padding.
    v = raw["fc_w"].reshape(NUM_CLASSES, C3, IMG_W).transpose(0, 2, 1)
    p["v_fc"] = jnp.pad(v, ((0, 0), (0, M3 - IMG_W), (0, 0))).astype(jnp.float32)
    p["b_fc"] = raw["fc_b"].reshape(1, NUM_CLASSES).astype(jnp.float32)
    return p


def init_raw_params(key):
    """Parameters matching CNN_20.__init__ (xavier_uniform conv/linear weights,
    zero biases, default BatchNorm affine params / running stats)."""
    def xavier(k, shape):
        if len(shape) == 4:
            rf = shape[2] * shape[3]
            fan_in, fan_out = shape[1] * rf, shape[0] * rf
        else:
            fan_out, fan_in = shape
        bound = math.sqrt(6.0 / (fan_in + fan_out))
        return jax.random.uniform(k, shape, jnp.float32, -bound, bound)

    ks = jax.random.split(key, 4)
    raw = {
        "conv1_w": xavier(ks[0], (C1, IN_CHANS, 5, 3)),
        "conv1_b": jnp.zeros((C1,), jnp.float32),
        "conv2_w": xavier(ks[1], (C2, C1, 5, 3)),
        "conv2_b": jnp.zeros((C2,), jnp.float32),
        "conv3_w": xavier(ks[2], (C3, C2, 5, 3)),
        "conv3_b": jnp.zeros((C3,), jnp.float32),
        "fc_w": xavier(ks[3], (NUM_CLASSES, C3 * (IMG_H // 64) * IMG_W)),
        "fc_b": jnp.zeros((NUM_CLASSES,), jnp.float32),
    }
    for name, c in (("bn1", C1), ("bn2", C2), ("bn3", C3)):
        raw[f"{name}_g"] = jnp.ones((c,), jnp.float32)
        raw[f"{name}_b"] = jnp.zeros((c,), jnp.float32)
        raw[f"{name}_m"] = jnp.zeros((c,), jnp.float32)
        raw[f"{name}_v"] = jnp.ones((c,), jnp.float32)
    return raw


# ------------------------------ pure-JAX reference ----------------------------

def _reference_forward(params, x):
    """lax.conv reference mirroring the kernel's eval-mode / bf16-operand math."""
    def block(h, taps, bias, cin, cout):
        k = 5 * 3 * cin
        w = taps[:k].reshape(5, 3, cin, cout)                  # bf16 (kh,kw,ci,co)
        z = lax.conv_general_dilated(
            h.astype(jnp.bfloat16), w, window_strides=(2, 1),
            padding=((2, 2), (1, 1)),
            dimension_numbers=("NHWC", "HWIO", "NHWC"),
            preferred_element_type=jnp.float32)
        z = z + bias.reshape(1, 1, 1, cout)
        z = jnp.maximum(z, NEG_SLOPE * z)
        bsz, hc, wd, _ = z.shape
        return z.reshape(bsz, hc // 2, 2, wd, cout).max(axis=2)

    x = x.reshape(-1, IN_CHANS, IMG_H, IMG_W).transpose(0, 2, 3, 1)
    h1 = block(x, params["w1"], params["b1"], IN_CHANS, C1).astype(jnp.bfloat16)
    h2 = block(h1, params["w2"], params["b2"], C1, C2).astype(jnp.bfloat16)
    h3 = block(h2, params["w3"], params["b3"], C2, C3)         # (B,1,60,256) f32
    v = params["v_fc"][:, :IMG_W, :]                           # (2, 60, 256)
    logits = jnp.einsum("bwc,kwc->bk", h3[:, 0], v) + params["b_fc"]
    logits = logits - jnp.max(logits, axis=1, keepdims=True)
    e = jnp.exp(logits)
    return e / jnp.sum(e, axis=1, keepdims=True)


if __name__ == "__main__":
    batch = 2
    key = jax.random.PRNGKey(0)
    k_x, k_p = jax.random.split(key)
    # module defaults: img_H=64, img_W=60, in_chans=3 (fc hard-codes 15360)
    x = jax.random.normal(k_x, (batch, IN_CHANS, IMG_H, IMG_W), jnp.float32)

    params = prepare_params(init_raw_params(k_p))              # one-time prep
    fwd = jax.jit(cnn20_forward)
    out = jax.block_until_ready(fwd(params, x))

    assert out.shape == (batch, NUM_CLASSES), out.shape
    assert bool(jnp.all(jnp.isfinite(out)))
    assert bool(jnp.allclose(jnp.sum(out, axis=1), 1.0, atol=1e-4))
    ref = jax.jit(_reference_forward)(params, x)
    assert bool(jnp.allclose(out, ref, atol=2e-2)), (out, ref)
    print("KERNEL_OK")
</pallas_src>

<mosaic_0001>
module attributes {stable_mosaic.version = 11 : i64} {
  func.func @_conv_block_kernel(%arg0: i32, %arg1: i32, %arg2: memref<1x2x240x128xbf16, #tpu.memory_space<vmem>>, %arg3: memref<128x64xbf16, #tpu.memory_space<vmem>>, %arg4: memref<1x64xf32, #tpu.memory_space<vmem>>, %arg5: memref<1x240x64xbf16, #tpu.memory_space<vmem>>) attributes {dimension_semantics = [#tpu.dimension_semantics<parallel>, #tpu.dimension_semantics<parallel>], iteration_bounds = array<i64: 2, 4>, scalar_prefetch = 0 : i64, scratch_operands = 0 : i64, tpu.core_type = #tpu.core_type<tc>, window_params = [{transform_indices = @transform_0, window_bounds = array<i64: 1, 2, 240, 128>}, {pipeline_mode = #tpu.pipeline_mode<synchronous>, transform_indices = @transform_1, window_bounds = array<i64: 128, 64>}, {pipeline_mode = #tpu.pipeline_mode<synchronous>, transform_indices = @transform_2, window_bounds = array<i64: 1, 64>}, {transform_indices = @transform_3, window_bounds = array<i64: 1, 240, 64>}]} {
    %c0 = arith.constant 0 : index
    %c0_0 = arith.constant 0 : index
    %0 = vector.load %arg3[%c0, %c0_0] : memref<128x64xbf16, #tpu.memory_space<vmem>>, vector<128x64xbf16>
    %c0_1 = arith.constant 0 : index
    %c0_2 = arith.constant 0 : index
    %c0_3 = arith.constant 0 : index
    %c0_4 = arith.constant 0 : index
    %1 = vector.load %arg2[%c0_1, %c0_2, %c0_3, %c0_4] : memref<1x2x240x128xbf16, #tpu.memory_space<vmem>>, vector<1x1x240x128xbf16>
    %2 = vector.shape_cast %1 : vector<1x1x240x128xbf16> to vector<240x128xbf16>
    %cst = arith.constant dense<0.000000e+00> : vector<240x64xf32>
    %3 = tpu.matmul %2, %0, %cst {dimension_numbers = #tpu.dot_dimension_numbers<[1], [0], [0], [1], [0, 0, 1, 1], [], []>} : vector<240x128xbf16>, vector<128x64xbf16>, vector<240x64xf32> -> vector<240x64xf32>
    %c0_5 = arith.constant 0 : index
    %c1 = arith.constant 1 : index
    %c0_6 = arith.constant 0 : index
    %c0_7 = arith.constant 0 : index
    %4 = vector.load %arg2[%c0_5, %c1, %c0_6, %c0_7] : memref<1x2x240x128xbf16, #tpu.memory_space<vmem>>, vector<1x1x240x128xbf16>
    %5 = vector.shape_cast %4 : vector<1x1x240x128xbf16> to vector<240x128xbf16>
    %cst_8 = arith.constant dense<0.000000e+00> : vector<240x64xf32>
    %6 = tpu.matmul %5, %0, %cst_8 {dimension_numbers = #tpu.dot_dimension_numbers<[1], [0], [0], [1], [0, 0, 1, 1], [], []>} : vector<240x128xbf16>, vector<128x64xbf16>, vector<240x64xf32> -> vector<240x64xf32>
    %7 = arith.maximumf %3, %6 : vector<240x64xf32>
    %c0_9 = arith.constant 0 : index
    %c0_10 = arith.constant 0 : index
    %8 = vector.load %arg4[%c0_9, %c0_10] : memref<1x64xf32, #tpu.memory_space<vmem>>, vector<1x64xf32>
    %9 = vector.broadcast %8 : vector<1x64xf32> to vector<240x64xf32>
    %10 = arith.addf %7, %9 : vector<240x64xf32>
    %cst_11 = arith.constant 0.00999999977 : f32
    %11 = vector.broadcast %cst_11 : f32 to vector<240x64xf32>
    %12 = arith.mulf %11, %10 : vector<240x64xf32>
    %13 = arith.maximumf %10, %12 : vector<240x64xf32>
    %14 = arith.truncf %13 : vector<240x64xf32> to vector<240x64xbf16>
    %c0_12 = arith.constant 0 : index
    %c0_13 = arith.constant 0 : index
    %c0_14 = arith.constant 0 : index
    %15 = vector.load %arg5[%c0_12, %c0_13, %c0_14] : memref<1x240x64xbf16, #tpu.memory_space<vmem>>, vector<1x240x64xbf16>
    %16 = vector.shape_cast %15 : vector<1x240x64xbf16> to vector<240x64xbf16>
    %17 = vector.shape_cast %14 : vector<240x64xbf16> to vector<1x240x64xbf16>
    tpu.vector_store %arg5[%c0_12, %c0_13, %c0_14], %17 {strides = array<i32>} : memref<1x240x64xbf16, #tpu.memory_space<vmem>>, vector<1x240x64xbf16>,
    return
  }
  func.func @transform_0(%arg0: i32, %arg1: i32) -> (i32, i32, i32, i32) {
    %c0_i32 = arith.constant 0 : i32
    %c0_i32_0 = arith.constant 0 : i32
    %c0_i32_1 = arith.constant 0 : i32
    return %arg0, %c0_i32, %arg1, %c0_i32_0 : i32, i32, i32, i32
  }
  func.func @transform_1(%arg0: i32, %arg1: i32) -> (i32, i32) {
    %c0_i32 = arith.constant 0 : i32
    %c0_i32_0 = arith.constant 0 : i32
    %c0_i32_1 = arith.constant 0 : i32
    return %c0_i32, %c0_i32_0 : i32, i32
  }
  func.func @transform_2(%arg0: i32, %arg1: i32) -> (i32, i32) {
    %c0_i32 = arith.constant 0 : i32
    %c0_i32_0 = arith.constant 0 : i32
    %c0_i32_1 = arith.constant 0 : i32
    return %c0_i32, %c0_i32_0 : i32, i32
  }
  func.func @transform_3(%arg0: i32, %arg1: i32) -> (i32, i32, i32) {
    %c0_i32 = arith.constant 0 : i32
    %c0_i32_0 = arith.constant 0 : i32
    return %arg0, %arg1, %c0_i32 : i32, i32, i32
  }
}

module attributes {stable_mosaic.version = 11 : i64} {
  func.func @_conv_block_kernel(%arg0: i32, %arg1: i32, %arg2: memref<1x2x120x1024xbf16, #tpu.memory_space<vmem>>, %arg3: memref<1024x128xbf16, #tpu.memory_space<vmem>>, %arg4: memref<1x128xf32, #tpu.memory_space<vmem>>, %arg5: memref<1x120x128xbf16, #tpu.memory_space<vmem>>) attributes {dimension_semantics = [#tpu.dimension_semantics<parallel>, #tpu.dimension_semantics<parallel>], iteration_bounds = array<i64: 2, 2>, scalar_prefetch = 0 : i64, scratch_operands = 0 : i64, tpu.core_type = #tpu.core_type<tc>, window_params = [{transform_indices = @transform_0, window_bounds = array<i64: 1, 2, 120, 1024>}, {pipeline_mode = #tpu.pipeline_mode<synchronous>, transform_indices = @transform_1, window_bounds = array<i64: 1024, 128>}, {pipeline_mode = #tpu.pipeline_mode<synchronous>, transform_indices = @transform_2, window_bounds = array<i64: 1, 128>}, {transform_indices = @transform_3, window_bounds = array<i64: 1, 120, 128>}]} {
    %c0 = arith.constant 0 : index
    %c0_0 = arith.constant 0 : index
    %0 = vector.load %arg3[%c0, %c0_0] : memref<1024x128xbf16, #tpu.memory_space<vmem>>, vector<1024x128xbf16>
    %c0_1 = arith.constant 0 : index
    %c0_2 = arith.constant 0 : index
    %c0_3 = arith.constant 0 : index
    %c0_4 = arith.constant 0 : index
    %1 = vector.load %arg2[%c0_1, %c0_2, %c0_3, %c0_4] : memref<1x2x120x1024xbf16, #tpu.memory_space<vmem>>, vector<1x1x120x1024xbf16>
    %2 = vector.shape_cast %1 : vector<1x1x120x1024xbf16> to vector<120x1024xbf16>
    %cst = arith.constant dense<0.000000e+00> : vector<120x128xf32>
    %3 = tpu.matmul %2, %0, %cst {dimension_numbers = #tpu.dot_dimension_numbers<[1], [0], [0], [1], [0, 0, 1, 1], [], []>} : vector<120x1024xbf16>, vector<1024x128xbf16>, vector<120x128xf32> -> vector<120x128xf32>
    %c0_5 = arith.constant 0 : index
    %c1 = arith.constant 1 : index
    %c0_6 = arith.constant 0 : index
    %c0_7 = arith.constant 0 : index
    %4 = vector.load %arg2[%c0_5, %c1, %c0_6, %c0_7] : memref<1x2x120x1024xbf16, #tpu.memory_space<vmem>>, vector<1x1x120x1024xbf16>
    %5 = vector.shape_cast %4 : vector<1x1x120x1024xbf16> to vector<120x1024xbf16>
    %cst_8 = arith.constant dense<0.000000e+00> : vector<120x128xf32>
    %6 = tpu.matmul %5, %0, %cst_8 {dimension_numbers = #tpu.dot_dimension_numbers<[1], [0], [0], [1], [0, 0, 1, 1], [], []>} : vector<120x1024xbf16>, vector<1024x128xbf16>, vector<120x128xf32> -> vector<120x128xf32>
    %7 = arith.maximumf %3, %6 : vector<120x128xf32>
    %c0_9 = arith.constant 0 : index
    %c0_10 = arith.constant 0 : index
    %8 = vector.load %arg4[%c0_9, %c0_10] : memref<1x128xf32, #tpu.memory_space<vmem>>, vector<1x128xf32>
    %9 = vector.broadcast %8 : vector<1x128xf32> to vector<120x128xf32>
    %10 = arith.addf %7, %9 : vector<120x128xf32>
    %cst_11 = arith.constant 0.00999999977 : f32
    %11 = vector.broadcast %cst_11 : f32 to vector<120x128xf32>
    %12 = arith.mulf %11, %10 : vector<120x128xf32>
    %13 = arith.maximumf %10, %12 : vector<120x128xf32>
    %14 = arith.truncf %13 : vector<120x128xf32> to vector<120x128xbf16>
    %c0_12 = arith.constant 0 : index
    %c0_13 = arith.constant 0 : index
    %c0_14 = arith.constant 0 : index
    %15 = vector.load %arg5[%c0_12, %c0_13, %c0_14] : memref<1x120x128xbf16, #tpu.memory_space<vmem>>, vector<1x120x128xbf16>
    %16 = vector.shape_cast %15 : vector<1x120x128xbf16> to vector<120x128xbf16>
    %17 = vector.shape_cast %14 : vector<120x128xbf16> to vector<1x120x128xbf16>
    tpu.vector_store %arg5[%c0_12, %c0_13, %c0_14], %17 {strides = array<i32>} : memref<1x120x128xbf16, #tpu.memory_space<vmem>>, vector<1x120x128xbf16>,
    return
  }
  func.func @transform_0(%arg0: i32, %arg1: i32) -> (i32, i32, i32, i32) {
    %c0_i32 = arith.constant 0 : i32
    %c0_i32_0 = arith.constant 0 : i32
    %c0_i32_1 = arith.constant 0 : i32
    return %arg0, %c0_i32, %arg1, %c0_i32_0 : i32, i32, i32, i32
  }
  func.func @transform_1(%arg0: i32, %arg1: i32) -> (i32, i32) {
    %c0_i32 = arith.constant 0 : i32
    %c0_i32_0 = arith.constant 0 : i32
    %c0_i32_1 = arith.constant 0 : i32
    return %c0_i32, %c0_i32_0 : i32, i32
  }
  func.func @transform_2(%arg0: i32, %arg1: i32) -> (i32, i32) {
    %c0_i32 = arith.constant 0 : i32
    %c0_i32_0 = arith.constant 0 : i32
    %c0_i32_1 = arith.constant 0 : i32
    return %c0_i32, %c0_i32_0 : i32, i32
  }
  func.func @transform_3(%arg0: i32, %arg1: i32) -> (i32, i32, i32) {
    %c0_i32 = arith.constant 0 : i32
    %c0_i32_0 = arith.constant 0 : i32
    return %arg0, %arg1, %c0_i32 : i32, i32, i32
  }
}

module attributes {stable_mosaic.version = 11 : i64} {
  func.func @_conv_fc_softmax_kernel(%arg0: i32, %arg1: memref<1x2x64x1920xbf16, #tpu.memory_space<vmem>>, %arg2: memref<1920x256xbf16, #tpu.memory_space<vmem>>, %arg3: memref<1x256xf32, #tpu.memory_space<vmem>>, %arg4: memref<2x64x256xf32, #tpu.memory_space<vmem>>, %arg5: memref<1x2xf32, #tpu.memory_space<vmem>>, %arg6: memref<1x1x2xf32, #tpu.memory_space<vmem>>) attributes {dimension_semantics = [#tpu.dimension_semantics<parallel>], iteration_bounds = array<i64: 2>, scalar_prefetch = 0 : i64, scratch_operands = 0 : i64, tpu.core_type = #tpu.core_type<tc>, window_params = [{transform_indices = @transform_0, window_bounds = array<i64: 1, 2, 64, 1920>}, {pipeline_mode = #tpu.pipeline_mode<synchronous>, transform_indices = @transform_1, window_bounds = array<i64: 1920, 256>}, {pipeline_mode = #tpu.pipeline_mode<synchronous>, transform_indices = @transform_2, window_bounds = array<i64: 1, 256>}, {pipeline_mode = #tpu.pipeline_mode<synchronous>, transform_indices = @transform_3, window_bounds = array<i64: 2, 64, 256>}, {pipeline_mode = #tpu.pipeline_mode<synchronous>, transform_indices = @transform_4, window_bounds = array<i64: 1, 2>}, {transform_indices = @transform_5, window_bounds = array<i64: 1, 1, 2>}]} {
    %c0 = arith.constant 0 : index
    %c0_0 = arith.constant 0 : index
    %0 = vector.load %arg2[%c0, %c0_0] : memref<1920x256xbf16, #tpu.memory_space<vmem>>, vector<1920x256xbf16>
    %c0_1 = arith.constant 0 : index
    %c0_2 = arith.constant 0 : index
    %c0_3 = arith.constant 0 : index
    %c0_4 = arith.constant 0 : index
    %1 = vector.load %arg1[%c0_1, %c0_2, %c0_3, %c0_4] : memref<1x2x64x1920xbf16, #tpu.memory_space<vmem>>, vector<1x1x64x1920xbf16>
    %2 = vector.shape_cast %1 : vector<1x1x64x1920xbf16> to vector<64x1920xbf16>
    %cst = arith.constant dense<0.000000e+00> : vector<64x256xf32>
    %3 = tpu.matmul %2, %0, %cst {dimension_numbers = #tpu.dot_dimension_numbers<[1], [0], [0], [1], [0, 0, 1, 1], [], []>} : vector<64x1920xbf16>, vector<1920x256xbf16>, vector<64x256xf32> -> vector<64x256xf32>
    %c0_5 = arith.constant 0 : index
    %c1 = arith.constant 1 : index
    %c0_6 = arith.constant 0 : index
    %c0_7 = arith.constant 0 : index
    %4 = vector.load %arg1[%c0_5, %c1, %c0_6, %c0_7] : memref<1x2x64x1920xbf16, #tpu.memory_space<vmem>>, vector<1x1x64x1920xbf16>
    %5 = vector.shape_cast %4 : vector<1x1x64x1920xbf16> to vector<64x1920xbf16>
    %cst_8 = arith.constant dense<0.000000e+00> : vector<64x256xf32>
    %6 = tpu.matmul %5, %0, %cst_8 {dimension_numbers = #tpu.dot_dimension_numbers<[1], [0], [0], [1], [0, 0, 1, 1], [], []>} : vector<64x1920xbf16>, vector<1920x256xbf16>, vector<64x256xf32> -> vector<64x256xf32>
    %7 = arith.maximumf %3, %6 : vector<64x256xf32>
    %c0_9 = arith.constant 0 : index
    %c0_10 = arith.constant 0 : index
    %8 = vector.load %arg3[%c0_9, %c0_10] : memref<1x256xf32, #tpu.memory_space<vmem>>, vector<1x256xf32>
    %9 = vector.broadcast %8 : vector<1x256xf32> to vector<64x256xf32>
    %10 = arith.addf %7, %9 : vector<64x256xf32>
    %cst_11 = arith.constant 0.00999999977 : f32
    %11 = vector.broadcast %cst_11 : f32 to vector<64x256xf32>
    %12 = arith.mulf %11, %10 : vector<64x256xf32>
    %13 = arith.maximumf %10, %12 : vector<64x256xf32>
    %c0_12 = arith.constant 0 : index
    %c0_13 = arith.constant 0 : index
    %c0_14 = arith.constant 0 : index
    %14 = vector.load %arg4[%c0_12, %c0_13, %c0_14] : memref<2x64x256xf32, #tpu.memory_space<vmem>>, vector<1x64x256xf32>
    %15 = vector.shape_cast %14 : vector<1x64x256xf32> to vector<64x256xf32>
    %16 = arith.mulf %13, %15 : vector<64x256xf32>
    %cst_15 = arith.constant dense<0.000000e+00> : vector<256xf32>
    %17 = vector.multi_reduction <add>, %16, %cst_15 [0] : vector<64x256xf32> to vector<256xf32>
    %18 = vector.shape_cast %17 : vector<256xf32> to vector<1x256xf32>
    %cst_16 = arith.constant dense<0.000000e+00> : vector<1xf32>
    %19 = vector.multi_reduction <add>, %18, %cst_16 [1] : vector<1x256xf32> to vector<1xf32>
    %20 = vector.shape_cast %19 : vector<1xf32> to vector<1x1xf32>
    %c1_17 = arith.constant 1 : index
    %c0_18 = arith.constant 0 : index
    %c0_19 = arith.constant 0 : index
    %21 = vector.load %arg4[%c1_17, %c0_18, %c0_19] : memref<2x64x256xf32, #tpu.memory_space<vmem>>, vector<1x64x256xf32>
    %22 = vector.shape_cast %21 : vector<1x64x256xf32> to vector<64x256xf32>
    %23 = arith.mulf %13, %22 : vector<64x256xf32>
    %cst_20 = arith.constant dense<0.000000e+00> : vector<256xf32>
    %24 = vector.multi_reduction <add>, %23, %cst_20 [0] : vector<64x256xf32> to vector<256xf32>
    %25 = vector.shape_cast %24 : vector<256xf32> to vector<1x256xf32>
    %cst_21 = arith.constant dense<0.000000e+00> : vector<1xf32>
    %26 = vector.multi_reduction <add>, %25, %cst_21 [1] : vector<1x256xf32> to vector<1xf32>
    %27 = vector.shape_cast %26 : vector<1xf32> to vector<1x1xf32>
    %28 = tpu.iota {dimensions = array<i32: 1>} : vector<1x2xi32>
    %c0_i32 = arith.constant 0 : i32
    %29 = vector.broadcast %c0_i32 : i32 to vector<1x2xi32>
    %30 = arith.cmpi eq, %28, %29 : vector<1x2xi32>
    %31 = vector.shape_cast %20 : vector<1x1xf32> to vector<1x1xf32>
    %32 = vector.broadcast %31 : vector<1x1xf32> to vector<1x2xf32>
    %33 = vector.shape_cast %27 : vector<1x1xf32> to vector<1x1xf32>
    %34 = vector.broadcast %33 : vector<1x1xf32> to vector<1x2xf32>
    %35 = arith.select %30, %32, %34 : vector<1x2xi1>, vector<1x2xf32>
    %c0_22 = arith.constant 0 : index
    %c0_23 = arith.constant 0 : index
    %36 = vector.load %arg5[%c0_22, %c0_23] : memref<1x2xf32, #tpu.memory_space<vmem>>, vector<1x2xf32>
    %37 = arith.addf %35, %36 : vector<1x2xf32>
    %cst_24 = arith.constant dense<0xFF800000> : vector<1xf32>
    %38 = vector.multi_reduction <maximumf>, %37, %cst_24 [1] : vector<1x2xf32> to vector<1xf32>
    %39 = vector.shape_cast %38 : vector<1xf32> to vector<1x1xf32>
    %40 = vector.broadcast %39 : vector<1x1xf32> to vector<1x2xf32>
    %41 = arith.subf %37, %40 : vector<1x2xf32>
    %42 = math.exp %41 : vector<1x2xf32>
    %cst_25 = arith.constant dense<0.000000e+00> : vector<1xf32>
    %43 = vector.multi_reduction <add>, %42, %cst_25 [1] : vector<1x2xf32> to vector<1xf32>
    %44 = vector.shape_cast %43 : vector<1xf32> to vector<1x1xf32>
    %45 = vector.broadcast %44 : vector<1x1xf32> to vector<1x2xf32>
    %46 = arith.divf %42, %45 : vector<1x2xf32>
    %c0_26 = arith.constant 0 : index
    %c0_27 = arith.constant 0 : index
    %c0_28 = arith.constant 0 : index
    %47 = vector.load %arg6[%c0_26, %c0_27, %c0_28] : memref<1x1x2xf32, #tpu.memory_space<vmem>>, vector<1x1x2xf32>
    %48 = vector.shape_cast %47 : vector<1x1x2xf32> to vector<1x2xf32>
    %49 = vector.shape_cast %46 : vector<1x2xf32> to vector<1x1x2xf32>
    tpu.vector_store %arg6[%c0_26, %c0_27, %c0_28], %49 {strides = array<i32>} : memref<1x1x2xf32, #tpu.memory_space<vmem>>, vector<1x1x2xf32>,
    return
  }
  func.func @transform_0(%arg0: i32) -> (i32, i32, i32, i32) {
    %c0_i32 = arith.constant 0 : i32
    %c0_i32_0 = arith.constant 0 : i32
    %c0_i32_1 = arith.constant 0 : i32
    %c0_i32_2 = arith.constant 0 : i32
    return %arg0, %c0_i32, %c0_i32_0, %c0_i32_1 : i32, i32, i32, i32
  }
  func.func @transform_1(%arg0: i32) -> (i32, i32) {
    %c0_i32 = arith.constant 0 : i32
    %c0_i32_0 = arith.constant 0 : i32
    %c0_i32_1 = arith.constant 0 : i32
    return %c0_i32, %c0_i32_0 : i32, i32
  }
  func.func @transform_2(%arg0: i32) -> (i32, i32) {
    %c0_i32 = arith.constant 0 : i32
    %c0_i32_0 = arith.constant 0 : i32
    %c0_i32_1 = arith.constant 0 : i32
    return %c0_i32, %c0_i32_0 : i32, i32
  }
  func.func @transform_3(%arg0: i32) -> (i32, i32, i32) {
    %c0_i32 = arith.constant 0 : i32
    %c0_i32_0 = arith.constant 0 : i32
    %c0_i32_1 = arith.constant 0 : i32
    %c0_i32_2 = arith.constant 0 : i32
    return %c0_i32, %c0_i32_0, %c0_i32_1 : i32, i32, i32
  }
  func.func @transform_4(%arg0: i32) -> (i32, i32) {
    %c0_i32 = arith.constant 0 : i32
    %c0_i32_0 = arith.constant 0 : i32
    %c0_i32_1 = arith.constant 0 : i32
    return %c0_i32, %c0_i32_0 : i32, i32
  }
  func.func @transform_5(%arg0: i32) -> (i32, i32, i32) {
    %c0_i32 = arith.constant 0 : i32
    %c0_i32_0 = arith.constant 0 : i32
    %c0_i32_1 = arith.constant 0 : i32
    return %arg0, %c0_i32, %c0_i32_0 : i32, i32, i32
  }
}

</mosaic_0001>

<llo_original>
// kernel: cnn20_forward.3
$region0: #{cnn20_forward.3}
  #allocation0 [shape = 'u32[]', space=smem, size = 0x4, offset = 0x4, fixed_abs, tag = 'smem constant byte address 0x4 - core index']
  #allocation1 [shape = 'u32[144,128]{1,0:T(1,128)}', space=vmem, size = 0x12000, scoped, tag = 'internal scratch']
  %s0 = inlined_call_operand.vmem [shape: bf16[2,2,960,128], index: 0, kind: input, shape index: {}]
  %s1 = inlined_call_operand.vmem [shape: bf16[128,64], index: 1, kind: input, shape index: {}]
  %s2 = inlined_call_operand.vmem [shape: f32[1,64], index: 2, kind: input, shape index: {}]
  %s3 = inlined_call_operand.vmem [shape: bf16[2,960,64], index: 3, kind: output, shape index: {}]
  %s4 = sld [smem:[#allocation0]]
  $region86: #{cnn20_forward.3} parent=0
    _
  %s6 = ssub.s32 1, %s4
  %s7 = scalar_select 0, %s6, %s4
  $region1: #{cnn20_forward.3} parent=0
    #allocation2 [shape = 'u8[245760]{0}', space=vmem, size = 0x3c000, scoped, tag = 'input window, operand 0']
    loop: start=0, step=1, limit=10
    $region2: #{cnn20_forward.3} parent=1 // loop_pre_header
      _
    $region3: #{cnn20_forward.3} parent=1 // loop_header
      %s9 = sphi 0, %s13
      %p10 = scmp.ge.s32.totalorder %s9, 10
      %s16 = sphi 0, %s28
      %s17 = sphi 0, %s24
      %s18 = sphi 0, %s16
      %s19 = sphi 0, %s17
      %s20 = sphi 0, %s18
      %s21 = sphi 0, %s19
      %s33 = sphi 0, %s35
      %s36 = sphi 0, %s33
      %s37 = sphi 0, %s36
      %s53 = sphi 0, %s37
      %s57 = sphi 0, %s57
      %s59 = sphi 0, %s57
      %s60 = sphi 0, %s59
      %s74 = sphi 0, %s60
      %s78 = sphi 0, %s78
      %s80 = sphi 0, %s78
      %s81 = sphi 0, %s80
      %s95 = sphi 0, %s81
      %s103 = sphi 0, %s105
      %s106 = sphi 0, %s103
      %s107 = sphi 0, %s106
      %s123 = sphi 0, %s107
    $region4: #{cnn20_forward.3} parent=1 // loop_header_branch
      %12 = sbr.rel (%p10) target = $region8
    $region5: #{cnn20_forward.3} parent=1 // loop_body
      %s14 = ssub.s32 %s9, 1
      %s15 = ssub.s32 %s9, 2
      %s22 = sadd.s32 1, %s17
      %p23 = scmp.ge.s32.totalorder %s22, 4
      %s24 = scalar_select %p23, 0, %s22
      %s25 = sadd.s32 1, %s16
      %s26 = scalar_select %p23, %s25, %s16
      %p27 = scmp.ge.s32.totalorder %s26, 2
      %s28 = scalar_select %p27, 0, %s26
      %s29 = ssub.s32 %s16, %s28
      %s30 = ssub.s32 %s17, %s24
      %s31 = sor.u32 %s29, %s30
      %p32 = scmp.eq.s32.totalorder %s31, 0
      %s34 = sadd.s32 %s33, 1
      %s35 = scalar_select %p32, %s33, %s34
      %p38 = pneg %p32
      %p39 = scmp.eq.s32.totalorder %s9, 7
      %p40 = por %p38, %p39
      %p41 = scmp.ne.s32.totalorder %s33, %s36
      %p42 = scmp.eq.s32.totalorder %s9, 0
      %p43 = por %p41, %p42
      %p44 = scmp.ne.s32.totalorder %s33, %s36
      %p45 = scmp.eq.s32.totalorder %s14, 7
      %p46 = por %p44, %p45
      %p47 = scmp.ne.s32.totalorder %s36, %s37
      %p48 = scmp.eq.s32.totalorder %s14, 0
      %p49 = por %p47, %p48
      %p50 = scmp.ne.s32.totalorder %s36, %s37
      %p51 = scmp.eq.s32.totalorder %s15, 7
      %p52 = por %p50, %p51
      %p54 = scmp.ne.s32.totalorder %s37, %s53
      %p55 = scmp.eq.s32.totalorder %s15, 0
      %p56 = por %p54, %p55
      %s58 = sadd.s32 %s57, 1
      %p61 = scmp.eq.s32.totalorder %s9, 7
      %p62 = scmp.ne.s32.totalorder %s57, %s59
      %p63 = scmp.eq.s32.totalorder %s9, 0
      %p64 = por %p62, %p63
      %p65 = scmp.ne.s32.totalorder %s57, %s59
      %p66 = scmp.eq.s32.totalorder %s14, 7
      %p67 = por %p65, %p66
      %p68 = scmp.ne.s32.totalorder %s59, %s60
      %p69 = scmp.eq.s32.totalorder %s14, 0
      %p70 = por %p68, %p69
      %p71 = scmp.ne.s32.totalorder %s59, %s60
      %p72 = scmp.eq.s32.totalorder %s15, 7
      %p73 = por %p71, %p72
      %p75 = scmp.ne.s32.totalorder %s60, %s74
      %p76 = scmp.eq.s32.totalorder %s15, 0
      %p77 = por %p75, %p76
      %s79 = sadd.s32 %s78, 1
      %p82 = scmp.eq.s32.totalorder %s9, 7
      %p83 = scmp.ne.s32.totalorder %s78, %s80
      %p84 = scmp.eq.s32.totalorder %s9, 0
      %p85 = por %p83, %p84
      %p86 = scmp.ne.s32.totalorder %s78, %s80
      %p87 = scmp.eq.s32.totalorder %s14, 7
      %p88 = por %p86, %p87
      %p89 = scmp.ne.s32.totalorder %s80, %s81
      %p90 = scmp.eq.s32.totalorder %s14, 0
      %p91 = por %p89, %p90
      %p92 = scmp.ne.s32.totalorder %s80, %s81
      %p93 = scmp.eq.s32.totalorder %s15, 7
      %p94 = por %p92, %p93
      %p96 = scmp.ne.s32.totalorder %s81, %s95
      %p97 = scmp.eq.s32.totalorder %s15, 0
      %p98 = por %p96, %p97
      %s99 = ssub.s32 %s16, %s28
      %s100 = ssub.s32 %s17, %s24
      %s101 = sor.u32 %s99, %s100
      %p102 = scmp.eq.s32.totalorder %s101, 0
      %s104 = sadd.s32 %s103, 1
      %s105 = scalar_select %p102, %s103, %s104
      %p108 = pneg %p102
      %p109 = scmp.eq.s32.totalorder %s9, 7
      %p110 = por %p108, %p109
      %p111 = scmp.ne.s32.totalorder %s103, %s106
      %p112 = scmp.eq.s32.totalorder %s9, 0
      %p113 = por %p111, %p112
      %p114 = scmp.ne.s32.totalorder %s103, %s106
      %p115 = scmp.eq.s32.totalorder %s14, 7
      %p116 = por %p114, %p115
      %p117 = scmp.ne.s32.totalorder %s106, %s107
      %p118 = scmp.eq.s32.totalorder %s14, 0
      %p119 = por %p117, %p118
      %p120 = scmp.ne.s32.totalorder %s106, %s107
      %p121 = scmp.eq.s32.totalorder %s15, 7
      %p122 = por %p120, %p121
      %p124 = scmp.ne.s32.totalorder %s107, %s123
      %p125 = scmp.eq.s32.totalorder %s15, 0
      %p126 = por %p124, %p125
      %p127 = scmp.le.s32.totalorder 1, %s9
      %p128 = scmp.lt.s32.totalorder %s9, 9
      %p129 = pnand %p127, %p128
      %p130 = pneg %p129
      // Predicated region
      $region9: #{cnn20_forward.3} parent=5 // pred_check
        _
      $region10: #{cnn20_forward.3} parent=5 // pred_check_branch
        %132 = sbr.rel (%p129) target = $region12
      $region11: #{cnn20_forward.3} parent=5 // pred_region
        %s133 = ssub.s32 %s9, 1
        // Predicated region
        $region13: #{cnn20_forward.3} parent=11 // pred_check
          %p134 = pneg %p70
        $region14: #{cnn20_forward.3} parent=11 // pred_check_branch
          %136 = sbr.rel (%p134) target = $region16
        $region15: #{cnn20_forward.3} parent=11 // pred_region
          _
        $region16: #{cnn20_forward.3} parent=11 // pred_fallthru
          _
        // Predicated region
        $region17: #{cnn20_forward.3} parent=11 // pred_check
          %p137 = pneg %p91
        $region18: #{cnn20_forward.3} parent=11 // pred_check_branch
          %139 = sbr.rel (%p137) target = $region20
        $region19: #{cnn20_forward.3} parent=11 // pred_region
          _
        $region20: #{cnn20_forward.3} parent=11 // pred_fallthru
          _
      $region12: #{cnn20_forward.3} parent=5 // pred_fallthru
        _
      %p140 = scmp.lt.s32.totalorder %s9, 8
      // Predicated region
      $region21: #{cnn20_forward.3} parent=5 // pred_check
        %p141 = pneg %p140
      $region22: #{cnn20_forward.3} parent=5 // pred_check_branch
        %143 = sbr.rel (%p141) target = $region24
      $region23: #{cnn20_forward.3} parent=5 // pred_region
        // Predicated region
        $region25: #{cnn20_forward.3} parent=23 // pred_check
          %p144 = pneg %p43
        $region26: #{cnn20_forward.3} parent=23 // pred_check_branch
          %146 = sbr.rel (%p144) target = $region28
        $region27: #{cnn20_forward.3} parent=23 // pred_region
          %s147 = sand.u32 %s33, 1
          %s148 = sand.u32 %s33, 1
          %s149 = smul.addr %s148, 240
          %s150 = scalar_lea.vmem [#allocation2], %s149
          %s151 = smul.u32 30, %s17
          %s152 = smul.addr %s16, 240
          %s153 = sadd.s32 %s151, %s152
          %s154 = smul.addr %s153, 4
          %s155 = scalar_lea.vmem %s0, %s154
          // Predicated region
          $region29: #{cnn20_forward.3} parent=27 // pred_check
            _
          $region30: #{cnn20_forward.3} parent=27 // pred_check_branch
            %157 = sbr.rel (0) target = $region32
          $region31: #{cnn20_forward.3} parent=27 // pred_region
            // Predicated region
            $region33: #{cnn20_forward.3} parent=31 // pred_check
              _
            $region34: #{cnn20_forward.3} parent=31 // pred_check_branch
              %159 = sbr.rel target = $region36
            $region35: #{cnn20_forward.3} parent=31 // pred_region
              // Predicated region
              $region48: #{cnn20_forward.3} parent=35 // pred_check
                _
              $region49: #{cnn20_forward.3} parent=35 // pred_check_branch
                %292 = sbr.rel (0) target = $region51
              $region50: #{cnn20_forward.3} parent=35 // pred_region
                loop: start=0, step=1, limit=1
                $region52: #{cnn20_forward.3} parent=50 // loop_pre_header
                  _
                $region53: #{cnn20_forward.3} parent=50 // loop_header
                  %s294 = sphi 0, %s298
                  %p295 = scmp.ge.s32.totalorder %s294, 1
                  %s299 = sphi %s155, %s155
                  %s300 = sphi %s150, %s150
                $region54: #{cnn20_forward.3} parent=50 // loop_header_branch
                  %297 = sbr.rel (%p295) target = $region58
                $region55: #{cnn20_forward.3} parent=50 // loop_body
                  _
                $region56: #{cnn20_forward.3} parent=50 // loop_footer
                  %s298 = sadd.s32 1, %s294
                $region57: #{cnn20_forward.3} parent=50 // loop_footer_branch
                  %293 = sbr.rel target = $region53
                $region58: #{cnn20_forward.3} parent=50 // loop_exit
                  _
                loop: start=0, step=1, limit=1
                $region59: #{cnn20_forward.3} parent=50 // loop_pre_header
                  _
                $region60: #{cnn20_forward.3} parent=50 // loop_header
                  %s303 = sphi 0, %s307
                  %p304 = scmp.ge.s32.totalorder %s303, 1
                  %s308 = sphi %s155, %s155
                  %s309 = sphi %s150, %s150
                $region61: #{cnn20_forward.3} parent=50 // loop_header_branch
                  %306 = sbr.rel (%p304) target = $region65
                $region62: #{cnn20_forward.3} parent=50 // loop_body
                  %v310 = vld [vmem:[%s308] sm:$0xf]
                  %311 = vst [vmem:[%s309] sm:$0xf] %v310
                  %v312 = vld [vmem:[%s308 + $0x4] sm:$0xf]
                  %313 = vst [vmem:[%s309 + $0x4] sm:$0xf] %v312
                  %v314 = vld [vmem:[%s308 + $0x8] sm:$0xf]
                  %315 = vst [vmem:[%s309 + $0x8] sm:$0xf] %v314
                  %v316 = vld [vmem:[%s308 + $0xc] sm:$0xf]
                  %317 = vst [vmem:[%s309 + $0xc] sm:$0xf] %v316
                  %v318 = vld [vmem:[%s308 + $0x10] sm:$0xf]
                  %319 = vst [vmem:[%s309 + $0x10] sm:$0xf] %v318
                  %v320 = vld [vmem:[%s308 + $0x14] sm:$0xf]
                  %321 = vst [vmem:[%s309 + $0x14] sm:$0xf] %v320
                  %v322 = vld [vmem:[%s308 + $0x18] sm:$0xf]
                  %323 = vst [vmem:[%s309 + $0x18] sm:$0xf] %v322
                  %v324 = vld [vmem:[%s308 + $0x1c] sm:$0xf]
                  %325 = vst [vmem:[%s309 + $0x1c] sm:$0xf] %v324
                  %v326 = vld [vmem:[%s308 + $0x20] sm:$0xf]
                  %327 = vst [vmem:[%s309 + $0x20] sm:$0xf] %v326
                  %v328 = vld [vmem:[%s308 + $0x24] sm:$0xf]
                  %329 = vst [vmem:[%s309 + $0x24] sm:$0xf] %v328
                  %v330 = vld [vmem:[%s308 + $0x28] sm:$0xf]
                  %331 = vst [vmem:[%s309 + $0x28] sm:$0xf] %v330
                  %v332 = vld [vmem:[%s308 + $0x2c] sm:$0xf]
                  %333 = vst [vmem:[%s309 + $0x2c] sm:$0xf] %v332
                  %v334 = vld [vmem:[%s308 + $0x30] sm:$0xf]
                  %335 = vst [vmem:[%s309 + $0x30] sm:$0xf] %v334
                  %v336 = vld [vmem:[%s308 + $0x34] sm:$0xf]
                  %337 = vst [vmem:[%s309 + $0x34] sm:$0xf] %v336
                  %v338 = vld [vmem:[%s308 + $0x38] sm:$0xf]
                  %339 = vst [vmem:[%s309 + $0x38] sm:$0xf] %v338
                  %v340 = vld [vmem:[%s308 + $0x3c] sm:$0xf]
                  %341 = vst [vmem:[%s309 + $0x3c] sm:$0xf] %v340
                  %v342 = vld [vmem:[%s308 + $0x40] sm:$0xf]
                  %343 = vst [vmem:[%s309 + $0x40] sm:$0xf] %v342
                  %v344 = vld [vmem:[%s308 + $0x44] sm:$0xf]
                  %345 = vst [vmem:[%s309 + $0x44] sm:$0xf] %v344
                  %v346 = vld [vmem:[%s308 + $0x48] sm:$0xf]
                  %347 = vst [vmem:[%s309 + $0x48] sm:$0xf] %v346
                  %v348 = vld [vmem:[%s308 + $0x4c] sm:$0xf]
                  %349 = vst [vmem:[%s309 + $0x4c] sm:$0xf] %v348
                  %v350 = vld [vmem:[%s308 + $0x50] sm:$0xf]
                  %351 = vst [vmem:[%s309 + $0x50] sm:$0xf] %v350
                  %v352 = vld [vmem:[%s308 + $0x54] sm:$0xf]
                  %353 = vst [vmem:[%s309 + $0x54] sm:$0xf] %v352
                  %v354 = vld [vmem:[%s308 + $0x58] sm:$0xf]
                  %355 = vst [vmem:[%s309 + $0x58] sm:$0xf] %v354
                  %v356 = vld [vmem:[%s308 + $0x5c] sm:$0xf]
                  %357 = vst [vmem:[%s309 + $0x5c] sm:$0xf] %v356
                  %v358 = vld [vmem:[%s308 + $0x60] sm:$0xf]
                  %359 = vst [vmem:[%s309 + $0x60] sm:$0xf] %v358
                  %v360 = vld [vmem:[%s308 + $0x64] sm:$0xf]
                  %361 = vst [vmem:[%s309 + $0x64] sm:$0xf] %v360
                  %v362 = vld [vmem:[%s308 + $0x68] sm:$0xf]
                  %363 = vst [vmem:[%s309 + $0x68] sm:$0xf] %v362
                  %v364 = vld [vmem:[%s308 + $0x6c] sm:$0xf]
                  %365 = vst [vmem:[%s309 + $0x6c] sm:$0xf] %v364
                  %v366 = vld [vmem:[%s308 + $0x70] sm:$0xf]
                  %367 = vst [vmem:[%s309 + $0x70] sm:$0xf] %v366
                  %v368 = vld [vmem:[%s308 + $0x74] sm:$0xf]
                  %369 = vst [vmem:[%s309 + $0x74] sm:$0xf] %v368
                  %v370 = vld [vmem:[%s308 + $0x1e0] sm:$0xf]
                  %371 = vst [vmem:[%s309 + $0x78] sm:$0xf] %v370
                  %v372 = vld [vmem:[%s308 + $0x1e4] sm:$0xf]
                  %373 = vst [vmem:[%s309 + $0x7c] sm:$0xf] %v372
                  %v374 = vld [vmem:[%s308 + $0x1e8] sm:$0xf]
                  %375 = vst [vmem:[%s309 + $0x80] sm:$0xf] %v374
                  %v376 = vld [vmem:[%s308 + $0x1ec] sm:$0xf]
                  %377 = vst [vmem:[%s309 + $0x84] sm:$0xf] %v376
                  %v378 = vld [vmem:[%s308 + $0x1f0] sm:$0xf]
                  %379 = vst [vmem:[%s309 + $0x88] sm:$0xf] %v378
                  %v380 = vld [vmem:[%s308 + $0x1f4] sm:$0xf]
                  %381 = vst [vmem:[%s309 + $0x8c] sm:$0xf] %v380
                  %v382 = vld [vmem:[%s308 + $0x1f8] sm:$0xf]
                  %383 = vst [vmem:[%s309 + $0x90] sm:$0xf] %v382
                  %v384 = vld [vmem:[%s308 + $0x1fc] sm:$0xf]
                  %385 = vst [vmem:[%s309 + $0x94] sm:$0xf] %v384
                  %v386 = vld [vmem:[%s308 + $0x200] sm:$0xf]
                  %387 = vst [vmem:[%s309 + $0x98] sm:$0xf] %v386
                  %v388 = vld [vmem:[%s308 + $0x204] sm:$0xf]
                  %389 = vst [vmem:[%s309 + $0x9c] sm:$0xf] %v388
                  %v390 = vld [vmem:[%s308 + $0x208] sm:$0xf]
                  %391 = vst [vmem:[%s309 + $0xa0] sm:$0xf] %v390
                  %v392 = vld [vmem:[%s308 + $0x20c] sm:$0xf]
                  %393 = vst [vmem:[%s309 + $0xa4] sm:$0xf] %v392
                  %v394 = vld [vmem:[%s308 + $0x210] sm:$0xf]
                  %395 = vst [vmem:[%s309 + $0xa8] sm:$0xf] %v394
                  %v396 = vld [vmem:[%s308 + $0x214] sm:$0xf]
                  %397 = vst [vmem:[%s309 + $0xac] sm:$0xf] %v396
                  %v398 = vld [vmem:[%s308 + $0x218] sm:$0xf]
                  %399 = vst [vmem:[%s309 + $0xb0] sm:$0xf] %v398
                  %v400 = vld [vmem:[%s308 + $0x21c] sm:$0xf]
                  %401 = vst [vmem:[%s309 + $0xb4] sm:$0xf] %v400
                  %v402 = vld [vmem:[%s308 + $0x220] sm:$0xf]
                  %403 = vst [vmem:[%s309 + $0xb8] sm:$0xf] %v402
                  %v404 = vld [vmem:[%s308 + $0x224] sm:$0xf]
                  %405 = vst [vmem:[%s309 + $0xbc] sm:$0xf] %v404
                  %v406 = vld [vmem:[%s308 + $0x228] sm:$0xf]
                  %407 = vst [vmem:[%s309 + $0xc0] sm:$0xf] %v406
                  %v408 = vld [vmem:[%s308 + $0x22c] sm:$0xf]
                  %409 = vst [vmem:[%s309 + $0xc4] sm:$0xf] %v408
                  %v410 = vld [vmem:[%s308 + $0x230] sm:$0xf]
                  %411 = vst [vmem:[%s309 + $0xc8] sm:$0xf] %v410
                  %v412 = vld [vmem:[%s308 + $0x234] sm:$0xf]
                  %413 = vst [vmem:[%s309 + $0xcc] sm:$0xf] %v412
                  %v414 = vld [vmem:[%s308 + $0x238] sm:$0xf]
                  %415 = vst [vmem:[%s309 + $0xd0] sm:$0xf] %v414
                  %v416 = vld [vmem:[%s308 + $0x23c] sm:$0xf]
                  %417 = vst [vmem:[%s309 + $0xd4] sm:$0xf] %v416
                  %v418 = vld [vmem:[%s308 + $0x240] sm:$0xf]
                  %419 = vst [vmem:[%s309 + $0xd8] sm:$0xf] %v418
                  %v420 = vld [vmem:[%s308 + $0x244] sm:$0xf]
                  %421 = vst [vmem:[%s309 + $0xdc] sm:$0xf] %v420
                  %v422 = vld [vmem:[%s308 + $0x248] sm:$0xf]
                  %423 = vst [vmem:[%s309 + $0xe0] sm:$0xf] %v422
                  %v424 = vld [vmem:[%s308 + $0x24c] sm:$0xf]
                  %425 = vst [vmem:[%s309 + $0xe4] sm:$0xf] %v424
                  %v426 = vld [vmem:[%s308 + $0x250] sm:$0xf]
                  %427 = vst [vmem:[%s309 + $0xe8] sm:$0xf] %v426
                  %v428 = vld [vmem:[%s308 + $0x254] sm:$0xf]
                  %429 = vst [vmem:[%s309 + $0xec] sm:$0xf] %v428
                $region63: #{cnn20_forward.3} parent=50 // loop_footer
                  %s307 = sadd.s32 1, %s303
                $region64: #{cnn20_forward.3} parent=50 // loop_footer_branch
                  %302 = sbr.rel target = $region60
                $region65: #{cnn20_forward.3} parent=50 // loop_exit
                  _
              $region51: #{cnn20_forward.3} parent=35 // pred_fallthru
                _
            $region36: #{cnn20_forward.3} parent=31 // pred_fallthru
              _
            // Predicated region
            $region37: #{cnn20_forward.3} parent=31 // pred_check
              _
            $region38: #{cnn20_forward.3} parent=31 // pred_check_branch
              %161 = sbr.rel (0) target = $region40
            $region39: #{cnn20_forward.3} parent=31 // pred_region
              loop: start=0, step=1, limit=1
              $region41: #{cnn20_forward.3} parent=39 // loop_pre_header
                _
              $region42: #{cnn20_forward.3} parent=39 // loop_header
                %s164 = sphi 0, %s168
                %p165 = scmp.ge.s32.totalorder %s164, 1
                %s169 = sphi %s155, %s155
                %s170 = sphi %s150, %s150
              $region43: #{cnn20_forward.3} parent=39 // loop_header_branch
                %167 = sbr.rel (%p165) target = $region47
              $region44: #{cnn20_forward.3} parent=39 // loop_body
                %v171 = vld [vmem:[%s169] sm:$0xf]
                %172 = vst [vmem:[%s170] sm:$0xf] %v171
                %v173 = vld [vmem:[%s169 + $0x4] sm:$0xf]
                %174 = vst [vmem:[%s170 + $0x4] sm:$0xf] %v173
                %v175 = vld [vmem:[%s169 + $0x8] sm:$0xf]
                %176 = vst [vmem:[%s170 + $0x8] sm:$0xf] %v175
                %v177 = vld [vmem:[%s169 + $0xc] sm:$0xf]
                %178 = vst [vmem:[%s170 + $0xc] sm:$0xf] %v177
                %v179 = vld [vmem:[%s169 + $0x10] sm:$0xf]
                %180 = vst [vmem:[%s170 + $0x10] sm:$0xf] %v179
                %v181 = vld [vmem:[%s169 + $0x14] sm:$0xf]
                %182 = vst [vmem:[%s170 + $0x14] sm:$0xf] %v181
                %v183 = vld [vmem:[%s169 + $0x18] sm:$0xf]
                %184 = vst [vmem:[%s170 + $0x18] sm:$0xf] %v183
                %v185 = vld [vmem:[%s169 + $0x1c] sm:$0xf]
                %186 = vst [vmem:[%s170 + $0x1c] sm:$0xf] %v185
                %v187 = vld [vmem:[%s169 + $0x20] sm:$0xf]
                %188 = vst [vmem:[%s170 + $0x20] sm:$0xf] %v187
                %v189 = vld [vmem:[%s169 + $0x24] sm:$0xf]
                %190 = vst [vmem:[%s170 + $0x24] sm:$0xf] %v189
                %v191 = vld [vmem:[%s169 + $0x28] sm:$0xf]
                %192 = vst [vmem:[%s170 + $0x28] sm:$0xf] %v191
                %v193 = vld [vmem:[%s169 + $0x2c] sm:$0xf]
                %194 = vst [vmem:[%s170 + $0x2c] sm:$0xf] %v193
                %v195 = vld [vmem:[%s169 + $0x30] sm:$0xf]
                %196 = vst [vmem:[%s170 + $0x30] sm:$0xf] %v195
                %v197 = vld [vmem:[%s169 + $0x34] sm:$0xf]
                %198 = vst [vmem:[%s170 + $0x34] sm:$0xf] %v197
                %v199 = vld [vmem:[%s169 + $0x38] sm:$0xf]
                %200 = vst [vmem:[%s170 + $0x38] sm:$0xf] %v199
                %v201 = vld [vmem:[%s169 + $0x3c] sm:$0xf]
                %202 = vst [vmem:[%s170 + $0x3c] sm:$0xf] %v201
                %v203 = vld [vmem:[%s169 + $0x40] sm:$0xf]
                %204 = vst [vmem:[%s170 + $0x40] sm:$0xf] %v203
                %v205 = vld [vmem:[%s169 + $0x44] sm:$0xf]
                %206 = vst [vmem:[%s170 + $0x44] sm:$0xf] %v205
                %v207 = vld [vmem:[%s169 + $0x48] sm:$0xf]
                %208 = vst [vmem:[%s170 + $0x48] sm:$0xf] %v207
                %v209 = vld [vmem:[%s169 + $0x4c] sm:$0xf]
                %210 = vst [vmem:[%s170 + $0x4c] sm:$0xf] %v209
                %v211 = vld [vmem:[%s169 + $0x50] sm:$0xf]
                %212 = vst [vmem:[%s170 + $0x50] sm:$0xf] %v211
                %v213 = vld [vmem:[%s169 + $0x54] sm:$0xf]
                %214 = vst [vmem:[%s170 + $0x54] sm:$0xf] %v213
                %v215 = vld [vmem:[%s169 + $0x58] sm:$0xf]
                %216 = vst [vmem:[%s170 + $0x58] sm:$0xf] %v215
                %v217 = vld [vmem:[%s169 + $0x5c] sm:$0xf]
                %218 = vst [vmem:[%s170 + $0x5c] sm:$0xf] %v217
                %v219 = vld [vmem:[%s169 + $0x60] sm:$0xf]
                %220 = vst [vmem:[%s170 + $0x60] sm:$0xf] %v219
                %v221 = vld [vmem:[%s169 + $0x64] sm:$0xf]
                %222 = vst [vmem:[%s170 + $0x64] sm:$0xf] %v221
                %v223 = vld [vmem:[%s169 + $0x68] sm:$0xf]
                %224 = vst [vmem:[%s170 + $0x68] sm:$0xf] %v223
                %v225 = vld [vmem:[%s169 + $0x6c] sm:$0xf]
                %226 = vst [vmem:[%s170 + $0x6c] sm:$0xf] %v225
                %v227 = vld [vmem:[%s169 + $0x70] sm:$0xf]
                %228 = vst [vmem:[%s170 + $0x70] sm:$0xf] %v227
                %v229 = vld [vmem:[%s169 + $0x74] sm:$0xf]
                %230 = vst [vmem:[%s170 + $0x74] sm:$0xf] %v229
                %v231 = vld [vmem:[%s169 + $0x1e0] sm:$0xf]
                %232 = vst [vmem:[%s170 + $0x78] sm:$0xf] %v231
                %v233 = vld [vmem:[%s169 + $0x1e4] sm:$0xf]
                %234 = vst [vmem:[%s170 + $0x7c] sm:$0xf] %v233
                %v235 = vld [vmem:[%s169 + $0x1e8] sm:$0xf]
                %236 = vst [vmem:[%s170 + $0x80] sm:$0xf] %v235
                %v237 = vld [vmem:[%s169 + $0x1ec] sm:$0xf]
                %238 = vst [vmem:[%s170 + $0x84] sm:$0xf] %v237
                %v239 = vld [vmem:[%s169 + $0x1f0] sm:$0xf]
                %240 = vst [vmem:[%s170 + $0x88] sm:$0xf] %v239
                %v241 = vld [vmem:[%s169 + $0x1f4] sm:$0xf]
                %242 = vst [vmem:[%s170 + $0x8c] sm:$0xf] %v241
                %v243 = vld [vmem:[%s169 + $0x1f8] sm:$0xf]
                %244 = vst [vmem:[%s170 + $0x90] sm:$0xf] %v243
                %v245 = vld [vmem:[%s169 + $0x1fc] sm:$0xf]
                %246 = vst [vmem:[%s170 + $0x94] sm:$0xf] %v245
                %v247 = vld [vmem:[%s169 + $0x200] sm:$0xf]
                %248 = vst [vmem:[%s170 + $0x98] sm:$0xf] %v247
                %v249 = vld [vmem:[%s169 + $0x204] sm:$0xf]
                %250 = vst [vmem:[%s170 + $0x9c] sm:$0xf] %v249
                %v251 = vld [vmem:[%s169 + $0x208] sm:$0xf]
                %252 = vst [vmem:[%s170 + $0xa0] sm:$0xf] %v251
                %v253 = vld [vmem:[%s169 + $0x20c] sm:$0xf]
                %254 = vst [vmem:[%s170 + $0xa4] sm:$0xf] %v253
                %v255 = vld [vmem:[%s169 + $0x210] sm:$0xf]
                %256 = vst [vmem:[%s170 + $0xa8] sm:$0xf] %v255
                %v257 = vld [vmem:[%s169 + $0x214] sm:$0xf]
                %258 = vst [vmem:[%s170 + $0xac] sm:$0xf] %v257
                %v259 = vld [vmem:[%s169 + $0x218] sm:$0xf]
                %260 = vst [vmem:[%s170 + $0xb0] sm:$0xf] %v259
                %v261 = vld [vmem:[%s169 + $0x21c] sm:$0xf]
                %262 = vst [vmem:[%s170 + $0xb4] sm:$0xf] %v261
                %v263 = vld [vmem:[%s169 + $0x220] sm:$0xf]
                %264 = vst [vmem:[%s170 + $0xb8] sm:$0xf] %v263
                %v265 = vld [vmem:[%s169 + $0x224] sm:$0xf]
                %266 = vst [vmem:[%s170 + $0xbc] sm:$0xf] %v265
                %v267 = vld [vmem:[%s169 + $0x228] sm:$0xf]
                %268 = vst [vmem:[%s170 + $0xc0] sm:$0xf] %v267
                %v269 = vld [vmem:[%s169 + $0x22c] sm:$0xf]
                %270 = vst [vmem:[%s170 + $0xc4] sm:$0xf] %v269
                %v271 = vld [vmem:[%s169 + $0x230] sm:$0xf]
                %272 = vst [vmem:[%s170 + $0xc8] sm:$0xf] %v271
                %v273 = vld [vmem:[%s169 + $0x234] sm:$0xf]
                %274 = vst [vmem:[%s170 + $0xcc] sm:$0xf] %v273
                %v275 = vld [vmem:[%s169 + $0x238] sm:$0xf]
                %276 = vst [vmem:[%s170 + $0xd0] sm:$0xf] %v275
                %v277 = vld [vmem:[%s169 + $0x23c] sm:$0xf]
                %278 = vst [vmem:[%s170 + $0xd4] sm:$0xf] %v277
                %v279 = vld [vmem:[%s169 + $0x240] sm:$0xf]
                %280 = vst [vmem:[%s170 + $0xd8] sm:$0xf] %v279
                %v281 = vld [vmem:[%s169 + $0x244] sm:$0xf]
                %282 = vst [vmem:[%s170 + $0xdc] sm:$0xf] %v281
                %v283 = vld [vmem:[%s169 + $0x248] sm:$0xf]
                %284 = vst [vmem:[%s170 + $0xe0] sm:$0xf] %v283
                %v285 = vld [vmem:[%s169 + $0x24c] sm:$0xf]
                %286 = vst [vmem:[%s170 + $0xe4] sm:$0xf] %v285
                %v287 = vld [vmem:[%s169 + $0x250] sm:$0xf]
                %288 = vst [vmem:[%s170 + $0xe8] sm:$0xf] %v287
                %v289 = vld [vmem:[%s169 + $0x254] sm:$0xf]
                %290 = vst [vmem:[%s170 + $0xec] sm:$0xf] %v289
              $region45: #{cnn20_forward.3} parent=39 // loop_footer
                %s168 = sadd.s32 1, %s164
              $region46: #{cnn20_forward.3} parent=39 // loop_footer_branch
                %163 = sbr.rel target = $region42
              $region47: #{cnn20_forward.3} parent=39 // loop_exit
                _
            $region40: #{cnn20_forward.3} parent=31 // pred_fallthru
              _
          $region32: #{cnn20_forward.3} parent=27 // pred_fallthru
            _
          %430 = vnop
        $region28: #{cnn20_forward.3} parent=23 // pred_fallthru
          _
      $region24: #{cnn20_forward.3} parent=5 // pred_fallthru
        _
      %p431 = scmp.le.s32.totalorder 1, %s9
      %p432 = scmp.lt.s32.totalorder %s9, 9
      %p433 = pnand %p431, %p432
      %p434 = pneg %p433
      // Predicated region
      $region66: #{cnn20_forward.3} parent=5 // pred_check
        _
      $region67: #{cnn20_forward.3} parent=5 // pred_check_branch
        %436 = sbr.rel (%p433) target = $region69
      $region68: #{cnn20_forward.3} parent=5 // pred_region
        %s437 = ssub.s32 %s9, 1
        %s438 = sand.u32 %s36, 1
        %s439 = sand.u32 %s36, 1
        %s440 = smul.addr %s439, 240
        %s441 = scalar_lea.vmem [#allocation2], %s440
        // Predicated region
        $region70: #{cnn20_forward.3} parent=68 // pred_check
          %p442 = pneg %p49
        $region71: #{cnn20_forward.3} parent=68 // pred_check_branch
          %444 = sbr.rel (%p442) target = $region73
        $region72: #{cnn20_forward.3} parent=68 // pred_region
          _
        $region73: #{cnn20_forward.3} parent=68 // pred_fallthru
          _
        %s445 = sand.u32 %s36, 1
        %s446 = sand.u32 %s36, 1
        %s447 = smul.addr %s446, 240
        %s448 = scalar_lea.vmem [#allocation2], %s447
        %p449 = pneg %p49
        %p450 = pneg %p46
        %p451 = pneg %p70
        %p452 = pneg %p67
        %p453 = pneg %p91
        %p454 = pneg %p88
        %p455 = pneg %p119
        %p456 = pneg %p116
        %s457 = smul.u32 30, %s19
        %p458 = scmp.lt.s32.totalorder %s18, 1
        %s459 = scalar_select %p458, %s18, 1
        %p460 = scmp.lt.s32.totalorder %s457, 119
        %s461 = scalar_select %p460, %s457, 119
        %s462 = smul.addr %s459, 120
        %s463 = sadd.s32 %s461, %s462
        %s464 = smul.addr %s463, 4
        %s465 = scalar_lea.vmem %s3, %s464
        %s466 = smul.u32 30, %s19
        %s467 = smul.u32 30, %s19
        %p468 = scmp.lt.s32.totalorder %s18, 1
        %s469 = scalar_select %p468, %s18, 1
        %p470 = scmp.lt.s32.totalorder %s467, 119
        %s471 = scalar_select %p470, %s467, 119
        %s472 = smul.addr %s469, 120
        %s473 = sadd.s32 %s471, %s472
        %s474 = smul.addr %s473, 4
        %s475 = scalar_lea.vmem %s3, %s474
        %s476 = smul.u32 30, %s19
        %v478 = vld [vmem:[%s1] sm:$0xf]
        %v479 = vld [vmem:[%s1 + $0x4] sm:$0xf]
        %v480 = vld [vmem:[%s1 + $0x8] sm:$0xf]
        %v481 = vld [vmem:[%s1 + $0xc] sm:$0xf]
        %v482 = vld [vmem:[%s1 + $0x10] sm:$0xf]
        %v483 = vld [vmem:[%s1 + $0x14] sm:$0xf]
        %v484 = vld [vmem:[%s1 + $0x18] sm:$0xf]
        %v485 = vld [vmem:[%s1 + $0x1c] sm:$0xf]
        %v486 = vld [vmem:[%s1 + $0x20] sm:$0xf]
        %v487 = vld [vmem:[%s1 + $0x24] sm:$0xf]
        %v488 = vld [vmem:[%s1 + $0x28] sm:$0xf]
        %v489 = vld [vmem:[%s1 + $0x2c] sm:$0xf]
        %v490 = vld [vmem:[%s1 + $0x30] sm:$0xf]
        %v491 = vld [vmem:[%s1 + $0x34] sm:$0xf]
        %v492 = vld [vmem:[%s1 + $0x38] sm:$0xf]
        %v493 = vld [vmem:[%s1 + $0x3c] sm:$0xf]
        %v494 = vld [vmem:[%s441] sm:$0xf]
        %v495 = vld [vmem:[%s441 + $0x4] sm:$0xf]
        %v496 = vld [vmem:[%s441 + $0x8] sm:$0xf]
        %v497 = vld [vmem:[%s441 + $0xc] sm:$0xf]
        %v498 = vld [vmem:[%s441 + $0x10] sm:$0xf]
        %v499 = vld [vmem:[%s441 + $0x14] sm:$0xf]
        %v500 = vld [vmem:[%s441 + $0x18] sm:$0xf]
        %v501 = vld [vmem:[%s441 + $0x1c] sm:$0xf]
        %v502 = vld [vmem:[%s441 + $0x20] sm:$0xf]
        %v503 = vld [vmem:[%s441 + $0x24] sm:$0xf]
        %v504 = vld [vmem:[%s441 + $0x28] sm:$0xf]
        %v505 = vld [vmem:[%s441 + $0x2c] sm:$0xf]
        %v506 = vld [vmem:[%s441 + $0x30] sm:$0xf]
        %v507 = vld [vmem:[%s441 + $0x34] sm:$0xf]
        %v508 = vld [vmem:[%s441 + $0x38] sm:$0xf]
        %v509 = vld [vmem:[%s441 + $0x3c] sm:$0xf]
        %v510 = vld [vmem:[%s441 + $0x40] sm:$0xf]
        %v511 = vld [vmem:[%s441 + $0x44] sm:$0xf]
        %v512 = vld [vmem:[%s441 + $0x48] sm:$0xf]
        %v513 = vld [vmem:[%s441 + $0x4c] sm:$0xf]
        %v514 = vld [vmem:[%s441 + $0x50] sm:$0xf]
        %v515 = vld [vmem:[%s441 + $0x54] sm:$0xf]
        %v516 = vld [vmem:[%s441 + $0x58] sm:$0xf]
        %v517 = vld [vmem:[%s441 + $0x5c] sm:$0xf]
        %v518 = vld [vmem:[%s441 + $0x60] sm:$0xf]
        %v519 = vld [vmem:[%s441 + $0x64] sm:$0xf]
        %v520 = vld [vmem:[%s441 + $0x68] sm:$0xf]
        %v521 = vld [vmem:[%s441 + $0x6c] sm:$0xf]
        %v522 = vld [vmem:[%s441 + $0x70] sm:$0xf]
        %v523 = vld [vmem:[%s441 + $0x74] sm:$0xf]
        %v554 = vunpack.c.l.b16 %v494
        %v555 = vunpack.c.l.b16 %v495
        %v556 = vunpack.c.l.b16 %v496
        %v557 = vunpack.c.l.b16 %v497
        %v558 = vunpack.c.l.b16 %v498
        %v559 = vunpack.c.l.b16 %v499
        %v560 = vunpack.c.l.b16 %v500
        %v561 = vunpack.c.l.b16 %v501
        %v562 = vunpack.c.l.b16 %v502
        %v563 = vunpack.c.l.b16 %v503
        %v564 = vunpack.c.l.b16 %v504
        %v565 = vunpack.c.l.b16 %v505
        %v566 = vunpack.c.l.b16 %v506
        %v567 = vunpack.c.l.b16 %v507
        %v568 = vunpack.c.l.b16 %v508
        %v569 = vunpack.c.l.b16 %v509
        %v570 = vunpack.c.l.b16 %v510
        %v571 = vunpack.c.l.b16 %v511
        %v572 = vunpack.c.l.b16 %v512
        %v573 = vunpack.c.l.b16 %v513
        %v574 = vunpack.c.l.b16 %v514
        %v575 = vunpack.c.l.b16 %v515
        %v576 = vunpack.c.l.b16 %v516
        %v577 = vunpack.c.l.b16 %v517
        %v578 = vunpack.c.l.b16 %v518
        %v579 = vunpack.c.l.b16 %v519
        %v580 = vunpack.c.l.b16 %v520
        %v581 = vunpack.c.l.b16 %v521
        %v582 = vunpack.c.l.b16 %v522
        %v583 = vunpack.c.l.b16 %v523
        %v584 = vpack.c.b16 %v555, %v554
        %v585 = vpack.c.b16 %v557, %v556
        %v586 = vpack.c.b16 %v559, %v558
        %v587 = vpack.c.b16 %v561, %v560
        %v588 = vpack.c.b16 %v563, %v562
        %v589 = vpack.c.b16 %v565, %v564
        %v590 = vpack.c.b16 %v567, %v566
        %v591 = vpack.c.b16 %v569, %v568
        %v592 = vpack.c.b16 %v571, %v570
        %v593 = vpack.c.b16 %v573, %v572
        %v594 = vpack.c.b16 %v575, %v574
        %v595 = vpack.c.b16 %v577, %v576
        %v596 = vpack.c.b16 %v579, %v578
        %v597 = vpack.c.b16 %v581, %v580
        %v598 = vpack.c.b16 %v583, %v582
        %v630 = vunpack.c.l.b16 %v478
        %v631 = vunpack.c.l.b16 %v479
        %v632 = vunpack.c.l.b16 %v480
        %v633 = vunpack.c.l.b16 %v481
        %v634 = vunpack.c.l.b16 %v482
        %v635 = vunpack.c.l.b16 %v483
        %v636 = vunpack.c.l.b16 %v484
        %v637 = vunpack.c.l.b16 %v485
        %v638 = vunpack.c.l.b16 %v486
        %v639 = vunpack.c.l.b16 %v487
        %v640 = vunpack.c.l.b16 %v488
        %v641 = vunpack.c.l.b16 %v489
        %v642 = vunpack.c.l.b16 %v490
        %v643 = vunpack.c.l.b16 %v491
        %v644 = vunpack.c.l.b16 %v492
        %v645 = vunpack.c.l.b16 %v493
        %v646 = vpack.c.b16 %v631, %v630
        %v647 = vpack.c.b16 %v633, %v632
        %v648 = vpack.c.b16 %v635, %v634
        %v649 = vpack.c.b16 %v637, %v636
        %v650 = vpack.c.b16 %v639, %v638
        %v651 = vpack.c.b16 %v641, %v640
        %v652 = vpack.c.b16 %v643, %v642
        %v653 = vpack.c.b16 %v645, %v644
        %662 = vmatprep.subr.bf16.mxu0 0
        %663 = vmatpush1.bf16.msra.mxu0 %v646
        %664 = vmatprep.subr.bf16.mxu0 0
        %665 = vmatpush1.bf16.msra.mxu0 %v647
        %666 = vmatprep.subr.bf16.mxu0 0
        %667 = vmatpush1.bf16.msra.mxu0 %v648
        %668 = vmatprep.subr.bf16.mxu0 0
        %669 = vmatpush1.bf16.msra.mxu0 %v649
        %670 = vmatprep.subr.bf16.mxu0 0
        %671 = vmatpush1.bf16.msra.mxu0 %v650
        %672 = vmatprep.subr.bf16.mxu0 0
        %673 = vmatpush1.bf16.msra.mxu0 %v651
        %674 = vmatprep.subr.bf16.mxu0 0
        %675 = vmatpush1.bf16.msra.mxu0 %v652
        %676 = vmatprep.subr.bf16.mxu0 0
        %677 = vmatpush1.bf16.msra.mxu0 %v653
        %678 = vmatprep.subr.bf16.mxu0 0
        %679 = vmatpush1.bf16.msra.mxu0 0
        %680 = vmatprep.subr.bf16.mxu0 0
        %681 = vmatpush1.bf16.msra.mxu0 0
        %682 = vmatprep.subr.bf16.mxu0 0
        %683 = vmatpush1.bf16.msra.mxu0 0
        %684 = vmatprep.subr.bf16.mxu0 0
        %685 = vmatpush1.bf16.msra.mxu0 0
        %686 = vmatprep.subr.bf16.mxu0 0
        %687 = vmatpush1.bf16.msra.mxu0 0
        %688 = vmatprep.subr.bf16.mxu0 0
        %689 = vmatpush1.bf16.msra.mxu0 0
        %690 = vmatprep.subr.bf16.mxu0 0
        %691 = vmatpush1.bf16.msra.mxu0 0
        %692 = vmatprep.subr.bf16.mxu0 0
        %693 = vmatpush1.bf16.msra.mxu0 0
        %694 = vmatprep.mubr.bf16.mxu0 0
        %695 = vmatmul.mubr.bf16.gmra.mrb[0].mxu0 %v584
        %v696 = vpop.f32.mrb[0].mxu0
        %v697 = vadd.f32 0.0, %v696
        %v698 = vpop.f32.mrb[0].mxu0
        %v699 = vpop.f32.mrb[0].mxu0
        %v700 = vadd.f32 0.0, %v699
        %v701 = vpop.f32.mrb[0].mxu0
        %702 = vmatprep.mubr.bf16.mxu0 0
        %703 = vmatmul.mubr.bf16.gmra.mrb[0].mxu0 %v585
        %v704 = vpop.f32.mrb[0].mxu0
        %v705 = vadd.f32 0.0, %v704
        %v706 = vpop.f32.mrb[0].mxu0
        %v707 = vpop.f32.mrb[0].mxu0
        %v708 = vadd.f32 0.0, %v707
        %v709 = vpop.f32.mrb[0].mxu0
        %710 = vmatprep.mubr.bf16.mxu0 0
        %711 = vmatmul.mubr.bf16.gmra.mrb[0].mxu0 %v586
        %v712 = vpop.f32.mrb[0].mxu0
        %v713 = vadd.f32 0.0, %v712
        %v714 = vpop.f32.mrb[0].mxu0
        %v715 = vpop.f32.mrb[0].mxu0
        %v716 = vadd.f32 0.0, %v715
        %v717 = vpop.f32.mrb[0].mxu0
        %718 = vmatprep.mubr.bf16.mxu0 0
        %719 = vmatmul.mubr.bf16.gmra.mrb[0].mxu0 %v587
        %v720 = vpop.f32.mrb[0].mxu0
        %v721 = vadd.f32 0.0, %v720
        %v722 = vpop.f32.mrb[0].mxu0
        %v723 = vpop.f32.mrb[0].mxu0
        %v724 = vadd.f32 0.0, %v723
        %v725 = vpop.f32.mrb[0].mxu0
        %726 = vmatprep.mubr.bf16.mxu0 0
        %727 = vmatmul.mubr.bf16.gmra.mrb[0].mxu0 %v588
        %v728 = vpop.f32.mrb[0].mxu0
        %v729 = vadd.f32 0.0, %v728
        %v730 = vpop.f32.mrb[0].mxu0
        %v731 = vpop.f32.mrb[0].mxu0
        %v732 = vadd.f32 0.0, %v731
        %v733 = vpop.f32.mrb[0].mxu0
        %734 = vmatprep.mubr.bf16.mxu0 0
        %735 = vmatmul.mubr.bf16.gmra.mrb[0].mxu0 %v589
        %v736 = vpop.f32.mrb[0].mxu0
        %v737 = vadd.f32 0.0, %v736
        %v738 = vpop.f32.mrb[0].mxu0
        %v739 = vpop.f32.mrb[0].mxu0
        %v740 = vadd.f32 0.0, %v739
        %v741 = vpop.f32.mrb[0].mxu0
        %742 = vmatprep.mubr.bf16.mxu0 0
        %743 = vmatmul.mubr.bf16.gmra.mrb[0].mxu0 %v590
        %v744 = vpop.f32.mrb[0].mxu0
        %v745 = vadd.f32 0.0, %v744
        %v746 = vpop.f32.mrb[0].mxu0
        %v747 = vpop.f32.mrb[0].mxu0
        %v748 = vadd.f32 0.0, %v747
        %v749 = vpop.f32.mrb[0].mxu0
        %750 = vmatprep.mubr.bf16.mxu0 0
        %751 = vmatmul.mubr.bf16.gmra.mrb[0].mxu0 %v591
        %v752 = vpop.f32.mrb[0].mxu0
        %v753 = vadd.f32 0.0, %v752
        %v754 = vpop.f32.mrb[0].mxu0
        %v755 = vpop.f32.mrb[0].mxu0
        %v756 = vadd.f32 0.0, %v755
        %v757 = vpop.f32.mrb[0].mxu0
        %758 = vmatprep.mubr.bf16.mxu0 0
        %759 = vmatmul.mubr.bf16.gmra.mrb[0].mxu0 %v592
        %v760 = vpop.f32.mrb[0].mxu0
        %v761 = vadd.f32 0.0, %v760
        %v762 = vpop.f32.mrb[0].mxu0
        %v763 = vpop.f32.mrb[0].mxu0
        %v764 = vadd.f32 0.0, %v763
        %v765 = vpop.f32.mrb[0].mxu0
        %766 = vmatprep.mubr.bf16.mxu0 0
        %767 = vmatmul.mubr.bf16.gmra.mrb[0].mxu0 %v593
        %v768 = vpop.f32.mrb[0].mxu0
        %v769 = vadd.f32 0.0, %v768
        %v770 = vpop.f32.mrb[0].mxu0
        %v771 = vpop.f32.mrb[0].mxu0
        %v772 = vadd.f32 0.0, %v771
        %v773 = vpop.f32.mrb[0].mxu0
        %774 = vmatprep.mubr.bf16.mxu0 0
        %775 = vmatmul.mubr.bf16.gmra.mrb[0].mxu0 %v594
        %v776 = vpop.f32.mrb[0].mxu0
        %v777 = vadd.f32 0.0, %v776
        %v778 = vpop.f32.mrb[0].mxu0
        %v779 = vpop.f32.mrb[0].mxu0
        %v780 = vadd.f32 0.0, %v779
        %v781 = vpop.f32.mrb[0].mxu0
        %782 = vmatprep.mubr.bf16.mxu0 0
        %783 = vmatmul.mubr.bf16.gmra.mrb[0].mxu0 %v595
        %v784 = vpop.f32.mrb[0].mxu0
        %v785 = vadd.f32 0.0, %v784
        %v786 = vpop.f32.mrb[0].mxu0
        %v787 = vpop.f32.mrb[0].mxu0
        %v788 = vadd.f32 0.0, %v787
        %v789 = vpop.f32.mrb[0].mxu0
        %790 = vmatprep.mubr.bf16.mxu0 0
        %791 = vmatmul.mubr.bf16.gmra.mrb[0].mxu0 %v596
        %v792 = vpop.f32.mrb[0].mxu0
        %v793 = vadd.f32 0.0, %v792
        %v794 = vpop.f32.mrb[0].mxu0
        %v795 = vpop.f32.mrb[0].mxu0
        %v796 = vadd.f32 0.0, %v795
        %v797 = vpop.f32.mrb[0].mxu0
        %798 = vmatprep.mubr.bf16.mxu0 0
        %799 = vmatmul.mubr.bf16.gmra.mrb[0].mxu0 %v597
        %v800 = vpop.f32.mrb[0].mxu0
        %v801 = vadd.f32 0.0, %v800
        %v802 = vpop.f32.mrb[0].mxu0
        %v803 = vpop.f32.mrb[0].mxu0
        %v804 = vadd.f32 0.0, %v803
        %v805 = vpop.f32.mrb[0].mxu0
        %806 = vmatprep.mubr.bf16.mxu0 0
        %807 = vmatmul.mubr.bf16.gmra.mrb[0].mxu0 %v598
        %v808 = vpop.f32.mrb[0].mxu0
        %v809 = vadd.f32 0.0, %v808
        %v810 = vpop.f32.mrb[0].mxu0
        %v811 = vpop.f32.mrb[0].mxu0
        %v812 = vadd.f32 0.0, %v811
        %v813 = vpop.f32.mrb[0].mxu0
        %814 = vdwg.mxu0
        %s815 = scalar_lea.vmem %s441, 120 [#allocation2]
        %v816 = vld [vmem:[%s815] sm:$0xf]
        %v817 = vld [vmem:[%s815 + $0x4] sm:$0xf]
        %v818 = vld [vmem:[%s815 + $0x8] sm:$0xf]
        %v819 = vld [vmem:[%s815 + $0xc] sm:$0xf]
        %v820 = vld [vmem:[%s815 + $0x10] sm:$0xf]
        %v821 = vld [vmem:[%s815 + $0x14] sm:$0xf]
        %v822 = vld [vmem:[%s815 + $0x18] sm:$0xf]
        %v823 = vld [vmem:[%s815 + $0x1c] sm:$0xf]
        %v824 = vld [vmem:[%s815 + $0x20] sm:$0xf]
        %v825 = vld [vmem:[%s815 + $0x24] sm:$0xf]
        %v826 = vld [vmem:[%s815 + $0x28] sm:$0xf]
        %v827 = vld [vmem:[%s815 + $0x2c] sm:$0xf]
        %v828 = vld [vmem:[%s815 + $0x30] sm:$0xf]
        %v829 = vld [vmem:[%s815 + $0x34] sm:$0xf]
        %v830 = vld [vmem:[%s815 + $0x38] sm:$0xf]
        %v831 = vld [vmem:[%s815 + $0x3c] sm:$0xf]
        %v832 = vld [vmem:[%s815 + $0x40] sm:$0xf]
        %v833 = vld [vmem:[%s815 + $0x44] sm:$0xf]
        %v834 = vld [vmem:[%s815 + $0x48] sm:$0xf]
        %v835 = vld [vmem:[%s815 + $0x4c] sm:$0xf]
        %v836 = vld [vmem:[%s815 + $0x50] sm:$0xf]
        %v837 = vld [vmem:[%s815 + $0x54] sm:$0xf]
        %v838 = vld [vmem:[%s815 + $0x58] sm:$0xf]
        %v839 = vld [vmem:[%s815 + $0x5c] sm:$0xf]
        %v840 = vld [vmem:[%s815 + $0x60] sm:$0xf]
        %v841 = vld [vmem:[%s815 + $0x64] sm:$0xf]
        %v842 = vld [vmem:[%s815 + $0x68] sm:$0xf]
        %v843 = vld [vmem:[%s815 + $0x6c] sm:$0xf]
        %v844 = vld [vmem:[%s815 + $0x70] sm:$0xf]
        %v845 = vld [vmem:[%s815 + $0x74] sm:$0xf]
        %v876 = vunpack.c.l.b16 %v816
        %v877 = vunpack.c.l.b16 %v817
        %v878 = vunpack.c.l.b16 %v818
        %v879 = vunpack.c.l.b16 %v819
        %v880 = vunpack.c.l.b16 %v820
        %v881 = vunpack.c.l.b16 %v821
        %v882 = vunpack.c.l.b16 %v822
        %v883 = vunpack.c.l.b16 %v823
        %v884 = vunpack.c.l.b16 %v824
        %v885 = vunpack.c.l.b16 %v825
        %v886 = vunpack.c.l.b16 %v826
        %v887 = vunpack.c.l.b16 %v827
        %v888 = vunpack.c.l.b16 %v828
        %v889 = vunpack.c.l.b16 %v829
        %v890 = vunpack.c.l.b16 %v830
        %v891 = vunpack.c.l.b16 %v831
        %v892 = vunpack.c.l.b16 %v832
        %v893 = vunpack.c.l.b16 %v833
        %v894 = vunpack.c.l.b16 %v834
        %v895 = vunpack.c.l.b16 %v835
        %v896 = vunpack.c.l.b16 %v836
        %v897 = vunpack.c.l.b16 %v837
        %v898 = vunpack.c.l.b16 %v838
        %v899 = vunpack.c.l.b16 %v839
        %v900 = vunpack.c.l.b16 %v840
        %v901 = vunpack.c.l.b16 %v841
        %v902 = vunpack.c.l.b16 %v842
        %v903 = vunpack.c.l.b16 %v843
        %v904 = vunpack.c.l.b16 %v844
        %v905 = vunpack.c.l.b16 %v845
        %v906 = vpack.c.b16 %v877, %v876
        %v907 = vpack.c.b16 %v879, %v878
        %v908 = vpack.c.b16 %v881, %v880
        %v909 = vpack.c.b16 %v883, %v882
        %v910 = vpack.c.b16 %v885, %v884
        %v911 = vpack.c.b16 %v887, %v886
        %v912 = vpack.c.b16 %v889, %v888
        %v913 = vpack.c.b16 %v891, %v890
        %v914 = vpack.c.b16 %v893, %v892
        %v915 = vpack.c.b16 %v895, %v894
        %v916 = vpack.c.b16 %v897, %v896
        %v917 = vpack.c.b16 %v899, %v898
        %v918 = vpack.c.b16 %v901, %v900
        %v919 = vpack.c.b16 %v903, %v902
        %v920 = vpack.c.b16 %v905, %v904
        %936 = vmatprep.subr.bf16.mxu0 0
        %937 = vmatpush1.bf16.msra.mxu0 %v646
        %938 = vmatprep.subr.bf16.mxu0 0
        %939 = vmatpush1.bf16.msra.mxu0 %v647
        %940 = vmatprep.subr.bf16.mxu0 0
        %941 = vmatpush1.bf16.msra.mxu0 %v648
        %942 = vmatprep.subr.bf16.mxu0 0
        %943 = vmatpush1.bf16.msra.mxu0 %v649
        %944 = vmatprep.subr.bf16.mxu0 0
        %945 = vmatpush1.bf16.msra.mxu0 %v650
        %946 = vmatprep.subr.bf16.mxu0 0
        %947 = vmatpush1.bf16.msra.mxu0 %v651
        %948 = vmatprep.subr.bf16.mxu0 0
        %949 = vmatpush1.bf16.msra.mxu0 %v652
        %950 = vmatprep.subr.bf16.mxu0 0
        %951 = vmatpush1.bf16.msra.mxu0 %v653
        %952 = vmatprep.subr.bf16.mxu0 0
        %953 = vmatpush1.bf16.msra.mxu0 0
        %954 = vmatprep.subr.bf16.mxu0 0
        %955 = vmatpush1.bf16.msra.mxu0 0
        %956 = vmatprep.subr.bf16.mxu0 0
        %957 = vmatpush1.bf16.msra.mxu0 0
        %958 = vmatprep.subr.bf16.mxu0 0
        %959 = vmatpush1.bf16.msra.mxu0 0
        %960 = vmatprep.subr.bf16.mxu0 0
        %961 = vmatpush1.bf16.msra.mxu0 0
        %962 = vmatprep.subr.bf16.mxu0 0
        %963 = vmatpush1.bf16.msra.mxu0 0
        %964 = vmatprep.subr.bf16.mxu0 0
        %965 = vmatpush1.bf16.msra.mxu0 0
        %966 = vmatprep.subr.bf16.mxu0 0
        %967 = vmatpush1.bf16.msra.mxu0 0
        %968 = vmatprep.mubr.bf16.mxu0 0
        %969 = vmatmul.mubr.bf16.gmra.mrb[0].mxu0 %v906
        %v970 = vpop.f32.mrb[0].mxu0
        %v971 = vadd.f32 0.0, %v970
        %v972 = vpop.f32.mrb[0].mxu0
        %v973 = vpop.f32.mrb[0].mxu0
        %v974 = vadd.f32 0.0, %v973
        %v975 = vpop.f32.mrb[0].mxu0
        %976 = vmatprep.mubr.bf16.mxu0 0
        %977 = vmatmul.mubr.bf16.gmra.mrb[0].mxu0 %v907
        %v978 = vpop.f32.mrb[0].mxu0
        %v979 = vadd.f32 0.0, %v978
        %v980 = vpop.f32.mrb[0].mxu0
        %v981 = vpop.f32.mrb[0].mxu0
        %v982 = vadd.f32 0.0, %v981
        %v983 = vpop.f32.mrb[0].mxu0
        %984 = vmatprep.mubr.bf16.mxu0 0
        %985 = vmatmul.mubr.bf16.gmra.mrb[0].mxu0 %v908
        %v986 = vpop.f32.mrb[0].mxu0
        %v987 = vadd.f32 0.0, %v986
        %v988 = vpop.f32.mrb[0].mxu0
        %v989 = vpop.f32.mrb[0].mxu0
        %v990 = vadd.f32 0.0, %v989
        %v991 = vpop.f32.mrb[0].mxu0
        %992 = vmatprep.mubr.bf16.mxu0 0
        %993 = vmatmul.mubr.bf16.gmra.mrb[0].mxu0 %v909
        %v994 = vpop.f32.mrb[0].mxu0
        %v995 = vadd.f32 0.0, %v994
        %v996 = vpop.f32.mrb[0].mxu0
        %v997 = vpop.f32.mrb[0].mxu0
        %v998 = vadd.f32 0.0, %v997
        %v999 = vpop.f32.mrb[0].mxu0
        %1000 = vmatprep.mubr.bf16.mxu0 0
        %1001 = vmatmul.mubr.bf16.gmra.mrb[0].mxu0 %v910
        %v1002 = vpop.f32.mrb[0].mxu0
        %v1003 = vadd.f32 0.0, %v1002
        %v1004 = vpop.f32.mrb[0].mxu0
        %v1005 = vpop.f32.mrb[0].mxu0
        %v1006 = vadd.f32 0.0, %v1005
        %v1007 = vpop.f32.mrb[0].mxu0
        %1008 = vmatprep.mubr.bf16.mxu0 0
        %1009 = vmatmul.mubr.bf16.gmra.mrb[0].mxu0 %v911
        %v1010 = vpop.f32.mrb[0].mxu0
        %v1011 = vadd.f32 0.0, %v1010
        %v1012 = vpop.f32.mrb[0].mxu0
        %v1013 = vpop.f32.mrb[0].mxu0
        %v1014 = vadd.f32 0.0, %v1013
        %v1015 = vpop.f32.mrb[0].mxu0
        %1016 = vmatprep.mubr.bf16.mxu0 0
        %1017 = vmatmul.mubr.bf16.gmra.mrb[0].mxu0 %v912
        %v1018 = vpop.f32.mrb[0].mxu0
        %v1019 = vadd.f32 0.0, %v1018
        %v1020 = vpop.f32.mrb[0].mxu0
        %v1021 = vpop.f32.mrb[0].mxu0
        %v1022 = vadd.f32 0.0, %v1021
        %v1023 = vpop.f32.mrb[0].mxu0
        %1024 = vmatprep.mubr.bf16.mxu0 0
        %1025 = vmatmul.mubr.bf16.gmra.mrb[0].mxu0 %v913
        %v1026 = vpop.f32.mrb[0].mxu0
        %v1027 = vadd.f32 0.0, %v1026
        %v1028 = vpop.f32.mrb[0].mxu0
        %v1029 = vpop.f32.mrb[0].mxu0
        %v1030 = vadd.f32 0.0, %v1029
        %v1031 = vpop.f32.mrb[0].mxu0
        %1032 = vmatprep.mubr.bf16.mxu0 0
        %1033 = vmatmul.mubr.bf16.gmra.mrb[0].mxu0 %v914
        %v1034 = vpop.f32.mrb[0].mxu0
        %v1035 = vadd.f32 0.0, %v1034
        %v1036 = vpop.f32.mrb[0].mxu0
        %v1037 = vpop.f32.mrb[0].mxu0
        %v1038 = vadd.f32 0.0, %v1037
        %v1039 = vpop.f32.mrb[0].mxu0
        %1040 = vmatprep.mubr.bf16.mxu0 0
        %1041 = vmatmul.mubr.bf16.gmra.mrb[0].mxu0 %v915
        %v1042 = vpop.f32.mrb[0].mxu0
        %v1043 = vadd.f32 0.0, %v1042
        %v1044 = vpop.f32.mrb[0].mxu0
        %v1045 = vpop.f32.mrb[0].mxu0
        %v1046 = vadd.f32 0.0, %v1045
        %v1047 = vpop.f32.mrb[0].mxu0
        %1048 = vmatprep.mubr.bf16.mxu0 0
        %1049 = vmatmul.mubr.bf16.gmra.mrb[0].mxu0 %v916
        %v1050 = vpop.f32.mrb[0].mxu0
        %v1051 = vadd.f32 0.0, %v1050
        %v1052 = vpop.f32.mrb[0].mxu0
        %v1053 = vpop.f32.mrb[0].mxu0
        %v1054 = vadd.f32 0.0, %v1053
        %v1055 = vpop.f32.mrb[0].mxu0
        %1056 = vmatprep.mubr.bf16.mxu0 0
        %1057 = vmatmul.mubr.bf16.gmra.mrb[0].mxu0 %v917
        %v1058 = vpop.f32.mrb[0].mxu0
        %v1059 = vadd.f32 0.0, %v1058
        %v1060 = vpop.f32.mrb[0].mxu0
        %v1061 = vpop.f32.mrb[0].mxu0
        %v1062 = vadd.f32 0.0, %v1061
        %v1063 = vpop.f32.mrb[0].mxu0
        %1064 = vmatprep.mubr.bf16.mxu0 0
        %1065 = vmatmul.mubr.bf16.gmra.mrb[0].mxu0 %v918
        %v1066 = vpop.f32.mrb[0].mxu0
        %v1067 = vadd.f32 0.0, %v1066
        %v1068 = vpop.f32.mrb[0].mxu0
        %v1069 = vpop.f32.mrb[0].mxu0
        %v1070 = vadd.f32 0.0, %v1069
        %v1071 = vpop.f32.mrb[0].mxu0
        %1072 = vmatprep.mubr.bf16.mxu0 0
        %1073 = vmatmul.mubr.bf16.gmra.mrb[0].mxu0 %v919
        %v1074 = vpop.f32.mrb[0].mxu0
        %v1075 = vadd.f32 0.0, %v1074
        %v1076 = vpop.f32.mrb[0].mxu0
        %v1077 = vpop.f32.mrb[0].mxu0
        %v1078 = vadd.f32 0.0, %v1077
        %v1079 = vpop.f32.mrb[0].mxu0
        %1080 = vmatprep.mubr.bf16.mxu0 0
        %1081 = vmatmul.mubr.bf16.gmra.mrb[0].mxu0 %v920
        %v1082 = vpop.f32.mrb[0].mxu0
        %v1083 = vadd.f32 0.0, %v1082
        %v1084 = vpop.f32.mrb[0].mxu0
        %v1085 = vpop.f32.mrb[0].mxu0
        %v1086 = vadd.f32 0.0, %v1085
        %v1087 = vpop.f32.mrb[0].mxu0
        %1088 = vdwg.mxu0
        %v1089 = vmax.f32 %v697, %v971
        %v1090 = vmax.f32 %v700, %v974
        %v1091 = vmax.f32 %v705, %v979
        %v1092 = vmax.f32 %v708, %v982
        %v1093 = vmax.f32 %v713, %v987
        %v1094 = vmax.f32 %v716, %v990
        %v1095 = vmax.f32 %v721, %v995
        %v1096 = vmax.f32 %v724, %v998
        %v1097 = vmax.f32 %v729, %v1003
        %v1098 = vmax.f32 %v732, %v1006
        %v1099 = vmax.f32 %v737, %v1011
        %v1100 = vmax.f32 %v740, %v1014
        %v1101 = vmax.f32 %v745, %v1019
        %v1102 = vmax.f32 %v748, %v1022
        %v1103 = vmax.f32 %v753, %v1027
        %v1104 = vmax.f32 %v756, %v1030
        %v1105 = vmax.f32 %v761, %v1035
        %v1106 = vmax.f32 %v764, %v1038
        %v1107 = vmax.f32 %v769, %v1043
        %v1108 = vmax.f32 %v772, %v1046
        %v1109 = vmax.f32 %v777, %v1051
        %v1110 = vmax.f32 %v780, %v1054
        %v1111 = vmax.f32 %v785, %v1059
        %v1112 = vmax.f32 %v788, %v1062
        %v1113 = vmax.f32 %v793, %v1067
        %v1114 = vmax.f32 %v796, %v1070
        %v1115 = vmax.f32 %v801, %v1075
        %v1116 = vmax.f32 %v804, %v1078
        %v1117 = vmax.f32 %v809, %v1083
        %v1118 = vmax.f32 %v812, %v1086
        %v1119 = vld [vmem:[%s2] sm:$0x1]
        %v1121 = vlaneseq
        %v1122 = vshrl.u32 %v1121, 7
        %v1123 = vsub.s32 0, %v1122
        %v1124 = vrot.slane %v1119, %v1123
        %v1126 = vadd.f32 %v1089, %v1124
        %v1127 = vadd.f32 %v1090, %v1124
        %v1128 = vadd.f32 %v1091, %v1124
        %v1129 = vadd.f32 %v1092, %v1124
        %v1130 = vadd.f32 %v1093, %v1124
        %v1131 = vadd.f32 %v1094, %v1124
        %v1132 = vadd.f32 %v1095, %v1124
        %v1133 = vadd.f32 %v1096, %v1124
        %v1134 = vadd.f32 %v1097, %v1124
        %v1135 = vadd.f32 %v1098, %v1124
        %v1136 = vadd.f32 %v1099, %v1124
        %v1137 = vadd.f32 %v1100, %v1124
        %v1138 = vadd.f32 %v1101, %v1124
        %v1139 = vadd.f32 %v1102, %v1124
        %v1140 = vadd.f32 %v1103, %v1124
        %v1141 = vadd.f32 %v1104, %v1124
        %v1142 = vadd.f32 %v1105, %v1124
        %v1143 = vadd.f32 %v1106, %v1124
        %v1144 = vadd.f32 %v1107, %v1124
        %v1145 = vadd.f32 %v1108, %v1124
        %v1146 = vadd.f32 %v1109, %v1124
        %v1147 = vadd.f32 %v1110, %v1124
        %v1148 = vadd.f32 %v1111, %v1124
        %v1149 = vadd.f32 %v1112, %v1124
        %v1150 = vadd.f32 %v1113, %v1124
        %v1151 = vadd.f32 %v1114, %v1124
        %v1152 = vadd.f32 %v1115, %v1124
        %v1153 = vadd.f32 %v1116, %v1124
        %v1154 = vadd.f32 %v1117, %v1124
        %v1155 = vadd.f32 %v1118, %v1124
        %v1156 = vmul.f32 %v1126, 0.01
        %v1157 = vmul.f32 %v1127, 0.01
        %v1158 = vmul.f32 %v1128, 0.01
        %v1159 = vmul.f32 %v1129, 0.01
        %v1160 = vmul.f32 %v1130, 0.01
        %v1161 = vmul.f32 %v1131, 0.01
        %v1162 = vmul.f32 %v1132, 0.01
        %v1163 = vmul.f32 %v1133, 0.01
        %v1164 = vmul.f32 %v1134, 0.01
        %v1165 = vmul.f32 %v1135, 0.01
        %v1166 = vmul.f32 %v1136, 0.01
        %v1167 = vmul.f32 %v1137, 0.01
        %v1168 = vmul.f32 %v1138, 0.01
        %v1169 = vmul.f32 %v1139, 0.01
        %v1170 = vmul.f32 %v1140, 0.01
        %v1171 = vmul.f32 %v1141, 0.01
        %v1172 = vmul.f32 %v1142, 0.01
        %v1173 = vmul.f32 %v1143, 0.01
        %v1174 = vmul.f32 %v1144, 0.01
        %v1175 = vmul.f32 %v1145, 0.01
        %v1176 = vmul.f32 %v1146, 0.01
        %v1177 = vmul.f32 %v1147, 0.01
        %v1178 = vmul.f32 %v1148, 0.01
        %v1179 = vmul.f32 %v1149, 0.01
        %v1180 = vmul.f32 %v1150, 0.01
        %v1181 = vmul.f32 %v1151, 0.01
        %v1182 = vmul.f32 %v1152, 0.01
        %v1183 = vmul.f32 %v1153, 0.01
        %v1184 = vmul.f32 %v1154, 0.01
        %v1185 = vmul.f32 %v1155, 0.01
        %v1186 = vmax.f32 %v1126, %v1156
        %v1187 = vmax.f32 %v1127, %v1157
        %v1188 = vmax.f32 %v1128, %v1158
        %v1189 = vmax.f32 %v1129, %v1159
        %v1190 = vmax.f32 %v1130, %v1160
        %v1191 = vmax.f32 %v1131, %v1161
        %v1192 = vmax.f32 %v1132, %v1162
        %v1193 = vmax.f32 %v1133, %v1163
        %v1194 = vmax.f32 %v1134, %v1164
        %v1195 = vmax.f32 %v1135, %v1165
        %v1196 = vmax.f32 %v1136, %v1166
        %v1197 = vmax.f32 %v1137, %v1167
        %v1198 = vmax.f32 %v1138, %v1168
        %v1199 = vmax.f32 %v1139, %v1169
        %v1200 = vmax.f32 %v1140, %v1170
        %v1201 = vmax.f32 %v1141, %v1171
        %v1202 = vmax.f32 %v1142, %v1172
        %v1203 = vmax.f32 %v1143, %v1173
        %v1204 = vmax.f32 %v1144, %v1174
        %v1205 = vmax.f32 %v1145, %v1175
        %v1206 = vmax.f32 %v1146, %v1176
        %v1207 = vmax.f32 %v1147, %v1177
        %v1208 = vmax.f32 %v1148, %v1178
        %v1209 = vmax.f32 %v1149, %v1179
        %v1210 = vmax.f32 %v1150, %v1180
        %v1211 = vmax.f32 %v1151, %v1181
        %v1212 = vmax.f32 %v1152, %v1182
        %v1213 = vmax.f32 %v1153, %v1183
        %v1214 = vmax.f32 %v1154, %v1184
        %v1215 = vmax.f32 %v1155, %v1185
        %v1216 = vpack.c.bf16 %v1187, %v1186
        %v1217 = vpack.c.bf16 %v1189, %v1188
        %v1218 = vpack.c.bf16 %v1191, %v1190
        %v1219 = vpack.c.bf16 %v1193, %v1192
        %v1220 = vpack.c.bf16 %v1195, %v1194
        %v1221 = vpack.c.bf16 %v1197, %v1196
        %v1222 = vpack.c.bf16 %v1199, %v1198
        %v1223 = vpack.c.bf16 %v1201, %v1200
        %v1224 = vpack.c.bf16 %v1203, %v1202
        %v1225 = vpack.c.bf16 %v1205, %v1204
        %v1226 = vpack.c.bf16 %v1207, %v1206
        %v1227 = vpack.c.bf16 %v1209, %v1208
        %v1228 = vpack.c.bf16 %v1211, %v1210
        %v1229 = vpack.c.bf16 %v1213, %v1212
        %v1230 = vpack.c.bf16 %v1215, %v1214
        %v1246 = vunpack.c.l.b16 %v1216
        %v1247 = vunpack.c.h.b16 %v1216
        %v1248 = vunpack.c.l.b16 %v1217
        %v1249 = vunpack.c.h.b16 %v1217
        %v1250 = vunpack.c.l.b16 %v1218
        %v1251 = vunpack.c.h.b16 %v1218
        %v1252 = vunpack.c.l.b16 %v1219
        %v1253 = vunpack.c.h.b16 %v1219
        %v1254 = vunpack.c.l.b16 %v1220
        %v1255 = vunpack.c.h.b16 %v1220
        %v1256 = vunpack.c.l.b16 %v1221
        %v1257 = vunpack.c.h.b16 %v1221
        %v1258 = vunpack.c.l.b16 %v1222
        %v1259 = vunpack.c.h.b16 %v1222
        %v1260 = vunpack.c.l.b16 %v1223
        %v1261 = vunpack.c.h.b16 %v1223
        %v1262 = vunpack.c.l.b16 %v1224
        %v1263 = vunpack.c.h.b16 %v1224
        %v1264 = vunpack.c.l.b16 %v1225
        %v1265 = vunpack.c.h.b16 %v1225
        %v1266 = vunpack.c.l.b16 %v1226
        %v1267 = vunpack.c.h.b16 %v1226
        %v1268 = vunpack.c.l.b16 %v1227
        %v1269 = vunpack.c.h.b16 %v1227
        %v1270 = vunpack.c.l.b16 %v1228
        %v1271 = vunpack.c.h.b16 %v1228
        %v1272 = vunpack.c.l.b16 %v1229
        %v1273 = vunpack.c.h.b16 %v1229
        %v1274 = vunpack.c.l.b16 %v1230
        %v1275 = vunpack.c.h.b16 %v1230
        %v1276 = vpack.c.b16 %v1246, %v1246
        %v1277 = vpack.c.b16 %v1247, %v1247
        %v1278 = vpack.c.b16 %v1248, %v1248
        %v1279 = vpack.c.b16 %v1249, %v1249
        %v1280 = vpack.c.b16 %v1250, %v1250
        %v1281 = vpack.c.b16 %v1251, %v1251
        %v1282 = vpack.c.b16 %v1252, %v1252
        %v1283 = vpack.c.b16 %v1253, %v1253
        %v1284 = vpack.c.b16 %v1254, %v1254
        %v1285 = vpack.c.b16 %v1255, %v1255
        %v1286 = vpack.c.b16 %v1256, %v1256
        %v1287 = vpack.c.b16 %v1257, %v1257
        %v1288 = vpack.c.b16 %v1258, %v1258
        %v1289 = vpack.c.b16 %v1259, %v1259
        %v1290 = vpack.c.b16 %v1260, %v1260
        %v1291 = vpack.c.b16 %v1261, %v1261
        %v1292 = vpack.c.b16 %v1262, %v1262
        %v1293 = vpack.c.b16 %v1263, %v1263
        %v1294 = vpack.c.b16 %v1264, %v1264
        %v1295 = vpack.c.b16 %v1265, %v1265
        %v1296 = vpack.c.b16 %v1266, %v1266
        %v1297 = vpack.c.b16 %v1267, %v1267
        %v1298 = vpack.c.b16 %v1268, %v1268
        %v1299 = vpack.c.b16 %v1269, %v1269
        %v1300 = vpack.c.b16 %v1270, %v1270
        %v1301 = vpack.c.b16 %v1271, %v1271
        %v1302 = vpack.c.b16 %v1272, %v1272
        %v1303 = vpack.c.b16 %v1273, %v1273
        %v1304 = vpack.c.b16 %v1274, %v1274
        %v1305 = vpack.c.b16 %v1275, %v1275
        %vm1336 = vcmask 519168
        %1337 = vst.msk [vmem:[%s475] sm:$0xf] %vm1336, %v1276
        %1338 = vst.msk [vmem:[%s475 + $0x4] sm:$0xf] %vm1336, %v1277
        %1339 = vst.msk [vmem:[%s475 + $0x8] sm:$0xf] %vm1336, %v1278
        %1340 = vst.msk [vmem:[%s475 + $0xc] sm:$0xf] %vm1336, %v1279
        %1341 = vst.msk [vmem:[%s475 + $0x10] sm:$0xf] %vm1336, %v1280
        %1342 = vst.msk [vmem:[%s475 + $0x14] sm:$0xf] %vm1336, %v1281
        %1343 = vst.msk [vmem:[%s475 + $0x18] sm:$0xf] %vm1336, %v1282
        %1344 = vst.msk [vmem:[%s475 + $0x1c] sm:$0xf] %vm1336, %v1283
        %1345 = vst.msk [vmem:[%s475 + $0x20] sm:$0xf] %vm1336, %v1284
        %1346 = vst.msk [vmem:[%s475 + $0x24] sm:$0xf] %vm1336, %v1285
        %1347 = vst.msk [vmem:[%s475 + $0x28] sm:$0xf] %vm1336, %v1286
        %1348 = vst.msk [vmem:[%s475 + $0x2c] sm:$0xf] %vm1336, %v1287
        %1349 = vst.msk [vmem:[%s475 + $0x30] sm:$0xf] %vm1336, %v1288
        %1350 = vst.msk [vmem:[%s475 + $0x34] sm:$0xf] %vm1336, %v1289
        %1351 = vst.msk [vmem:[%s475 + $0x38] sm:$0xf] %vm1336, %v1290
        %1352 = vst.msk [vmem:[%s475 + $0x3c] sm:$0xf] %vm1336, %v1291
        %1353 = vst.msk [vmem:[%s475 + $0x40] sm:$0xf] %vm1336, %v1292
        %1354 = vst.msk [vmem:[%s475 + $0x44] sm:$0xf] %vm1336, %v1293
        %1355 = vst.msk [vmem:[%s475 + $0x48] sm:$0xf] %vm1336, %v1294
        %1356 = vst.msk [vmem:[%s475 + $0x4c] sm:$0xf] %vm1336, %v1295
        %1357 = vst.msk [vmem:[%s475 + $0x50] sm:$0xf] %vm1336, %v1296
        %1358 = vst.msk [vmem:[%s475 + $0x54] sm:$0xf] %vm1336, %v1297
        %1359 = vst.msk [vmem:[%s475 + $0x58] sm:$0xf] %vm1336, %v1298
        %1360 = vst.msk [vmem:[%s475 + $0x5c] sm:$0xf] %vm1336, %v1299
        %1361 = vst.msk [vmem:[%s475 + $0x60] sm:$0xf] %vm1336, %v1300
        %1362 = vst.msk [vmem:[%s475 + $0x64] sm:$0xf] %vm1336, %v1301
        %1363 = vst.msk [vmem:[%s475 + $0x68] sm:$0xf] %vm1336, %v1302
        %1364 = vst.msk [vmem:[%s475 + $0x6c] sm:$0xf] %vm1336, %v1303
        %1365 = vst.msk [vmem:[%s475 + $0x70] sm:$0xf] %vm1336, %v1304
        %1366 = vst.msk [vmem:[%s475 + $0x74] sm:$0xf] %vm1336, %v1305
        %s1367 = smul.u32 30, %s19
        %p1368 = scmp.lt.s32.totalorder %s18, 1
        %s1369 = scalar_select %p1368, %s18, 1
        %p1370 = scmp.lt.s32.totalorder %s1367, 119
        %s1371 = scalar_select %p1370, %s1367, 119
        %s1372 = smul.addr %s1369, 120
        %s1373 = sadd.s32 %s1371, %s1372
        %s1374 = smul.addr %s1373, 4
        %s1375 = scalar_lea.vmem %s3, %s1374
        // Predicated region
        $region74: #{cnn20_forward.3} parent=68 // pred_check
          %p1376 = pneg %p116
        $region75: #{cnn20_forward.3} parent=68 // pred_check_branch
          %1378 = sbr.rel (%p1376) target = $region77
        $region76: #{cnn20_forward.3} parent=68 // pred_region
          %s1379 = smul.u32 30, %s19
        $region77: #{cnn20_forward.3} parent=68 // pred_fallthru
          _
      $region69: #{cnn20_forward.3} parent=5 // pred_fallthru
        _
      %p1380 = scmp.le.s32.totalorder 2, %s9
      // Predicated region
      $region78: #{cnn20_forward.3} parent=5 // pred_check
        %p1381 = pneg %p1380
      $region79: #{cnn20_forward.3} parent=5 // pred_check_branch
        %1383 = sbr.rel (%p1381) target = $region81
      $region80: #{cnn20_forward.3} parent=5 // pred_region
        %s1384 = ssub.s32 %s9, 2
        // Predicated region
        $region82: #{cnn20_forward.3} parent=80 // pred_check
          %p1385 = pneg %p122
        $region83: #{cnn20_forward.3} parent=80 // pred_check_branch
          %1387 = sbr.rel (%p1385) target = $region85
        $region84: #{cnn20_forward.3} parent=80 // pred_region
          %s1388 = smul.u32 30, %s21
          %p1389 = scmp.lt.s32.totalorder %s20, 1
          %s1390 = scalar_select %p1389, %s20, 1
          %p1391 = scmp.lt.s32.totalorder %s1388, 119
          %s1392 = scalar_select %p1391, %s1388, 119
          %s1393 = smul.addr %s1390, 120
          %s1394 = sadd.s32 %s1392, %s1393
          %s1395 = smul.addr %s1394, 4
          %s1396 = scalar_lea.vmem %s3, %s1395
        $region85: #{cnn20_forward.3} parent=80 // pred_fallthru
          _
      $region81: #{cnn20_forward.3} parent=5 // pred_fallthru
        _
    $region6: #{cnn20_forward.3} parent=1 // loop_footer
      %s13 = sadd.s32 1, %s9
    $region7: #{cnn20_forward.3} parent=1 // loop_footer_branch
      %8 = sbr.rel target = $region3
    $region8: #{cnn20_forward.3} parent=1 // loop_exit
      _

// kernel: cnn20_forward.4
$region0: #{cnn20_forward.4}
  #allocation0 [shape = 'u32[]', space=smem, size = 0x4, offset = 0x4, fixed_abs, tag = 'smem constant byte address 0x4 - core index']
  #allocation1 [shape = 'u32[144,128]{1,0:T(1,128)}', space=vmem, size = 0x12000, scoped, tag = 'internal scratch']
  %s0 = inlined_call_operand.vmem [shape: bf16[2,2,240,1024], index: 0, kind: input, shape index: {}]
  %s1 = inlined_call_operand.vmem [shape: bf16[1024,128], index: 1, kind: input, shape index: {}]
  %s2 = inlined_call_operand.vmem [shape: f32[1,128], index: 2, kind: input, shape index: {}]
  %s3 = inlined_call_operand.vmem [shape: bf16[2,240,128], index: 3, kind: output, shape index: {}]
  %s4 = sld [smem:[#allocation0]]
  $region68: #{cnn20_forward.4} parent=0
    _
  %s6 = ssub.s32 1, %s4
  %s7 = scalar_select 0, %s6, %s4
  $region1: #{cnn20_forward.4} parent=0
    #allocation2 [shape = 'u8[983040]{0}', space=vmem, size = 0xf0000, scoped, tag = 'input window, operand 0']
    loop: start=0, step=1, limit=6
    $region2: #{cnn20_forward.4} parent=1 // loop_pre_header
      _
    $region3: #{cnn20_forward.4} parent=1 // loop_header
      %s9 = sphi 0, %s13
      %p10 = scmp.ge.s32.totalorder %s9, 6
      %s16 = sphi 0, %s28
      %s17 = sphi 0, %s24
      %s18 = sphi 0, %s16
      %s19 = sphi 0, %s17
      %s20 = sphi 0, %s18
      %s21 = sphi 0, %s19
      %s33 = sphi 0, %s35
      %s36 = sphi 0, %s33
      %s37 = sphi 0, %s36
      %s53 = sphi 0, %s37
      %s57 = sphi 0, %s57
      %s59 = sphi 0, %s57
      %s60 = sphi 0, %s59
      %s74 = sphi 0, %s60
      %s78 = sphi 0, %s78
      %s80 = sphi 0, %s78
      %s81 = sphi 0, %s80
      %s95 = sphi 0, %s81
      %s103 = sphi 0, %s105
      %s106 = sphi 0, %s103
      %s107 = sphi 0, %s106
      %s123 = sphi 0, %s107
    $region4: #{cnn20_forward.4} parent=1 // loop_header_branch
      %12 = sbr.rel (%p10) target = $region8
    $region5: #{cnn20_forward.4} parent=1 // loop_body
      %s14 = ssub.s32 %s9, 1
      %s15 = ssub.s32 %s9, 2
      %s22 = sadd.s32 1, %s17
      %p23 = scmp.ge.s32.totalorder %s22, 2
      %s24 = scalar_select %p23, 0, %s22
      %s25 = sadd.s32 1, %s16
      %s26 = scalar_select %p23, %s25, %s16
      %p27 = scmp.ge.s32.totalorder %s26, 2
      %s28 = scalar_select %p27, 0, %s26
      %s29 = ssub.s32 %s16, %s28
      %s30 = ssub.s32 %s17, %s24
      %s31 = sor.u32 %s29, %s30
      %p32 = scmp.eq.s32.totalorder %s31, 0
      %s34 = sadd.s32 %s33, 1
      %s35 = scalar_select %p32, %s33, %s34
      %p38 = pneg %p32
      %p39 = scmp.eq.s32.totalorder %s9, 3
      %p40 = por %p38, %p39
      %p41 = scmp.ne.s32.totalorder %s33, %s36
      %p42 = scmp.eq.s32.totalorder %s9, 0
      %p43 = por %p41, %p42
      %p44 = scmp.ne.s32.totalorder %s33, %s36
      %p45 = scmp.eq.s32.totalorder %s14, 3
      %p46 = por %p44, %p45
      %p47 = scmp.ne.s32.totalorder %s36, %s37
      %p48 = scmp.eq.s32.totalorder %s14, 0
      %p49 = por %p47, %p48
      %p50 = scmp.ne.s32.totalorder %s36, %s37
      %p51 = scmp.eq.s32.totalorder %s15, 3
      %p52 = por %p50, %p51
      %p54 = scmp.ne.s32.totalorder %s37, %s53
      %p55 = scmp.eq.s32.totalorder %s15, 0
      %p56 = por %p54, %p55
      %s58 = sadd.s32 %s57, 1
      %p61 = scmp.eq.s32.totalorder %s9, 3
      %p62 = scmp.ne.s32.totalorder %s57, %s59
      %p63 = scmp.eq.s32.totalorder %s9, 0
      %p64 = por %p62, %p63
      %p65 = scmp.ne.s32.totalorder %s57, %s59
      %p66 = scmp.eq.s32.totalorder %s14, 3
      %p67 = por %p65, %p66
      %p68 = scmp.ne.s32.totalorder %s59, %s60
      %p69 = scmp.eq.s32.totalorder %s14, 0
      %p70 = por %p68, %p69
      %p71 = scmp.ne.s32.totalorder %s59, %s60
      %p72 = scmp.eq.s32.totalorder %s15, 3
      %p73 = por %p71, %p72
      %p75 = scmp.ne.s32.totalorder %s60, %s74
      %p76 = scmp.eq.s32.totalorder %s15, 0
      %p77 = por %p75, %p76
      %s79 = sadd.s32 %s78, 1
      %p82 = scmp.eq.s32.totalorder %s9, 3
      %p83 = scmp.ne.s32.totalorder %s78, %s80
      %p84 = scmp.eq.s32.totalorder %s9, 0
      %p85 = por %p83, %p84
      %p86 = scmp.ne.s32.totalorder %s78, %s80
      %p87 = scmp.eq.s32.totalorder %s14, 3
      %p88 = por %p86, %p87
      %p89 = scmp.ne.s32.totalorder %s80, %s81
      %p90 = scmp.eq.s32.totalorder %s14, 0
      %p91 = por %p89, %p90
      %p92 = scmp.ne.s32.totalorder %s80, %s81
      %p93 = scmp.eq.s32.totalorder %s15, 3
      %p94 = por %p92, %p93
      %p96 = scmp.ne.s32.totalorder %s81, %s95
      %p97 = scmp.eq.s32.totalorder %s15, 0
      %p98 = por %p96, %p97
      %s99 = ssub.s32 %s16, %s28
      %s100 = ssub.s32 %s17, %s24
      %s101 = sor.u32 %s99, %s100
      %p102 = scmp.eq.s32.totalorder %s101, 0
      %s104 = sadd.s32 %s103, 1
      %s105 = scalar_select %p102, %s103, %s104
      %p108 = pneg %p102
      %p109 = scmp.eq.s32.totalorder %s9, 3
      %p110 = por %p108, %p109
      %p111 = scmp.ne.s32.totalorder %s103, %s106
      %p112 = scmp.eq.s32.totalorder %s9, 0
      %p113 = por %p111, %p112
      %p114 = scmp.ne.s32.totalorder %s103, %s106
      %p115 = scmp.eq.s32.totalorder %s14, 3
      %p116 = por %p114, %p115
      %p117 = scmp.ne.s32.totalorder %s106, %s107
      %p118 = scmp.eq.s32.totalorder %s14, 0
      %p119 = por %p117, %p118
      %p120 = scmp.ne.s32.totalorder %s106, %s107
      %p121 = scmp.eq.s32.totalorder %s15, 3
      %p122 = por %p120, %p121
      %p124 = scmp.ne.s32.totalorder %s107, %s123
      %p125 = scmp.eq.s32.totalorder %s15, 0
      %p126 = por %p124, %p125
      %p127 = scmp.le.s32.totalorder 1, %s9
      %p128 = scmp.lt.s32.totalorder %s9, 5
      %p129 = pnand %p127, %p128
      %p130 = pneg %p129
      // Predicated region
      $region9: #{cnn20_forward.4} parent=5 // pred_check
        _
      $region10: #{cnn20_forward.4} parent=5 // pred_check_branch
        %132 = sbr.rel (%p129) target = $region12
      $region11: #{cnn20_forward.4} parent=5 // pred_region
        %s133 = ssub.s32 %s9, 1
        // Predicated region
        $region13: #{cnn20_forward.4} parent=11 // pred_check
          %p134 = pneg %p70
        $region14: #{cnn20_forward.4} parent=11 // pred_check_branch
          %136 = sbr.rel (%p134) target = $region16
        $region15: #{cnn20_forward.4} parent=11 // pred_region
          _
        $region16: #{cnn20_forward.4} parent=11 // pred_fallthru
          _
        // Predicated region
        $region17: #{cnn20_forward.4} parent=11 // pred_check
          %p137 = pneg %p91
        $region18: #{cnn20_forward.4} parent=11 // pred_check_branch
          %139 = sbr.rel (%p137) target = $region20
        $region19: #{cnn20_forward.4} parent=11 // pred_region
          _
        $region20: #{cnn20_forward.4} parent=11 // pred_fallthru
          _
      $region12: #{cnn20_forward.4} parent=5 // pred_fallthru
        _
      %p140 = scmp.lt.s32.totalorder %s9, 4
      // Predicated region
      $region21: #{cnn20_forward.4} parent=5 // pred_check
        %p141 = pneg %p140
      $region22: #{cnn20_forward.4} parent=5 // pred_check_branch
        %143 = sbr.rel (%p141) target = $region24
      $region23: #{cnn20_forward.4} parent=5 // pred_region
        // Predicated region
        $region25: #{cnn20_forward.4} parent=23 // pred_check
          %p144 = pneg %p43
        $region26: #{cnn20_forward.4} parent=23 // pred_check_branch
          %146 = sbr.rel (%p144) target = $region28
        $region27: #{cnn20_forward.4} parent=23 // pred_region
          %s147 = sand.u32 %s33, 1
          %s148 = sand.u32 %s33, 1
          %s149 = smul.addr %s148, 960
          %s150 = scalar_lea.vmem [#allocation2], %s149
          %s151 = smul.u32 15, %s17
          %s152 = smul.addr %s151, 8
          %s153 = smul.addr %s16, 480
          %s154 = sadd.s32 %s152, %s153
          %s155 = smul.addr %s154, 4
          %s156 = scalar_lea.vmem %s0, %s155
          // Predicated region
          $region29: #{cnn20_forward.4} parent=27 // pred_check
            _
          $region30: #{cnn20_forward.4} parent=27 // pred_check_branch
            %158 = sbr.rel (0) target = $region32
          $region31: #{cnn20_forward.4} parent=27 // pred_region
            // Predicated region
            $region33: #{cnn20_forward.4} parent=31 // pred_check
              _
            $region34: #{cnn20_forward.4} parent=31 // pred_check_branch
              %160 = sbr.rel (0) target = $region36
            $region35: #{cnn20_forward.4} parent=31 // pred_region
              loop: start=0, step=1, limit=1
              $region37: #{cnn20_forward.4} parent=35 // loop_pre_header
                _
              $region38: #{cnn20_forward.4} parent=35 // loop_header
                %s162 = sphi 0, %s166
                %p163 = scmp.ge.s32.totalorder %s162, 1
                %s167 = sphi %s156, %s156
                %s168 = sphi %s150, %s150
              $region39: #{cnn20_forward.4} parent=35 // loop_header_branch
                %165 = sbr.rel (%p163) target = $region43
              $region40: #{cnn20_forward.4} parent=35 // loop_body
                %v169 = vld [vmem:[%s167] sm:$0xff]
                %170 = vst [vmem:[%s168] sm:$0xff] %v169
                %v171 = vld [vmem:[%s167 + $0x8] sm:$0xff]
                %172 = vst [vmem:[%s168 + $0x8] sm:$0xff] %v171
                %v173 = vld [vmem:[%s167 + $0x10] sm:$0xff]
                %174 = vst [vmem:[%s168 + $0x10] sm:$0xff] %v173
                %v175 = vld [vmem:[%s167 + $0x18] sm:$0xff]
                %176 = vst [vmem:[%s168 + $0x18] sm:$0xff] %v175
                %v177 = vld [vmem:[%s167 + $0x20] sm:$0xff]
                %178 = vst [vmem:[%s168 + $0x20] sm:$0xff] %v177
                %v179 = vld [vmem:[%s167 + $0x28] sm:$0xff]
                %180 = vst [vmem:[%s168 + $0x28] sm:$0xff] %v179
                %v181 = vld [vmem:[%s167 + $0x30] sm:$0xff]
                %182 = vst [vmem:[%s168 + $0x30] sm:$0xff] %v181
                %v183 = vld [vmem:[%s167 + $0x38] sm:$0xff]
                %184 = vst [vmem:[%s168 + $0x38] sm:$0xff] %v183
                %v185 = vld [vmem:[%s167 + $0x40] sm:$0xff]
                %186 = vst [vmem:[%s168 + $0x40] sm:$0xff] %v185
                %v187 = vld [vmem:[%s167 + $0x48] sm:$0xff]
                %188 = vst [vmem:[%s168 + $0x48] sm:$0xff] %v187
                %v189 = vld [vmem:[%s167 + $0x50] sm:$0xff]
                %190 = vst [vmem:[%s168 + $0x50] sm:$0xff] %v189
                %v191 = vld [vmem:[%s167 + $0x58] sm:$0xff]
                %192 = vst [vmem:[%s168 + $0x58] sm:$0xff] %v191
                %v193 = vld [vmem:[%s167 + $0x60] sm:$0xff]
                %194 = vst [vmem:[%s168 + $0x60] sm:$0xff] %v193
                %v195 = vld [vmem:[%s167 + $0x68] sm:$0xff]
                %196 = vst [vmem:[%s168 + $0x68] sm:$0xff] %v195
                %v197 = vld [vmem:[%s167 + $0x70] sm:$0xff]
                %198 = vst [vmem:[%s168 + $0x70] sm:$0xff] %v197
                %v199 = vld [vmem:[%s167 + $0x78] sm:$0xff]
                %200 = vst [vmem:[%s168 + $0x78] sm:$0xff] %v199
                %v201 = vld [vmem:[%s167 + $0x80] sm:$0xff]
                %202 = vst [vmem:[%s168 + $0x80] sm:$0xff] %v201
                %v203 = vld [vmem:[%s167 + $0x88] sm:$0xff]
                %204 = vst [vmem:[%s168 + $0x88] sm:$0xff] %v203
                %v205 = vld [vmem:[%s167 + $0x90] sm:$0xff]
                %206 = vst [vmem:[%s168 + $0x90] sm:$0xff] %v205
                %v207 = vld [vmem:[%s167 + $0x98] sm:$0xff]
                %208 = vst [vmem:[%s168 + $0x98] sm:$0xff] %v207
                %v209 = vld [vmem:[%s167 + $0xa0] sm:$0xff]
                %210 = vst [vmem:[%s168 + $0xa0] sm:$0xff] %v209
                %v211 = vld [vmem:[%s167 + $0xa8] sm:$0xff]
                %212 = vst [vmem:[%s168 + $0xa8] sm:$0xff] %v211
                %v213 = vld [vmem:[%s167 + $0xb0] sm:$0xff]
                %214 = vst [vmem:[%s168 + $0xb0] sm:$0xff] %v213
                %v215 = vld [vmem:[%s167 + $0xb8] sm:$0xff]
                %216 = vst [vmem:[%s168 + $0xb8] sm:$0xff] %v215
                %v217 = vld [vmem:[%s167 + $0xc0] sm:$0xff]
                %218 = vst [vmem:[%s168 + $0xc0] sm:$0xff] %v217
                %v219 = vld [vmem:[%s167 + $0xc8] sm:$0xff]
                %220 = vst [vmem:[%s168 + $0xc8] sm:$0xff] %v219
                %v221 = vld [vmem:[%s167 + $0xd0] sm:$0xff]
                %222 = vst [vmem:[%s168 + $0xd0] sm:$0xff] %v221
                %v223 = vld [vmem:[%s167 + $0xd8] sm:$0xff]
                %224 = vst [vmem:[%s168 + $0xd8] sm:$0xff] %v223
                %v225 = vld [vmem:[%s167 + $0xe0] sm:$0xff]
                %226 = vst [vmem:[%s168 + $0xe0] sm:$0xff] %v225
                %v227 = vld [vmem:[%s167 + $0xe8] sm:$0xff]
                %228 = vst [vmem:[%s168 + $0xe8] sm:$0xff] %v227
                %v229 = vld [vmem:[%s167 + $0xf0] sm:$0xff]
                %230 = vst [vmem:[%s168 + $0xf0] sm:$0xff] %v229
                %v231 = vld [vmem:[%s167 + $0xf8] sm:$0xff]
                %232 = vst [vmem:[%s168 + $0xf8] sm:$0xff] %v231
                %v233 = vld [vmem:[%s167 + $0x100] sm:$0xff]
                %234 = vst [vmem:[%s168 + $0x100] sm:$0xff] %v233
                %v235 = vld [vmem:[%s167 + $0x108] sm:$0xff]
                %236 = vst [vmem:[%s168 + $0x108] sm:$0xff] %v235
                %v237 = vld [vmem:[%s167 + $0x110] sm:$0xff]
                %238 = vst [vmem:[%s168 + $0x110] sm:$0xff] %v237
                %v239 = vld [vmem:[%s167 + $0x118] sm:$0xff]
                %240 = vst [vmem:[%s168 + $0x118] sm:$0xff] %v239
                %v241 = vld [vmem:[%s167 + $0x120] sm:$0xff]
                %242 = vst [vmem:[%s168 + $0x120] sm:$0xff] %v241
                %v243 = vld [vmem:[%s167 + $0x128] sm:$0xff]
                %244 = vst [vmem:[%s168 + $0x128] sm:$0xff] %v243
                %v245 = vld [vmem:[%s167 + $0x130] sm:$0xff]
                %246 = vst [vmem:[%s168 + $0x130] sm:$0xff] %v245
                %v247 = vld [vmem:[%s167 + $0x138] sm:$0xff]
                %248 = vst [vmem:[%s168 + $0x138] sm:$0xff] %v247
                %v249 = vld [vmem:[%s167 + $0x140] sm:$0xff]
                %250 = vst [vmem:[%s168 + $0x140] sm:$0xff] %v249
                %v251 = vld [vmem:[%s167 + $0x148] sm:$0xff]
                %252 = vst [vmem:[%s168 + $0x148] sm:$0xff] %v251
                %v253 = vld [vmem:[%s167 + $0x150] sm:$0xff]
                %254 = vst [vmem:[%s168 + $0x150] sm:$0xff] %v253
                %v255 = vld [vmem:[%s167 + $0x158] sm:$0xff]
                %256 = vst [vmem:[%s168 + $0x158] sm:$0xff] %v255
                %v257 = vld [vmem:[%s167 + $0x160] sm:$0xff]
                %258 = vst [vmem:[%s168 + $0x160] sm:$0xff] %v257
                %v259 = vld [vmem:[%s167 + $0x168] sm:$0xff]
                %260 = vst [vmem:[%s168 + $0x168] sm:$0xff] %v259
                %v261 = vld [vmem:[%s167 + $0x170] sm:$0xff]
                %262 = vst [vmem:[%s168 + $0x170] sm:$0xff] %v261
                %v263 = vld [vmem:[%s167 + $0x178] sm:$0xff]
                %264 = vst [vmem:[%s168 + $0x178] sm:$0xff] %v263
                %v265 = vld [vmem:[%s167 + $0x180] sm:$0xff]
                %266 = vst [vmem:[%s168 + $0x180] sm:$0xff] %v265
                %v267 = vld [vmem:[%s167 + $0x188] sm:$0xff]
                %268 = vst [vmem:[%s168 + $0x188] sm:$0xff] %v267
                %v269 = vld [vmem:[%s167 + $0x190] sm:$0xff]
                %270 = vst [vmem:[%s168 + $0x190] sm:$0xff] %v269
                %v271 = vld [vmem:[%s167 + $0x198] sm:$0xff]
                %272 = vst [vmem:[%s168 + $0x198] sm:$0xff] %v271
                %v273 = vld [vmem:[%s167 + $0x1a0] sm:$0xff]
                %274 = vst [vmem:[%s168 + $0x1a0] sm:$0xff] %v273
                %v275 = vld [vmem:[%s167 + $0x1a8] sm:$0xff]
                %276 = vst [vmem:[%s168 + $0x1a8] sm:$0xff] %v275
                %v277 = vld [vmem:[%s167 + $0x1b0] sm:$0xff]
                %278 = vst [vmem:[%s168 + $0x1b0] sm:$0xff] %v277
                %v279 = vld [vmem:[%s167 + $0x1b8] sm:$0xff]
                %280 = vst [vmem:[%s168 + $0x1b8] sm:$0xff] %v279
                %v281 = vld [vmem:[%s167 + $0x1c0] sm:$0xff]
                %282 = vst [vmem:[%s168 + $0x1c0] sm:$0xff] %v281
                %v283 = vld [vmem:[%s167 + $0x1c8] sm:$0xff]
                %284 = vst [vmem:[%s168 + $0x1c8] sm:$0xff] %v283
                %v285 = vld [vmem:[%s167 + $0x1d0] sm:$0xff]
                %286 = vst [vmem:[%s168 + $0x1d0] sm:$0xff] %v285
                %v287 = vld [vmem:[%s167 + $0x1d8] sm:$0xff]
                %288 = vst [vmem:[%s168 + $0x1d8] sm:$0xff] %v287
                %v289 = vld [vmem:[%s167 + $0x3c0] sm:$0xff]
                %290 = vst [vmem:[%s168 + $0x1e0] sm:$0xff] %v289
                %v291 = vld [vmem:[%s167 + $0x3c8] sm:$0xff]
                %292 = vst [vmem:[%s168 + $0x1e8] sm:$0xff] %v291
                %v293 = vld [vmem:[%s167 + $0x3d0] sm:$0xff]
                %294 = vst [vmem:[%s168 + $0x1f0] sm:$0xff] %v293
                %v295 = vld [vmem:[%s167 + $0x3d8] sm:$0xff]
                %296 = vst [vmem:[%s168 + $0x1f8] sm:$0xff] %v295
                %v297 = vld [vmem:[%s167 + $0x3e0] sm:$0xff]
                %298 = vst [vmem:[%s168 + $0x200] sm:$0xff] %v297
                %v299 = vld [vmem:[%s167 + $0x3e8] sm:$0xff]
                %300 = vst [vmem:[%s168 + $0x208] sm:$0xff] %v299
                %v301 = vld [vmem:[%s167 + $0x3f0] sm:$0xff]
                %302 = vst [vmem:[%s168 + $0x210] sm:$0xff] %v301
                %v303 = vld [vmem:[%s167 + $0x3f8] sm:$0xff]
                %304 = vst [vmem:[%s168 + $0x218] sm:$0xff] %v303
                %v305 = vld [vmem:[%s167 + $0x400] sm:$0xff]
                %306 = vst [vmem:[%s168 + $0x220] sm:$0xff] %v305
                %v307 = vld [vmem:[%s167 + $0x408] sm:$0xff]
                %308 = vst [vmem:[%s168 + $0x228] sm:$0xff] %v307
                %v309 = vld [vmem:[%s167 + $0x410] sm:$0xff]
                %310 = vst [vmem:[%s168 + $0x230] sm:$0xff] %v309
                %v311 = vld [vmem:[%s167 + $0x418] sm:$0xff]
                %312 = vst [vmem:[%s168 + $0x238] sm:$0xff] %v311
                %v313 = vld [vmem:[%s167 + $0x420] sm:$0xff]
                %314 = vst [vmem:[%s168 + $0x240] sm:$0xff] %v313
                %v315 = vld [vmem:[%s167 + $0x428] sm:$0xff]
                %316 = vst [vmem:[%s168 + $0x248] sm:$0xff] %v315
                %v317 = vld [vmem:[%s167 + $0x430] sm:$0xff]
                %318 = vst [vmem:[%s168 + $0x250] sm:$0xff] %v317
                %v319 = vld [vmem:[%s167 + $0x438] sm:$0xff]
                %320 = vst [vmem:[%s168 + $0x258] sm:$0xff] %v319
                %v321 = vld [vmem:[%s167 + $0x440] sm:$0xff]
                %322 = vst [vmem:[%s168 + $0x260] sm:$0xff] %v321
                %v323 = vld [vmem:[%s167 + $0x448] sm:$0xff]
                %324 = vst [vmem:[%s168 + $0x268] sm:$0xff] %v323
                %v325 = vld [vmem:[%s167 + $0x450] sm:$0xff]
                %326 = vst [vmem:[%s168 + $0x270] sm:$0xff] %v325
                %v327 = vld [vmem:[%s167 + $0x458] sm:$0xff]
                %328 = vst [vmem:[%s168 + $0x278] sm:$0xff] %v327
                %v329 = vld [vmem:[%s167 + $0x460] sm:$0xff]
                %330 = vst [vmem:[%s168 + $0x280] sm:$0xff] %v329
                %v331 = vld [vmem:[%s167 + $0x468] sm:$0xff]
                %332 = vst [vmem:[%s168 + $0x288] sm:$0xff] %v331
                %v333 = vld [vmem:[%s167 + $0x470] sm:$0xff]
                %334 = vst [vmem:[%s168 + $0x290] sm:$0xff] %v333
                %v335 = vld [vmem:[%s167 + $0x478] sm:$0xff]
                %336 = vst [vmem:[%s168 + $0x298] sm:$0xff] %v335
                %v337 = vld [vmem:[%s167 + $0x480] sm:$0xff]
                %338 = vst [vmem:[%s168 + $0x2a0] sm:$0xff] %v337
                %v339 = vld [vmem:[%s167 + $0x488] sm:$0xff]
                %340 = vst [vmem:[%s168 + $0x2a8] sm:$0xff] %v339
                %v341 = vld [vmem:[%s167 + $0x490] sm:$0xff]
                %342 = vst [vmem:[%s168 + $0x2b0] sm:$0xff] %v341
                %v343 = vld [vmem:[%s167 + $0x498] sm:$0xff]
                %344 = vst [vmem:[%s168 + $0x2b8] sm:$0xff] %v343
                %v345 = vld [vmem:[%s167 + $0x4a0] sm:$0xff]
                %346 = vst [vmem:[%s168 + $0x2c0] sm:$0xff] %v345
                %v347 = vld [vmem:[%s167 + $0x4a8] sm:$0xff]
                %348 = vst [vmem:[%s168 + $0x2c8] sm:$0xff] %v347
                %v349 = vld [vmem:[%s167 + $0x4b0] sm:$0xff]
                %350 = vst [vmem:[%s168 + $0x2d0] sm:$0xff] %v349
                %v351 = vld [vmem:[%s167 + $0x4b8] sm:$0xff]
                %352 = vst [vmem:[%s168 + $0x2d8] sm:$0xff] %v351
                %v353 = vld [vmem:[%s167 + $0x4c0] sm:$0xff]
                %354 = vst [vmem:[%s168 + $0x2e0] sm:$0xff] %v353
                %v355 = vld [vmem:[%s167 + $0x4c8] sm:$0xff]
                %356 = vst [vmem:[%s168 + $0x2e8] sm:$0xff] %v355
                %v357 = vld [vmem:[%s167 + $0x4d0] sm:$0xff]
                %358 = vst [vmem:[%s168 + $0x2f0] sm:$0xff] %v357
                %v359 = vld [vmem:[%s167 + $0x4d8] sm:$0xff]
                %360 = vst [vmem:[%s168 + $0x2f8] sm:$0xff] %v359
                %v361 = vld [vmem:[%s167 + $0x4e0] sm:$0xff]
                %362 = vst [vmem:[%s168 + $0x300] sm:$0xff] %v361
                %v363 = vld [vmem:[%s167 + $0x4e8] sm:$0xff]
                %364 = vst [vmem:[%s168 + $0x308] sm:$0xff] %v363
                %v365 = vld [vmem:[%s167 + $0x4f0] sm:$0xff]
                %366 = vst [vmem:[%s168 + $0x310] sm:$0xff] %v365
                %v367 = vld [vmem:[%s167 + $0x4f8] sm:$0xff]
                %368 = vst [vmem:[%s168 + $0x318] sm:$0xff] %v367
                %v369 = vld [vmem:[%s167 + $0x500] sm:$0xff]
                %370 = vst [vmem:[%s168 + $0x320] sm:$0xff] %v369
                %v371 = vld [vmem:[%s167 + $0x508] sm:$0xff]
                %372 = vst [vmem:[%s168 + $0x328] sm:$0xff] %v371
                %v373 = vld [vmem:[%s167 + $0x510] sm:$0xff]
                %374 = vst [vmem:[%s168 + $0x330] sm:$0xff] %v373
                %v375 = vld [vmem:[%s167 + $0x518] sm:$0xff]
                %376 = vst [vmem:[%s168 + $0x338] sm:$0xff] %v375
                %v377 = vld [vmem:[%s167 + $0x520] sm:$0xff]
                %378 = vst [vmem:[%s168 + $0x340] sm:$0xff] %v377
                %v379 = vld [vmem:[%s167 + $0x528] sm:$0xff]
                %380 = vst [vmem:[%s168 + $0x348] sm:$0xff] %v379
                %v381 = vld [vmem:[%s167 + $0x530] sm:$0xff]
                %382 = vst [vmem:[%s168 + $0x350] sm:$0xff] %v381
                %v383 = vld [vmem:[%s167 + $0x538] sm:$0xff]
                %384 = vst [vmem:[%s168 + $0x358] sm:$0xff] %v383
                %v385 = vld [vmem:[%s167 + $0x540] sm:$0xff]
                %386 = vst [vmem:[%s168 + $0x360] sm:$0xff] %v385
                %v387 = vld [vmem:[%s167 + $0x548] sm:$0xff]
                %388 = vst [vmem:[%s168 + $0x368] sm:$0xff] %v387
                %v389 = vld [vmem:[%s167 + $0x550] sm:$0xff]
                %390 = vst [vmem:[%s168 + $0x370] sm:$0xff] %v389
                %v391 = vld [vmem:[%s167 + $0x558] sm:$0xff]
                %392 = vst [vmem:[%s168 + $0x378] sm:$0xff] %v391
                %v393 = vld [vmem:[%s167 + $0x560] sm:$0xff]
                %394 = vst [vmem:[%s168 + $0x380] sm:$0xff] %v393
                %v395 = vld [vmem:[%s167 + $0x568] sm:$0xff]
                %396 = vst [vmem:[%s168 + $0x388] sm:$0xff] %v395
                %v397 = vld [vmem:[%s167 + $0x570] sm:$0xff]
                %398 = vst [vmem:[%s168 + $0x390] sm:$0xff] %v397
                %v399 = vld [vmem:[%s167 + $0x578] sm:$0xff]
                %400 = vst [vmem:[%s168 + $0x398] sm:$0xff] %v399
                %v401 = vld [vmem:[%s167 + $0x580] sm:$0xff]
                %402 = vst [vmem:[%s168 + $0x3a0] sm:$0xff] %v401
                %v403 = vld [vmem:[%s167 + $0x588] sm:$0xff]
                %404 = vst [vmem:[%s168 + $0x3a8] sm:$0xff] %v403
                %v405 = vld [vmem:[%s167 + $0x590] sm:$0xff]
                %406 = vst [vmem:[%s168 + $0x3b0] sm:$0xff] %v405
                %v407 = vld [vmem:[%s167 + $0x598] sm:$0xff]
                %408 = vst [vmem:[%s168 + $0x3b8] sm:$0xff] %v407
              $region41: #{cnn20_forward.4} parent=35 // loop_footer
                %s166 = sadd.s32 1, %s162
              $region42: #{cnn20_forward.4} parent=35 // loop_footer_branch
                %161 = sbr.rel target = $region38
              $region43: #{cnn20_forward.4} parent=35 // loop_exit
                _
            $region36: #{cnn20_forward.4} parent=31 // pred_fallthru
              _
            // Predicated region
            $region44: #{cnn20_forward.4} parent=31 // pred_check
              _
            $region45: #{cnn20_forward.4} parent=31 // pred_check_branch
              %410 = sbr.rel target = $region47
            $region46: #{cnn20_forward.4} parent=31 // pred_region
              _
            $region47: #{cnn20_forward.4} parent=31 // pred_fallthru
              _
          $region32: #{cnn20_forward.4} parent=27 // pred_fallthru
            _
          %411 = vnop
        $region28: #{cnn20_forward.4} parent=23 // pred_fallthru
          _
      $region24: #{cnn20_forward.4} parent=5 // pred_fallthru
        _
      %p412 = scmp.le.s32.totalorder 1, %s9
      %p413 = scmp.lt.s32.totalorder %s9, 5
      %p414 = pnand %p412, %p413
      %p415 = pneg %p414
      // Predicated region
      $region48: #{cnn20_forward.4} parent=5 // pred_check
        _
      $region49: #{cnn20_forward.4} parent=5 // pred_check_branch
        %417 = sbr.rel (%p414) target = $region51
      $region50: #{cnn20_forward.4} parent=5 // pred_region
        %s418 = ssub.s32 %s9, 1
        %s419 = sand.u32 %s36, 1
        %s420 = sand.u32 %s36, 1
        %s421 = smul.addr %s420, 960
        %s422 = scalar_lea.vmem [#allocation2], %s421
        // Predicated region
        $region52: #{cnn20_forward.4} parent=50 // pred_check
          %p423 = pneg %p49
        $region53: #{cnn20_forward.4} parent=50 // pred_check_branch
          %425 = sbr.rel (%p423) target = $region55
        $region54: #{cnn20_forward.4} parent=50 // pred_region
          _
        $region55: #{cnn20_forward.4} parent=50 // pred_fallthru
          _
        %s426 = sand.u32 %s36, 1
        %s427 = sand.u32 %s36, 1
        %s428 = smul.addr %s427, 960
        %s429 = scalar_lea.vmem [#allocation2], %s428
        %p430 = pneg %p49
        %p431 = pneg %p46
        %p432 = pneg %p70
        %p433 = pneg %p67
        %p434 = pneg %p91
        %p435 = pneg %p88
        %p436 = pneg %p119
        %p437 = pneg %p116
        %s438 = smul.u32 15, %s19
        %p439 = scmp.lt.s32.totalorder %s18, 1
        %s440 = scalar_select %p439, %s18, 1
        %p441 = scmp.lt.s32.totalorder %s438, 29
        %s442 = scalar_select %p441, %s438, 29
        %s443 = smul.addr %s440, 30
        %s444 = sadd.s32 %s442, %s443
        %s445 = smul.addr %s444, 4
        %s446 = scalar_lea.vmem %s3, %s445
        %s447 = smul.u32 15, %s19
        %s448 = smul.u32 15, %s19
        %p449 = scmp.lt.s32.totalorder %s18, 1
        %s450 = scalar_select %p449, %s18, 1
        %p451 = scmp.lt.s32.totalorder %s448, 29
        %s452 = scalar_select %p451, %s448, 29
        %s453 = smul.addr %s450, 30
        %s454 = sadd.s32 %s452, %s453
        %s455 = smul.addr %s454, 4
        %s456 = scalar_lea.vmem %s3, %s455
        %s457 = smul.u32 15, %s19
        %v459 = vld [vmem:[%s1] sm:$0xf]
        %v460 = vld [vmem:[%s1 + $0x4] sm:$0xf]
        %v461 = vld [vmem:[%s1 + $0x8] sm:$0xf]
        %v462 = vld [vmem:[%s1 + $0xc] sm:$0xf]
        %v463 = vld [vmem:[%s1 + $0x10] sm:$0xf]
        %v464 = vld [vmem:[%s1 + $0x14] sm:$0xf]
        %v465 = vld [vmem:[%s1 + $0x18] sm:$0xf]
        %v466 = vld [vmem:[%s1 + $0x1c] sm:$0xf]
        %v467 = vld [vmem:[%s1 + $0x20] sm:$0xf]
        %v468 = vld [vmem:[%s1 + $0x24] sm:$0xf]
        %v469 = vld [vmem:[%s1 + $0x28] sm:$0xf]
        %v470 = vld [vmem:[%s1 + $0x2c] sm:$0xf]
        %v471 = vld [vmem:[%s1 + $0x30] sm:$0xf]
        %v472 = vld [vmem:[%s1 + $0x34] sm:$0xf]
        %v473 = vld [vmem:[%s1 + $0x38] sm:$0xf]
        %v474 = vld [vmem:[%s1 + $0x3c] sm:$0xf]
        %v475 = vld [vmem:[%s1 + $0x40] sm:$0xf]
        %v476 = vld [vmem:[%s1 + $0x44] sm:$0xf]
        %v477 = vld [vmem:[%s1 + $0x48] sm:$0xf]
        %v478 = vld [vmem:[%s1 + $0x4c] sm:$0xf]
        %v479 = vld [vmem:[%s1 + $0x50] sm:$0xf]
        %v480 = vld [vmem:[%s1 + $0x54] sm:$0xf]
        %v481 = vld [vmem:[%s1 + $0x58] sm:$0xf]
        %v482 = vld [vmem:[%s1 + $0x5c] sm:$0xf]
        %v483 = vld [vmem:[%s1 + $0x60] sm:$0xf]
        %v484 = vld [vmem:[%s1 + $0x64] sm:$0xf]
        %v485 = vld [vmem:[%s1 + $0x68] sm:$0xf]
        %v486 = vld [vmem:[%s1 + $0x6c] sm:$0xf]
        %v487 = vld [vmem:[%s1 + $0x70] sm:$0xf]
        %v488 = vld [vmem:[%s1 + $0x74] sm:$0xf]
        %v489 = vld [vmem:[%s1 + $0x78] sm:$0xf]
        %v490 = vld [vmem:[%s1 + $0x7c] sm:$0xf]
        %v491 = vld [vmem:[%s1 + $0x80] sm:$0xf]
        %v492 = vld [vmem:[%s1 + $0x84] sm:$0xf]
        %v493 = vld [vmem:[%s1 + $0x88] sm:$0xf]
        %v494 = vld [vmem:[%s1 + $0x8c] sm:$0xf]
        %v495 = vld [vmem:[%s1 + $0x90] sm:$0xf]
        %v496 = vld [vmem:[%s1 + $0x94] sm:$0xf]
        %v497 = vld [vmem:[%s1 + $0x98] sm:$0xf]
        %v498 = vld [vmem:[%s1 + $0x9c] sm:$0xf]
        %v499 = vld [vmem:[%s1 + $0xa0] sm:$0xf]
        %v500 = vld [vmem:[%s1 + $0xa4] sm:$0xf]
        %v501 = vld [vmem:[%s1 + $0xa8] sm:$0xf]
        %v502 = vld [vmem:[%s1 + $0xac] sm:$0xf]
        %v503 = vld [vmem:[%s1 + $0xb0] sm:$0xf]
        %v504 = vld [vmem:[%s1 + $0xb4] sm:$0xf]
        %v505 = vld [vmem:[%s1 + $0xb8] sm:$0xf]
        %v506 = vld [vmem:[%s1 + $0xbc] sm:$0xf]
        %v507 = vld [vmem:[%s1 + $0xc0] sm:$0xf]
        %v508 = vld [vmem:[%s1 + $0xc4] sm:$0xf]
        %v509 = vld [vmem:[%s1 + $0xc8] sm:$0xf]
        %v510 = vld [vmem:[%s1 + $0xcc] sm:$0xf]
        %v511 = vld [vmem:[%s1 + $0xd0] sm:$0xf]
        %v512 = vld [vmem:[%s1 + $0xd4] sm:$0xf]
        %v513 = vld [vmem:[%s1 + $0xd8] sm:$0xf]
        %v514 = vld [vmem:[%s1 + $0xdc] sm:$0xf]
        %v515 = vld [vmem:[%s1 + $0xe0] sm:$0xf]
        %v516 = vld [vmem:[%s1 + $0xe4] sm:$0xf]
        %v517 = vld [vmem:[%s1 + $0xe8] sm:$0xf]
        %v518 = vld [vmem:[%s1 + $0xec] sm:$0xf]
        %v519 = vld [vmem:[%s1 + $0xf0] sm:$0xf]
        %v520 = vld [vmem:[%s1 + $0xf4] sm:$0xf]
        %v521 = vld [vmem:[%s1 + $0xf8] sm:$0xf]
        %v522 = vld [vmem:[%s1 + $0xfc] sm:$0xf]
        %v523 = vld [vmem:[%s1 + $0x100] sm:$0xf]
        %v524 = vld [vmem:[%s1 + $0x104] sm:$0xf]
        %v525 = vld [vmem:[%s1 + $0x108] sm:$0xf]
        %v526 = vld [vmem:[%s1 + $0x10c] sm:$0xf]
        %v527 = vld [vmem:[%s1 + $0x110] sm:$0xf]
        %v528 = vld [vmem:[%s1 + $0x114] sm:$0xf]
        %v529 = vld [vmem:[%s1 + $0x118] sm:$0xf]
        %v530 = vld [vmem:[%s1 + $0x11c] sm:$0xf]
        %v531 = vld [vmem:[%s1 + $0x120] sm:$0xf]
        %v532 = vld [vmem:[%s1 + $0x124] sm:$0xf]
        %v533 = vld [vmem:[%s1 + $0x128] sm:$0xf]
        %v534 = vld [vmem:[%s1 + $0x12c] sm:$0xf]
        %v535 = vld [vmem:[%s1 + $0x130] sm:$0xf]
        %v536 = vld [vmem:[%s1 + $0x134] sm:$0xf]
        %v537 = vld [vmem:[%s1 + $0x138] sm:$0xf]
        %v538 = vld [vmem:[%s1 + $0x13c] sm:$0xf]
        %v539 = vld [vmem:[%s1 + $0x140] sm:$0xf]
        %v540 = vld [vmem:[%s1 + $0x144] sm:$0xf]
        %v541 = vld [vmem:[%s1 + $0x148] sm:$0xf]
        %v542 = vld [vmem:[%s1 + $0x14c] sm:$0xf]
        %v543 = vld [vmem:[%s1 + $0x150] sm:$0xf]
        %v544 = vld [vmem:[%s1 + $0x154] sm:$0xf]
        %v545 = vld [vmem:[%s1 + $0x158] sm:$0xf]
        %v546 = vld [vmem:[%s1 + $0x15c] sm:$0xf]
        %v547 = vld [vmem:[%s1 + $0x160] sm:$0xf]
        %v548 = vld [vmem:[%s1 + $0x164] sm:$0xf]
        %v549 = vld [vmem:[%s1 + $0x168] sm:$0xf]
        %v550 = vld [vmem:[%s1 + $0x16c] sm:$0xf]
        %v551 = vld [vmem:[%s1 + $0x170] sm:$0xf]
        %v552 = vld [vmem:[%s1 + $0x174] sm:$0xf]
        %v553 = vld [vmem:[%s1 + $0x178] sm:$0xf]
        %v554 = vld [vmem:[%s1 + $0x17c] sm:$0xf]
        %v555 = vld [vmem:[%s1 + $0x180] sm:$0xf]
        %v556 = vld [vmem:[%s1 + $0x184] sm:$0xf]
        %v557 = vld [vmem:[%s1 + $0x188] sm:$0xf]
        %v558 = vld [vmem:[%s1 + $0x18c] sm:$0xf]
        %v559 = vld [vmem:[%s1 + $0x190] sm:$0xf]
        %v560 = vld [vmem:[%s1 + $0x194] sm:$0xf]
        %v561 = vld [vmem:[%s1 + $0x198] sm:$0xf]
        %v562 = vld [vmem:[%s1 + $0x19c] sm:$0xf]
        %v563 = vld [vmem:[%s1 + $0x1a0] sm:$0xf]
        %v564 = vld [vmem:[%s1 + $0x1a4] sm:$0xf]
        %v565 = vld [vmem:[%s1 + $0x1a8] sm:$0xf]
        %v566 = vld [vmem:[%s1 + $0x1ac] sm:$0xf]
        %v567 = vld [vmem:[%s1 + $0x1b0] sm:$0xf]
        %v568 = vld [vmem:[%s1 + $0x1b4] sm:$0xf]
        %v569 = vld [vmem:[%s1 + $0x1b8] sm:$0xf]
        %v570 = vld [vmem:[%s1 + $0x1bc] sm:$0xf]
        %v571 = vld [vmem:[%s1 + $0x1c0] sm:$0xf]
        %v572 = vld [vmem:[%s1 + $0x1c4] sm:$0xf]
        %v573 = vld [vmem:[%s1 + $0x1c8] sm:$0xf]
        %v574 = vld [vmem:[%s1 + $0x1cc] sm:$0xf]
        %v575 = vld [vmem:[%s1 + $0x1d0] sm:$0xf]
        %v576 = vld [vmem:[%s1 + $0x1d4] sm:$0xf]
        %v577 = vld [vmem:[%s1 + $0x1d8] sm:$0xf]
        %v578 = vld [vmem:[%s1 + $0x1dc] sm:$0xf]
        %v579 = vld [vmem:[%s1 + $0x1e0] sm:$0xf]
        %v580 = vld [vmem:[%s1 + $0x1e4] sm:$0xf]
        %v581 = vld [vmem:[%s1 + $0x1e8] sm:$0xf]
        %v582 = vld [vmem:[%s1 + $0x1ec] sm:$0xf]
        %v583 = vld [vmem:[%s1 + $0x1f0] sm:$0xf]
        %v584 = vld [vmem:[%s1 + $0x1f4] sm:$0xf]
        %v585 = vld [vmem:[%s1 + $0x1f8] sm:$0xf]
        %v586 = vld [vmem:[%s1 + $0x1fc] sm:$0xf]
        %v587 = vld [vmem:[%s422] sm:$0xff]
        %v588 = vld [vmem:[%s422 + $0x8] sm:$0xff]
        %v589 = vld [vmem:[%s422 + $0x10] sm:$0xff]
        %v590 = vld [vmem:[%s422 + $0x18] sm:$0xff]
        %v591 = vld [vmem:[%s422 + $0x20] sm:$0xff]
        %v592 = vld [vmem:[%s422 + $0x28] sm:$0xff]
        %v593 = vld [vmem:[%s422 + $0x30] sm:$0xff]
        %v594 = vld [vmem:[%s422 + $0x38] sm:$0xff]
        %v595 = vld [vmem:[%s422 + $0x40] sm:$0xff]
        %v596 = vld [vmem:[%s422 + $0x48] sm:$0xff]
        %v597 = vld [vmem:[%s422 + $0x50] sm:$0xff]
        %v598 = vld [vmem:[%s422 + $0x58] sm:$0xff]
        %v599 = vld [vmem:[%s422 + $0x60] sm:$0xff]
        %v600 = vld [vmem:[%s422 + $0x68] sm:$0xff]
        %v601 = vld [vmem:[%s422 + $0x70] sm:$0xff]
        %v602 = vld [vmem:[%s422 + $0x78] sm:$0xff]
        %v603 = vld [vmem:[%s422 + $0x80] sm:$0xff]
        %v604 = vld [vmem:[%s422 + $0x88] sm:$0xff]
        %v605 = vld [vmem:[%s422 + $0x90] sm:$0xff]
        %v606 = vld [vmem:[%s422 + $0x98] sm:$0xff]
        %v607 = vld [vmem:[%s422 + $0xa0] sm:$0xff]
        %v608 = vld [vmem:[%s422 + $0xa8] sm:$0xff]
        %v609 = vld [vmem:[%s422 + $0xb0] sm:$0xff]
        %v610 = vld [vmem:[%s422 + $0xb8] sm:$0xff]
        %v611 = vld [vmem:[%s422 + $0xc0] sm:$0xff]
        %v612 = vld [vmem:[%s422 + $0xc8] sm:$0xff]
        %v613 = vld [vmem:[%s422 + $0xd0] sm:$0xff]
        %v614 = vld [vmem:[%s422 + $0xd8] sm:$0xff]
        %v615 = vld [vmem:[%s422 + $0xe0] sm:$0xff]
        %v616 = vld [vmem:[%s422 + $0xe8] sm:$0xff]
        %v617 = vld [vmem:[%s422 + $0xf0] sm:$0xff]
        %v618 = vld [vmem:[%s422 + $0xf8] sm:$0xff]
        %v619 = vld [vmem:[%s422 + $0x100] sm:$0xff]
        %v620 = vld [vmem:[%s422 + $0x108] sm:$0xff]
        %v621 = vld [vmem:[%s422 + $0x110] sm:$0xff]
        %v622 = vld [vmem:[%s422 + $0x118] sm:$0xff]
        %v623 = vld [vmem:[%s422 + $0x120] sm:$0xff]
        %v624 = vld [vmem:[%s422 + $0x128] sm:$0xff]
        %v625 = vld [vmem:[%s422 + $0x130] sm:$0xff]
        %v626 = vld [vmem:[%s422 + $0x138] sm:$0xff]
        %v627 = vld [vmem:[%s422 + $0x140] sm:$0xff]
        %v628 = vld [vmem:[%s422 + $0x148] sm:$0xff]
        %v629 = vld [vmem:[%s422 + $0x150] sm:$0xff]
        %v630 = vld [vmem:[%s422 + $0x158] sm:$0xff]
        %v631 = vld [vmem:[%s422 + $0x160] sm:$0xff]
        %v632 = vld [vmem:[%s422 + $0x168] sm:$0xff]
        %v633 = vld [vmem:[%s422 + $0x170] sm:$0xff]
        %v634 = vld [vmem:[%s422 + $0x178] sm:$0xff]
        %v635 = vld [vmem:[%s422 + $0x180] sm:$0xff]
        %v636 = vld [vmem:[%s422 + $0x188] sm:$0xff]
        %v637 = vld [vmem:[%s422 + $0x190] sm:$0xff]
        %v638 = vld [vmem:[%s422 + $0x198] sm:$0xff]
        %v639 = vld [vmem:[%s422 + $0x1a0] sm:$0xff]
        %v640 = vld [vmem:[%s422 + $0x1a8] sm:$0xff]
        %v641 = vld [vmem:[%s422 + $0x1b0] sm:$0xff]
        %v642 = vld [vmem:[%s422 + $0x1b8] sm:$0xff]
        %v643 = vld [vmem:[%s422 + $0x1c0] sm:$0xff]
        %v644 = vld [vmem:[%s422 + $0x1c8] sm:$0xff]
        %v645 = vld [vmem:[%s422 + $0x1d0] sm:$0xff]
        %v646 = vld [vmem:[%s422 + $0x1d8] sm:$0xff]
        %v707 = vunpack.c.l.b16 %v587
        %v708 = vunpack.c.h.b16 %v587
        %v709 = vunpack.c.l.b16 %v588
        %v710 = vunpack.c.h.b16 %v588
        %v711 = vunpack.c.l.b16 %v589
        %v712 = vunpack.c.h.b16 %v589
        %v713 = vunpack.c.l.b16 %v590
        %v714 = vunpack.c.h.b16 %v590
        %v715 = vunpack.c.l.b16 %v591
        %v716 = vunpack.c.h.b16 %v591
        %v717 = vunpack.c.l.b16 %v592
        %v718 = vunpack.c.h.b16 %v592
        %v719 = vunpack.c.l.b16 %v593
        %v720 = vunpack.c.h.b16 %v593
        %v721 = vunpack.c.l.b16 %v594
        %v722 = vunpack.c.h.b16 %v594
        %v723 = vunpack.c.l.b16 %v595
        %v724 = vunpack.c.h.b16 %v595
        %v725 = vunpack.c.l.b16 %v596
        %v726 = vunpack.c.h.b16 %v596
        %v727 = vunpack.c.l.b16 %v597
        %v728 = vunpack.c.h.b16 %v597
        %v729 = vunpack.c.l.b16 %v598
        %v730 = vunpack.c.h.b16 %v598
        %v731 = vunpack.c.l.b16 %v599
        %v732 = vunpack.c.h.b16 %v599
        %v733 = vunpack.c.l.b16 %v600
        %v734 = vunpack.c.h.b16 %v600
        %v735 = vunpack.c.l.b16 %v601
        %v736 = vunpack.c.h.b16 %v601
        %v737 = vunpack.c.l.b16 %v602
        %v738 = vunpack.c.h.b16 %v602
        %v739 = vunpack.c.l.b16 %v603
        %v740 = vunpack.c.h.b16 %v603
        %v741 = vunpack.c.l.b16 %v604
        %v742 = vunpack.c.h.b16 %v604
        %v743 = vunpack.c.l.b16 %v605
        %v744 = vunpack.c.h.b16 %v605
        %v745 = vunpack.c.l.b16 %v606
        %v746 = vunpack.c.h.b16 %v606
        %v747 = vunpack.c.l.b16 %v607
        %v748 = vunpack.c.h.b16 %v607
        %v749 = vunpack.c.l.b16 %v608
        %v750 = vunpack.c.h.b16 %v608
        %v751 = vunpack.c.l.b16 %v609
        %v752 = vunpack.c.h.b16 %v609
        %v753 = vunpack.c.l.b16 %v610
        %v754 = vunpack.c.h.b16 %v610
        %v755 = vunpack.c.l.b16 %v611
        %v756 = vunpack.c.h.b16 %v611
        %v757 = vunpack.c.l.b16 %v612
        %v758 = vunpack.c.h.b16 %v612
        %v759 = vunpack.c.l.b16 %v613
        %v760 = vunpack.c.h.b16 %v613
        %v761 = vunpack.c.l.b16 %v614
        %v762 = vunpack.c.h.b16 %v614
        %v763 = vunpack.c.l.b16 %v615
        %v764 = vunpack.c.h.b16 %v615
        %v765 = vunpack.c.l.b16 %v616
        %v766 = vunpack.c.h.b16 %v616
        %v767 = vunpack.c.l.b16 %v617
        %v768 = vunpack.c.h.b16 %v617
        %v769 = vunpack.c.l.b16 %v618
        %v770 = vunpack.c.h.b16 %v618
        %v771 = vunpack.c.l.b16 %v619
        %v772 = vunpack.c.h.b16 %v619
        %v773 = vunpack.c.l.b16 %v620
        %v774 = vunpack.c.h.b16 %v620
        %v775 = vunpack.c.l.b16 %v621
        %v776 = vunpack.c.h.b16 %v621
        %v777 = vunpack.c.l.b16 %v622
        %v778 = vunpack.c.h.b16 %v622
        %v779 = vunpack.c.l.b16 %v623
        %v780 = vunpack.c.h.b16 %v623
        %v781 = vunpack.c.l.b16 %v624
        %v782 = vunpack.c.h.b16 %v624
        %v783 = vunpack.c.l.b16 %v625
        %v784 = vunpack.c.h.b16 %v625
        %v785 = vunpack.c.l.b16 %v626
        %v786 = vunpack.c.h.b16 %v626
        %v787 = vunpack.c.l.b16 %v627
        %v788 = vunpack.c.h.b16 %v627
        %v789 = vunpack.c.l.b16 %v628
        %v790 = vunpack.c.h.b16 %v628
        %v791 = vunpack.c.l.b16 %v629
        %v792 = vunpack.c.h.b16 %v629
        %v793 = vunpack.c.l.b16 %v630
        %v794 = vunpack.c.h.b16 %v630
        %v795 = vunpack.c.l.b16 %v631
        %v796 = vunpack.c.h.b16 %v631
        %v797 = vunpack.c.l.b16 %v632
        %v798 = vunpack.c.h.b16 %v632
        %v799 = vunpack.c.l.b16 %v633
        %v800 = vunpack.c.h.b16 %v633
        %v801 = vunpack.c.l.b16 %v634
        %v802 = vunpack.c.h.b16 %v634
        %v803 = vunpack.c.l.b16 %v635
        %v804 = vunpack.c.h.b16 %v635
        %v805 = vunpack.c.l.b16 %v636
        %v806 = vunpack.c.h.b16 %v636
        %v807 = vunpack.c.l.b16 %v637
        %v808 = vunpack.c.h.b16 %v637
        %v809 = vunpack.c.l.b16 %v638
        %v810 = vunpack.c.h.b16 %v638
        %v811 = vunpack.c.l.b16 %v639
        %v812 = vunpack.c.h.b16 %v639
        %v813 = vunpack.c.l.b16 %v640
        %v814 = vunpack.c.h.b16 %v640
        %v815 = vunpack.c.l.b16 %v641
        %v816 = vunpack.c.h.b16 %v641
        %v817 = vunpack.c.l.b16 %v642
        %v818 = vunpack.c.h.b16 %v642
        %v819 = vunpack.c.l.b16 %v643
        %v820 = vunpack.c.h.b16 %v643
        %v821 = vunpack.c.l.b16 %v644
        %v822 = vunpack.c.h.b16 %v644
        %v823 = vunpack.c.l.b16 %v645
        %v824 = vunpack.c.h.b16 %v645
        %v825 = vunpack.c.l.b16 %v646
        %v826 = vunpack.c.h.b16 %v646
        %v827 = vpack.c.b16 %v715, %v707
        %v828 = vpack.c.b16 %v716, %v708
        %v829 = vpack.c.b16 %v717, %v709
        %v830 = vpack.c.b16 %v718, %v710
        %v831 = vpack.c.b16 %v719, %v711
        %v832 = vpack.c.b16 %v720, %v712
        %v833 = vpack.c.b16 %v721, %v713
        %v834 = vpack.c.b16 %v722, %v714
        %v835 = vpack.c.b16 %v731, %v723
        %v836 = vpack.c.b16 %v732, %v724
        %v837 = vpack.c.b16 %v733, %v725
        %v838 = vpack.c.b16 %v734, %v726
        %v839 = vpack.c.b16 %v735, %v727
        %v840 = vpack.c.b16 %v736, %v728
        %v841 = vpack.c.b16 %v737, %v729
        %v842 = vpack.c.b16 %v738, %v730
        %v843 = vpack.c.b16 %v747, %v739
        %v844 = vpack.c.b16 %v748, %v740
        %v845 = vpack.c.b16 %v749, %v741
        %v846 = vpack.c.b16 %v750, %v742
        %v847 = vpack.c.b16 %v751, %v743
        %v848 = vpack.c.b16 %v752, %v744
        %v849 = vpack.c.b16 %v753, %v745
        %v850 = vpack.c.b16 %v754, %v746
        %v851 = vpack.c.b16 %v763, %v755
        %v852 = vpack.c.b16 %v764, %v756
        %v853 = vpack.c.b16 %v765, %v757
        %v854 = vpack.c.b16 %v766, %v758
        %v855 = vpack.c.b16 %v767, %v759
        %v856 = vpack.c.b16 %v768, %v760
        %v857 = vpack.c.b16 %v769, %v761
        %v858 = vpack.c.b16 %v770, %v762
        %v859 = vpack.c.b16 %v779, %v771
        %v860 = vpack.c.b16 %v780, %v772
        %v861 = vpack.c.b16 %v781, %v773
        %v862 = vpack.c.b16 %v782, %v774
        %v863 = vpack.c.b16 %v783, %v775
        %v864 = vpack.c.b16 %v784, %v776
        %v865 = vpack.c.b16 %v785, %v777
        %v866 = vpack.c.b16 %v786, %v778
        %v867 = vpack.c.b16 %v795, %v787
        %v868 = vpack.c.b16 %v796, %v788
        %v869 = vpack.c.b16 %v797, %v789
        %v870 = vpack.c.b16 %v798, %v790
        %v871 = vpack.c.b16 %v799, %v791
        %v872 = vpack.c.b16 %v800, %v792
        %v873 = vpack.c.b16 %v801, %v793
        %v874 = vpack.c.b16 %v802, %v794
        %v875 = vpack.c.b16 %v811, %v803
        %v876 = vpack.c.b16 %v812, %v804
        %v877 = vpack.c.b16 %v813, %v805
        %v878 = vpack.c.b16 %v814, %v806
        %v879 = vpack.c.b16 %v815, %v807
        %v880 = vpack.c.b16 %v816, %v808
        %v881 = vpack.c.b16 %v817, %v809
        %v882 = vpack.c.b16 %v818, %v810
        %v883 = vpack.c.b16 %v819, %v819
        %v884 = vpack.c.b16 %v820, %v820
        %v885 = vpack.c.b16 %v821, %v821
        %v886 = vpack.c.b16 %v822, %v822
        %v887 = vpack.c.b16 %v823, %v823
        %v888 = vpack.c.b16 %v824, %v824
        %v889 = vpack.c.b16 %v825, %v825
        %v890 = vpack.c.b16 %v826, %v826
        %v1083 = vunpack.c.l.b16 %v459
        %v1084 = vunpack.c.l.b16 %v460
        %v1085 = vunpack.c.l.b16 %v461
        %v1086 = vunpack.c.l.b16 %v462
        %v1087 = vunpack.c.l.b16 %v463
        %v1088 = vunpack.c.l.b16 %v464
        %v1089 = vunpack.c.l.b16 %v465
        %v1090 = vunpack.c.l.b16 %v466
        %v1091 = vunpack.c.l.b16 %v467
        %v1092 = vunpack.c.l.b16 %v468
        %v1093 = vunpack.c.l.b16 %v469
        %v1094 = vunpack.c.l.b16 %v470
        %v1095 = vunpack.c.l.b16 %v471
        %v1096 = vunpack.c.l.b16 %v472
        %v1097 = vunpack.c.l.b16 %v473
        %v1098 = vunpack.c.l.b16 %v474
        %v1099 = vunpack.c.l.b16 %v475
        %v1100 = vunpack.c.l.b16 %v476
        %v1101 = vunpack.c.l.b16 %v477
        %v1102 = vunpack.c.l.b16 %v478
        %v1103 = vunpack.c.l.b16 %v479
        %v1104 = vunpack.c.l.b16 %v480
        %v1105 = vunpack.c.l.b16 %v481
        %v1106 = vunpack.c.l.b16 %v482
        %v1107 = vunpack.c.l.b16 %v483
        %v1108 = vunpack.c.l.b16 %v484
        %v1109 = vunpack.c.l.b16 %v485
        %v1110 = vunpack.c.l.b16 %v486
        %v1111 = vunpack.c.l.b16 %v487
        %v1112 = vunpack.c.l.b16 %v488
        %v1113 = vunpack.c.l.b16 %v489
        %v1114 = vunpack.c.l.b16 %v490
        %v1115 = vunpack.c.l.b16 %v491
        %v1116 = vunpack.c.l.b16 %v492
        %v1117 = vunpack.c.l.b16 %v493
        %v1118 = vunpack.c.l.b16 %v494
        %v1119 = vunpack.c.l.b16 %v495
        %v1120 = vunpack.c.l.b16 %v496
        %v1121 = vunpack.c.l.b16 %v497
        %v1122 = vunpack.c.l.b16 %v498
        %v1123 = vunpack.c.l.b16 %v499
        %v1124 = vunpack.c.l.b16 %v500
        %v1125 = vunpack.c.l.b16 %v501
        %v1126 = vunpack.c.l.b16 %v502
        %v1127 = vunpack.c.l.b16 %v503
        %v1128 = vunpack.c.l.b16 %v504
        %v1129 = vunpack.c.l.b16 %v505
        %v1130 = vunpack.c.l.b16 %v506
        %v1131 = vunpack.c.l.b16 %v507
        %v1132 = vunpack.c.l.b16 %v508
        %v1133 = vunpack.c.l.b16 %v509
        %v1134 = vunpack.c.l.b16 %v510
        %v1135 = vunpack.c.l.b16 %v511
        %v1136 = vunpack.c.l.b16 %v512
        %v1137 = vunpack.c.l.b16 %v513
        %v1138 = vunpack.c.l.b16 %v514
        %v1139 = vunpack.c.l.b16 %v515
        %v1140 = vunpack.c.l.b16 %v516
        %v1141 = vunpack.c.l.b16 %v517
        %v1142 = vunpack.c.l.b16 %v518
        %v1143 = vunpack.c.l.b16 %v519
        %v1144 = vunpack.c.l.b16 %v520
        %v1145 = vunpack.c.l.b16 %v521
        %v1146 = vunpack.c.l.b16 %v522
        %v1147 = vunpack.c.l.b16 %v523
        %v1148 = vunpack.c.l.b16 %v524
        %v1149 = vunpack.c.l.b16 %v525
        %v1150 = vunpack.c.l.b16 %v526
        %v1151 = vunpack.c.l.b16 %v527
        %v1152 = vunpack.c.l.b16 %v528
        %v1153 = vunpack.c.l.b16 %v529
        %v1154 = vunpack.c.l.b16 %v530
        %v1155 = vunpack.c.l.b16 %v531
        %v1156 = vunpack.c.l.b16 %v532
        %v1157 = vunpack.c.l.b16 %v533
        %v1158 = vunpack.c.l.b16 %v534
        %v1159 = vunpack.c.l.b16 %v535
        %v1160 = vunpack.c.l.b16 %v536
        %v1161 = vunpack.c.l.b16 %v537
        %v1162 = vunpack.c.l.b16 %v538
        %v1163 = vunpack.c.l.b16 %v539
        %v1164 = vunpack.c.l.b16 %v540
        %v1165 = vunpack.c.l.b16 %v541
        %v1166 = vunpack.c.l.b16 %v542
        %v1167 = vunpack.c.l.b16 %v543
        %v1168 = vunpack.c.l.b16 %v544
        %v1169 = vunpack.c.l.b16 %v545
        %v1170 = vunpack.c.l.b16 %v546
        %v1171 = vunpack.c.l.b16 %v547
        %v1172 = vunpack.c.l.b16 %v548
        %v1173 = vunpack.c.l.b16 %v549
        %v1174 = vunpack.c.l.b16 %v550
        %v1175 = vunpack.c.l.b16 %v551
        %v1176 = vunpack.c.l.b16 %v552
        %v1177 = vunpack.c.l.b16 %v553
        %v1178 = vunpack.c.l.b16 %v554
        %v1179 = vunpack.c.l.b16 %v555
        %v1180 = vunpack.c.l.b16 %v556
        %v1181 = vunpack.c.l.b16 %v557
        %v1182 = vunpack.c.l.b16 %v558
        %v1183 = vunpack.c.l.b16 %v559
        %v1184 = vunpack.c.l.b16 %v560
        %v1185 = vunpack.c.l.b16 %v561
        %v1186 = vunpack.c.l.b16 %v562
        %v1187 = vunpack.c.l.b16 %v563
        %v1188 = vunpack.c.l.b16 %v564
        %v1189 = vunpack.c.l.b16 %v565
        %v1190 = vunpack.c.l.b16 %v566
        %v1191 = vunpack.c.l.b16 %v567
        %v1192 = vunpack.c.l.b16 %v568
        %v1193 = vunpack.c.l.b16 %v569
        %v1194 = vunpack.c.l.b16 %v570
        %v1195 = vunpack.c.l.b16 %v571
        %v1196 = vunpack.c.l.b16 %v572
        %v1197 = vunpack.c.l.b16 %v573
        %v1198 = vunpack.c.l.b16 %v574
        %v1199 = vunpack.c.l.b16 %v575
        %v1200 = vunpack.c.l.b16 %v576
        %v1201 = vunpack.c.l.b16 %v577
        %v1202 = vunpack.c.l.b16 %v578
        %v1203 = vunpack.c.l.b16 %v579
        %v1204 = vunpack.c.l.b16 %v580
        %v1205 = vunpack.c.l.b16 %v581
        %v1206 = vunpack.c.l.b16 %v582
        %v1207 = vunpack.c.l.b16 %v583
        %v1208 = vunpack.c.l.b16 %v584
        %v1209 = vunpack.c.l.b16 %v585
        %v1210 = vunpack.c.l.b16 %v586
        %v1211 = vpack.c.b16 %v1084, %v1083
        %v1212 = vpack.c.b16 %v1086, %v1085
        %v1213 = vpack.c.b16 %v1088, %v1087
        %v1214 = vpack.c.b16 %v1090, %v1089
        %v1215 = vpack.c.b16 %v1092, %v1091
        %v1216 = vpack.c.b16 %v1094, %v1093
        %v1217 = vpack.c.b16 %v1096, %v1095
        %v1218 = vpack.c.b16 %v1098, %v1097
        %v1219 = vpack.c.b16 %v1100, %v1099
        %v1220 = vpack.c.b16 %v1102, %v1101
        %v1221 = vpack.c.b16 %v1104, %v1103
        %v1222 = vpack.c.b16 %v1106, %v1105
        %v1223 = vpack.c.b16 %v1108, %v1107
        %v1224 = vpack.c.b16 %v1110, %v1109
        %v1225 = vpack.c.b16 %v1112, %v1111
        %v1226 = vpack.c.b16 %v1114, %v1113
        %v1227 = vpack.c.b16 %v1116, %v1115
        %v1228 = vpack.c.b16 %v1118, %v1117
        %v1229 = vpack.c.b16 %v1120, %v1119
        %v1230 = vpack.c.b16 %v1122, %v1121
        %v1231 = vpack.c.b16 %v1124, %v1123
        %v1232 = vpack.c.b16 %v1126, %v1125
        %v1233 = vpack.c.b16 %v1128, %v1127
        %v1234 = vpack.c.b16 %v1130, %v1129
        %v1235 = vpack.c.b16 %v1132, %v1131
        %v1236 = vpack.c.b16 %v1134, %v1133
        %v1237 = vpack.c.b16 %v1136, %v1135
        %v1238 = vpack.c.b16 %v1138, %v1137
        %v1239 = vpack.c.b16 %v1140, %v1139
        %v1240 = vpack.c.b16 %v1142, %v1141
        %v1241 = vpack.c.b16 %v1144, %v1143
        %v1242 = vpack.c.b16 %v1146, %v1145
        %v1243 = vpack.c.b16 %v1148, %v1147
        %v1244 = vpack.c.b16 %v1150, %v1149
        %v1245 = vpack.c.b16 %v1152, %v1151
        %v1246 = vpack.c.b16 %v1154, %v1153
        %v1247 = vpack.c.b16 %v1156, %v1155
        %v1248 = vpack.c.b16 %v1158, %v1157
        %v1249 = vpack.c.b16 %v1160, %v1159
        %v1250 = vpack.c.b16 %v1162, %v1161
        %v1251 = vpack.c.b16 %v1164, %v1163
        %v1252 = vpack.c.b16 %v1166, %v1165
        %v1253 = vpack.c.b16 %v1168, %v1167
        %v1254 = vpack.c.b16 %v1170, %v1169
        %v1255 = vpack.c.b16 %v1172, %v1171
        %v1256 = vpack.c.b16 %v1174, %v1173
        %v1257 = vpack.c.b16 %v1176, %v1175
        %v1258 = vpack.c.b16 %v1178, %v1177
        %v1259 = vpack.c.b16 %v1180, %v1179
        %v1260 = vpack.c.b16 %v1182, %v1181
        %v1261 = vpack.c.b16 %v1184, %v1183
        %v1262 = vpack.c.b16 %v1186, %v1185
        %v1263 = vpack.c.b16 %v1188, %v1187
        %v1264 = vpack.c.b16 %v1190, %v1189
        %v1265 = vpack.c.b16 %v1192, %v1191
        %v1266 = vpack.c.b16 %v1194, %v1193
        %v1267 = vpack.c.b16 %v1196, %v1195
        %v1268 = vpack.c.b16 %v1198, %v1197
        %v1269 = vpack.c.b16 %v1200, %v1199
        %v1270 = vpack.c.b16 %v1202, %v1201
        %v1271 = vpack.c.b16 %v1204, %v1203
        %v1272 = vpack.c.b16 %v1206, %v1205
        %v1273 = vpack.c.b16 %v1208, %v1207
        %v1274 = vpack.c.b16 %v1210, %v1209
        %1339 = vmatprep.subr.bf16.mxu0 0
        %1340 = vmatpush1.bf16.msra.mxu0 %v1211
        %1341 = vmatprep.subr.bf16.mxu0 0
        %1342 = vmatpush1.bf16.msra.mxu0 %v1212
        %1343 = vmatprep.subr.bf16.mxu0 0
        %1344 = vmatpush1.bf16.msra.mxu0 %v1213
        %1345 = vmatprep.subr.bf16.mxu0 0
        %1346 = vmatpush1.bf16.msra.mxu0 %v1214
        %1347 = vmatprep.subr.bf16.mxu0 0
        %1348 = vmatpush1.bf16.msra.mxu0 %v1215
        %1349 = vmatprep.subr.bf16.mxu0 0
        %1350 = vmatpush1.bf16.msra.mxu0 %v1216
        %1351 = vmatprep.subr.bf16.mxu0 0
        %1352 = vmatpush1.bf16.msra.mxu0 %v1217
        %1353 = vmatprep.subr.bf16.mxu0 0
        %1354 = vmatpush1.bf16.msra.mxu0 %v1218
        %1355 = vmatprep.subr.bf16.mxu0 0
        %1356 = vmatpush1.bf16.msra.mxu0 %v1219
        %1357 = vmatprep.subr.bf16.mxu0 0
        %1358 = vmatpush1.bf16.msra.mxu0 %v1220
        %1359 = vmatprep.subr.bf16.mxu0 0
        %1360 = vmatpush1.bf16.msra.mxu0 %v1221
        %1361 = vmatprep.subr.bf16.mxu0 0
        %1362 = vmatpush1.bf16.msra.mxu0 %v1222
        %1363 = vmatprep.subr.bf16.mxu0 0
        %1364 = vmatpush1.bf16.msra.mxu0 %v1223
        %1365 = vmatprep.subr.bf16.mxu0 0
        %1366 = vmatpush1.bf16.msra.mxu0 %v1224
        %1367 = vmatprep.subr.bf16.mxu0 0
        %1368 = vmatpush1.bf16.msra.mxu0 %v1225
        %1369 = vmatprep.subr.bf16.mxu0 0
        %1370 = vmatpush1.bf16.msra.mxu0 %v1226
        %1371 = vmatprep.mubr.bf16.mxu0 %v828
        %1372 = vmatmul.mubr.bf16.gmra.mrb[0].mxu0 %v827
        %v1373 = vpop.f32.mrb[0].mxu0
        %v1374 = vadd.f32 0.0, %v1373
        %v1375 = vpop.f32.mrb[0].mxu0
        %v1376 = vpop.f32.mrb[0].mxu0
        %v1377 = vadd.f32 0.0, %v1376
        %v1378 = vpop.f32.mrb[0].mxu0
        %1379 = vmatprep.mubr.bf16.mxu0 %v836
        %1380 = vmatmul.mubr.bf16.gmra.mrb[0].mxu0 %v835
        %v1381 = vpop.f32.mrb[0].mxu0
        %v1382 = vadd.f32 0.0, %v1381
        %v1383 = vpop.f32.mrb[0].mxu0
        %v1384 = vpop.f32.mrb[0].mxu0
        %v1385 = vadd.f32 0.0, %v1384
        %v1386 = vpop.f32.mrb[0].mxu0
        %1387 = vmatprep.mubr.bf16.mxu0 %v844
        %1388 = vmatmul.mubr.bf16.gmra.mrb[0].mxu0 %v843
        %v1389 = vpop.f32.mrb[0].mxu0
        %v1390 = vadd.f32 0.0, %v1389
        %v1391 = vpop.f32.mrb[0].mxu0
        %v1392 = vpop.f32.mrb[0].mxu0
        %v1393 = vadd.f32 0.0, %v1392
        %v1394 = vpop.f32.mrb[0].mxu0
        %1395 = vmatprep.mubr.bf16.mxu0 %v852
        %1396 = vmatmul.mubr.bf16.gmra.mrb[0].mxu0 %v851
        %v1397 = vpop.f32.mrb[0].mxu0
        %v1398 = vadd.f32 0.0, %v1397
        %v1399 = vpop.f32.mrb[0].mxu0
        %v1400 = vpop.f32.mrb[0].mxu0
        %v1401 = vadd.f32 0.0, %v1400
        %v1402 = vpop.f32.mrb[0].mxu0
        %1403 = vmatprep.mubr.bf16.mxu0 %v860
        %1404 = vmatmul.mubr.bf16.gmra.mrb[0].mxu0 %v859
        %v1405 = vpop.f32.mrb[0].mxu0
        %v1406 = vadd.f32 0.0, %v1405
        %v1407 = vpop.f32.mrb[0].mxu0
        %v1408 = vpop.f32.mrb[0].mxu0
        %v1409 = vadd.f32 0.0, %v1408
        %v1410 = vpop.f32.mrb[0].mxu0
        %1411 = vmatprep.mubr.bf16.mxu0 %v868
        %1412 = vmatmul.mubr.bf16.gmra.mrb[0].mxu0 %v867
        %v1413 = vpop.f32.mrb[0].mxu0
        %v1414 = vadd.f32 0.0, %v1413
        %v1415 = vpop.f32.mrb[0].mxu0
        %v1416 = vpop.f32.mrb[0].mxu0
        %v1417 = vadd.f32 0.0, %v1416
        %v1418 = vpop.f32.mrb[0].mxu0
        %1419 = vmatprep.mubr.bf16.mxu0 %v876
        %1420 = vmatmul.mubr.bf16.gmra.mrb[0].mxu0 %v875
        %v1421 = vpop.f32.mrb[0].mxu0
        %v1422 = vadd.f32 0.0, %v1421
        %v1423 = vpop.f32.mrb[0].mxu0
        %v1424 = vpop.f32.mrb[0].mxu0
        %v1425 = vadd.f32 0.0, %v1424
        %v1426 = vpop.f32.mrb[0].mxu0
        %1427 = vmatprep.mubr.bf16.mxu0 %v884
        %1428 = vmatmul.mubr.bf16.gmra.mrb[0].mxu0 %v883
        %v1429 = vpop.f32.mrb[0].mxu0
        %v1430 = vadd.f32 0.0, %v1429
        %v1431 = vpop.f32.mrb[0].mxu0
        %v1432 = vpop.f32.mrb[0].mxu0
        %v1433 = vpop.f32.mrb[0].mxu0
        %1434 = vdwg.mxu0
        %1435 = vmatprep.subr.bf16.mxu0 0
        %1436 = vmatpush1.bf16.msra.mxu0 %v1227
        %1437 = vmatprep.subr.bf16.mxu0 0
        %1438 = vmatpush1.bf16.msra.mxu0 %v1228
        %1439 = vmatprep.subr.bf16.mxu0 0
        %1440 = vmatpush1.bf16.msra.mxu0 %v1229
        %1441 = vmatprep.subr.bf16.mxu0 0
        %1442 = vmatpush1.bf16.msra.mxu0 %v1230
        %1443 = vmatprep.subr.bf16.mxu0 0
        %1444 = vmatpush1.bf16.msra.mxu0 %v1231
        %1445 = vmatprep.subr.bf16.mxu0 0
        %1446 = vmatpush1.bf16.msra.mxu0 %v1232
        %1447 = vmatprep.subr.bf16.mxu0 0
        %1448 = vmatpush1.bf16.msra.mxu0 %v1233
        %1449 = vmatprep.subr.bf16.mxu0 0
        %1450 = vmatpush1.bf16.msra.mxu0 %v1234
        %1451 = vmatprep.subr.bf16.mxu0 0
        %1452 = vmatpush1.bf16.msra.mxu0 %v1235
        %1453 = vmatprep.subr.bf16.mxu0 0
        %1454 = vmatpush1.bf16.msra.mxu0 %v1236
        %1455 = vmatprep.subr.bf16.mxu0 0
        %1456 = vmatpush1.bf16.msra.mxu0 %v1237
        %1457 = vmatprep.subr.bf16.mxu0 0
        %1458 = vmatpush1.bf16.msra.mxu0 %v1238
        %1459 = vmatprep.subr.bf16.mxu0 0
        %1460 = vmatpush1.bf16.msra.mxu0 %v1239
        %1461 = vmatprep.subr.bf16.mxu0 0
        %1462 = vmatpush1.bf16.msra.mxu0 %v1240
        %1463 = vmatprep.subr.bf16.mxu0 0
        %1464 = vmatpush1.bf16.msra.mxu0 %v1241
        %1465 = vmatprep.subr.bf16.mxu0 0
        %1466 = vmatpush1.bf16.msra.mxu0 %v1242
        %1467 = vmatprep.mubr.bf16.mxu0 %v830
        %1468 = vmatmul.mubr.bf16.gmra.mrb[0].mxu0 %v829
        %v1469 = vpop.f32.mrb[0].mxu0
        %v1470 = vadd.f32 %v1374, %v1469
        %v1471 = vpop.f32.mrb[0].mxu0
        %v1472 = vpop.f32.mrb[0].mxu0
        %v1473 = vadd.f32 %v1377, %v1472
        %v1474 = vpop.f32.mrb[0].mxu0
        %1475 = vmatprep.mubr.bf16.mxu0 %v838
        %1476 = vmatmul.mubr.bf16.gmra.mrb[0].mxu0 %v837
        %v1477 = vpop.f32.mrb[0].mxu0
        %v1478 = vadd.f32 %v1382, %v1477
        %v1479 = vpop.f32.mrb[0].mxu0
        %v1480 = vpop.f32.mrb[0].mxu0
        %v1481 = vadd.f32 %v1385, %v1480
        %v1482 = vpop.f32.mrb[0].mxu0
        %1483 = vmatprep.mubr.bf16.mxu0 %v846
        %1484 = vmatmul.mubr.bf16.gmra.mrb[0].mxu0 %v845
        %v1485 = vpop.f32.mrb[0].mxu0
        %v1486 = vadd.f32 %v1390, %v1485
        %v1487 = vpop.f32.mrb[0].mxu0
        %v1488 = vpop.f32.mrb[0].mxu0
        %v1489 = vadd.f32 %v1393, %v1488
        %v1490 = vpop.f32.mrb[0].mxu0
        %1491 = vmatprep.mubr.bf16.mxu0 %v854
        %1492 = vmatmul.mubr.bf16.gmra.mrb[0].mxu0 %v853
        %v1493 = vpop.f32.mrb[0].mxu0
        %v1494 = vadd.f32 %v1398, %v1493
        %v1495 = vpop.f32.mrb[0].mxu0
        %v1496 = vpop.f32.mrb[0].mxu0
        %v1497 = vadd.f32 %v1401, %v1496
        %v1498 = vpop.f32.mrb[0].mxu0
        %1499 = vmatprep.mubr.bf16.mxu0 %v862
        %1500 = vmatmul.mubr.bf16.gmra.mrb[0].mxu0 %v861
        %v1501 = vpop.f32.mrb[0].mxu0
        %v1502 = vadd.f32 %v1406, %v1501
        %v1503 = vpop.f32.mrb[0].mxu0
        %v1504 = vpop.f32.mrb[0].mxu0
        %v1505 = vadd.f32 %v1409, %v1504
        %v1506 = vpop.f32.mrb[0].mxu0
        %1507 = vmatprep.mubr.bf16.mxu0 %v870
        %1508 = vmatmul.mubr.bf16.gmra.mrb[0].mxu0 %v869
        %v1509 = vpop.f32.mrb[0].mxu0
        %v1510 = vadd.f32 %v1414, %v1509
        %v1511 = vpop.f32.mrb[0].mxu0
        %v1512 = vpop.f32.mrb[0].mxu0
        %v1513 = vadd.f32 %v1417, %v1512
        %v1514 = vpop.f32.mrb[0].mxu0
        %1515 = vmatprep.mubr.bf16.mxu0 %v878
        %1516 = vmatmul.mubr.bf16.gmra.mrb[0].mxu0 %v877
        %v1517 = vpop.f32.mrb[0].mxu0
        %v1518 = vadd.f32 %v1422, %v1517
        %v1519 = vpop.f32.mrb[0].mxu0
        %v1520 = vpop.f32.mrb[0].mxu0
        %v1521 = vadd.f32 %v1425, %v1520
        %v1522 = vpop.f32.mrb[0].mxu0
        %1523 = vmatprep.mubr.bf16.mxu0 %v886
        %1524 = vmatmul.mubr.bf16.gmra.mrb[0].mxu0 %v885
        %v1525 = vpop.f32.mrb[0].mxu0
        %v1526 = vadd.f32 %v1430, %v1525
        %v1527 = vpop.f32.mrb[0].mxu0
        %v1528 = vpop.f32.mrb[0].mxu0
        %v1529 = vpop.f32.mrb[0].mxu0
        %1530 = vdwg.mxu0
        %1531 = vmatprep.subr.bf16.mxu0 0
        %1532 = vmatpush1.bf16.msra.mxu0 %v1243
        %1533 = vmatprep.subr.bf16.mxu0 0
        %1534 = vmatpush1.bf16.msra.mxu0 %v1244
        %1535 = vmatprep.subr.bf16.mxu0 0
        %1536 = vmatpush1.bf16.msra.mxu0 %v1245
        %1537 = vmatprep.subr.bf16.mxu0 0
        %1538 = vmatpush1.bf16.msra.mxu0 %v1246
        %1539 = vmatprep.subr.bf16.mxu0 0
        %1540 = vmatpush1.bf16.msra.mxu0 %v1247
        %1541 = vmatprep.subr.bf16.mxu0 0
        %1542 = vmatpush1.bf16.msra.mxu0 %v1248
        %1543 = vmatprep.subr.bf16.mxu0 0
        %1544 = vmatpush1.bf16.msra.mxu0 %v1249
        %1545 = vmatprep.subr.bf16.mxu0 0
        %1546 = vmatpush1.bf16.msra.mxu0 %v1250
        %1547 = vmatprep.subr.bf16.mxu0 0
        %1548 = vmatpush1.bf16.msra.mxu0 %v1251
        %1549 = vmatprep.subr.bf16.mxu0 0
        %1550 = vmatpush1.bf16.msra.mxu0 %v1252
        %1551 = vmatprep.subr.bf16.mxu0 0
        %1552 = vmatpush1.bf16.msra.mxu0 %v1253
        %1553 = vmatprep.subr.bf16.mxu0 0
        %1554 = vmatpush1.bf16.msra.mxu0 %v1254
        %1555 = vmatprep.subr.bf16.mxu0 0
        %1556 = vmatpush1.bf16.msra.mxu0 %v1255
        %1557 = vmatprep.subr.bf16.mxu0 0
        %1558 = vmatpush1.bf16.msra.mxu0 %v1256
        %1559 = vmatprep.subr.bf16.mxu0 0
        %1560 = vmatpush1.bf16.msra.mxu0 %v1257
        %1561 = vmatprep.subr.bf16.mxu0 0
        %1562 = vmatpush1.bf16.msra.mxu0 %v1258
        %1563 = vmatprep.mubr.bf16.mxu0 %v832
        %1564 = vmatmul.mubr.bf16.gmra.mrb[0].mxu0 %v831
        %v1565 = vpop.f32.mrb[0].mxu0
        %v1566 = vadd.f32 %v1470, %v1565
        %v1567 = vpop.f32.mrb[0].mxu0
        %v1568 = vpop.f32.mrb[0].mxu0
        %v1569 = vadd.f32 %v1473, %v1568
        %v1570 = vpop.f32.mrb[0].mxu0
        %1571 = vmatprep.mubr.bf16.mxu0 %v840
        %1572 = vmatmul.mubr.bf16.gmra.mrb[0].mxu0 %v839
        %v1573 = vpop.f32.mrb[0].mxu0
        %v1574 = vadd.f32 %v1478, %v1573
        %v1575 = vpop.f32.mrb[0].mxu0
        %v1576 = vpop.f32.mrb[0].mxu0
        %v1577 = vadd.f32 %v1481, %v1576
        %v1578 = vpop.f32.mrb[0].mxu0
        %1579 = vmatprep.mubr.bf16.mxu0 %v848
        %1580 = vmatmul.mubr.bf16.gmra.mrb[0].mxu0 %v847
        %v1581 = vpop.f32.mrb[0].mxu0
        %v1582 = vadd.f32 %v1486, %v1581
        %v1583 = vpop.f32.mrb[0].mxu0
        %v1584 = vpop.f32.mrb[0].mxu0
        %v1585 = vadd.f32 %v1489, %v1584
        %v1586 = vpop.f32.mrb[0].mxu0
        %1587 = vmatprep.mubr.bf16.mxu0 %v856
        %1588 = vmatmul.mubr.bf16.gmra.mrb[0].mxu0 %v855
        %v1589 = vpop.f32.mrb[0].mxu0
        %v1590 = vadd.f32 %v1494, %v1589
        %v1591 = vpop.f32.mrb[0].mxu0
        %v1592 = vpop.f32.mrb[0].mxu0
        %v1593 = vadd.f32 %v1497, %v1592
        %v1594 = vpop.f32.mrb[0].mxu0
        %1595 = vmatprep.mubr.bf16.mxu0 %v864
        %1596 = vmatmul.mubr.bf16.gmra.mrb[0].mxu0 %v863
        %v1597 = vpop.f32.mrb[0].mxu0
        %v1598 = vadd.f32 %v1502, %v1597
        %v1599 = vpop.f32.mrb[0].mxu0
        %v1600 = vpop.f32.mrb[0].mxu0
        %v1601 = vadd.f32 %v1505, %v1600
        %v1602 = vpop.f32.mrb[0].mxu0
        %1603 = vmatprep.mubr.bf16.mxu0 %v872
        %1604 = vmatmul.mubr.bf16.gmra.mrb[0].mxu0 %v871
        %v1605 = vpop.f32.mrb[0].mxu0
        %v1606 = vadd.f32 %v1510, %v1605
        %v1607 = vpop.f32.mrb[0].mxu0
        %v1608 = vpop.f32.mrb[0].mxu0
        %v1609 = vadd.f32 %v1513, %v1608
        %v1610 = vpop.f32.mrb[0].mxu0
        %1611 = vmatprep.mubr.bf16.mxu0 %v880
        %1612 = vmatmul.mubr.bf16.gmra.mrb[0].mxu0 %v879
        %v1613 = vpop.f32.mrb[0].mxu0
        %v1614 = vadd.f32 %v1518, %v1613
        %v1615 = vpop.f32.mrb[0].mxu0
        %v1616 = vpop.f32.mrb[0].mxu0
        %v1617 = vadd.f32 %v1521, %v1616
        %v1618 = vpop.f32.mrb[0].mxu0
        %1619 = vmatprep.mubr.bf16.mxu0 %v888
        %1620 = vmatmul.mubr.bf16.gmra.mrb[0].mxu0 %v887
        %v1621 = vpop.f32.mrb[0].mxu0
        %v1622 = vadd.f32 %v1526, %v1621
        %v1623 = vpop.f32.mrb[0].mxu0
        %v1624 = vpop.f32.mrb[0].mxu0
        %v1625 = vpop.f32.mrb[0].mxu0
        %1626 = vdwg.mxu0
        %1627 = vmatprep.subr.bf16.mxu0 0
        %1628 = vmatpush1.bf16.msra.mxu0 %v1259
        %1629 = vmatprep.subr.bf16.mxu0 0
        %1630 = vmatpush1.bf16.msra.mxu0 %v1260
        %1631 = vmatprep.subr.bf16.mxu0 0
        %1632 = vmatpush1.bf16.msra.mxu0 %v1261
        %1633 = vmatprep.subr.bf16.mxu0 0
        %1634 = vmatpush1.bf16.msra.mxu0 %v1262
        %1635 = vmatprep.subr.bf16.mxu0 0
        %1636 = vmatpush1.bf16.msra.mxu0 %v1263
        %1637 = vmatprep.subr.bf16.mxu0 0
        %1638 = vmatpush1.bf16.msra.mxu0 %v1264
        %1639 = vmatprep.subr.bf16.mxu0 0
        %1640 = vmatpush1.bf16.msra.mxu0 %v1265
        %1641 = vmatprep.subr.bf16.mxu0 0
        %1642 = vmatpush1.bf16.msra.mxu0 %v1266
        %1643 = vmatprep.subr.bf16.mxu0 0
        %1644 = vmatpush1.bf16.msra.mxu0 %v1267
        %1645 = vmatprep.subr.bf16.mxu0 0
        %1646 = vmatpush1.bf16.msra.mxu0 %v1268
        %1647 = vmatprep.subr.bf16.mxu0 0
        %1648 = vmatpush1.bf16.msra.mxu0 %v1269
        %1649 = vmatprep.subr.bf16.mxu0 0
        %1650 = vmatpush1.bf16.msra.mxu0 %v1270
        %1651 = vmatprep.subr.bf16.mxu0 0
        %1652 = vmatpush1.bf16.msra.mxu0 %v1271
        %1653 = vmatprep.subr.bf16.mxu0 0
        %1654 = vmatpush1.bf16.msra.mxu0 %v1272
        %1655 = vmatprep.subr.bf16.mxu0 0
        %1656 = vmatpush1.bf16.msra.mxu0 %v1273
        %1657 = vmatprep.subr.bf16.mxu0 0
        %1658 = vmatpush1.bf16.msra.mxu0 %v1274
        %1659 = vmatprep.mubr.bf16.mxu0 %v834
        %1660 = vmatmul.mubr.bf16.gmra.mrb[0].mxu0 %v833
        %v1661 = vpop.f32.mrb[0].mxu0
        %v1662 = vadd.f32 %v1566, %v1661
        %v1663 = vpop.f32.mrb[0].mxu0
        %v1664 = vpop.f32.mrb[0].mxu0
        %v1665 = vadd.f32 %v1569, %v1664
        %v1666 = vpop.f32.mrb[0].mxu0
        %1667 = vmatprep.mubr.bf16.mxu0 %v842
        %1668 = vmatmul.mubr.bf16.gmra.mrb[0].mxu0 %v841
        %v1669 = vpop.f32.mrb[0].mxu0
        %v1670 = vadd.f32 %v1574, %v1669
        %v1671 = vpop.f32.mrb[0].mxu0
        %v1672 = vpop.f32.mrb[0].mxu0
        %v1673 = vadd.f32 %v1577, %v1672
        %v1674 = vpop.f32.mrb[0].mxu0
        %1675 = vmatprep.mubr.bf16.mxu0 %v850
        %1676 = vmatmul.mubr.bf16.gmra.mrb[0].mxu0 %v849
        %v1677 = vpop.f32.mrb[0].mxu0
        %v1678 = vadd.f32 %v1582, %v1677
        %v1679 = vpop.f32.mrb[0].mxu0
        %v1680 = vpop.f32.mrb[0].mxu0
        %v1681 = vadd.f32 %v1585, %v1680
        %v1682 = vpop.f32.mrb[0].mxu0
        %1683 = vmatprep.mubr.bf16.mxu0 %v858
        %1684 = vmatmul.mubr.bf16.gmra.mrb[0].mxu0 %v857
        %v1685 = vpop.f32.mrb[0].mxu0
        %v1686 = vadd.f32 %v1590, %v1685
        %v1687 = vpop.f32.mrb[0].mxu0
        %v1688 = vpop.f32.mrb[0].mxu0
        %v1689 = vadd.f32 %v1593, %v1688
        %v1690 = vpop.f32.mrb[0].mxu0
        %1691 = vmatprep.mubr.bf16.mxu0 %v866
        %1692 = vmatmul.mubr.bf16.gmra.mrb[0].mxu0 %v865
        %v1693 = vpop.f32.mrb[0].mxu0
        %v1694 = vadd.f32 %v1598, %v1693
        %v1695 = vpop.f32.mrb[0].mxu0
        %v1696 = vpop.f32.mrb[0].mxu0
        %v1697 = vadd.f32 %v1601, %v1696
        %v1698 = vpop.f32.mrb[0].mxu0
        %1699 = vmatprep.mubr.bf16.mxu0 %v874
        %1700 = vmatmul.mubr.bf16.gmra.mrb[0].mxu0 %v873
        %v1701 = vpop.f32.mrb[0].mxu0
        %v1702 = vadd.f32 %v1606, %v1701
        %v1703 = vpop.f32.mrb[0].mxu0
        %v1704 = vpop.f32.mrb[0].mxu0
        %v1705 = vadd.f32 %v1609, %v1704
        %v1706 = vpop.f32.mrb[0].mxu0
        %1707 = vmatprep.mubr.bf16.mxu0 %v882
        %1708 = vmatmul.mubr.bf16.gmra.mrb[0].mxu0 %v881
        %v1709 = vpop.f32.mrb[0].mxu0
        %v1710 = vadd.f32 %v1614, %v1709
        %v1711 = vpop.f32.mrb[0].mxu0
        %v1712 = vpop.f32.mrb[0].mxu0
        %v1713 = vadd.f32 %v1617, %v1712
        %v1714 = vpop.f32.mrb[0].mxu0
        %1715 = vmatprep.mubr.bf16.mxu0 %v890
        %1716 = vmatmul.mubr.bf16.gmra.mrb[0].mxu0 %v889
        %v1717 = vpop.f32.mrb[0].mxu0
        %v1718 = vadd.f32 %v1622, %v1717
        %v1719 = vpop.f32.mrb[0].mxu0
        %v1720 = vpop.f32.mrb[0].mxu0
        %v1721 = vpop.f32.mrb[0].mxu0
        %1722 = vdwg.mxu0
        %s1723 = scalar_lea.vmem %s422, 480 [#allocation2]
        %v1724 = vld [vmem:[%s1723] sm:$0xff]
        %v1725 = vld [vmem:[%s1723 + $0x8] sm:$0xff]
        %v1726 = vld [vmem:[%s1723 + $0x10] sm:$0xff]
        %v1727 = vld [vmem:[%s1723 + $0x18] sm:$0xff]
        %v1728 = vld [vmem:[%s1723 + $0x20] sm:$0xff]
        %v1729 = vld [vmem:[%s1723 + $0x28] sm:$0xff]
        %v1730 = vld [vmem:[%s1723 + $0x30] sm:$0xff]
        %v1731 = vld [vmem:[%s1723 + $0x38] sm:$0xff]
        %v1732 = vld [vmem:[%s1723 + $0x40] sm:$0xff]
        %v1733 = vld [vmem:[%s1723 + $0x48] sm:$0xff]
        %v1734 = vld [vmem:[%s1723 + $0x50] sm:$0xff]
        %v1735 = vld [vmem:[%s1723 + $0x58] sm:$0xff]
        %v1736 = vld [vmem:[%s1723 + $0x60] sm:$0xff]
        %v1737 = vld [vmem:[%s1723 + $0x68] sm:$0xff]
        %v1738 = vld [vmem:[%s1723 + $0x70] sm:$0xff]
        %v1739 = vld [vmem:[%s1723 + $0x78] sm:$0xff]
        %v1740 = vld [vmem:[%s1723 + $0x80] sm:$0xff]
        %v1741 = vld [vmem:[%s1723 + $0x88] sm:$0xff]
        %v1742 = vld [vmem:[%s1723 + $0x90] sm:$0xff]
        %v1743 = vld [vmem:[%s1723 + $0x98] sm:$0xff]
        %v1744 = vld [vmem:[%s1723 + $0xa0] sm:$0xff]
        %v1745 = vld [vmem:[%s1723 + $0xa8] sm:$0xff]
        %v1746 = vld [vmem:[%s1723 + $0xb0] sm:$0xff]
        %v1747 = vld [vmem:[%s1723 + $0xb8] sm:$0xff]
        %v1748 = vld [vmem:[%s1723 + $0xc0] sm:$0xff]
        %v1749 = vld [vmem:[%s1723 + $0xc8] sm:$0xff]
        %v1750 = vld [vmem:[%s1723 + $0xd0] sm:$0xff]
        %v1751 = vld [vmem:[%s1723 + $0xd8] sm:$0xff]
        %v1752 = vld [vmem:[%s1723 + $0xe0] sm:$0xff]
        %v1753 = vld [vmem:[%s1723 + $0xe8] sm:$0xff]
        %v1754 = vld [vmem:[%s1723 + $0xf0] sm:$0xff]
        %v1755 = vld [vmem:[%s1723 + $0xf8] sm:$0xff]
        %v1756 = vld [vmem:[%s1723 + $0x100] sm:$0xff]
        %v1757 = vld [vmem:[%s1723 + $0x108] sm:$0xff]
        %v1758 = vld [vmem:[%s1723 + $0x110] sm:$0xff]
        %v1759 = vld [vmem:[%s1723 + $0x118] sm:$0xff]
        %v1760 = vld [vmem:[%s1723 + $0x120] sm:$0xff]
        %v1761 = vld [vmem:[%s1723 + $0x128] sm:$0xff]
        %v1762 = vld [vmem:[%s1723 + $0x130] sm:$0xff]
        %v1763 = vld [vmem:[%s1723 + $0x138] sm:$0xff]
        %v1764 = vld [vmem:[%s1723 + $0x140] sm:$0xff]
        %v1765 = vld [vmem:[%s1723 + $0x148] sm:$0xff]
        %v1766 = vld [vmem:[%s1723 + $0x150] sm:$0xff]
        %v1767 = vld [vmem:[%s1723 + $0x158] sm:$0xff]
        %v1768 = vld [vmem:[%s1723 + $0x160] sm:$0xff]
        %v1769 = vld [vmem:[%s1723 + $0x168] sm:$0xff]
        %v1770 = vld [vmem:[%s1723 + $0x170] sm:$0xff]
        %v1771 = vld [vmem:[%s1723 + $0x178] sm:$0xff]
        %v1772 = vld [vmem:[%s1723 + $0x180] sm:$0xff]
        %v1773 = vld [vmem:[%s1723 + $0x188] sm:$0xff]
        %v1774 = vld [vmem:[%s1723 + $0x190] sm:$0xff]
        %v1775 = vld [vmem:[%s1723 + $0x198] sm:$0xff]
        %v1776 = vld [vmem:[%s1723 + $0x1a0] sm:$0xff]
        %v1777 = vld [vmem:[%s1723 + $0x1a8] sm:$0xff]
        %v1778 = vld [vmem:[%s1723 + $0x1b0] sm:$0xff]
        %v1779 = vld [vmem:[%s1723 + $0x1b8] sm:$0xff]
        %v1780 = vld [vmem:[%s1723 + $0x1c0] sm:$0xff]
        %v1781 = vld [vmem:[%s1723 + $0x1c8] sm:$0xff]
        %v1782 = vld [vmem:[%s1723 + $0x1d0] sm:$0xff]
        %v1783 = vld [vmem:[%s1723 + $0x1d8] sm:$0xff]
        %v1844 = vunpack.c.l.b16 %v1724
        %v1845 = vunpack.c.h.b16 %v1724
        %v1846 = vunpack.c.l.b16 %v1725
        %v1847 = vunpack.c.h.b16 %v1725
        %v1848 = vunpack.c.l.b16 %v1726
        %v1849 = vunpack.c.h.b16 %v1726
        %v1850 = vunpack.c.l.b16 %v1727
        %v1851 = vunpack.c.h.b16 %v1727
        %v1852 = vunpack.c.l.b16 %v1728
        %v1853 = vunpack.c.h.b16 %v1728
        %v1854 = vunpack.c.l.b16 %v1729
        %v1855 = vunpack.c.h.b16 %v1729
        %v1856 = vunpack.c.l.b16 %v1730
        %v1857 = vunpack.c.h.b16 %v1730
        %v1858 = vunpack.c.l.b16 %v1731
        %v1859 = vunpack.c.h.b16 %v1731
        %v1860 = vunpack.c.l.b16 %v1732
        %v1861 = vunpack.c.h.b16 %v1732
        %v1862 = vunpack.c.l.b16 %v1733
        %v1863 = vunpack.c.h.b16 %v1733
        %v1864 = vunpack.c.l.b16 %v1734
        %v1865 = vunpack.c.h.b16 %v1734
        %v1866 = vunpack.c.l.b16 %v1735
        %v1867 = vunpack.c.h.b16 %v1735
        %v1868 = vunpack.c.l.b16 %v1736
        %v1869 = vunpack.c.h.b16 %v1736
        %v1870 = vunpack.c.l.b16 %v1737
        %v1871 = vunpack.c.h.b16 %v1737
        %v1872 = vunpack.c.l.b16 %v1738
        %v1873 = vunpack.c.h.b16 %v1738
        %v1874 = vunpack.c.l.b16 %v1739
        %v1875 = vunpack.c.h.b16 %v1739
        %v1876 = vunpack.c.l.b16 %v1740
        %v1877 = vunpack.c.h.b16 %v1740
        %v1878 = vunpack.c.l.b16 %v1741
        %v1879 = vunpack.c.h.b16 %v1741
        %v1880 = vunpack.c.l.b16 %v1742
        %v1881 = vunpack.c.h.b16 %v1742
        %v1882 = vunpack.c.l.b16 %v1743
        %v1883 = vunpack.c.h.b16 %v1743
        %v1884 = vunpack.c.l.b16 %v1744
        %v1885 = vunpack.c.h.b16 %v1744
        %v1886 = vunpack.c.l.b16 %v1745
        %v1887 = vunpack.c.h.b16 %v1745
        %v1888 = vunpack.c.l.b16 %v1746
        %v1889 = vunpack.c.h.b16 %v1746
        %v1890 = vunpack.c.l.b16 %v1747
        %v1891 = vunpack.c.h.b16 %v1747
        %v1892 = vunpack.c.l.b16 %v1748
        %v1893 = vunpack.c.h.b16 %v1748
        %v1894 = vunpack.c.l.b16 %v1749
        %v1895 = vunpack.c.h.b16 %v1749
        %v1896 = vunpack.c.l.b16 %v1750
        %v1897 = vunpack.c.h.b16 %v1750
        %v1898 = vunpack.c.l.b16 %v1751
        %v1899 = vunpack.c.h.b16 %v1751
        %v1900 = vunpack.c.l.b16 %v1752
        %v1901 = vunpack.c.h.b16 %v1752
        %v1902 = vunpack.c.l.b16 %v1753
        %v1903 = vunpack.c.h.b16 %v1753
        %v1904 = vunpack.c.l.b16 %v1754
        %v1905 = vunpack.c.h.b16 %v1754
        %v1906 = vunpack.c.l.b16 %v1755
        %v1907 = vunpack.c.h.b16 %v1755
        %v1908 = vunpack.c.l.b16 %v1756
        %v1909 = vunpack.c.h.b16 %v1756
        %v1910 = vunpack.c.l.b16 %v1757
        %v1911 = vunpack.c.h.b16 %v1757
        %v1912 = vunpack.c.l.b16 %v1758
        %v1913 = vunpack.c.h.b16 %v1758
        %v1914 = vunpack.c.l.b16 %v1759
        %v1915 = vunpack.c.h.b16 %v1759
        %v1916 = vunpack.c.l.b16 %v1760
        %v1917 = vunpack.c.h.b16 %v1760
        %v1918 = vunpack.c.l.b16 %v1761
        %v1919 = vunpack.c.h.b16 %v1761
        %v1920 = vunpack.c.l.b16 %v1762
        %v1921 = vunpack.c.h.b16 %v1762
        %v1922 = vunpack.c.l.b16 %v1763
        %v1923 = vunpack.c.h.b16 %v1763
        %v1924 = vunpack.c.l.b16 %v1764
        %v1925 = vunpack.c.h.b16 %v1764
        %v1926 = vunpack.c.l.b16 %v1765
        %v1927 = vunpack.c.h.b16 %v1765
        %v1928 = vunpack.c.l.b16 %v1766
        %v1929 = vunpack.c.h.b16 %v1766
        %v1930 = vunpack.c.l.b16 %v1767
        %v1931 = vunpack.c.h.b16 %v1767
        %v1932 = vunpack.c.l.b16 %v1768
        %v1933 = vunpack.c.h.b16 %v1768
        %v1934 = vunpack.c.l.b16 %v1769
        %v1935 = vunpack.c.h.b16 %v1769
        %v1936 = vunpack.c.l.b16 %v1770
        %v1937 = vunpack.c.h.b16 %v1770
        %v1938 = vunpack.c.l.b16 %v1771
        %v1939 = vunpack.c.h.b16 %v1771
        %v1940 = vunpack.c.l.b16 %v1772
        %v1941 = vunpack.c.h.b16 %v1772
        %v1942 = vunpack.c.l.b16 %v1773
        %v1943 = vunpack.c.h.b16 %v1773
        %v1944 = vunpack.c.l.b16 %v1774
        %v1945 = vunpack.c.h.b16 %v1774
        %v1946 = vunpack.c.l.b16 %v1775
        %v1947 = vunpack.c.h.b16 %v1775
        %v1948 = vunpack.c.l.b16 %v1776
        %v1949 = vunpack.c.h.b16 %v1776
        %v1950 = vunpack.c.l.b16 %v1777
        %v1951 = vunpack.c.h.b16 %v1777
        %v1952 = vunpack.c.l.b16 %v1778
        %v1953 = vunpack.c.h.b16 %v1778
        %v1954 = vunpack.c.l.b16 %v1779
        %v1955 = vunpack.c.h.b16 %v1779
        %v1956 = vunpack.c.l.b16 %v1780
        %v1957 = vunpack.c.h.b16 %v1780
        %v1958 = vunpack.c.l.b16 %v1781
        %v1959 = vunpack.c.h.b16 %v1781
        %v1960 = vunpack.c.l.b16 %v1782
        %v1961 = vunpack.c.h.b16 %v1782
        %v1962 = vunpack.c.l.b16 %v1783
        %v1963 = vunpack.c.h.b16 %v1783
        %v1964 = vpack.c.b16 %v1852, %v1844
        %v1965 = vpack.c.b16 %v1853, %v1845
        %v1966 = vpack.c.b16 %v1854, %v1846
        %v1967 = vpack.c.b16 %v1855, %v1847
        %v1968 = vpack.c.b16 %v1856, %v1848
        %v1969 = vpack.c.b16 %v1857, %v1849
        %v1970 = vpack.c.b16 %v1858, %v1850
        %v1971 = vpack.c.b16 %v1859, %v1851
        %v1972 = vpack.c.b16 %v1868, %v1860
        %v1973 = vpack.c.b16 %v1869, %v1861
        %v1974 = vpack.c.b16 %v1870, %v1862
        %v1975 = vpack.c.b16 %v1871, %v1863
        %v1976 = vpack.c.b16 %v1872, %v1864
        %v1977 = vpack.c.b16 %v1873, %v1865
        %v1978 = vpack.c.b16 %v1874, %v1866
        %v1979 = vpack.c.b16 %v1875, %v1867
        %v1980 = vpack.c.b16 %v1884, %v1876
        %v1981 = vpack.c.b16 %v1885, %v1877
        %v1982 = vpack.c.b16 %v1886, %v1878
        %v1983 = vpack.c.b16 %v1887, %v1879
        %v1984 = vpack.c.b16 %v1888, %v1880
        %v1985 = vpack.c.b16 %v1889, %v1881
        %v1986 = vpack.c.b16 %v1890, %v1882
        %v1987 = vpack.c.b16 %v1891, %v1883
        %v1988 = vpack.c.b16 %v1900, %v1892
        %v1989 = vpack.c.b16 %v1901, %v1893
        %v1990 = vpack.c.b16 %v1902, %v1894
        %v1991 = vpack.c.b16 %v1903, %v1895
        %v1992 = vpack.c.b16 %v1904, %v1896
        %v1993 = vpack.c.b16 %v1905, %v1897
        %v1994 = vpack.c.b16 %v1906, %v1898
        %v1995 = vpack.c.b16 %v1907, %v1899
        %v1996 = vpack.c.b16 %v1916, %v1908
        %v1997 = vpack.c.b16 %v1917, %v1909
        %v1998 = vpack.c.b16 %v1918, %v1910
        %v1999 = vpack.c.b16 %v1919, %v1911
        %v2000 = vpack.c.b16 %v1920, %v1912
        %v2001 = vpack.c.b16 %v1921, %v1913
        %v2002 = vpack.c.b16 %v1922, %v1914
        %v2003 = vpack.c.b16 %v1923, %v1915
        %v2004 = vpack.c.b16 %v1932, %v1924
        %v2005 = vpack.c.b16 %v1933, %v1925
        %v2006 = vpack.c.b16 %v1934, %v1926
        %v2007 = vpack.c.b16 %v1935, %v1927
        %v2008 = vpack.c.b16 %v1936, %v1928
        %v2009 = vpack.c.b16 %v1937, %v1929
        %v2010 = vpack.c.b16 %v1938, %v1930
        %v2011 = vpack.c.b16 %v1939, %v1931
        %v2012 = vpack.c.b16 %v1948, %v1940
        %v2013 = vpack.c.b16 %v1949, %v1941
        %v2014 = vpack.c.b16 %v1950, %v1942
        %v2015 = vpack.c.b16 %v1951, %v1943
        %v2016 = vpack.c.b16 %v1952, %v1944
        %v2017 = vpack.c.b16 %v1953, %v1945
        %v2018 = vpack.c.b16 %v1954, %v1946
        %v2019 = vpack.c.b16 %v1955, %v1947
        %v2020 = vpack.c.b16 %v1956, %v1956
        %v2021 = vpack.c.b16 %v1957, %v1957
        %v2022 = vpack.c.b16 %v1958, %v1958
        %v2023 = vpack.c.b16 %v1959, %v1959
        %v2024 = vpack.c.b16 %v1960, %v1960
        %v2025 = vpack.c.b16 %v1961, %v1961
        %v2026 = vpack.c.b16 %v1962, %v1962
        %v2027 = vpack.c.b16 %v1963, %v1963
        %2092 = vmatprep.subr.bf16.mxu0 0
        %2093 = vmatpush1.bf16.msra.mxu0 %v1211
        %2094 = vmatprep.subr.bf16.mxu0 0
        %2095 = vmatpush1.bf16.msra.mxu0 %v1212
        %2096 = vmatprep.subr.bf16.mxu0 0
        %2097 = vmatpush1.bf16.msra.mxu0 %v1213
        %2098 = vmatprep.subr.bf16.mxu0 0
        %2099 = vmatpush1.bf16.msra.mxu0 %v1214
        %2100 = vmatprep.subr.bf16.mxu0 0
        %2101 = vmatpush1.bf16.msra.mxu0 %v1215
        %2102 = vmatprep.subr.bf16.mxu0 0
        %2103 = vmatpush1.bf16.msra.mxu0 %v1216
        %2104 = vmatprep.subr.bf16.mxu0 0
        %2105 = vmatpush1.bf16.msra.mxu0 %v1217
        %2106 = vmatprep.subr.bf16.mxu0 0
        %2107 = vmatpush1.bf16.msra.mxu0 %v1218
        %2108 = vmatprep.subr.bf16.mxu0 0
        %2109 = vmatpush1.bf16.msra.mxu0 %v1219
        %2110 = vmatprep.subr.bf16.mxu0 0
        %2111 = vmatpush1.bf16.msra.mxu0 %v1220
        %2112 = vmatprep.subr.bf16.mxu0 0
        %2113 = vmatpush1.bf16.msra.mxu0 %v1221
        %2114 = vmatprep.subr.bf16.mxu0 0
        %2115 = vmatpush1.bf16.msra.mxu0 %v1222
        %2116 = vmatprep.subr.bf16.mxu0 0
        %2117 = vmatpush1.bf16.msra.mxu0 %v1223
        %2118 = vmatprep.subr.bf16.mxu0 0
        %2119 = vmatpush1.bf16.msra.mxu0 %v1224
        %2120 = vmatprep.subr.bf16.mxu0 0
        %2121 = vmatpush1.bf16.msra.mxu0 %v1225
        %2122 = vmatprep.subr.bf16.mxu0 0
        %2123 = vmatpush1.bf16.msra.mxu0 %v1226
        %2124 = vmatprep.mubr.bf16.mxu0 %v1965
        %2125 = vmatmul.mubr.bf16.gmra.mrb[0].mxu0 %v1964
        %v2126 = vpop.f32.mrb[0].mxu0
        %v2127 = vadd.f32 0.0, %v2126
        %v2128 = vpop.f32.mrb[0].mxu0
        %v2129 = vpop.f32.mrb[0].mxu0
        %v2130 = vadd.f32 0.0, %v2129
        %v2131 = vpop.f32.mrb[0].mxu0
        %2132 = vmatprep.mubr.bf16.mxu0 %v1973
        %2133 = vmatmul.mubr.bf16.gmra.mrb[0].mxu0 %v1972
        %v2134 = vpop.f32.mrb[0].mxu0
        %v2135 = vadd.f32 0.0, %v2134
        %v2136 = vpop.f32.mrb[0].mxu0
        %v2137 = vpop.f32.mrb[0].mxu0
        %v2138 = vadd.f32 0.0, %v2137
        %v2139 = vpop.f32.mrb[0].mxu0
        %2140 = vmatprep.mubr.bf16.mxu0 %v1981
        %2141 = vmatmul.mubr.bf16.gmra.mrb[0].mxu0 %v1980
        %v2142 = vpop.f32.mrb[0].mxu0
        %v2143 = vadd.f32 0.0, %v2142
        %v2144 = vpop.f32.mrb[0].mxu0
        %v2145 = vpop.f32.mrb[0].mxu0
        %v2146 = vadd.f32 0.0, %v2145
        %v2147 = vpop.f32.mrb[0].mxu0
        %2148 = vmatprep.mubr.bf16.mxu0 %v1989
        %2149 = vmatmul.mubr.bf16.gmra.mrb[0].mxu0 %v1988
        %v2150 = vpop.f32.mrb[0].mxu0
        %v2151 = vadd.f32 0.0, %v2150
        %v2152 = vpop.f32.mrb[0].mxu0
        %v2153 = vpop.f32.mrb[0].mxu0
        %v2154 = vadd.f32 0.0, %v2153
        %v2155 = vpop.f32.mrb[0].mxu0
        %2156 = vmatprep.mubr.bf16.mxu0 %v1997
        %2157 = vmatmul.mubr.bf16.gmra.mrb[0].mxu0 %v1996
        %v2158 = vpop.f32.mrb[0].mxu0
        %v2159 = vadd.f32 0.0, %v2158
        %v2160 = vpop.f32.mrb[0].mxu0
        %v2161 = vpop.f32.mrb[0].mxu0
        %v2162 = vadd.f32 0.0, %v2161
        %v2163 = vpop.f32.mrb[0].mxu0
        %2164 = vmatprep.mubr.bf16.mxu0 %v2005
        %2165 = vmatmul.mubr.bf16.gmra.mrb[0].mxu0 %v2004
        %v2166 = vpop.f32.mrb[0].mxu0
        %v2167 = vadd.f32 0.0, %v2166
        %v2168 = vpop.f32.mrb[0].mxu0
        %v2169 = vpop.f32.mrb[0].mxu0
        %v2170 = vadd.f32 0.0, %v2169
        %v2171 = vpop.f32.mrb[0].mxu0
        %2172 = vmatprep.mubr.bf16.mxu0 %v2013
        %2173 = vmatmul.mubr.bf16.gmra.mrb[0].mxu0 %v2012
        %v2174 = vpop.f32.mrb[0].mxu0
        %v2175 = vadd.f32 0.0, %v2174
        %v2176 = vpop.f32.mrb[0].mxu0
        %v2177 = vpop.f32.mrb[0].mxu0
        %v2178 = vadd.f32 0.0, %v2177
        %v2179 = vpop.f32.mrb[0].mxu0
        %2180 = vmatprep.mubr.bf16.mxu0 %v2021
        %2181 = vmatmul.mubr.bf16.gmra.mrb[0].mxu0 %v2020
        %v2182 = vpop.f32.mrb[0].mxu0
        %v2183 = vadd.f32 0.0, %v2182
        %v2184 = vpop.f32.mrb[0].mxu0
        %v2185 = vpop.f32.mrb[0].mxu0
        %v2186 = vpop.f32.mrb[0].mxu0
        %2187 = vdwg.mxu0
        %2188 = vmatprep.subr.bf16.mxu0 0
        %2189 = vmatpush1.bf16.msra.mxu0 %v1227
        %2190 = vmatprep.subr.bf16.mxu0 0
        %2191 = vmatpush1.bf16.msra.mxu0 %v1228
        %2192 = vmatprep.subr.bf16.mxu0 0
        %2193 = vmatpush1.bf16.msra.mxu0 %v1229
        %2194 = vmatprep.subr.bf16.mxu0 0
        %2195 = vmatpush1.bf16.msra.mxu0 %v1230
        %2196 = vmatprep.subr.bf16.mxu0 0
        %2197 = vmatpush1.bf16.msra.mxu0 %v1231
        %2198 = vmatprep.subr.bf16.mxu0 0
        %2199 = vmatpush1.bf16.msra.mxu0 %v1232
        %2200 = vmatprep.subr.bf16.mxu0 0
        %2201 = vmatpush1.bf16.msra.mxu0 %v1233
        %2202 = vmatprep.subr.bf16.mxu0 0
        %2203 = vmatpush1.bf16.msra.mxu0 %v1234
        %2204 = vmatprep.subr.bf16.mxu0 0
        %2205 = vmatpush1.bf16.msra.mxu0 %v1235
        %2206 = vmatprep.subr.bf16.mxu0 0
        %2207 = vmatpush1.bf16.msra.mxu0 %v1236
        %2208 = vmatprep.subr.bf16.mxu0 0
        %2209 = vmatpush1.bf16.msra.mxu0 %v1237
        %2210 = vmatprep.subr.bf16.mxu0 0
        %2211 = vmatpush1.bf16.msra.mxu0 %v1238
        %2212 = vmatprep.subr.bf16.mxu0 0
        %2213 = vmatpush1.bf16.msra.mxu0 %v1239
        %2214 = vmatprep.subr.bf16.mxu0 0
        %2215 = vmatpush1.bf16.msra.mxu0 %v1240
        %2216 = vmatprep.subr.bf16.mxu0 0
        %2217 = vmatpush1.bf16.msra.mxu0 %v1241
        %2218 = vmatprep.subr.bf16.mxu0 0
        %2219 = vmatpush1.bf16.msra.mxu0 %v1242
        %2220 = vmatprep.mubr.bf16.mxu0 %v1967
        %2221 = vmatmul.mubr.bf16.gmra.mrb[0].mxu0 %v1966
        %v2222 = vpop.f32.mrb[0].mxu0
        %v2223 = vadd.f32 %v2127, %v2222
        %v2224 = vpop.f32.mrb[0].mxu0
        %v2225 = vpop.f32.mrb[0].mxu0
        %v2226 = vadd.f32 %v2130, %v2225
        %v2227 = vpop.f32.mrb[0].mxu0
        %2228 = vmatprep.mubr.bf16.mxu0 %v1975
        %2229 = vmatmul.mubr.bf16.gmra.mrb[0].mxu0 %v1974
        %v2230 = vpop.f32.mrb[0].mxu0
        %v2231 = vadd.f32 %v2135, %v2230
        %v2232 = vpop.f32.mrb[0].mxu0
        %v2233 = vpop.f32.mrb[0].mxu0
        %v2234 = vadd.f32 %v2138, %v2233
        %v2235 = vpop.f32.mrb[0].mxu0
        %2236 = vmatprep.mubr.bf16.mxu0 %v1983
        %2237 = vmatmul.mubr.bf16.gmra.mrb[0].mxu0 %v1982
        %v2238 = vpop.f32.mrb[0].mxu0
        %v2239 = vadd.f32 %v2143, %v2238
        %v2240 = vpop.f32.mrb[0].mxu0
        %v2241 = vpop.f32.mrb[0].mxu0
        %v2242 = vadd.f32 %v2146, %v2241
        %v2243 = vpop.f32.mrb[0].mxu0
        %2244 = vmatprep.mubr.bf16.mxu0 %v1991
        %2245 = vmatmul.mubr.bf16.gmra.mrb[0].mxu0 %v1990
        %v2246 = vpop.f32.mrb[0].mxu0
        %v2247 = vadd.f32 %v2151, %v2246
        %v2248 = vpop.f32.mrb[0].mxu0
        %v2249 = vpop.f32.mrb[0].mxu0
        %v2250 = vadd.f32 %v2154, %v2249
        %v2251 = vpop.f32.mrb[0].mxu0
        %2252 = vmatprep.mubr.bf16.mxu0 %v1999
        %2253 = vmatmul.mubr.bf16.gmra.mrb[0].mxu0 %v1998
        %v2254 = vpop.f32.mrb[0].mxu0
        %v2255 = vadd.f32 %v2159, %v2254
        %v2256 = vpop.f32.mrb[0].mxu0
        %v2257 = vpop.f32.mrb[0].mxu0
        %v2258 = vadd.f32 %v2162, %v2257
        %v2259 = vpop.f32.mrb[0].mxu0
        %2260 = vmatprep.mubr.bf16.mxu0 %v2007
        %2261 = vmatmul.mubr.bf16.gmra.mrb[0].mxu0 %v2006
        %v2262 = vpop.f32.mrb[0].mxu0
        %v2263 = vadd.f32 %v2167, %v2262
        %v2264 = vpop.f32.mrb[0].mxu0
        %v2265 = vpop.f32.mrb[0].mxu0
        %v2266 = vadd.f32 %v2170, %v2265
        %v2267 = vpop.f32.mrb[0].mxu0
        %2268 = vmatprep.mubr.bf16.mxu0 %v2015
        %2269 = vmatmul.mubr.bf16.gmra.mrb[0].mxu0 %v2014
        %v2270 = vpop.f32.mrb[0].mxu0
        %v2271 = vadd.f32 %v2175, %v2270
        %v2272 = vpop.f32.mrb[0].mxu0
        %v2273 = vpop.f32.mrb[0].mxu0
        %v2274 = vadd.f32 %v2178, %v2273
        %v2275 = vpop.f32.mrb[0].mxu0
        %2276 = vmatprep.mubr.bf16.mxu0 %v2023
        %2277 = vmatmul.mubr.bf16.gmra.mrb[0].mxu0 %v2022
        %v2278 = vpop.f32.mrb[0].mxu0
        %v2279 = vadd.f32 %v2183, %v2278
        %v2280 = vpop.f32.mrb[0].mxu0
        %v2281 = vpop.f32.mrb[0].mxu0
        %v2282 = vpop.f32.mrb[0].mxu0
        %2283 = vdwg.mxu0
        %2284 = vmatprep.subr.bf16.mxu0 0
        %2285 = vmatpush1.bf16.msra.mxu0 %v1243
        %2286 = vmatprep.subr.bf16.mxu0 0
        %2287 = vmatpush1.bf16.msra.mxu0 %v1244
        %2288 = vmatprep.subr.bf16.mxu0 0
        %2289 = vmatpush1.bf16.msra.mxu0 %v1245
        %2290 = vmatprep.subr.bf16.mxu0 0
        %2291 = vmatpush1.bf16.msra.mxu0 %v1246
        %2292 = vmatprep.subr.bf16.mxu0 0
        %2293 = vmatpush1.bf16.msra.mxu0 %v1247
        %2294 = vmatprep.subr.bf16.mxu0 0
        %2295 = vmatpush1.bf16.msra.mxu0 %v1248
        %2296 = vmatprep.subr.bf16.mxu0 0
        %2297 = vmatpush1.bf16.msra.mxu0 %v1249
        %2298 = vmatprep.subr.bf16.mxu0 0
        %2299 = vmatpush1.bf16.msra.mxu0 %v1250
        %2300 = vmatprep.subr.bf16.mxu0 0
        %2301 = vmatpush1.bf16.msra.mxu0 %v1251
        %2302 = vmatprep.subr.bf16.mxu0 0
        %2303 = vmatpush1.bf16.msra.mxu0 %v1252
        %2304 = vmatprep.subr.bf16.mxu0 0
        %2305 = vmatpush1.bf16.msra.mxu0 %v1253
        %2306 = vmatprep.subr.bf16.mxu0 0
        %2307 = vmatpush1.bf16.msra.mxu0 %v1254
        %2308 = vmatprep.subr.bf16.mxu0 0
        %2309 = vmatpush1.bf16.msra.mxu0 %v1255
        %2310 = vmatprep.subr.bf16.mxu0 0
        %2311 = vmatpush1.bf16.msra.mxu0 %v1256
        %2312 = vmatprep.subr.bf16.mxu0 0
        %2313 = vmatpush1.bf16.msra.mxu0 %v1257
        %2314 = vmatprep.subr.bf16.mxu0 0
        %2315 = vmatpush1.bf16.msra.mxu0 %v1258
        %2316 = vmatprep.mubr.bf16.mxu0 %v1969
        %2317 = vmatmul.mubr.bf16.gmra.mrb[0].mxu0 %v1968
        %v2318 = vpop.f32.mrb[0].mxu0
        %v2319 = vadd.f32 %v2223, %v2318
        %v2320 = vpop.f32.mrb[0].mxu0
        %v2321 = vpop.f32.mrb[0].mxu0
        %v2322 = vadd.f32 %v2226, %v2321
        %v2323 = vpop.f32.mrb[0].mxu0
        %2324 = vmatprep.mubr.bf16.mxu0 %v1977
        %2325 = vmatmul.mubr.bf16.gmra.mrb[0].mxu0 %v1976
        %v2326 = vpop.f32.mrb[0].mxu0
        %v2327 = vadd.f32 %v2231, %v2326
        %v2328 = vpop.f32.mrb[0].mxu0
        %v2329 = vpop.f32.mrb[0].mxu0
        %v2330 = vadd.f32 %v2234, %v2329
        %v2331 = vpop.f32.mrb[0].mxu0
        %2332 = vmatprep.mubr.bf16.mxu0 %v1985
        %2333 = vmatmul.mubr.bf16.gmra.mrb[0].mxu0 %v1984
        %v2334 = vpop.f32.mrb[0].mxu0
        %v2335 = vadd.f32 %v2239, %v2334
        %v2336 = vpop.f32.mrb[0].mxu0
        %v2337 = vpop.f32.mrb[0].mxu0
        %v2338 = vadd.f32 %v2242, %v2337
        %v2339 = vpop.f32.mrb[0].mxu0
        %2340 = vmatprep.mubr.bf16.mxu0 %v1993
        %2341 = vmatmul.mubr.bf16.gmra.mrb[0].mxu0 %v1992
        %v2342 = vpop.f32.mrb[0].mxu0
        %v2343 = vadd.f32 %v2247, %v2342
        %v2344 = vpop.f32.mrb[0].mxu0
        %v2345 = vpop.f32.mrb[0].mxu0
        %v2346 = vadd.f32 %v2250, %v2345
        %v2347 = vpop.f32.mrb[0].mxu0
        %2348 = vmatprep.mubr.bf16.mxu0 %v2001
        %2349 = vmatmul.mubr.bf16.gmra.mrb[0].mxu0 %v2000
        %v2350 = vpop.f32.mrb[0].mxu0
        %v2351 = vadd.f32 %v2255, %v2350
        %v2352 = vpop.f32.mrb[0].mxu0
        %v2353 = vpop.f32.mrb[0].mxu0
        %v2354 = vadd.f32 %v2258, %v2353
        %v2355 = vpop.f32.mrb[0].mxu0
        %2356 = vmatprep.mubr.bf16.mxu0 %v2009
        %2357 = vmatmul.mubr.bf16.gmra.mrb[0].mxu0 %v2008
        %v2358 = vpop.f32.mrb[0].mxu0
        %v2359 = vadd.f32 %v2263, %v2358
        %v2360 = vpop.f32.mrb[0].mxu0
        %v2361 = vpop.f32.mrb[0].mxu0
        %v2362 = vadd.f32 %v2266, %v2361
        %v2363 = vpop.f32.mrb[0].mxu0
        %2364 = vmatprep.mubr.bf16.mxu0 %v2017
        %2365 = vmatmul.mubr.bf16.gmra.mrb[0].mxu0 %v2016
        %v2366 = vpop.f32.mrb[0].mxu0
        %v2367 = vadd.f32 %v2271, %v2366
        %v2368 = vpop.f32.mrb[0].mxu0
        %v2369 = vpop.f32.mrb[0].mxu0
        %v2370 = vadd.f32 %v2274, %v2369
        %v2371 = vpop.f32.mrb[0].mxu0
        %2372 = vmatprep.mubr.bf16.mxu0 %v2025
        %2373 = vmatmul.mubr.bf16.gmra.mrb[0].mxu0 %v2024
        %v2374 = vpop.f32.mrb[0].mxu0
        %v2375 = vadd.f32 %v2279, %v2374
        %v2376 = vpop.f32.mrb[0].mxu0
        %v2377 = vpop.f32.mrb[0].mxu0
        %v2378 = vpop.f32.mrb[0].mxu0
        %2379 = vdwg.mxu0
        %2380 = vmatprep.subr.bf16.mxu0 0
        %2381 = vmatpush1.bf16.msra.mxu0 %v1259
        %2382 = vmatprep.subr.bf16.mxu0 0
        %2383 = vmatpush1.bf16.msra.mxu0 %v1260
        %2384 = vmatprep.subr.bf16.mxu0 0
        %2385 = vmatpush1.bf16.msra.mxu0 %v1261
        %2386 = vmatprep.subr.bf16.mxu0 0
        %2387 = vmatpush1.bf16.msra.mxu0 %v1262
        %2388 = vmatprep.subr.bf16.mxu0 0
        %2389 = vmatpush1.bf16.msra.mxu0 %v1263
        %2390 = vmatprep.subr.bf16.mxu0 0
        %2391 = vmatpush1.bf16.msra.mxu0 %v1264
        %2392 = vmatprep.subr.bf16.mxu0 0
        %2393 = vmatpush1.bf16.msra.mxu0 %v1265
        %2394 = vmatprep.subr.bf16.mxu0 0
        %2395 = vmatpush1.bf16.msra.mxu0 %v1266
        %2396 = vmatprep.subr.bf16.mxu0 0
        %2397 = vmatpush1.bf16.msra.mxu0 %v1267
        %2398 = vmatprep.subr.bf16.mxu0 0
        %2399 = vmatpush1.bf16.msra.mxu0 %v1268
        %2400 = vmatprep.subr.bf16.mxu0 0
        %2401 = vmatpush1.bf16.msra.mxu0 %v1269
        %2402 = vmatprep.subr.bf16.mxu0 0
        %2403 = vmatpush1.bf16.msra.mxu0 %v1270
        %2404 = vmatprep.subr.bf16.mxu0 0
        %2405 = vmatpush1.bf16.msra.mxu0 %v1271
        %2406 = vmatprep.subr.bf16.mxu0 0
        %2407 = vmatpush1.bf16.msra.mxu0 %v1272
        %2408 = vmatprep.subr.bf16.mxu0 0
        %2409 = vmatpush1.bf16.msra.mxu0 %v1273
        %2410 = vmatprep.subr.bf16.mxu0 0
        %2411 = vmatpush1.bf16.msra.mxu0 %v1274
        %2412 = vmatprep.mubr.bf16.mxu0 %v1971
        %2413 = vmatmul.mubr.bf16.gmra.mrb[0].mxu0 %v1970
        %v2414 = vpop.f32.mrb[0].mxu0
        %v2415 = vadd.f32 %v2319, %v2414
        %v2416 = vpop.f32.mrb[0].mxu0
        %v2417 = vpop.f32.mrb[0].mxu0
        %v2418 = vadd.f32 %v2322, %v2417
        %v2419 = vpop.f32.mrb[0].mxu0
        %2420 = vmatprep.mubr.bf16.mxu0 %v1979
        %2421 = vmatmul.mubr.bf16.gmra.mrb[0].mxu0 %v1978
        %v2422 = vpop.f32.mrb[0].mxu0
        %v2423 = vadd.f32 %v2327, %v2422
        %v2424 = vpop.f32.mrb[0].mxu0
        %v2425 = vpop.f32.mrb[0].mxu0
        %v2426 = vadd.f32 %v2330, %v2425
        %v2427 = vpop.f32.mrb[0].mxu0
        %2428 = vmatprep.mubr.bf16.mxu0 %v1987
        %2429 = vmatmul.mubr.bf16.gmra.mrb[0].mxu0 %v1986
        %v2430 = vpop.f32.mrb[0].mxu0
        %v2431 = vadd.f32 %v2335, %v2430
        %v2432 = vpop.f32.mrb[0].mxu0
        %v2433 = vpop.f32.mrb[0].mxu0
        %v2434 = vadd.f32 %v2338, %v2433
        %v2435 = vpop.f32.mrb[0].mxu0
        %2436 = vmatprep.mubr.bf16.mxu0 %v1995
        %2437 = vmatmul.mubr.bf16.gmra.mrb[0].mxu0 %v1994
        %v2438 = vpop.f32.mrb[0].mxu0
        %v2439 = vadd.f32 %v2343, %v2438
        %v2440 = vpop.f32.mrb[0].mxu0
        %v2441 = vpop.f32.mrb[0].mxu0
        %v2442 = vadd.f32 %v2346, %v2441
        %v2443 = vpop.f32.mrb[0].mxu0
        %2444 = vmatprep.mubr.bf16.mxu0 %v2003
        %2445 = vmatmul.mubr.bf16.gmra.mrb[0].mxu0 %v2002
        %v2446 = vpop.f32.mrb[0].mxu0
        %v2447 = vadd.f32 %v2351, %v2446
        %v2448 = vpop.f32.mrb[0].mxu0
        %v2449 = vpop.f32.mrb[0].mxu0
        %v2450 = vadd.f32 %v2354, %v2449
        %v2451 = vpop.f32.mrb[0].mxu0
        %2452 = vmatprep.mubr.bf16.mxu0 %v2011
        %2453 = vmatmul.mubr.bf16.gmra.mrb[0].mxu0 %v2010
        %v2454 = vpop.f32.mrb[0].mxu0
        %v2455 = vadd.f32 %v2359, %v2454
        %v2456 = vpop.f32.mrb[0].mxu0
        %v2457 = vpop.f32.mrb[0].mxu0
        %v2458 = vadd.f32 %v2362, %v2457
        %v2459 = vpop.f32.mrb[0].mxu0
        %2460 = vmatprep.mubr.bf16.mxu0 %v2019
        %2461 = vmatmul.mubr.bf16.gmra.mrb[0].mxu0 %v2018
        %v2462 = vpop.f32.mrb[0].mxu0
        %v2463 = vadd.f32 %v2367, %v2462
        %v2464 = vpop.f32.mrb[0].mxu0
        %v2465 = vpop.f32.mrb[0].mxu0
        %v2466 = vadd.f32 %v2370, %v2465
        %v2467 = vpop.f32.mrb[0].mxu0
        %2468 = vmatprep.mubr.bf16.mxu0 %v2027
        %2469 = vmatmul.mubr.bf16.gmra.mrb[0].mxu0 %v2026
        %v2470 = vpop.f32.mrb[0].mxu0
        %v2471 = vadd.f32 %v2375, %v2470
        %v2472 = vpop.f32.mrb[0].mxu0
        %v2473 = vpop.f32.mrb[0].mxu0
        %v2474 = vpop.f32.mrb[0].mxu0
        %2475 = vdwg.mxu0
        %v2476 = vmax.f32 %v1662, %v2415
        %v2477 = vmax.f32 %v1665, %v2418
        %v2478 = vmax.f32 %v1670, %v2423
        %v2479 = vmax.f32 %v1673, %v2426
        %v2480 = vmax.f32 %v1678, %v2431
        %v2481 = vmax.f32 %v1681, %v2434
        %v2482 = vmax.f32 %v1686, %v2439
        %v2483 = vmax.f32 %v1689, %v2442
        %v2484 = vmax.f32 %v1694, %v2447
        %v2485 = vmax.f32 %v1697, %v2450
        %v2486 = vmax.f32 %v1702, %v2455
        %v2487 = vmax.f32 %v1705, %v2458
        %v2488 = vmax.f32 %v1710, %v2463
        %v2489 = vmax.f32 %v1713, %v2466
        %v2490 = vmax.f32 %v1718, %v2471
        %v2491 = vld [vmem:[%s2] sm:$0x1]
        %v2493 = vlaneseq
        %v2494 = vshrl.u32 %v2493, 7
        %v2495 = vsub.s32 0, %v2494
        %v2496 = vrot.slane %v2491, %v2495
        %v2498 = vadd.f32 %v2476, %v2496
        %v2499 = vadd.f32 %v2477, %v2496
        %v2500 = vadd.f32 %v2478, %v2496
        %v2501 = vadd.f32 %v2479, %v2496
        %v2502 = vadd.f32 %v2480, %v2496
        %v2503 = vadd.f32 %v2481, %v2496
        %v2504 = vadd.f32 %v2482, %v2496
        %v2505 = vadd.f32 %v2483, %v2496
        %v2506 = vadd.f32 %v2484, %v2496
        %v2507 = vadd.f32 %v2485, %v2496
        %v2508 = vadd.f32 %v2486, %v2496
        %v2509 = vadd.f32 %v2487, %v2496
        %v2510 = vadd.f32 %v2488, %v2496
        %v2511 = vadd.f32 %v2489, %v2496
        %v2512 = vadd.f32 %v2490, %v2496
        %v2513 = vmul.f32 %v2498, 0.01
        %v2514 = vmul.f32 %v2499, 0.01
        %v2515 = vmul.f32 %v2500, 0.01
        %v2516 = vmul.f32 %v2501, 0.01
        %v2517 = vmul.f32 %v2502, 0.01
        %v2518 = vmul.f32 %v2503, 0.01
        %v2519 = vmul.f32 %v2504, 0.01
        %v2520 = vmul.f32 %v2505, 0.01
        %v2521 = vmul.f32 %v2506, 0.01
        %v2522 = vmul.f32 %v2507, 0.01
        %v2523 = vmul.f32 %v2508, 0.01
        %v2524 = vmul.f32 %v2509, 0.01
        %v2525 = vmul.f32 %v2510, 0.01
        %v2526 = vmul.f32 %v2511, 0.01
        %v2527 = vmul.f32 %v2512, 0.01
        %v2528 = vmax.f32 %v2498, %v2513
        %v2529 = vmax.f32 %v2499, %v2514
        %v2530 = vmax.f32 %v2500, %v2515
        %v2531 = vmax.f32 %v2501, %v2516
        %v2532 = vmax.f32 %v2502, %v2517
        %v2533 = vmax.f32 %v2503, %v2518
        %v2534 = vmax.f32 %v2504, %v2519
        %v2535 = vmax.f32 %v2505, %v2520
        %v2536 = vmax.f32 %v2506, %v2521
        %v2537 = vmax.f32 %v2507, %v2522
        %v2538 = vmax.f32 %v2508, %v2523
        %v2539 = vmax.f32 %v2509, %v2524
        %v2540 = vmax.f32 %v2510, %v2525
        %v2541 = vmax.f32 %v2511, %v2526
        %v2542 = vmax.f32 %v2512, %v2527
        %v2543 = vpack.c.bf16 %v2529, %v2528
        %v2544 = vpack.c.bf16 %v2531, %v2530
        %v2545 = vpack.c.bf16 %v2533, %v2532
        %v2546 = vpack.c.bf16 %v2535, %v2534
        %v2547 = vpack.c.bf16 %v2537, %v2536
        %v2548 = vpack.c.bf16 %v2539, %v2538
        %v2549 = vpack.c.bf16 %v2541, %v2540
        %v2550 = vpack.c.bf16 %v2542, %v2542
        %v2559 = vunpack.c.l.b16 %v2543
        %v2560 = vunpack.c.h.b16 %v2543
        %v2561 = vunpack.c.l.b16 %v2544
        %v2562 = vunpack.c.h.b16 %v2544
        %v2563 = vunpack.c.l.b16 %v2545
        %v2564 = vunpack.c.h.b16 %v2545
        %v2565 = vunpack.c.l.b16 %v2546
        %v2566 = vunpack.c.h.b16 %v2546
        %v2567 = vunpack.c.l.b16 %v2547
        %v2568 = vunpack.c.h.b16 %v2547
        %v2569 = vunpack.c.l.b16 %v2548
        %v2570 = vunpack.c.h.b16 %v2548
        %v2571 = vunpack.c.l.b16 %v2549
        %v2572 = vunpack.c.h.b16 %v2549
        %v2573 = vunpack.c.l.b16 %v2550
        %v2574 = vpack.c.b16 %v2559, %v2559
        %v2575 = vpack.c.b16 %v2560, %v2560
        %v2576 = vpack.c.b16 %v2561, %v2561
        %v2577 = vpack.c.b16 %v2562, %v2562
        %v2578 = vpack.c.b16 %v2563, %v2563
        %v2579 = vpack.c.b16 %v2564, %v2564
        %v2580 = vpack.c.b16 %v2565, %v2565
        %v2581 = vpack.c.b16 %v2566, %v2566
        %v2582 = vpack.c.b16 %v2567, %v2567
        %v2583 = vpack.c.b16 %v2568, %v2568
        %v2584 = vpack.c.b16 %v2569, %v2569
        %v2585 = vpack.c.b16 %v2570, %v2570
        %v2586 = vpack.c.b16 %v2571, %v2571
        %v2587 = vpack.c.b16 %v2572, %v2572
        %v2588 = vpack.c.b16 %v2573, %v2573
        %2604 = vst [vmem:[%s456] sm:$0xf] %v2574
        %2605 = vst [vmem:[%s456 + $0x4] sm:$0xf] %v2575
        %2606 = vst [vmem:[%s456 + $0x8] sm:$0xf] %v2576
        %2607 = vst [vmem:[%s456 + $0xc] sm:$0xf] %v2577
        %2608 = vst [vmem:[%s456 + $0x10] sm:$0xf] %v2578
        %2609 = vst [vmem:[%s456 + $0x14] sm:$0xf] %v2579
        %2610 = vst [vmem:[%s456 + $0x18] sm:$0xf] %v2580
        %2611 = vst [vmem:[%s456 + $0x1c] sm:$0xf] %v2581
        %2612 = vst [vmem:[%s456 + $0x20] sm:$0xf] %v2582
        %2613 = vst [vmem:[%s456 + $0x24] sm:$0xf] %v2583
        %2614 = vst [vmem:[%s456 + $0x28] sm:$0xf] %v2584
        %2615 = vst [vmem:[%s456 + $0x2c] sm:$0xf] %v2585
        %2616 = vst [vmem:[%s456 + $0x30] sm:$0xf] %v2586
        %2617 = vst [vmem:[%s456 + $0x34] sm:$0xf] %v2587
        %2618 = vst [vmem:[%s456 + $0x38] sm:$0xf] %v2588
        %s2619 = smul.u32 15, %s19
        %p2620 = scmp.lt.s32.totalorder %s18, 1
        %s2621 = scalar_select %p2620, %s18, 1
        %p2622 = scmp.lt.s32.totalorder %s2619, 29
        %s2623 = scalar_select %p2622, %s2619, 29
        %s2624 = smul.addr %s2621, 30
        %s2625 = sadd.s32 %s2623, %s2624
        %s2626 = smul.addr %s2625, 4
        %s2627 = scalar_lea.vmem %s3, %s2626
        // Predicated region
        $region56: #{cnn20_forward.4} parent=50 // pred_check
          %p2628 = pneg %p116
        $region57: #{cnn20_forward.4} parent=50 // pred_check_branch
          %2630 = sbr.rel (%p2628) target = $region59
        $region58: #{cnn20_forward.4} parent=50 // pred_region
          %s2631 = smul.u32 15, %s19
        $region59: #{cnn20_forward.4} parent=50 // pred_fallthru
          _
      $region51: #{cnn20_forward.4} parent=5 // pred_fallthru
        _
      %p2632 = scmp.le.s32.totalorder 2, %s9
      // Predicated region
      $region60: #{cnn20_forward.4} parent=5 // pred_check
        %p2633 = pneg %p2632
      $region61: #{cnn20_forward.4} parent=5 // pred_check_branch
        %2635 = sbr.rel (%p2633) target = $region63
      $region62: #{cnn20_forward.4} parent=5 // pred_region
        %s2636 = ssub.s32 %s9, 2
        // Predicated region
        $region64: #{cnn20_forward.4} parent=62 // pred_check
          %p2637 = pneg %p122
        $region65: #{cnn20_forward.4} parent=62 // pred_check_branch
          %2639 = sbr.rel (%p2637) target = $region67
        $region66: #{cnn20_forward.4} parent=62 // pred_region
          %s2640 = smul.u32 15, %s21
          %p2641 = scmp.lt.s32.totalorder %s20, 1
          %s2642 = scalar_select %p2641, %s20, 1
          %p2643 = scmp.lt.s32.totalorder %s2640, 29
          %s2644 = scalar_select %p2643, %s2640, 29
          %s2645 = smul.addr %s2642, 30
          %s2646 = sadd.s32 %s2644, %s2645
          %s2647 = smul.addr %s2646, 4
          %s2648 = scalar_lea.vmem %s3, %s2647
        $region67: #{cnn20_forward.4} parent=62 // pred_fallthru
          _
      $region63: #{cnn20_forward.4} parent=5 // pred_fallthru
        _
    $region6: #{cnn20_forward.4} parent=1 // loop_footer
      %s13 = sadd.s32 1, %s9
    $region7: #{cnn20_forward.4} parent=1 // loop_footer_branch
      %8 = sbr.rel target = $region3
    $region8: #{cnn20_forward.4} parent=1 // loop_exit
      _

// kernel: cnn20_forward.5
$region0: #{cnn20_forward.5}
  #allocation0 [shape = 'u32[]', space=smem, size = 0x4, offset = 0x4, fixed_abs, tag = 'smem constant byte address 0x4 - core index']
  #allocation1 [shape = 'u32[144,128]{1,0:T(1,128)}', space=vmem, size = 0x12000, scoped, tag = 'internal scratch']
  %s0 = inlined_call_operand.vmem [shape: bf16[2,2,64,1920], index: 0, kind: input, shape index: {}]
  %s1 = inlined_call_operand.vmem [shape: bf16[1920,256], index: 1, kind: input, shape index: {}]
  %s2 = inlined_call_operand.vmem [shape: f32[1,256], index: 2, kind: input, shape index: {}]
  %s3 = inlined_call_operand.vmem [shape: f32[2,64,256], index: 3, kind: input, shape index: {}]
  %s4 = inlined_call_operand.vmem [shape: f32[1,2], index: 4, kind: input, shape index: {}]
  %s5 = inlined_call_operand.hbm [shape: f32[2,1,2], index: 5, kind: output, shape index: {}]
  %s6 = sld [smem:[#allocation0]]
  $region53: #{cnn20_forward.5} parent=0
    _
  %s8 = ssub.s32 1, %s6
  %s9 = scalar_select 0, %s8, %s6
  $region1: #{cnn20_forward.5} parent=0
    #allocation2 [shape = 'u8[1024]{0}', space=vmem, size = 0x400, scoped, tag = 'output window, operand 0']
    #allocation3 [shape = 's32[2]{0}', space=sflag, size = 0x8, scoped, tag = 'scoped memory for cnn20_forward.5']
    %10 = vsyncpa [#allocation3], 0
    %s11 = scalar_lea.sflag [#allocation3], 1
    %12 = vsyncpa %s11, 0
    loop: start=0, step=1, limit=4
    $region2: #{cnn20_forward.5} parent=1 // loop_pre_header
      _
    $region3: #{cnn20_forward.5} parent=1 // loop_header
      %s14 = sphi 0, %s18
      %p15 = scmp.ge.s32.totalorder %s14, 4
      %s24 = sphi 0, %s26
      %s27 = sphi 0, %s24
      %s28 = sphi 0, %s27
      %s44 = sphi 0, %s28
      %s48 = sphi 0, %s48
      %s50 = sphi 0, %s48
      %s51 = sphi 0, %s50
      %s65 = sphi 0, %s51
      %s69 = sphi 0, %s69
      %s71 = sphi 0, %s69
      %s72 = sphi 0, %s71
      %s86 = sphi 0, %s72
      %s90 = sphi 0, %s90
      %s92 = sphi 0, %s90
      %s93 = sphi 0, %s92
      %s107 = sphi 0, %s93
      %s111 = sphi 0, %s111
      %s113 = sphi 0, %s111
      %s114 = sphi 0, %s113
      %s128 = sphi 0, %s114
      %s134 = sphi 0, %s136
      %s137 = sphi 0, %s134
      %s138 = sphi 0, %s137
      %s154 = sphi 0, %s138
    $region4: #{cnn20_forward.5} parent=1 // loop_header_branch
      %17 = sbr.rel (%p15) target = $region8
    $region5: #{cnn20_forward.5} parent=1 // loop_body
      %s19 = ssub.s32 %s14, 1
      %s20 = ssub.s32 %s14, 2
      %s21 = sadd.s32 %s14, 1
      %s22 = ssub.s32 %s14, %s21
      %p23 = scmp.eq.s32.totalorder %s22, 0
      %s25 = sadd.s32 %s24, 1
      %s26 = scalar_select %p23, %s24, %s25
      %p29 = pneg %p23
      %p30 = scmp.eq.s32.totalorder %s14, 1
      %p31 = por %p29, %p30
      %p32 = scmp.ne.s32.totalorder %s24, %s27
      %p33 = scmp.eq.s32.totalorder %s14, 0
      %p34 = por %p32, %p33
      %p35 = scmp.ne.s32.totalorder %s24, %s27
      %p36 = scmp.eq.s32.totalorder %s19, 1
      %p37 = por %p35, %p36
      %p38 = scmp.ne.s32.totalorder %s27, %s28
      %p39 = scmp.eq.s32.totalorder %s19, 0
      %p40 = por %p38, %p39
      %p41 = scmp.ne.s32.totalorder %s27, %s28
      %p42 = scmp.eq.s32.totalorder %s20, 1
      %p43 = por %p41, %p42
      %p45 = scmp.ne.s32.totalorder %s28, %s44
      %p46 = scmp.eq.s32.totalorder %s20, 0
      %p47 = por %p45, %p46
      %s49 = sadd.s32 %s48, 1
      %p52 = scmp.eq.s32.totalorder %s14, 1
      %p53 = scmp.ne.s32.totalorder %s48, %s50
      %p54 = scmp.eq.s32.totalorder %s14, 0
      %p55 = por %p53, %p54
      %p56 = scmp.ne.s32.totalorder %s48, %s50
      %p57 = scmp.eq.s32.totalorder %s19, 1
      %p58 = por %p56, %p57
      %p59 = scmp.ne.s32.totalorder %s50, %s51
      %p60 = scmp.eq.s32.totalorder %s19, 0
      %p61 = por %p59, %p60
      %p62 = scmp.ne.s32.totalorder %s50, %s51
      %p63 = scmp.eq.s32.totalorder %s20, 1
      %p64 = por %p62, %p63
      %p66 = scmp.ne.s32.totalorder %s51, %s65
      %p67 = scmp.eq.s32.totalorder %s20, 0
      %p68 = por %p66, %p67
      %s70 = sadd.s32 %s69, 1
      %p73 = scmp.eq.s32.totalorder %s14, 1
      %p74 = scmp.ne.s32.totalorder %s69, %s71
      %p75 = scmp.eq.s32.totalorder %s14, 0
      %p76 = por %p74, %p75
      %p77 = scmp.ne.s32.totalorder %s69, %s71
      %p78 = scmp.eq.s32.totalorder %s19, 1
      %p79 = por %p77, %p78
      %p80 = scmp.ne.s32.totalorder %s71, %s72
      %p81 = scmp.eq.s32.totalorder %s19, 0
      %p82 = por %p80, %p81
      %p83 = scmp.ne.s32.totalorder %s71, %s72
      %p84 = scmp.eq.s32.totalorder %s20, 1
      %p85 = por %p83, %p84
      %p87 = scmp.ne.s32.totalorder %s72, %s86
      %p88 = scmp.eq.s32.totalorder %s20, 0
      %p89 = por %p87, %p88
      %s91 = sadd.s32 %s90, 1
      %p94 = scmp.eq.s32.totalorder %s14, 1
      %p95 = scmp.ne.s32.totalorder %s90, %s92
      %p96 = scmp.eq.s32.totalorder %s14, 0
      %p97 = por %p95, %p96
      %p98 = scmp.ne.s32.totalorder %s90, %s92
      %p99 = scmp.eq.s32.totalorder %s19, 1
      %p100 = por %p98, %p99
      %p101 = scmp.ne.s32.totalorder %s92, %s93
      %p102 = scmp.eq.s32.totalorder %s19, 0
      %p103 = por %p101, %p102
      %p104 = scmp.ne.s32.totalorder %s92, %s93
      %p105 = scmp.eq.s32.totalorder %s20, 1
      %p106 = por %p104, %p105
      %p108 = scmp.ne.s32.totalorder %s93, %s107
      %p109 = scmp.eq.s32.totalorder %s20, 0
      %p110 = por %p108, %p109
      %s112 = sadd.s32 %s111, 1
      %p115 = scmp.eq.s32.totalorder %s14, 1
      %p116 = scmp.ne.s32.totalorder %s111, %s113
      %p117 = scmp.eq.s32.totalorder %s14, 0
      %p118 = por %p116, %p117
      %p119 = scmp.ne.s32.totalorder %s111, %s113
      %p120 = scmp.eq.s32.totalorder %s19, 1
      %p121 = por %p119, %p120
      %p122 = scmp.ne.s32.totalorder %s113, %s114
      %p123 = scmp.eq.s32.totalorder %s19, 0
      %p124 = por %p122, %p123
      %p125 = scmp.ne.s32.totalorder %s113, %s114
      %p126 = scmp.eq.s32.totalorder %s20, 1
      %p127 = por %p125, %p126
      %p129 = scmp.ne.s32.totalorder %s114, %s128
      %p130 = scmp.eq.s32.totalorder %s20, 0
      %p131 = por %p129, %p130
      %s132 = ssub.s32 %s14, %s21
      %p133 = scmp.eq.s32.totalorder %s132, 0
      %s135 = sadd.s32 %s134, 1
      %s136 = scalar_select %p133, %s134, %s135
      %p139 = pneg %p133
      %p140 = scmp.eq.s32.totalorder %s14, 1
      %p141 = por %p139, %p140
      %p142 = scmp.ne.s32.totalorder %s134, %s137
      %p143 = scmp.eq.s32.totalorder %s14, 0
      %p144 = por %p142, %p143
      %p145 = scmp.ne.s32.totalorder %s134, %s137
      %p146 = scmp.eq.s32.totalorder %s19, 1
      %p147 = por %p145, %p146
      %p148 = scmp.ne.s32.totalorder %s137, %s138
      %p149 = scmp.eq.s32.totalorder %s19, 0
      %p150 = por %p148, %p149
      %p151 = scmp.ne.s32.totalorder %s137, %s138
      %p152 = scmp.eq.s32.totalorder %s20, 1
      %p153 = por %p151, %p152
      %p155 = scmp.ne.s32.totalorder %s138, %s154
      %p156 = scmp.eq.s32.totalorder %s20, 0
      %p157 = por %p155, %p156
      %p158 = scmp.le.s32.totalorder 1, %s14
      %p159 = scmp.lt.s32.totalorder %s14, 3
      %p160 = pnand %p158, %p159
      %p161 = pneg %p160
      // Predicated region
      $region9: #{cnn20_forward.5} parent=5 // pred_check
        _
      $region10: #{cnn20_forward.5} parent=5 // pred_check_branch
        %163 = sbr.rel (%p160) target = $region12
      $region11: #{cnn20_forward.5} parent=5 // pred_region
        %s164 = ssub.s32 %s14, 1
        // Predicated region
        $region13: #{cnn20_forward.5} parent=11 // pred_check
          %p165 = pneg %p61
        $region14: #{cnn20_forward.5} parent=11 // pred_check_branch
          %167 = sbr.rel (%p165) target = $region16
        $region15: #{cnn20_forward.5} parent=11 // pred_region
          _
        $region16: #{cnn20_forward.5} parent=11 // pred_fallthru
          _
        // Predicated region
        $region17: #{cnn20_forward.5} parent=11 // pred_check
          %p168 = pneg %p82
        $region18: #{cnn20_forward.5} parent=11 // pred_check_branch
          %170 = sbr.rel (%p168) target = $region20
        $region19: #{cnn20_forward.5} parent=11 // pred_region
          _
        $region20: #{cnn20_forward.5} parent=11 // pred_fallthru
          _
        // Predicated region
        $region21: #{cnn20_forward.5} parent=11 // pred_check
          %p171 = pneg %p103
        $region22: #{cnn20_forward.5} parent=11 // pred_check_branch
          %173 = sbr.rel (%p171) target = $region24
        $region23: #{cnn20_forward.5} parent=11 // pred_region
          _
        $region24: #{cnn20_forward.5} parent=11 // pred_fallthru
          _
        // Predicated region
        $region25: #{cnn20_forward.5} parent=11 // pred_check
          %p174 = pneg %p124
        $region26: #{cnn20_forward.5} parent=11 // pred_check_branch
          %176 = sbr.rel (%p174) target = $region28
        $region27: #{cnn20_forward.5} parent=11 // pred_region
          _
        $region28: #{cnn20_forward.5} parent=11 // pred_fallthru
          _
      $region12: #{cnn20_forward.5} parent=5 // pred_fallthru
        _
      %p177 = scmp.lt.s32.totalorder %s14, 2
      // Predicated region
      $region29: #{cnn20_forward.5} parent=5 // pred_check
        %p178 = pneg %p177
      $region30: #{cnn20_forward.5} parent=5 // pred_check_branch
        %180 = sbr.rel (%p178) target = $region32
      $region31: #{cnn20_forward.5} parent=5 // pred_region
        // Predicated region
        $region33: #{cnn20_forward.5} parent=31 // pred_check
          %p181 = pneg %p34
        $region34: #{cnn20_forward.5} parent=31 // pred_check_branch
          %183 = sbr.rel (%p181) target = $region36
        $region35: #{cnn20_forward.5} parent=31 // pred_region
          %p184 = scmp.lt.s32.totalorder %s14, 1
          %s185 = scalar_select %p184, %s14, 1
          %s186 = smul.addr %s185, 240
          %s187 = smul.addr %s186, 4
          %s188 = scalar_lea.vmem %s0, %s187
        $region36: #{cnn20_forward.5} parent=31 // pred_fallthru
          _
      $region32: #{cnn20_forward.5} parent=5 // pred_fallthru
        _
      %p189 = scmp.le.s32.totalorder 1, %s14
      %p190 = scmp.lt.s32.totalorder %s14, 3
      %p191 = pnand %p189, %p190
      %p192 = pneg %p191
      // Predicated region
      $region37: #{cnn20_forward.5} parent=5 // pred_check
        _
      $region38: #{cnn20_forward.5} parent=5 // pred_check_branch
        %194 = sbr.rel (%p191) target = $region40
      $region39: #{cnn20_forward.5} parent=5 // pred_region
        %s195 = ssub.s32 %s14, 1
        %p196 = scmp.lt.s32.totalorder %s19, 1
        %s197 = scalar_select %p196, %s19, 1
        %s198 = smul.addr %s197, 240
        %s199 = smul.addr %s198, 4
        %s200 = scalar_lea.vmem %s0, %s199
        %p201 = pneg %p40
        %p202 = pneg %p37
        %p203 = pneg %p61
        %p204 = pneg %p58
        %p205 = pneg %p82
        %p206 = pneg %p79
        %p207 = pneg %p103
        %p208 = pneg %p100
        %p209 = pneg %p124
        %p210 = pneg %p121
        %p211 = pneg %p150
        %p212 = pneg %p147
        %s213 = sand.u32 %s137, 1
        %s214 = scalar_lea.sflag [#allocation3], %s213
        %s215 = sand.u32 %s137, 1
        %s216 = scalar_lea.vmem [#allocation2], %s215
        %p217 = scmp.lt.s32.totalorder %s19, 1
        %s218 = scalar_select %p217, %s19, 1
        %s219 = smul.addr %s218, 240
        %s220 = smul.addr %s219, 4
        %s221 = scalar_lea.vmem %s0, %s220
        %v223 = vld [vmem:[%s1] sm:$0xff]
        %v224 = vld [vmem:[%s1 + $0x8] sm:$0xff]
        %v225 = vld [vmem:[%s1 + $0x10] sm:$0xff]
        %v226 = vld [vmem:[%s1 + $0x18] sm:$0xff]
        %v227 = vld [vmem:[%s1 + $0x20] sm:$0xff]
        %v228 = vld [vmem:[%s1 + $0x28] sm:$0xff]
        %v229 = vld [vmem:[%s1 + $0x30] sm:$0xff]
        %v230 = vld [vmem:[%s1 + $0x38] sm:$0xff]
        %v231 = vld [vmem:[%s1 + $0x40] sm:$0xff]
        %v232 = vld [vmem:[%s1 + $0x48] sm:$0xff]
        %v233 = vld [vmem:[%s1 + $0x50] sm:$0xff]
        %v234 = vld [vmem:[%s1 + $0x58] sm:$0xff]
        %v235 = vld [vmem:[%s1 + $0x60] sm:$0xff]
        %v236 = vld [vmem:[%s1 + $0x68] sm:$0xff]
        %v237 = vld [vmem:[%s1 + $0x70] sm:$0xff]
        %v238 = vld [vmem:[%s1 + $0x78] sm:$0xff]
        %v239 = vld [vmem:[%s1 + $0x80] sm:$0xff]
        %v240 = vld [vmem:[%s1 + $0x88] sm:$0xff]
        %v241 = vld [vmem:[%s1 + $0x90] sm:$0xff]
        %v242 = vld [vmem:[%s1 + $0x98] sm:$0xff]
        %v243 = vld [vmem:[%s1 + $0xa0] sm:$0xff]
        %v244 = vld [vmem:[%s1 + $0xa8] sm:$0xff]
        %v245 = vld [vmem:[%s1 + $0xb0] sm:$0xff]
        %v246 = vld [vmem:[%s1 + $0xb8] sm:$0xff]
        %v247 = vld [vmem:[%s1 + $0xc0] sm:$0xff]
        %v248 = vld [vmem:[%s1 + $0xc8] sm:$0xff]
        %v249 = vld [vmem:[%s1 + $0xd0] sm:$0xff]
        %v250 = vld [vmem:[%s1 + $0xd8] sm:$0xff]
        %v251 = vld [vmem:[%s1 + $0xe0] sm:$0xff]
        %v252 = vld [vmem:[%s1 + $0xe8] sm:$0xff]
        %v253 = vld [vmem:[%s1 + $0xf0] sm:$0xff]
        %v254 = vld [vmem:[%s1 + $0xf8] sm:$0xff]
        %v255 = vld [vmem:[%s1 + $0x100] sm:$0xff]
        %v256 = vld [vmem:[%s1 + $0x108] sm:$0xff]
        %v257 = vld [vmem:[%s1 + $0x110] sm:$0xff]
        %v258 = vld [vmem:[%s1 + $0x118] sm:$0xff]
        %v259 = vld [vmem:[%s1 + $0x120] sm:$0xff]
        %v260 = vld [vmem:[%s1 + $0x128] sm:$0xff]
        %v261 = vld [vmem:[%s1 + $0x130] sm:$0xff]
        %v262 = vld [vmem:[%s1 + $0x138] sm:$0xff]
        %v263 = vld [vmem:[%s1 + $0x140] sm:$0xff]
        %v264 = vld [vmem:[%s1 + $0x148] sm:$0xff]
        %v265 = vld [vmem:[%s1 + $0x150] sm:$0xff]
        %v266 = vld [vmem:[%s1 + $0x158] sm:$0xff]
        %v267 = vld [vmem:[%s1 + $0x160] sm:$0xff]
        %v268 = vld [vmem:[%s1 + $0x168] sm:$0xff]
        %v269 = vld [vmem:[%s1 + $0x170] sm:$0xff]
        %v270 = vld [vmem:[%s1 + $0x178] sm:$0xff]
        %v271 = vld [vmem:[%s1 + $0x180] sm:$0xff]
        %v272 = vld [vmem:[%s1 + $0x188] sm:$0xff]
        %v273 = vld [vmem:[%s1 + $0x190] sm:$0xff]
        %v274 = vld [vmem:[%s1 + $0x198] sm:$0xff]
        %v275 = vld [vmem:[%s1 + $0x1a0] sm:$0xff]
        %v276 = vld [vmem:[%s1 + $0x1a8] sm:$0xff]
        %v277 = vld [vmem:[%s1 + $0x1b0] sm:$0xff]
        %v278 = vld [vmem:[%s1 + $0x1b8] sm:$0xff]
        %v279 = vld [vmem:[%s1 + $0x1c0] sm:$0xff]
        %v280 = vld [vmem:[%s1 + $0x1c8] sm:$0xff]
        %v281 = vld [vmem:[%s1 + $0x1d0] sm:$0xff]
        %v282 = vld [vmem:[%s1 + $0x1d8] sm:$0xff]
        %v283 = vld [vmem:[%s1 + $0x1e0] sm:$0xff]
        %v284 = vld [vmem:[%s1 + $0x1e8] sm:$0xff]
        %v285 = vld [vmem:[%s1 + $0x1f0] sm:$0xff]
        %v286 = vld [vmem:[%s1 + $0x1f8] sm:$0xff]
        %v287 = vld [vmem:[%s1 + $0x200] sm:$0xff]
        %v288 = vld [vmem:[%s1 + $0x208] sm:$0xff]
        %v289 = vld [vmem:[%s1 + $0x210] sm:$0xff]
        %v290 = vld [vmem:[%s1 + $0x218] sm:$0xff]
        %v291 = vld [vmem:[%s1 + $0x220] sm:$0xff]
        %v292 = vld [vmem:[%s1 + $0x228] sm:$0xff]
        %v293 = vld [vmem:[%s1 + $0x230] sm:$0xff]
        %v294 = vld [vmem:[%s1 + $0x238] sm:$0xff]
        %v295 = vld [vmem:[%s1 + $0x240] sm:$0xff]
        %v296 = vld [vmem:[%s1 + $0x248] sm:$0xff]
        %v297 = vld [vmem:[%s1 + $0x250] sm:$0xff]
        %v298 = vld [vmem:[%s1 + $0x258] sm:$0xff]
        %v299 = vld [vmem:[%s1 + $0x260] sm:$0xff]
        %v300 = vld [vmem:[%s1 + $0x268] sm:$0xff]
        %v301 = vld [vmem:[%s1 + $0x270] sm:$0xff]
        %v302 = vld [vmem:[%s1 + $0x278] sm:$0xff]
        %v303 = vld [vmem:[%s1 + $0x280] sm:$0xff]
        %v304 = vld [vmem:[%s1 + $0x288] sm:$0xff]
        %v305 = vld [vmem:[%s1 + $0x290] sm:$0xff]
        %v306 = vld [vmem:[%s1 + $0x298] sm:$0xff]
        %v307 = vld [vmem:[%s1 + $0x2a0] sm:$0xff]
        %v308 = vld [vmem:[%s1 + $0x2a8] sm:$0xff]
        %v309 = vld [vmem:[%s1 + $0x2b0] sm:$0xff]
        %v310 = vld [vmem:[%s1 + $0x2b8] sm:$0xff]
        %v311 = vld [vmem:[%s1 + $0x2c0] sm:$0xff]
        %v312 = vld [vmem:[%s1 + $0x2c8] sm:$0xff]
        %v313 = vld [vmem:[%s1 + $0x2d0] sm:$0xff]
        %v314 = vld [vmem:[%s1 + $0x2d8] sm:$0xff]
        %v315 = vld [vmem:[%s1 + $0x2e0] sm:$0xff]
        %v316 = vld [vmem:[%s1 + $0x2e8] sm:$0xff]
        %v317 = vld [vmem:[%s1 + $0x2f0] sm:$0xff]
        %v318 = vld [vmem:[%s1 + $0x2f8] sm:$0xff]
        %v319 = vld [vmem:[%s1 + $0x300] sm:$0xff]
        %v320 = vld [vmem:[%s1 + $0x308] sm:$0xff]
        %v321 = vld [vmem:[%s1 + $0x310] sm:$0xff]
        %v322 = vld [vmem:[%s1 + $0x318] sm:$0xff]
        %v323 = vld [vmem:[%s1 + $0x320] sm:$0xff]
        %v324 = vld [vmem:[%s1 + $0x328] sm:$0xff]
        %v325 = vld [vmem:[%s1 + $0x330] sm:$0xff]
        %v326 = vld [vmem:[%s1 + $0x338] sm:$0xff]
        %v327 = vld [vmem:[%s1 + $0x340] sm:$0xff]
        %v328 = vld [vmem:[%s1 + $0x348] sm:$0xff]
        %v329 = vld [vmem:[%s1 + $0x350] sm:$0xff]
        %v330 = vld [vmem:[%s1 + $0x358] sm:$0xff]
        %v331 = vld [vmem:[%s1 + $0x360] sm:$0xff]
        %v332 = vld [vmem:[%s1 + $0x368] sm:$0xff]
        %v333 = vld [vmem:[%s1 + $0x370] sm:$0xff]
        %v334 = vld [vmem:[%s1 + $0x378] sm:$0xff]
        %v335 = vld [vmem:[%s1 + $0x380] sm:$0xff]
        %v336 = vld [vmem:[%s1 + $0x388] sm:$0xff]
        %v337 = vld [vmem:[%s1 + $0x390] sm:$0xff]
        %v338 = vld [vmem:[%s1 + $0x398] sm:$0xff]
        %v339 = vld [vmem:[%s1 + $0x3a0] sm:$0xff]
        %v340 = vld [vmem:[%s1 + $0x3a8] sm:$0xff]
        %v341 = vld [vmem:[%s1 + $0x3b0] sm:$0xff]
        %v342 = vld [vmem:[%s1 + $0x3b8] sm:$0xff]
        %v343 = vld [vmem:[%s1 + $0x3c0] sm:$0xff]
        %v344 = vld [vmem:[%s1 + $0x3c8] sm:$0xff]
        %v345 = vld [vmem:[%s1 + $0x3d0] sm:$0xff]
        %v346 = vld [vmem:[%s1 + $0x3d8] sm:$0xff]
        %v347 = vld [vmem:[%s1 + $0x3e0] sm:$0xff]
        %v348 = vld [vmem:[%s1 + $0x3e8] sm:$0xff]
        %v349 = vld [vmem:[%s1 + $0x3f0] sm:$0xff]
        %v350 = vld [vmem:[%s1 + $0x3f8] sm:$0xff]
        %v351 = vld [vmem:[%s1 + $0x400] sm:$0xff]
        %v352 = vld [vmem:[%s1 + $0x408] sm:$0xff]
        %v353 = vld [vmem:[%s1 + $0x410] sm:$0xff]
        %v354 = vld [vmem:[%s1 + $0x418] sm:$0xff]
        %v355 = vld [vmem:[%s1 + $0x420] sm:$0xff]
        %v356 = vld [vmem:[%s1 + $0x428] sm:$0xff]
        %v357 = vld [vmem:[%s1 + $0x430] sm:$0xff]
        %v358 = vld [vmem:[%s1 + $0x438] sm:$0xff]
        %v359 = vld [vmem:[%s1 + $0x440] sm:$0xff]
        %v360 = vld [vmem:[%s1 + $0x448] sm:$0xff]
        %v361 = vld [vmem:[%s1 + $0x450] sm:$0xff]
        %v362 = vld [vmem:[%s1 + $0x458] sm:$0xff]
        %v363 = vld [vmem:[%s1 + $0x460] sm:$0xff]
        %v364 = vld [vmem:[%s1 + $0x468] sm:$0xff]
        %v365 = vld [vmem:[%s1 + $0x470] sm:$0xff]
        %v366 = vld [vmem:[%s1 + $0x478] sm:$0xff]
        %v367 = vld [vmem:[%s1 + $0x480] sm:$0xff]
        %v368 = vld [vmem:[%s1 + $0x488] sm:$0xff]
        %v369 = vld [vmem:[%s1 + $0x490] sm:$0xff]
        %v370 = vld [vmem:[%s1 + $0x498] sm:$0xff]
        %v371 = vld [vmem:[%s1 + $0x4a0] sm:$0xff]
        %v372 = vld [vmem:[%s1 + $0x4a8] sm:$0xff]
        %v373 = vld [vmem:[%s1 + $0x4b0] sm:$0xff]
        %v374 = vld [vmem:[%s1 + $0x4b8] sm:$0xff]
        %v375 = vld [vmem:[%s1 + $0x4c0] sm:$0xff]
        %v376 = vld [vmem:[%s1 + $0x4c8] sm:$0xff]
        %v377 = vld [vmem:[%s1 + $0x4d0] sm:$0xff]
        %v378 = vld [vmem:[%s1 + $0x4d8] sm:$0xff]
        %v379 = vld [vmem:[%s1 + $0x4e0] sm:$0xff]
        %v380 = vld [vmem:[%s1 + $0x4e8] sm:$0xff]
        %v381 = vld [vmem:[%s1 + $0x4f0] sm:$0xff]
        %v382 = vld [vmem:[%s1 + $0x4f8] sm:$0xff]
        %v383 = vld [vmem:[%s1 + $0x500] sm:$0xff]
        %v384 = vld [vmem:[%s1 + $0x508] sm:$0xff]
        %v385 = vld [vmem:[%s1 + $0x510] sm:$0xff]
        %v386 = vld [vmem:[%s1 + $0x518] sm:$0xff]
        %v387 = vld [vmem:[%s1 + $0x520] sm:$0xff]
        %v388 = vld [vmem:[%s1 + $0x528] sm:$0xff]
        %v389 = vld [vmem:[%s1 + $0x530] sm:$0xff]
        %v390 = vld [vmem:[%s1 + $0x538] sm:$0xff]
        %v391 = vld [vmem:[%s1 + $0x540] sm:$0xff]
        %v392 = vld [vmem:[%s1 + $0x548] sm:$0xff]
        %v393 = vld [vmem:[%s1 + $0x550] sm:$0xff]
        %v394 = vld [vmem:[%s1 + $0x558] sm:$0xff]
        %v395 = vld [vmem:[%s1 + $0x560] sm:$0xff]
        %v396 = vld [vmem:[%s1 + $0x568] sm:$0xff]
        %v397 = vld [vmem:[%s1 + $0x570] sm:$0xff]
        %v398 = vld [vmem:[%s1 + $0x578] sm:$0xff]
        %v399 = vld [vmem:[%s1 + $0x580] sm:$0xff]
        %v400 = vld [vmem:[%s1 + $0x588] sm:$0xff]
        %v401 = vld [vmem:[%s1 + $0x590] sm:$0xff]
        %v402 = vld [vmem:[%s1 + $0x598] sm:$0xff]
        %v403 = vld [vmem:[%s1 + $0x5a0] sm:$0xff]
        %v404 = vld [vmem:[%s1 + $0x5a8] sm:$0xff]
        %v405 = vld [vmem:[%s1 + $0x5b0] sm:$0xff]
        %v406 = vld [vmem:[%s1 + $0x5b8] sm:$0xff]
        %v407 = vld [vmem:[%s1 + $0x5c0] sm:$0xff]
        %v408 = vld [vmem:[%s1 + $0x5c8] sm:$0xff]
        %v409 = vld [vmem:[%s1 + $0x5d0] sm:$0xff]
        %v410 = vld [vmem:[%s1 + $0x5d8] sm:$0xff]
        %v411 = vld [vmem:[%s1 + $0x5e0] sm:$0xff]
        %v412 = vld [vmem:[%s1 + $0x5e8] sm:$0xff]
        %v413 = vld [vmem:[%s1 + $0x5f0] sm:$0xff]
        %v414 = vld [vmem:[%s1 + $0x5f8] sm:$0xff]
        %v415 = vld [vmem:[%s1 + $0x600] sm:$0xff]
        %v416 = vld [vmem:[%s1 + $0x608] sm:$0xff]
        %v417 = vld [vmem:[%s1 + $0x610] sm:$0xff]
        %v418 = vld [vmem:[%s1 + $0x618] sm:$0xff]
        %v419 = vld [vmem:[%s1 + $0x620] sm:$0xff]
        %v420 = vld [vmem:[%s1 + $0x628] sm:$0xff]
        %v421 = vld [vmem:[%s1 + $0x630] sm:$0xff]
        %v422 = vld [vmem:[%s1 + $0x638] sm:$0xff]
        %v423 = vld [vmem:[%s1 + $0x640] sm:$0xff]
        %v424 = vld [vmem:[%s1 + $0x648] sm:$0xff]
        %v425 = vld [vmem:[%s1 + $0x650] sm:$0xff]
        %v426 = vld [vmem:[%s1 + $0x658] sm:$0xff]
        %v427 = vld [vmem:[%s1 + $0x660] sm:$0xff]
        %v428 = vld [vmem:[%s1 + $0x668] sm:$0xff]
        %v429 = vld [vmem:[%s1 + $0x670] sm:$0xff]
        %v430 = vld [vmem:[%s1 + $0x678] sm:$0xff]
        %v431 = vld [vmem:[%s1 + $0x680] sm:$0xff]
        %v432 = vld [vmem:[%s1 + $0x688] sm:$0xff]
        %v433 = vld [vmem:[%s1 + $0x690] sm:$0xff]
        %v434 = vld [vmem:[%s1 + $0x698] sm:$0xff]
        %v435 = vld [vmem:[%s1 + $0x6a0] sm:$0xff]
        %v436 = vld [vmem:[%s1 + $0x6a8] sm:$0xff]
        %v437 = vld [vmem:[%s1 + $0x6b0] sm:$0xff]
        %v438 = vld [vmem:[%s1 + $0x6b8] sm:$0xff]
        %v439 = vld [vmem:[%s1 + $0x6c0] sm:$0xff]
        %v440 = vld [vmem:[%s1 + $0x6c8] sm:$0xff]
        %v441 = vld [vmem:[%s1 + $0x6d0] sm:$0xff]
        %v442 = vld [vmem:[%s1 + $0x6d8] sm:$0xff]
        %v443 = vld [vmem:[%s1 + $0x6e0] sm:$0xff]
        %v444 = vld [vmem:[%s1 + $0x6e8] sm:$0xff]
        %v445 = vld [vmem:[%s1 + $0x6f0] sm:$0xff]
        %v446 = vld [vmem:[%s1 + $0x6f8] sm:$0xff]
        %v447 = vld [vmem:[%s1 + $0x700] sm:$0xff]
        %v448 = vld [vmem:[%s1 + $0x708] sm:$0xff]
        %v449 = vld [vmem:[%s1 + $0x710] sm:$0xff]
        %v450 = vld [vmem:[%s1 + $0x718] sm:$0xff]
        %v451 = vld [vmem:[%s1 + $0x720] sm:$0xff]
        %v452 = vld [vmem:[%s1 + $0x728] sm:$0xff]
        %v453 = vld [vmem:[%s1 + $0x730] sm:$0xff]
        %v454 = vld [vmem:[%s1 + $0x738] sm:$0xff]
        %v455 = vld [vmem:[%s1 + $0x740] sm:$0xff]
        %v456 = vld [vmem:[%s1 + $0x748] sm:$0xff]
        %v457 = vld [vmem:[%s1 + $0x750] sm:$0xff]
        %v458 = vld [vmem:[%s1 + $0x758] sm:$0xff]
        %v459 = vld [vmem:[%s1 + $0x760] sm:$0xff]
        %v460 = vld [vmem:[%s1 + $0x768] sm:$0xff]
        %v461 = vld [vmem:[%s1 + $0x770] sm:$0xff]
        %v462 = vld [vmem:[%s1 + $0x778] sm:$0xff]
        %v463 = vld [vmem:[%s221] sm:$0xff]
        %v464 = vld [vmem:[%s221 + $0x8] sm:$0xff]
        %v465 = vld [vmem:[%s221 + $0x10] sm:$0xff]
        %v466 = vld [vmem:[%s221 + $0x18] sm:$0xff]
        %v467 = vld [vmem:[%s221 + $0x20] sm:$0xff]
        %v468 = vld [vmem:[%s221 + $0x28] sm:$0xff]
        %v469 = vld [vmem:[%s221 + $0x30] sm:$0xff]
        %v470 = vld [vmem:[%s221 + $0x38] sm:$0xf]
        %v471 = vld [vmem:[%s221 + $0x3c] sm:$0xff]
        %v472 = vld [vmem:[%s221 + $0x44] sm:$0xff]
        %v473 = vld [vmem:[%s221 + $0x4c] sm:$0xff]
        %v474 = vld [vmem:[%s221 + $0x54] sm:$0xff]
        %v475 = vld [vmem:[%s221 + $0x5c] sm:$0xff]
        %v476 = vld [vmem:[%s221 + $0x64] sm:$0xff]
        %v477 = vld [vmem:[%s221 + $0x6c] sm:$0xff]
        %v478 = vld [vmem:[%s221 + $0x74] sm:$0xf]
        %v479 = vld [vmem:[%s221 + $0x78] sm:$0xff]
        %v480 = vld [vmem:[%s221 + $0x80] sm:$0xff]
        %v481 = vld [vmem:[%s221 + $0x88] sm:$0xff]
        %v482 = vld [vmem:[%s221 + $0x90] sm:$0xff]
        %v483 = vld [vmem:[%s221 + $0x98] sm:$0xff]
        %v484 = vld [vmem:[%s221 + $0xa0] sm:$0xff]
        %v485 = vld [vmem:[%s221 + $0xa8] sm:$0xff]
        %v486 = vld [vmem:[%s221 + $0xb0] sm:$0xf]
        %v487 = vld [vmem:[%s221 + $0xb4] sm:$0xff]
        %v488 = vld [vmem:[%s221 + $0xbc] sm:$0xff]
        %v489 = vld [vmem:[%s221 + $0xc4] sm:$0xff]
        %v490 = vld [vmem:[%s221 + $0xcc] sm:$0xff]
        %v491 = vld [vmem:[%s221 + $0xd4] sm:$0xff]
        %v492 = vld [vmem:[%s221 + $0xdc] sm:$0xff]
        %v493 = vld [vmem:[%s221 + $0xe4] sm:$0xff]
        %v494 = vld [vmem:[%s221 + $0xec] sm:$0xf]
        %v495 = vld [vmem:[%s221 + $0xf0] sm:$0xff]
        %v496 = vld [vmem:[%s221 + $0xf8] sm:$0xff]
        %v497 = vld [vmem:[%s221 + $0x100] sm:$0xff]
        %v498 = vld [vmem:[%s221 + $0x108] sm:$0xff]
        %v499 = vld [vmem:[%s221 + $0x110] sm:$0xff]
        %v500 = vld [vmem:[%s221 + $0x118] sm:$0xff]
        %v501 = vld [vmem:[%s221 + $0x120] sm:$0xff]
        %v502 = vld [vmem:[%s221 + $0x128] sm:$0xf]
        %v503 = vld [vmem:[%s221 + $0x12c] sm:$0xff]
        %v504 = vld [vmem:[%s221 + $0x134] sm:$0xff]
        %v505 = vld [vmem:[%s221 + $0x13c] sm:$0xff]
        %v506 = vld [vmem:[%s221 + $0x144] sm:$0xff]
        %v507 = vld [vmem:[%s221 + $0x14c] sm:$0xff]
        %v508 = vld [vmem:[%s221 + $0x154] sm:$0xff]
        %v509 = vld [vmem:[%s221 + $0x15c] sm:$0xff]
        %v510 = vld [vmem:[%s221 + $0x164] sm:$0xf]
        %v511 = vld [vmem:[%s221 + $0x168] sm:$0xff]
        %v512 = vld [vmem:[%s221 + $0x170] sm:$0xff]
        %v513 = vld [vmem:[%s221 + $0x178] sm:$0xff]
        %v514 = vld [vmem:[%s221 + $0x180] sm:$0xff]
        %v515 = vld [vmem:[%s221 + $0x188] sm:$0xff]
        %v516 = vld [vmem:[%s221 + $0x190] sm:$0xff]
        %v517 = vld [vmem:[%s221 + $0x198] sm:$0xff]
        %v518 = vld [vmem:[%s221 + $0x1a0] sm:$0xf]
        %v519 = vld [vmem:[%s221 + $0x1a4] sm:$0xff]
        %v520 = vld [vmem:[%s221 + $0x1ac] sm:$0xff]
        %v521 = vld [vmem:[%s221 + $0x1b4] sm:$0xff]
        %v522 = vld [vmem:[%s221 + $0x1bc] sm:$0xff]
        %v523 = vld [vmem:[%s221 + $0x1c4] sm:$0xff]
        %v524 = vld [vmem:[%s221 + $0x1cc] sm:$0xff]
        %v525 = vld [vmem:[%s221 + $0x1d4] sm:$0xff]
        %v526 = vld [vmem:[%s221 + $0x1dc] sm:$0xf]
        %v591 = vunpack.c.l.b16 %v463
        %v592 = vunpack.c.h.b16 %v463
        %v593 = vunpack.c.l.b16 %v464
        %v594 = vunpack.c.h.b16 %v464
        %v595 = vunpack.c.l.b16 %v465
        %v596 = vunpack.c.h.b16 %v465
        %v597 = vunpack.c.l.b16 %v466
        %v598 = vunpack.c.h.b16 %v466
        %v599 = vunpack.c.l.b16 %v467
        %v600 = vunpack.c.h.b16 %v467
        %v601 = vunpack.c.l.b16 %v468
        %v602 = vunpack.c.h.b16 %v468
        %v603 = vunpack.c.l.b16 %v469
        %v604 = vunpack.c.h.b16 %v469
        %v605 = vunpack.c.l.b16 %v470
        %v606 = vunpack.c.l.b16 %v471
        %v607 = vunpack.c.h.b16 %v471
        %v608 = vunpack.c.l.b16 %v472
        %v609 = vunpack.c.h.b16 %v472
        %v610 = vunpack.c.l.b16 %v473
        %v611 = vunpack.c.h.b16 %v473
        %v612 = vunpack.c.l.b16 %v474
        %v613 = vunpack.c.h.b16 %v474
        %v614 = vunpack.c.l.b16 %v475
        %v615 = vunpack.c.h.b16 %v475
        %v616 = vunpack.c.l.b16 %v476
        %v617 = vunpack.c.h.b16 %v476
        %v618 = vunpack.c.l.b16 %v477
        %v619 = vunpack.c.h.b16 %v477
        %v620 = vunpack.c.l.b16 %v478
        %v621 = vunpack.c.l.b16 %v479
        %v622 = vunpack.c.h.b16 %v479
        %v623 = vunpack.c.l.b16 %v480
        %v624 = vunpack.c.h.b16 %v480
        %v625 = vunpack.c.l.b16 %v481
        %v626 = vunpack.c.h.b16 %v481
        %v627 = vunpack.c.l.b16 %v482
        %v628 = vunpack.c.h.b16 %v482
        %v629 = vunpack.c.l.b16 %v483
        %v630 = vunpack.c.h.b16 %v483
        %v631 = vunpack.c.l.b16 %v484
        %v632 = vunpack.c.h.b16 %v484
        %v633 = vunpack.c.l.b16 %v485
        %v634 = vunpack.c.h.b16 %v485
        %v635 = vunpack.c.l.b16 %v486
        %v636 = vunpack.c.l.b16 %v487
        %v637 = vunpack.c.h.b16 %v487
        %v638 = vunpack.c.l.b16 %v488
        %v639 = vunpack.c.h.b16 %v488
        %v640 = vunpack.c.l.b16 %v489
        %v641 = vunpack.c.h.b16 %v489
        %v642 = vunpack.c.l.b16 %v490
        %v643 = vunpack.c.h.b16 %v490
        %v644 = vunpack.c.l.b16 %v491
        %v645 = vunpack.c.h.b16 %v491
        %v646 = vunpack.c.l.b16 %v492
        %v647 = vunpack.c.h.b16 %v492
        %v648 = vunpack.c.l.b16 %v493
        %v649 = vunpack.c.h.b16 %v493
        %v650 = vunpack.c.l.b16 %v494
        %v651 = vunpack.c.l.b16 %v495
        %v652 = vunpack.c.h.b16 %v495
        %v653 = vunpack.c.l.b16 %v496
        %v654 = vunpack.c.h.b16 %v496
        %v655 = vunpack.c.l.b16 %v497
        %v656 = vunpack.c.h.b16 %v497
        %v657 = vunpack.c.l.b16 %v498
        %v658 = vunpack.c.h.b16 %v498
        %v659 = vunpack.c.l.b16 %v499
        %v660 = vunpack.c.h.b16 %v499
        %v661 = vunpack.c.l.b16 %v500
        %v662 = vunpack.c.h.b16 %v500
        %v663 = vunpack.c.l.b16 %v501
        %v664 = vunpack.c.h.b16 %v501
        %v665 = vunpack.c.l.b16 %v502
        %v666 = vunpack.c.l.b16 %v503
        %v667 = vunpack.c.h.b16 %v503
        %v668 = vunpack.c.l.b16 %v504
        %v669 = vunpack.c.h.b16 %v504
        %v670 = vunpack.c.l.b16 %v505
        %v671 = vunpack.c.h.b16 %v505
        %v672 = vunpack.c.l.b16 %v506
        %v673 = vunpack.c.h.b16 %v506
        %v674 = vunpack.c.l.b16 %v507
        %v675 = vunpack.c.h.b16 %v507
        %v676 = vunpack.c.l.b16 %v508
        %v677 = vunpack.c.h.b16 %v508
        %v678 = vunpack.c.l.b16 %v509
        %v679 = vunpack.c.h.b16 %v509
        %v680 = vunpack.c.l.b16 %v510
        %v681 = vunpack.c.l.b16 %v511
        %v682 = vunpack.c.h.b16 %v511
        %v683 = vunpack.c.l.b16 %v512
        %v684 = vunpack.c.h.b16 %v512
        %v685 = vunpack.c.l.b16 %v513
        %v686 = vunpack.c.h.b16 %v513
        %v687 = vunpack.c.l.b16 %v514
        %v688 = vunpack.c.h.b16 %v514
        %v689 = vunpack.c.l.b16 %v515
        %v690 = vunpack.c.h.b16 %v515
        %v691 = vunpack.c.l.b16 %v516
        %v692 = vunpack.c.h.b16 %v516
        %v693 = vunpack.c.l.b16 %v517
        %v694 = vunpack.c.h.b16 %v517
        %v695 = vunpack.c.l.b16 %v518
        %v696 = vunpack.c.l.b16 %v519
        %v697 = vunpack.c.h.b16 %v519
        %v698 = vunpack.c.l.b16 %v520
        %v699 = vunpack.c.h.b16 %v520
        %v700 = vunpack.c.l.b16 %v521
        %v701 = vunpack.c.h.b16 %v521
        %v702 = vunpack.c.l.b16 %v522
        %v703 = vunpack.c.h.b16 %v522
        %v704 = vunpack.c.l.b16 %v523
        %v705 = vunpack.c.h.b16 %v523
        %v706 = vunpack.c.l.b16 %v524
        %v707 = vunpack.c.h.b16 %v524
        %v708 = vunpack.c.l.b16 %v525
        %v709 = vunpack.c.h.b16 %v525
        %v710 = vunpack.c.l.b16 %v526
        %v711 = vpack.c.b16 %v606, %v591
        %v712 = vpack.c.b16 %v607, %v592
        %v713 = vpack.c.b16 %v608, %v593
        %v714 = vpack.c.b16 %v609, %v594
        %v715 = vpack.c.b16 %v610, %v595
        %v716 = vpack.c.b16 %v611, %v596
        %v717 = vpack.c.b16 %v612, %v597
        %v718 = vpack.c.b16 %v613, %v598
        %v719 = vpack.c.b16 %v614, %v599
        %v720 = vpack.c.b16 %v615, %v600
        %v721 = vpack.c.b16 %v616, %v601
        %v722 = vpack.c.b16 %v617, %v602
        %v723 = vpack.c.b16 %v618, %v603
        %v724 = vpack.c.b16 %v619, %v604
        %v725 = vpack.c.b16 %v620, %v605
        %v726 = vpack.c.b16 %v636, %v621
        %v727 = vpack.c.b16 %v637, %v622
        %v728 = vpack.c.b16 %v638, %v623
        %v729 = vpack.c.b16 %v639, %v624
        %v730 = vpack.c.b16 %v640, %v625
        %v731 = vpack.c.b16 %v641, %v626
        %v732 = vpack.c.b16 %v642, %v627
        %v733 = vpack.c.b16 %v643, %v628
        %v734 = vpack.c.b16 %v644, %v629
        %v735 = vpack.c.b16 %v645, %v630
        %v736 = vpack.c.b16 %v646, %v631
        %v737 = vpack.c.b16 %v647, %v632
        %v738 = vpack.c.b16 %v648, %v633
        %v739 = vpack.c.b16 %v649, %v634
        %v740 = vpack.c.b16 %v650, %v635
        %v741 = vpack.c.b16 %v666, %v651
        %v742 = vpack.c.b16 %v667, %v652
        %v743 = vpack.c.b16 %v668, %v653
        %v744 = vpack.c.b16 %v669, %v654
        %v745 = vpack.c.b16 %v670, %v655
        %v746 = vpack.c.b16 %v671, %v656
        %v747 = vpack.c.b16 %v672, %v657
        %v748 = vpack.c.b16 %v673, %v658
        %v749 = vpack.c.b16 %v674, %v659
        %v750 = vpack.c.b16 %v675, %v660
        %v751 = vpack.c.b16 %v676, %v661
        %v752 = vpack.c.b16 %v677, %v662
        %v753 = vpack.c.b16 %v678, %v663
        %v754 = vpack.c.b16 %v679, %v664
        %v755 = vpack.c.b16 %v680, %v665
        %v756 = vpack.c.b16 %v696, %v681
        %v757 = vpack.c.b16 %v697, %v682
        %v758 = vpack.c.b16 %v698, %v683
        %v759 = vpack.c.b16 %v699, %v684
        %v760 = vpack.c.b16 %v700, %v685
        %v761 = vpack.c.b16 %v701, %v686
        %v762 = vpack.c.b16 %v702, %v687
        %v763 = vpack.c.b16 %v703, %v688
        %v764 = vpack.c.b16 %v704, %v689
        %v765 = vpack.c.b16 %v705, %v690
        %v766 = vpack.c.b16 %v706, %v691
        %v767 = vpack.c.b16 %v707, %v692
        %v768 = vpack.c.b16 %v708, %v693
        %v769 = vpack.c.b16 %v709, %v694
        %v770 = vpack.c.b16 %v710, %v695
        %v1071 = vunpack.c.l.b16 %v223
        %v1072 = vunpack.c.h.b16 %v223
        %v1073 = vunpack.c.l.b16 %v224
        %v1074 = vunpack.c.h.b16 %v224
        %v1075 = vunpack.c.l.b16 %v225
        %v1076 = vunpack.c.h.b16 %v225
        %v1077 = vunpack.c.l.b16 %v226
        %v1078 = vunpack.c.h.b16 %v226
        %v1079 = vunpack.c.l.b16 %v227
        %v1080 = vunpack.c.h.b16 %v227
        %v1081 = vunpack.c.l.b16 %v228
        %v1082 = vunpack.c.h.b16 %v228
        %v1083 = vunpack.c.l.b16 %v229
        %v1084 = vunpack.c.h.b16 %v229
        %v1085 = vunpack.c.l.b16 %v230
        %v1086 = vunpack.c.h.b16 %v230
        %v1087 = vunpack.c.l.b16 %v231
        %v1088 = vunpack.c.h.b16 %v231
        %v1089 = vunpack.c.l.b16 %v232
        %v1090 = vunpack.c.h.b16 %v232
        %v1091 = vunpack.c.l.b16 %v233
        %v1092 = vunpack.c.h.b16 %v233
        %v1093 = vunpack.c.l.b16 %v234
        %v1094 = vunpack.c.h.b16 %v234
        %v1095 = vunpack.c.l.b16 %v235
        %v1096 = vunpack.c.h.b16 %v235
        %v1097 = vunpack.c.l.b16 %v236
        %v1098 = vunpack.c.h.b16 %v236
        %v1099 = vunpack.c.l.b16 %v237
        %v1100 = vunpack.c.h.b16 %v237
        %v1101 = vunpack.c.l.b16 %v238
        %v1102 = vunpack.c.h.b16 %v238
        %v1103 = vunpack.c.l.b16 %v239
        %v1104 = vunpack.c.h.b16 %v239
        %v1105 = vunpack.c.l.b16 %v240
        %v1106 = vunpack.c.h.b16 %v240
        %v1107 = vunpack.c.l.b16 %v241
        %v1108 = vunpack.c.h.b16 %v241
        %v1109 = vunpack.c.l.b16 %v242
        %v1110 = vunpack.c.h.b16 %v242
        %v1111 = vunpack.c.l.b16 %v243
        %v1112 = vunpack.c.h.b16 %v243
        %v1113 = vunpack.c.l.b16 %v244
        %v1114 = vunpack.c.h.b16 %v244
        %v1115 = vunpack.c.l.b16 %v245
        %v1116 = vunpack.c.h.b16 %v245
        %v1117 = vunpack.c.l.b16 %v246
        %v1118 = vunpack.c.h.b16 %v246
        %v1119 = vunpack.c.l.b16 %v247
        %v1120 = vunpack.c.h.b16 %v247
        %v1121 = vunpack.c.l.b16 %v248
        %v1122 = vunpack.c.h.b16 %v248
        %v1123 = vunpack.c.l.b16 %v249
        %v1124 = vunpack.c.h.b16 %v249
        %v1125 = vunpack.c.l.b16 %v250
        %v1126 = vunpack.c.h.b16 %v250
        %v1127 = vunpack.c.l.b16 %v251
        %v1128 = vunpack.c.h.b16 %v251
        %v1129 = vunpack.c.l.b16 %v252
        %v1130 = vunpack.c.h.b16 %v252
        %v1131 = vunpack.c.l.b16 %v253
        %v1132 = vunpack.c.h.b16 %v253
        %v1133 = vunpack.c.l.b16 %v254
        %v1134 = vunpack.c.h.b16 %v254
        %v1135 = vunpack.c.l.b16 %v255
        %v1136 = vunpack.c.h.b16 %v255
        %v1137 = vunpack.c.l.b16 %v256
        %v1138 = vunpack.c.h.b16 %v256
        %v1139 = vunpack.c.l.b16 %v257
        %v1140 = vunpack.c.h.b16 %v257
        %v1141 = vunpack.c.l.b16 %v258
        %v1142 = vunpack.c.h.b16 %v258
        %v1143 = vunpack.c.l.b16 %v259
        %v1144 = vunpack.c.h.b16 %v259
        %v1145 = vunpack.c.l.b16 %v260
        %v1146 = vunpack.c.h.b16 %v260
        %v1147 = vunpack.c.l.b16 %v261
        %v1148 = vunpack.c.h.b16 %v261
        %v1149 = vunpack.c.l.b16 %v262
        %v1150 = vunpack.c.h.b16 %v262
        %v1151 = vunpack.c.l.b16 %v263
        %v1152 = vunpack.c.h.b16 %v263
        %v1153 = vunpack.c.l.b16 %v264
        %v1154 = vunpack.c.h.b16 %v264
        %v1155 = vunpack.c.l.b16 %v265
        %v1156 = vunpack.c.h.b16 %v265
        %v1157 = vunpack.c.l.b16 %v266
        %v1158 = vunpack.c.h.b16 %v266
        %v1159 = vunpack.c.l.b16 %v267
        %v1160 = vunpack.c.h.b16 %v267
        %v1161 = vunpack.c.l.b16 %v268
        %v1162 = vunpack.c.h.b16 %v268
        %v1163 = vunpack.c.l.b16 %v269
        %v1164 = vunpack.c.h.b16 %v269
        %v1165 = vunpack.c.l.b16 %v270
        %v1166 = vunpack.c.h.b16 %v270
        %v1167 = vunpack.c.l.b16 %v271
        %v1168 = vunpack.c.h.b16 %v271
        %v1169 = vunpack.c.l.b16 %v272
        %v1170 = vunpack.c.h.b16 %v272
        %v1171 = vunpack.c.l.b16 %v273
        %v1172 = vunpack.c.h.b16 %v273
        %v1173 = vunpack.c.l.b16 %v274
        %v1174 = vunpack.c.h.b16 %v274
        %v1175 = vunpack.c.l.b16 %v275
        %v1176 = vunpack.c.h.b16 %v275
        %v1177 = vunpack.c.l.b16 %v276
        %v1178 = vunpack.c.h.b16 %v276
        %v1179 = vunpack.c.l.b16 %v277
        %v1180 = vunpack.c.h.b16 %v277
        %v1181 = vunpack.c.l.b16 %v278
        %v1182 = vunpack.c.h.b16 %v278
        %v1183 = vunpack.c.l.b16 %v279
        %v1184 = vunpack.c.h.b16 %v279
        %v1185 = vunpack.c.l.b16 %v280
        %v1186 = vunpack.c.h.b16 %v280
        %v1187 = vunpack.c.l.b16 %v281
        %v1188 = vunpack.c.h.b16 %v281
        %v1189 = vunpack.c.l.b16 %v282
        %v1190 = vunpack.c.h.b16 %v282
        %v1191 = vunpack.c.l.b16 %v283
        %v1192 = vunpack.c.h.b16 %v283
        %v1193 = vunpack.c.l.b16 %v284
        %v1194 = vunpack.c.h.b16 %v284
        %v1195 = vunpack.c.l.b16 %v285
        %v1196 = vunpack.c.h.b16 %v285
        %v1197 = vunpack.c.l.b16 %v286
        %v1198 = vunpack.c.h.b16 %v286
        %v1199 = vunpack.c.l.b16 %v287
        %v1200 = vunpack.c.h.b16 %v287
        %v1201 = vunpack.c.l.b16 %v288
        %v1202 = vunpack.c.h.b16 %v288
        %v1203 = vunpack.c.l.b16 %v289
        %v1204 = vunpack.c.h.b16 %v289
        %v1205 = vunpack.c.l.b16 %v290
        %v1206 = vunpack.c.h.b16 %v290
        %v1207 = vunpack.c.l.b16 %v291
        %v1208 = vunpack.c.h.b16 %v291
        %v1209 = vunpack.c.l.b16 %v292
        %v1210 = vunpack.c.h.b16 %v292
        %v1211 = vunpack.c.l.b16 %v293
        %v1212 = vunpack.c.h.b16 %v293
        %v1213 = vunpack.c.l.b16 %v294
        %v1214 = vunpack.c.h.b16 %v294
        %v1215 = vunpack.c.l.b16 %v295
        %v1216 = vunpack.c.h.b16 %v295
        %v1217 = vunpack.c.l.b16 %v296
        %v1218 = vunpack.c.h.b16 %v296
        %v1219 = vunpack.c.l.b16 %v297
        %v1220 = vunpack.c.h.b16 %v297
        %v1221 = vunpack.c.l.b16 %v298
        %v1222 = vunpack.c.h.b16 %v298
        %v1223 = vunpack.c.l.b16 %v299
        %v1224 = vunpack.c.h.b16 %v299
        %v1225 = vunpack.c.l.b16 %v300
        %v1226 = vunpack.c.h.b16 %v300
        %v1227 = vunpack.c.l.b16 %v301
        %v1228 = vunpack.c.h.b16 %v301
        %v1229 = vunpack.c.l.b16 %v302
        %v1230 = vunpack.c.h.b16 %v302
        %v1231 = vunpack.c.l.b16 %v303
        %v1232 = vunpack.c.h.b16 %v303
        %v1233 = vunpack.c.l.b16 %v304
        %v1234 = vunpack.c.h.b16 %v304
        %v1235 = vunpack.c.l.b16 %v305
        %v1236 = vunpack.c.h.b16 %v305
        %v1237 = vunpack.c.l.b16 %v306
        %v1238 = vunpack.c.h.b16 %v306
        %v1239 = vunpack.c.l.b16 %v307
        %v1240 = vunpack.c.h.b16 %v307
        %v1241 = vunpack.c.l.b16 %v308
        %v1242 = vunpack.c.h.b16 %v308
        %v1243 = vunpack.c.l.b16 %v309
        %v1244 = vunpack.c.h.b16 %v309
        %v1245 = vunpack.c.l.b16 %v310
        %v1246 = vunpack.c.h.b16 %v310
        %v1247 = vunpack.c.l.b16 %v311
        %v1248 = vunpack.c.h.b16 %v311
        %v1249 = vunpack.c.l.b16 %v312
        %v1250 = vunpack.c.h.b16 %v312
        %v1251 = vunpack.c.l.b16 %v313
        %v1252 = vunpack.c.h.b16 %v313
        %v1253 = vunpack.c.l.b16 %v314
        %v1254 = vunpack.c.h.b16 %v314
        %v1255 = vunpack.c.l.b16 %v315
        %v1256 = vunpack.c.h.b16 %v315
        %v1257 = vunpack.c.l.b16 %v316
        %v1258 = vunpack.c.h.b16 %v316
        %v1259 = vunpack.c.l.b16 %v317
        %v1260 = vunpack.c.h.b16 %v317
        %v1261 = vunpack.c.l.b16 %v318
        %v1262 = vunpack.c.h.b16 %v318
        %v1263 = vunpack.c.l.b16 %v319
        %v1264 = vunpack.c.h.b16 %v319
        %v1265 = vunpack.c.l.b16 %v320
        %v1266 = vunpack.c.h.b16 %v320
        %v1267 = vunpack.c.l.b16 %v321
        %v1268 = vunpack.c.h.b16 %v321
        %v1269 = vunpack.c.l.b16 %v322
        %v1270 = vunpack.c.h.b16 %v322
        %v1271 = vunpack.c.l.b16 %v323
        %v1272 = vunpack.c.h.b16 %v323
        %v1273 = vunpack.c.l.b16 %v324
        %v1274 = vunpack.c.h.b16 %v324
        %v1275 = vunpack.c.l.b16 %v325
        %v1276 = vunpack.c.h.b16 %v325
        %v1277 = vunpack.c.l.b16 %v326
        %v1278 = vunpack.c.h.b16 %v326
        %v1279 = vunpack.c.l.b16 %v327
        %v1280 = vunpack.c.h.b16 %v327
        %v1281 = vunpack.c.l.b16 %v328
        %v1282 = vunpack.c.h.b16 %v328
        %v1283 = vunpack.c.l.b16 %v329
        %v1284 = vunpack.c.h.b16 %v329
        %v1285 = vunpack.c.l.b16 %v330
        %v1286 = vunpack.c.h.b16 %v330
        %v1287 = vunpack.c.l.b16 %v331
        %v1288 = vunpack.c.h.b16 %v331
        %v1289 = vunpack.c.l.b16 %v332
        %v1290 = vunpack.c.h.b16 %v332
        %v1291 = vunpack.c.l.b16 %v333
        %v1292 = vunpack.c.h.b16 %v333
        %v1293 = vunpack.c.l.b16 %v334
        %v1294 = vunpack.c.h.b16 %v334
        %v1295 = vunpack.c.l.b16 %v335
        %v1296 = vunpack.c.h.b16 %v335
        %v1297 = vunpack.c.l.b16 %v336
        %v1298 = vunpack.c.h.b16 %v336
        %v1299 = vunpack.c.l.b16 %v337
        %v1300 = vunpack.c.h.b16 %v337
        %v1301 = vunpack.c.l.b16 %v338
        %v1302 = vunpack.c.h.b16 %v338
        %v1303 = vunpack.c.l.b16 %v339
        %v1304 = vunpack.c.h.b16 %v339
        %v1305 = vunpack.c.l.b16 %v340
        %v1306 = vunpack.c.h.b16 %v340
        %v1307 = vunpack.c.l.b16 %v341
        %v1308 = vunpack.c.h.b16 %v341
        %v1309 = vunpack.c.l.b16 %v342
        %v1310 = vunpack.c.h.b16 %v342
        %v1311 = vunpack.c.l.b16 %v343
        %v1312 = vunpack.c.h.b16 %v343
        %v1313 = vunpack.c.l.b16 %v344
        %v1314 = vunpack.c.h.b16 %v344
        %v1315 = vunpack.c.l.b16 %v345
        %v1316 = vunpack.c.h.b16 %v345
        %v1317 = vunpack.c.l.b16 %v346
        %v1318 = vunpack.c.h.b16 %v346
        %v1319 = vunpack.c.l.b16 %v347
        %v1320 = vunpack.c.h.b16 %v347
        %v1321 = vunpack.c.l.b16 %v348
        %v1322 = vunpack.c.h.b16 %v348
        %v1323 = vunpack.c.l.b16 %v349
        %v1324 = vunpack.c.h.b16 %v349
        %v1325 = vunpack.c.l.b16 %v350
        %v1326 = vunpack.c.h.b16 %v350
        %v1327 = vunpack.c.l.b16 %v351
        %v1328 = vunpack.c.h.b16 %v351
        %v1329 = vunpack.c.l.b16 %v352
        %v1330 = vunpack.c.h.b16 %v352
        %v1331 = vunpack.c.l.b16 %v353
        %v1332 = vunpack.c.h.b16 %v353
        %v1333 = vunpack.c.l.b16 %v354
        %v1334 = vunpack.c.h.b16 %v354
        %v1335 = vunpack.c.l.b16 %v355
        %v1336 = vunpack.c.h.b16 %v355
        %v1337 = vunpack.c.l.b16 %v356
        %v1338 = vunpack.c.h.b16 %v356
        %v1339 = vunpack.c.l.b16 %v357
        %v1340 = vunpack.c.h.b16 %v357
        %v1341 = vunpack.c.l.b16 %v358
        %v1342 = vunpack.c.h.b16 %v358
        %v1343 = vunpack.c.l.b16 %v359
        %v1344 = vunpack.c.h.b16 %v359
        %v1345 = vunpack.c.l.b16 %v360
        %v1346 = vunpack.c.h.b16 %v360
        %v1347 = vunpack.c.l.b16 %v361
        %v1348 = vunpack.c.h.b16 %v361
        %v1349 = vunpack.c.l.b16 %v362
        %v1350 = vunpack.c.h.b16 %v362
        %v1351 = vunpack.c.l.b16 %v363
        %v1352 = vunpack.c.h.b16 %v363
        %v1353 = vunpack.c.l.b16 %v364
        %v1354 = vunpack.c.h.b16 %v364
        %v1355 = vunpack.c.l.b16 %v365
        %v1356 = vunpack.c.h.b16 %v365
        %v1357 = vunpack.c.l.b16 %v366
        %v1358 = vunpack.c.h.b16 %v366
        %v1359 = vunpack.c.l.b16 %v367
        %v1360 = vunpack.c.h.b16 %v367
        %v1361 = vunpack.c.l.b16 %v368
        %v1362 = vunpack.c.h.b16 %v368
        %v1363 = vunpack.c.l.b16 %v369
        %v1364 = vunpack.c.h.b16 %v369
        %v1365 = vunpack.c.l.b16 %v370
        %v1366 = vunpack.c.h.b16 %v370
        %v1367 = vunpack.c.l.b16 %v371
        %v1368 = vunpack.c.h.b16 %v371
        %v1369 = vunpack.c.l.b16 %v372
        %v1370 = vunpack.c.h.b16 %v372
        %v1371 = vunpack.c.l.b16 %v373
        %v1372 = vunpack.c.h.b16 %v373
        %v1373 = vunpack.c.l.b16 %v374
        %v1374 = vunpack.c.h.b16 %v374
        %v1375 = vunpack.c.l.b16 %v375
        %v1376 = vunpack.c.h.b16 %v375
        %v1377 = vunpack.c.l.b16 %v376
        %v1378 = vunpack.c.h.b16 %v376
        %v1379 = vunpack.c.l.b16 %v377
        %v1380 = vunpack.c.h.b16 %v377
        %v1381 = vunpack.c.l.b16 %v378
        %v1382 = vunpack.c.h.b16 %v378
        %v1383 = vunpack.c.l.b16 %v379
        %v1384 = vunpack.c.h.b16 %v379
        %v1385 = vunpack.c.l.b16 %v380
        %v1386 = vunpack.c.h.b16 %v380
        %v1387 = vunpack.c.l.b16 %v381
        %v1388 = vunpack.c.h.b16 %v381
        %v1389 = vunpack.c.l.b16 %v382
        %v1390 = vunpack.c.h.b16 %v382
        %v1391 = vunpack.c.l.b16 %v383
        %v1392 = vunpack.c.h.b16 %v383
        %v1393 = vunpack.c.l.b16 %v384
        %v1394 = vunpack.c.h.b16 %v384
        %v1395 = vunpack.c.l.b16 %v385
        %v1396 = vunpack.c.h.b16 %v385
        %v1397 = vunpack.c.l.b16 %v386
        %v1398 = vunpack.c.h.b16 %v386
        %v1399 = vunpack.c.l.b16 %v387
        %v1400 = vunpack.c.h.b16 %v387
        %v1401 = vunpack.c.l.b16 %v388
        %v1402 = vunpack.c.h.b16 %v388
        %v1403 = vunpack.c.l.b16 %v389
        %v1404 = vunpack.c.h.b16 %v389
        %v1405 = vunpack.c.l.b16 %v390
        %v1406 = vunpack.c.h.b16 %v390
        %v1407 = vunpack.c.l.b16 %v391
        %v1408 = vunpack.c.h.b16 %v391
        %v1409 = vunpack.c.l.b16 %v392
        %v1410 = vunpack.c.h.b16 %v392
        %v1411 = vunpack.c.l.b16 %v393
        %v1412 = vunpack.c.h.b16 %v393
        %v1413 = vunpack.c.l.b16 %v394
        %v1414 = vunpack.c.h.b16 %v394
        %v1415 = vunpack.c.l.b16 %v395
        %v1416 = vunpack.c.h.b16 %v395
        %v1417 = vunpack.c.l.b16 %v396
        %v1418 = vunpack.c.h.b16 %v396
        %v1419 = vunpack.c.l.b16 %v397
        %v1420 = vunpack.c.h.b16 %v397
        %v1421 = vunpack.c.l.b16 %v398
        %v1422 = vunpack.c.h.b16 %v398
        %v1423 = vunpack.c.l.b16 %v399
        %v1424 = vunpack.c.h.b16 %v399
        %v1425 = vunpack.c.l.b16 %v400
        %v1426 = vunpack.c.h.b16 %v400
        %v1427 = vunpack.c.l.b16 %v401
        %v1428 = vunpack.c.h.b16 %v401
        %v1429 = vunpack.c.l.b16 %v402
        %v1430 = vunpack.c.h.b16 %v402
        %v1431 = vunpack.c.l.b16 %v403
        %v1432 = vunpack.c.h.b16 %v403
        %v1433 = vunpack.c.l.b16 %v404
        %v1434 = vunpack.c.h.b16 %v404
        %v1435 = vunpack.c.l.b16 %v405
        %v1436 = vunpack.c.h.b16 %v405
        %v1437 = vunpack.c.l.b16 %v406
        %v1438 = vunpack.c.h.b16 %v406
        %v1439 = vunpack.c.l.b16 %v407
        %v1440 = vunpack.c.h.b16 %v407
        %v1441 = vunpack.c.l.b16 %v408
        %v1442 = vunpack.c.h.b16 %v408
        %v1443 = vunpack.c.l.b16 %v409
        %v1444 = vunpack.c.h.b16 %v409
        %v1445 = vunpack.c.l.b16 %v410
        %v1446 = vunpack.c.h.b16 %v410
        %v1447 = vunpack.c.l.b16 %v411
        %v1448 = vunpack.c.h.b16 %v411
        %v1449 = vunpack.c.l.b16 %v412
        %v1450 = vunpack.c.h.b16 %v412
        %v1451 = vunpack.c.l.b16 %v413
        %v1452 = vunpack.c.h.b16 %v413
        %v1453 = vunpack.c.l.b16 %v414
        %v1454 = vunpack.c.h.b16 %v414
        %v1455 = vunpack.c.l.b16 %v415
        %v1456 = vunpack.c.h.b16 %v415
        %v1457 = vunpack.c.l.b16 %v416
        %v1458 = vunpack.c.h.b16 %v416
        %v1459 = vunpack.c.l.b16 %v417
        %v1460 = vunpack.c.h.b16 %v417
        %v1461 = vunpack.c.l.b16 %v418
        %v1462 = vunpack.c.h.b16 %v418
        %v1463 = vunpack.c.l.b16 %v419
        %v1464 = vunpack.c.h.b16 %v419
        %v1465 = vunpack.c.l.b16 %v420
        %v1466 = vunpack.c.h.b16 %v420
        %v1467 = vunpack.c.l.b16 %v421
        %v1468 = vunpack.c.h.b16 %v421
        %v1469 = vunpack.c.l.b16 %v422
        %v1470 = vunpack.c.h.b16 %v422
        %v1471 = vunpack.c.l.b16 %v423
        %v1472 = vunpack.c.h.b16 %v423
        %v1473 = vunpack.c.l.b16 %v424
        %v1474 = vunpack.c.h.b16 %v424
        %v1475 = vunpack.c.l.b16 %v425
        %v1476 = vunpack.c.h.b16 %v425
        %v1477 = vunpack.c.l.b16 %v426
        %v1478 = vunpack.c.h.b16 %v426
        %v1479 = vunpack.c.l.b16 %v427
        %v1480 = vunpack.c.h.b16 %v427
        %v1481 = vunpack.c.l.b16 %v428
        %v1482 = vunpack.c.h.b16 %v428
        %v1483 = vunpack.c.l.b16 %v429
        %v1484 = vunpack.c.h.b16 %v429
        %v1485 = vunpack.c.l.b16 %v430
        %v1486 = vunpack.c.h.b16 %v430
        %v1487 = vunpack.c.l.b16 %v431
        %v1488 = vunpack.c.h.b16 %v431
        %v1489 = vunpack.c.l.b16 %v432
        %v1490 = vunpack.c.h.b16 %v432
        %v1491 = vunpack.c.l.b16 %v433
        %v1492 = vunpack.c.h.b16 %v433
        %v1493 = vunpack.c.l.b16 %v434
        %v1494 = vunpack.c.h.b16 %v434
        %v1495 = vunpack.c.l.b16 %v435
        %v1496 = vunpack.c.h.b16 %v435
        %v1497 = vunpack.c.l.b16 %v436
        %v1498 = vunpack.c.h.b16 %v436
        %v1499 = vunpack.c.l.b16 %v437
        %v1500 = vunpack.c.h.b16 %v437
        %v1501 = vunpack.c.l.b16 %v438
        %v1502 = vunpack.c.h.b16 %v438
        %v1503 = vunpack.c.l.b16 %v439
        %v1504 = vunpack.c.h.b16 %v439
        %v1505 = vunpack.c.l.b16 %v440
        %v1506 = vunpack.c.h.b16 %v440
        %v1507 = vunpack.c.l.b16 %v441
        %v1508 = vunpack.c.h.b16 %v441
        %v1509 = vunpack.c.l.b16 %v442
        %v1510 = vunpack.c.h.b16 %v442
        %v1511 = vunpack.c.l.b16 %v443
        %v1512 = vunpack.c.h.b16 %v443
        %v1513 = vunpack.c.l.b16 %v444
        %v1514 = vunpack.c.h.b16 %v444
        %v1515 = vunpack.c.l.b16 %v445
        %v1516 = vunpack.c.h.b16 %v445
        %v1517 = vunpack.c.l.b16 %v446
        %v1518 = vunpack.c.h.b16 %v446
        %v1519 = vunpack.c.l.b16 %v447
        %v1520 = vunpack.c.h.b16 %v447
        %v1521 = vunpack.c.l.b16 %v448
        %v1522 = vunpack.c.h.b16 %v448
        %v1523 = vunpack.c.l.b16 %v449
        %v1524 = vunpack.c.h.b16 %v449
        %v1525 = vunpack.c.l.b16 %v450
        %v1526 = vunpack.c.h.b16 %v450
        %v1527 = vunpack.c.l.b16 %v451
        %v1528 = vunpack.c.h.b16 %v451
        %v1529 = vunpack.c.l.b16 %v452
        %v1530 = vunpack.c.h.b16 %v452
        %v1531 = vunpack.c.l.b16 %v453
        %v1532 = vunpack.c.h.b16 %v453
        %v1533 = vunpack.c.l.b16 %v454
        %v1534 = vunpack.c.h.b16 %v454
        %v1535 = vunpack.c.l.b16 %v455
        %v1536 = vunpack.c.h.b16 %v455
        %v1537 = vunpack.c.l.b16 %v456
        %v1538 = vunpack.c.h.b16 %v456
        %v1539 = vunpack.c.l.b16 %v457
        %v1540 = vunpack.c.h.b16 %v457
        %v1541 = vunpack.c.l.b16 %v458
        %v1542 = vunpack.c.h.b16 %v458
        %v1543 = vunpack.c.l.b16 %v459
        %v1544 = vunpack.c.h.b16 %v459
        %v1545 = vunpack.c.l.b16 %v460
        %v1546 = vunpack.c.h.b16 %v460
        %v1547 = vunpack.c.l.b16 %v461
        %v1548 = vunpack.c.h.b16 %v461
        %v1549 = vunpack.c.l.b16 %v462
        %v1550 = vunpack.c.h.b16 %v462
        %v1551 = vpack.c.b16 %v1073, %v1071
        %v1552 = vpack.c.b16 %v1074, %v1072
        %v1553 = vpack.c.b16 %v1077, %v1075
        %v1554 = vpack.c.b16 %v1078, %v1076
        %v1555 = vpack.c.b16 %v1081, %v1079
        %v1556 = vpack.c.b16 %v1082, %v1080
        %v1557 = vpack.c.b16 %v1085, %v1083
        %v1558 = vpack.c.b16 %v1086, %v1084
        %v1559 = vpack.c.b16 %v1089, %v1087
        %v1560 = vpack.c.b16 %v1090, %v1088
        %v1561 = vpack.c.b16 %v1093, %v1091
        %v1562 = vpack.c.b16 %v1094, %v1092
        %v1563 = vpack.c.b16 %v1097, %v1095
        %v1564 = vpack.c.b16 %v1098, %v1096
        %v1565 = vpack.c.b16 %v1101, %v1099
        %v1566 = vpack.c.b16 %v1102, %v1100
        %v1567 = vpack.c.b16 %v1105, %v1103
        %v1568 = vpack.c.b16 %v1106, %v1104
        %v1569 = vpack.c.b16 %v1109, %v1107
        %v1570 = vpack.c.b16 %v1110, %v1108
        %v1571 = vpack.c.b16 %v1113, %v1111
        %v1572 = vpack.c.b16 %v1114, %v1112
        %v1573 = vpack.c.b16 %v1117, %v1115
        %v1574 = vpack.c.b16 %v1118, %v1116
        %v1575 = vpack.c.b16 %v1121, %v1119
        %v1576 = vpack.c.b16 %v1122, %v1120
        %v1577 = vpack.c.b16 %v1125, %v1123
        %v1578 = vpack.c.b16 %v1126, %v1124
        %v1579 = vpack.c.b16 %v1129, %v1127
        %v1580 = vpack.c.b16 %v1130, %v1128
        %v1581 = vpack.c.b16 %v1133, %v1131
        %v1582 = vpack.c.b16 %v1134, %v1132
        %v1583 = vpack.c.b16 %v1137, %v1135
        %v1584 = vpack.c.b16 %v1138, %v1136
        %v1585 = vpack.c.b16 %v1141, %v1139
        %v1586 = vpack.c.b16 %v1142, %v1140
        %v1587 = vpack.c.b16 %v1145, %v1143
        %v1588 = vpack.c.b16 %v1146, %v1144
        %v1589 = vpack.c.b16 %v1149, %v1147
        %v1590 = vpack.c.b16 %v1150, %v1148
        %v1591 = vpack.c.b16 %v1153, %v1151
        %v1592 = vpack.c.b16 %v1154, %v1152
        %v1593 = vpack.c.b16 %v1157, %v1155
        %v1594 = vpack.c.b16 %v1158, %v1156
        %v1595 = vpack.c.b16 %v1161, %v1159
        %v1596 = vpack.c.b16 %v1162, %v1160
        %v1597 = vpack.c.b16 %v1165, %v1163
        %v1598 = vpack.c.b16 %v1166, %v1164
        %v1599 = vpack.c.b16 %v1169, %v1167
        %v1600 = vpack.c.b16 %v1170, %v1168
        %v1601 = vpack.c.b16 %v1173, %v1171
        %v1602 = vpack.c.b16 %v1174, %v1172
        %v1603 = vpack.c.b16 %v1177, %v1175
        %v1604 = vpack.c.b16 %v1178, %v1176
        %v1605 = vpack.c.b16 %v1181, %v1179
        %v1606 = vpack.c.b16 %v1182, %v1180
        %v1607 = vpack.c.b16 %v1185, %v1183
        %v1608 = vpack.c.b16 %v1186, %v1184
        %v1609 = vpack.c.b16 %v1189, %v1187
        %v1610 = vpack.c.b16 %v1190, %v1188
        %v1611 = vpack.c.b16 %v1193, %v1191
        %v1612 = vpack.c.b16 %v1194, %v1192
        %v1613 = vpack.c.b16 %v1197, %v1195
        %v1614 = vpack.c.b16 %v1198, %v1196
        %v1615 = vpack.c.b16 %v1201, %v1199
        %v1616 = vpack.c.b16 %v1202, %v1200
        %v1617 = vpack.c.b16 %v1205, %v1203
        %v1618 = vpack.c.b16 %v1206, %v1204
        %v1619 = vpack.c.b16 %v1209, %v1207
        %v1620 = vpack.c.b16 %v1210, %v1208
        %v1621 = vpack.c.b16 %v1213, %v1211
        %v1622 = vpack.c.b16 %v1214, %v1212
        %v1623 = vpack.c.b16 %v1217, %v1215
        %v1624 = vpack.c.b16 %v1218, %v1216
        %v1625 = vpack.c.b16 %v1221, %v1219
        %v1626 = vpack.c.b16 %v1222, %v1220
        %v1627 = vpack.c.b16 %v1225, %v1223
        %v1628 = vpack.c.b16 %v1226, %v1224
        %v1629 = vpack.c.b16 %v1229, %v1227
        %v1630 = vpack.c.b16 %v1230, %v1228
        %v1631 = vpack.c.b16 %v1233, %v1231
        %v1632 = vpack.c.b16 %v1234, %v1232
        %v1633 = vpack.c.b16 %v1237, %v1235
        %v1634 = vpack.c.b16 %v1238, %v1236
        %v1635 = vpack.c.b16 %v1241, %v1239
        %v1636 = vpack.c.b16 %v1242, %v1240
        %v1637 = vpack.c.b16 %v1245, %v1243
        %v1638 = vpack.c.b16 %v1246, %v1244
        %v1639 = vpack.c.b16 %v1249, %v1247
        %v1640 = vpack.c.b16 %v1250, %v1248
        %v1641 = vpack.c.b16 %v1253, %v1251
        %v1642 = vpack.c.b16 %v1254, %v1252
        %v1643 = vpack.c.b16 %v1257, %v1255
        %v1644 = vpack.c.b16 %v1258, %v1256
        %v1645 = vpack.c.b16 %v1261, %v1259
        %v1646 = vpack.c.b16 %v1262, %v1260
        %v1647 = vpack.c.b16 %v1265, %v1263
        %v1648 = vpack.c.b16 %v1266, %v1264
        %v1649 = vpack.c.b16 %v1269, %v1267
        %v1650 = vpack.c.b16 %v1270, %v1268
        %v1651 = vpack.c.b16 %v1273, %v1271
        %v1652 = vpack.c.b16 %v1274, %v1272
        %v1653 = vpack.c.b16 %v1277, %v1275
        %v1654 = vpack.c.b16 %v1278, %v1276
        %v1655 = vpack.c.b16 %v1281, %v1279
        %v1656 = vpack.c.b16 %v1282, %v1280
        %v1657 = vpack.c.b16 %v1285, %v1283
        %v1658 = vpack.c.b16 %v1286, %v1284
        %v1659 = vpack.c.b16 %v1289, %v1287
        %v1660 = vpack.c.b16 %v1290, %v1288
        %v1661 = vpack.c.b16 %v1293, %v1291
        %v1662 = vpack.c.b16 %v1294, %v1292
        %v1663 = vpack.c.b16 %v1297, %v1295
        %v1664 = vpack.c.b16 %v1298, %v1296
        %v1665 = vpack.c.b16 %v1301, %v1299
        %v1666 = vpack.c.b16 %v1302, %v1300
        %v1667 = vpack.c.b16 %v1305, %v1303
        %v1668 = vpack.c.b16 %v1306, %v1304
        %v1669 = vpack.c.b16 %v1309, %v1307
        %v1670 = vpack.c.b16 %v1310, %v1308
        %v1671 = vpack.c.b16 %v1313, %v1311
        %v1672 = vpack.c.b16 %v1314, %v1312
        %v1673 = vpack.c.b16 %v1317, %v1315
        %v1674 = vpack.c.b16 %v1318, %v1316
        %v1675 = vpack.c.b16 %v1321, %v1319
        %v1676 = vpack.c.b16 %v1322, %v1320
        %v1677 = vpack.c.b16 %v1325, %v1323
        %v1678 = vpack.c.b16 %v1326, %v1324
        %v1679 = vpack.c.b16 %v1329, %v1327
        %v1680 = vpack.c.b16 %v1330, %v1328
        %v1681 = vpack.c.b16 %v1333, %v1331
        %v1682 = vpack.c.b16 %v1334, %v1332
        %v1683 = vpack.c.b16 %v1337, %v1335
        %v1684 = vpack.c.b16 %v1338, %v1336
        %v1685 = vpack.c.b16 %v1341, %v1339
        %v1686 = vpack.c.b16 %v1342, %v1340
        %v1687 = vpack.c.b16 %v1345, %v1343
        %v1688 = vpack.c.b16 %v1346, %v1344
        %v1689 = vpack.c.b16 %v1349, %v1347
        %v1690 = vpack.c.b16 %v1350, %v1348
        %v1691 = vpack.c.b16 %v1353, %v1351
        %v1692 = vpack.c.b16 %v1354, %v1352
        %v1693 = vpack.c.b16 %v1357, %v1355
        %v1694 = vpack.c.b16 %v1358, %v1356
        %v1695 = vpack.c.b16 %v1361, %v1359
        %v1696 = vpack.c.b16 %v1362, %v1360
        %v1697 = vpack.c.b16 %v1365, %v1363
        %v1698 = vpack.c.b16 %v1366, %v1364
        %v1699 = vpack.c.b16 %v1369, %v1367
        %v1700 = vpack.c.b16 %v1370, %v1368
        %v1701 = vpack.c.b16 %v1373, %v1371
        %v1702 = vpack.c.b16 %v1374, %v1372
        %v1703 = vpack.c.b16 %v1377, %v1375
        %v1704 = vpack.c.b16 %v1378, %v1376
        %v1705 = vpack.c.b16 %v1381, %v1379
        %v1706 = vpack.c.b16 %v1382, %v1380
        %v1707 = vpack.c.b16 %v1385, %v1383
        %v1708 = vpack.c.b16 %v1386, %v1384
        %v1709 = vpack.c.b16 %v1389, %v1387
        %v1710 = vpack.c.b16 %v1390, %v1388
        %v1711 = vpack.c.b16 %v1393, %v1391
        %v1712 = vpack.c.b16 %v1394, %v1392
        %v1713 = vpack.c.b16 %v1397, %v1395
        %v1714 = vpack.c.b16 %v1398, %v1396
        %v1715 = vpack.c.b16 %v1401, %v1399
        %v1716 = vpack.c.b16 %v1402, %v1400
        %v1717 = vpack.c.b16 %v1405, %v1403
        %v1718 = vpack.c.b16 %v1406, %v1404
        %v1719 = vpack.c.b16 %v1409, %v1407
        %v1720 = vpack.c.b16 %v1410, %v1408
        %v1721 = vpack.c.b16 %v1413, %v1411
        %v1722 = vpack.c.b16 %v1414, %v1412
        %v1723 = vpack.c.b16 %v1417, %v1415
        %v1724 = vpack.c.b16 %v1418, %v1416
        %v1725 = vpack.c.b16 %v1421, %v1419
        %v1726 = vpack.c.b16 %v1422, %v1420
        %v1727 = vpack.c.b16 %v1425, %v1423
        %v1728 = vpack.c.b16 %v1426, %v1424
        %v1729 = vpack.c.b16 %v1429, %v1427
        %v1730 = vpack.c.b16 %v1430, %v1428
        %v1731 = vpack.c.b16 %v1433, %v1431
        %v1732 = vpack.c.b16 %v1434, %v1432
        %v1733 = vpack.c.b16 %v1437, %v1435
        %v1734 = vpack.c.b16 %v1438, %v1436
        %v1735 = vpack.c.b16 %v1441, %v1439
        %v1736 = vpack.c.b16 %v1442, %v1440
        %v1737 = vpack.c.b16 %v1445, %v1443
        %v1738 = vpack.c.b16 %v1446, %v1444
        %v1739 = vpack.c.b16 %v1449, %v1447
        %v1740 = vpack.c.b16 %v1450, %v1448
        %v1741 = vpack.c.b16 %v1453, %v1451
        %v1742 = vpack.c.b16 %v1454, %v1452
        %v1743 = vpack.c.b16 %v1457, %v1455
        %v1744 = vpack.c.b16 %v1458, %v1456
        %v1745 = vpack.c.b16 %v1461, %v1459
        %v1746 = vpack.c.b16 %v1462, %v1460
        %v1747 = vpack.c.b16 %v1465, %v1463
        %v1748 = vpack.c.b16 %v1466, %v1464
        %v1749 = vpack.c.b16 %v1469, %v1467
        %v1750 = vpack.c.b16 %v1470, %v1468
        %v1751 = vpack.c.b16 %v1473, %v1471
        %v1752 = vpack.c.b16 %v1474, %v1472
        %v1753 = vpack.c.b16 %v1477, %v1475
        %v1754 = vpack.c.b16 %v1478, %v1476
        %v1755 = vpack.c.b16 %v1481, %v1479
        %v1756 = vpack.c.b16 %v1482, %v1480
        %v1757 = vpack.c.b16 %v1485, %v1483
        %v1758 = vpack.c.b16 %v1486, %v1484
        %v1759 = vpack.c.b16 %v1489, %v1487
        %v1760 = vpack.c.b16 %v1490, %v1488
        %v1761 = vpack.c.b16 %v1493, %v1491
        %v1762 = vpack.c.b16 %v1494, %v1492
        %v1763 = vpack.c.b16 %v1497, %v1495
        %v1764 = vpack.c.b16 %v1498, %v1496
        %v1765 = vpack.c.b16 %v1501, %v1499
        %v1766 = vpack.c.b16 %v1502, %v1500
        %v1767 = vpack.c.b16 %v1505, %v1503
        %v1768 = vpack.c.b16 %v1506, %v1504
        %v1769 = vpack.c.b16 %v1509, %v1507
        %v1770 = vpack.c.b16 %v1510, %v1508
        %v1771 = vpack.c.b16 %v1513, %v1511
        %v1772 = vpack.c.b16 %v1514, %v1512
        %v1773 = vpack.c.b16 %v1517, %v1515
        %v1774 = vpack.c.b16 %v1518, %v1516
        %v1775 = vpack.c.b16 %v1521, %v1519
        %v1776 = vpack.c.b16 %v1522, %v1520
        %v1777 = vpack.c.b16 %v1525, %v1523
        %v1778 = vpack.c.b16 %v1526, %v1524
        %v1779 = vpack.c.b16 %v1529, %v1527
        %v1780 = vpack.c.b16 %v1530, %v1528
        %v1781 = vpack.c.b16 %v1533, %v1531
        %v1782 = vpack.c.b16 %v1534, %v1532
        %v1783 = vpack.c.b16 %v1537, %v1535
        %v1784 = vpack.c.b16 %v1538, %v1536
        %v1785 = vpack.c.b16 %v1541, %v1539
        %v1786 = vpack.c.b16 %v1542, %v1540
        %v1787 = vpack.c.b16 %v1545, %v1543
        %v1788 = vpack.c.b16 %v1546, %v1544
        %v1789 = vpack.c.b16 %v1549, %v1547
        %v1790 = vpack.c.b16 %v1550, %v1548
        %2031 = vmatprep.subr.bf16.mxu0 %v1552
        %2032 = vmatpush1.bf16.msra.mxu0 %v1551
        %2033 = vmatprep.subr.bf16.mxu0 %v1554
        %2034 = vmatpush1.bf16.msra.mxu0 %v1553
        %2035 = vmatprep.subr.bf16.mxu0 %v1556
        %2036 = vmatpush1.bf16.msra.mxu0 %v1555
        %2037 = vmatprep.subr.bf16.mxu0 %v1558
        %2038 = vmatpush1.bf16.msra.mxu0 %v1557
        %2039 = vmatprep.subr.bf16.mxu0 %v1560
        %2040 = vmatpush1.bf16.msra.mxu0 %v1559
        %2041 = vmatprep.subr.bf16.mxu0 %v1562
        %2042 = vmatpush1.bf16.msra.mxu0 %v1561
        %2043 = vmatprep.subr.bf16.mxu0 %v1564
        %2044 = vmatpush1.bf16.msra.mxu0 %v1563
        %2045 = vmatprep.subr.bf16.mxu0 %v1566
        %2046 = vmatpush1.bf16.msra.mxu0 %v1565
        %2047 = vmatprep.subr.bf16.mxu0 %v1568
        %2048 = vmatpush1.bf16.msra.mxu0 %v1567
        %2049 = vmatprep.subr.bf16.mxu0 %v1570
        %2050 = vmatpush1.bf16.msra.mxu0 %v1569
        %2051 = vmatprep.subr.bf16.mxu0 %v1572
        %2052 = vmatpush1.bf16.msra.mxu0 %v1571
        %2053 = vmatprep.subr.bf16.mxu0 %v1574
        %2054 = vmatpush1.bf16.msra.mxu0 %v1573
        %2055 = vmatprep.subr.bf16.mxu0 %v1576
        %2056 = vmatpush1.bf16.msra.mxu0 %v1575
        %2057 = vmatprep.subr.bf16.mxu0 %v1578
        %2058 = vmatpush1.bf16.msra.mxu0 %v1577
        %2059 = vmatprep.subr.bf16.mxu0 %v1580
        %2060 = vmatpush1.bf16.msra.mxu0 %v1579
        %2061 = vmatprep.subr.bf16.mxu0 %v1582
        %2062 = vmatpush1.bf16.msra.mxu0 %v1581
        %2063 = vmatprep.mubr.bf16.mxu0 %v712
        %2064 = vmatmul.mubr.bf16.gmra.mrb[0].mxu0 %v711
        %v2065 = vpop.f32.mrb[0].mxu0
        %v2066 = vadd.f32 0.0, %v2065
        %v2067 = vpop.f32.mrb[0].mxu0
        %v2068 = vadd.f32 0.0, %v2067
        %v2069 = vpop.f32.mrb[0].mxu0
        %v2070 = vadd.f32 0.0, %v2069
        %v2071 = vpop.f32.mrb[0].mxu0
        %v2072 = vadd.f32 0.0, %v2071
        %2073 = vmatprep.mubr.bf16.mxu0 %v727
        %2074 = vmatmul.mubr.bf16.gmra.mrb[0].mxu0 %v726
        %v2075 = vpop.f32.mrb[0].mxu0
        %v2076 = vadd.f32 0.0, %v2075
        %v2077 = vpop.f32.mrb[0].mxu0
        %v2078 = vadd.f32 0.0, %v2077
        %v2079 = vpop.f32.mrb[0].mxu0
        %v2080 = vadd.f32 0.0, %v2079
        %v2081 = vpop.f32.mrb[0].mxu0
        %v2082 = vadd.f32 0.0, %v2081
        %2083 = vmatprep.mubr.bf16.mxu0 %v742
        %2084 = vmatmul.mubr.bf16.gmra.mrb[0].mxu0 %v741
        %v2085 = vpop.f32.mrb[0].mxu0
        %v2086 = vadd.f32 0.0, %v2085
        %v2087 = vpop.f32.mrb[0].mxu0
        %v2088 = vadd.f32 0.0, %v2087
        %v2089 = vpop.f32.mrb[0].mxu0
        %v2090 = vadd.f32 0.0, %v2089
        %v2091 = vpop.f32.mrb[0].mxu0
        %v2092 = vadd.f32 0.0, %v2091
        %2093 = vmatprep.mubr.bf16.mxu0 %v757
        %2094 = vmatmul.mubr.bf16.gmra.mrb[0].mxu0 %v756
        %v2095 = vpop.f32.mrb[0].mxu0
        %v2096 = vadd.f32 0.0, %v2095
        %v2097 = vpop.f32.mrb[0].mxu0
        %v2098 = vadd.f32 0.0, %v2097
        %v2099 = vpop.f32.mrb[0].mxu0
        %v2100 = vadd.f32 0.0, %v2099
        %v2101 = vpop.f32.mrb[0].mxu0
        %v2102 = vadd.f32 0.0, %v2101
        %2103 = vdwg.mxu0
        %2104 = vmatprep.subr.bf16.mxu0 %v1584
        %2105 = vmatpush1.bf16.msra.mxu0 %v1583
        %2106 = vmatprep.subr.bf16.mxu0 %v1586
        %2107 = vmatpush1.bf16.msra.mxu0 %v1585
        %2108 = vmatprep.subr.bf16.mxu0 %v1588
        %2109 = vmatpush1.bf16.msra.mxu0 %v1587
        %2110 = vmatprep.subr.bf16.mxu0 %v1590
        %2111 = vmatpush1.bf16.msra.mxu0 %v1589
        %2112 = vmatprep.subr.bf16.mxu0 %v1592
        %2113 = vmatpush1.bf16.msra.mxu0 %v1591
        %2114 = vmatprep.subr.bf16.mxu0 %v1594
        %2115 = vmatpush1.bf16.msra.mxu0 %v1593
        %2116 = vmatprep.subr.bf16.mxu0 %v1596
        %2117 = vmatpush1.bf16.msra.mxu0 %v1595
        %2118 = vmatprep.subr.bf16.mxu0 %v1598
        %2119 = vmatpush1.bf16.msra.mxu0 %v1597
        %2120 = vmatprep.subr.bf16.mxu0 %v1600
        %2121 = vmatpush1.bf16.msra.mxu0 %v1599
        %2122 = vmatprep.subr.bf16.mxu0 %v1602
        %2123 = vmatpush1.bf16.msra.mxu0 %v1601
        %2124 = vmatprep.subr.bf16.mxu0 %v1604
        %2125 = vmatpush1.bf16.msra.mxu0 %v1603
        %2126 = vmatprep.subr.bf16.mxu0 %v1606
        %2127 = vmatpush1.bf16.msra.mxu0 %v1605
        %2128 = vmatprep.subr.bf16.mxu0 %v1608
        %2129 = vmatpush1.bf16.msra.mxu0 %v1607
        %2130 = vmatprep.subr.bf16.mxu0 %v1610
        %2131 = vmatpush1.bf16.msra.mxu0 %v1609
        %2132 = vmatprep.subr.bf16.mxu0 %v1612
        %2133 = vmatpush1.bf16.msra.mxu0 %v1611
        %2134 = vmatprep.subr.bf16.mxu0 %v1614
        %2135 = vmatpush1.bf16.msra.mxu0 %v1613
        %2136 = vmatprep.mubr.bf16.mxu0 %v714
        %2137 = vmatmul.mubr.bf16.gmra.mrb[0].mxu0 %v713
        %v2138 = vpop.f32.mrb[0].mxu0
        %v2139 = vadd.f32 %v2066, %v2138
        %v2140 = vpop.f32.mrb[0].mxu0
        %v2141 = vadd.f32 %v2068, %v2140
        %v2142 = vpop.f32.mrb[0].mxu0
        %v2143 = vadd.f32 %v2070, %v2142
        %v2144 = vpop.f32.mrb[0].mxu0
        %v2145 = vadd.f32 %v2072, %v2144
        %2146 = vmatprep.mubr.bf16.mxu0 %v729
        %2147 = vmatmul.mubr.bf16.gmra.mrb[0].mxu0 %v728
        %v2148 = vpop.f32.mrb[0].mxu0
        %v2149 = vadd.f32 %v2076, %v2148
        %v2150 = vpop.f32.mrb[0].mxu0
        %v2151 = vadd.f32 %v2078, %v2150
        %v2152 = vpop.f32.mrb[0].mxu0
        %v2153 = vadd.f32 %v2080, %v2152
        %v2154 = vpop.f32.mrb[0].mxu0
        %v2155 = vadd.f32 %v2082, %v2154
        %2156 = vmatprep.mubr.bf16.mxu0 %v744
        %2157 = vmatmul.mubr.bf16.gmra.mrb[0].mxu0 %v743
        %v2158 = vpop.f32.mrb[0].mxu0
        %v2159 = vadd.f32 %v2086, %v2158
        %v2160 = vpop.f32.mrb[0].mxu0
        %v2161 = vadd.f32 %v2088, %v2160
        %v2162 = vpop.f32.mrb[0].mxu0
        %v2163 = vadd.f32 %v2090, %v2162
        %v2164 = vpop.f32.mrb[0].mxu0
        %v2165 = vadd.f32 %v2092, %v2164
        %2166 = vmatprep.mubr.bf16.mxu0 %v759
        %2167 = vmatmul.mubr.bf16.gmra.mrb[0].mxu0 %v758
        %v2168 = vpop.f32.mrb[0].mxu0
        %v2169 = vadd.f32 %v2096, %v2168
        %v2170 = vpop.f32.mrb[0].mxu0
        %v2171 = vadd.f32 %v2098, %v2170
        %v2172 = vpop.f32.mrb[0].mxu0
        %v2173 = vadd.f32 %v2100, %v2172
        %v2174 = vpop.f32.mrb[0].mxu0
        %v2175 = vadd.f32 %v2102, %v2174
        %2176 = vdwg.mxu0
        %2177 = vmatprep.subr.bf16.mxu0 %v1616
        %2178 = vmatpush1.bf16.msra.mxu0 %v1615
        %2179 = vmatprep.subr.bf16.mxu0 %v1618
        %2180 = vmatpush1.bf16.msra.mxu0 %v1617
        %2181 = vmatprep.subr.bf16.mxu0 %v1620
        %2182 = vmatpush1.bf16.msra.mxu0 %v1619
        %2183 = vmatprep.subr.bf16.mxu0 %v1622
        %2184 = vmatpush1.bf16.msra.mxu0 %v1621
        %2185 = vmatprep.subr.bf16.mxu0 %v1624
        %2186 = vmatpush1.bf16.msra.mxu0 %v1623
        %2187 = vmatprep.subr.bf16.mxu0 %v1626
        %2188 = vmatpush1.bf16.msra.mxu0 %v1625
        %2189 = vmatprep.subr.bf16.mxu0 %v1628
        %2190 = vmatpush1.bf16.msra.mxu0 %v1627
        %2191 = vmatprep.subr.bf16.mxu0 %v1630
        %2192 = vmatpush1.bf16.msra.mxu0 %v1629
        %2193 = vmatprep.subr.bf16.mxu0 %v1632
        %2194 = vmatpush1.bf16.msra.mxu0 %v1631
        %2195 = vmatprep.subr.bf16.mxu0 %v1634
        %2196 = vmatpush1.bf16.msra.mxu0 %v1633
        %2197 = vmatprep.subr.bf16.mxu0 %v1636
        %2198 = vmatpush1.bf16.msra.mxu0 %v1635
        %2199 = vmatprep.subr.bf16.mxu0 %v1638
        %2200 = vmatpush1.bf16.msra.mxu0 %v1637
        %2201 = vmatprep.subr.bf16.mxu0 %v1640
        %2202 = vmatpush1.bf16.msra.mxu0 %v1639
        %2203 = vmatprep.subr.bf16.mxu0 %v1642
        %2204 = vmatpush1.bf16.msra.mxu0 %v1641
        %2205 = vmatprep.subr.bf16.mxu0 %v1644
        %2206 = vmatpush1.bf16.msra.mxu0 %v1643
        %2207 = vmatprep.subr.bf16.mxu0 %v1646
        %2208 = vmatpush1.bf16.msra.mxu0 %v1645
        %2209 = vmatprep.mubr.bf16.mxu0 %v716
        %2210 = vmatmul.mubr.bf16.gmra.mrb[0].mxu0 %v715
        %v2211 = vpop.f32.mrb[0].mxu0
        %v2212 = vadd.f32 %v2139, %v2211
        %v2213 = vpop.f32.mrb[0].mxu0
        %v2214 = vadd.f32 %v2141, %v2213
        %v2215 = vpop.f32.mrb[0].mxu0
        %v2216 = vadd.f32 %v2143, %v2215
        %v2217 = vpop.f32.mrb[0].mxu0
        %v2218 = vadd.f32 %v2145, %v2217
        %2219 = vmatprep.mubr.bf16.mxu0 %v731
        %2220 = vmatmul.mubr.bf16.gmra.mrb[0].mxu0 %v730
        %v2221 = vpop.f32.mrb[0].mxu0
        %v2222 = vadd.f32 %v2149, %v2221
        %v2223 = vpop.f32.mrb[0].mxu0
        %v2224 = vadd.f32 %v2151, %v2223
        %v2225 = vpop.f32.mrb[0].mxu0
        %v2226 = vadd.f32 %v2153, %v2225
        %v2227 = vpop.f32.mrb[0].mxu0
        %v2228 = vadd.f32 %v2155, %v2227
        %2229 = vmatprep.mubr.bf16.mxu0 %v746
        %2230 = vmatmul.mubr.bf16.gmra.mrb[0].mxu0 %v745
        %v2231 = vpop.f32.mrb[0].mxu0
        %v2232 = vadd.f32 %v2159, %v2231
        %v2233 = vpop.f32.mrb[0].mxu0
        %v2234 = vadd.f32 %v2161, %v2233
        %v2235 = vpop.f32.mrb[0].mxu0
        %v2236 = vadd.f32 %v2163, %v2235
        %v2237 = vpop.f32.mrb[0].mxu0
        %v2238 = vadd.f32 %v2165, %v2237
        %2239 = vmatprep.mubr.bf16.mxu0 %v761
        %2240 = vmatmul.mubr.bf16.gmra.mrb[0].mxu0 %v760
        %v2241 = vpop.f32.mrb[0].mxu0
        %v2242 = vadd.f32 %v2169, %v2241
        %v2243 = vpop.f32.mrb[0].mxu0
        %v2244 = vadd.f32 %v2171, %v2243
        %v2245 = vpop.f32.mrb[0].mxu0
        %v2246 = vadd.f32 %v2173, %v2245
        %v2247 = vpop.f32.mrb[0].mxu0
        %v2248 = vadd.f32 %v2175, %v2247
        %2249 = vdwg.mxu0
        %2250 = vmatprep.subr.bf16.mxu0 %v1648
        %2251 = vmatpush1.bf16.msra.mxu0 %v1647
        %2252 = vmatprep.subr.bf16.mxu0 %v1650
        %2253 = vmatpush1.bf16.msra.mxu0 %v1649
        %2254 = vmatprep.subr.bf16.mxu0 %v1652
        %2255 = vmatpush1.bf16.msra.mxu0 %v1651
        %2256 = vmatprep.subr.bf16.mxu0 %v1654
        %2257 = vmatpush1.bf16.msra.mxu0 %v1653
        %2258 = vmatprep.subr.bf16.mxu0 %v1656
        %2259 = vmatpush1.bf16.msra.mxu0 %v1655
        %2260 = vmatprep.subr.bf16.mxu0 %v1658
        %2261 = vmatpush1.bf16.msra.mxu0 %v1657
        %2262 = vmatprep.subr.bf16.mxu0 %v1660
        %2263 = vmatpush1.bf16.msra.mxu0 %v1659
        %2264 = vmatprep.subr.bf16.mxu0 %v1662
        %2265 = vmatpush1.bf16.msra.mxu0 %v1661
        %2266 = vmatprep.subr.bf16.mxu0 %v1664
        %2267 = vmatpush1.bf16.msra.mxu0 %v1663
        %2268 = vmatprep.subr.bf16.mxu0 %v1666
        %2269 = vmatpush1.bf16.msra.mxu0 %v1665
        %2270 = vmatprep.subr.bf16.mxu0 %v1668
        %2271 = vmatpush1.bf16.msra.mxu0 %v1667
        %2272 = vmatprep.subr.bf16.mxu0 %v1670
        %2273 = vmatpush1.bf16.msra.mxu0 %v1669
        %2274 = vmatprep.subr.bf16.mxu0 %v1672
        %2275 = vmatpush1.bf16.msra.mxu0 %v1671
        %2276 = vmatprep.subr.bf16.mxu0 %v1674
        %2277 = vmatpush1.bf16.msra.mxu0 %v1673
        %2278 = vmatprep.subr.bf16.mxu0 %v1676
        %2279 = vmatpush1.bf16.msra.mxu0 %v1675
        %2280 = vmatprep.subr.bf16.mxu0 %v1678
        %2281 = vmatpush1.bf16.msra.mxu0 %v1677
        %2282 = vmatprep.mubr.bf16.mxu0 %v718
        %2283 = vmatmul.mubr.bf16.gmra.mrb[0].mxu0 %v717
        %v2284 = vpop.f32.mrb[0].mxu0
        %v2285 = vadd.f32 %v2212, %v2284
        %v2286 = vpop.f32.mrb[0].mxu0
        %v2287 = vadd.f32 %v2214, %v2286
        %v2288 = vpop.f32.mrb[0].mxu0
        %v2289 = vadd.f32 %v2216, %v2288
        %v2290 = vpop.f32.mrb[0].mxu0
        %v2291 = vadd.f32 %v2218, %v2290
        %2292 = vmatprep.mubr.bf16.mxu0 %v733
        %2293 = vmatmul.mubr.bf16.gmra.mrb[0].mxu0 %v732
        %v2294 = vpop.f32.mrb[0].mxu0
        %v2295 = vadd.f32 %v2222, %v2294
        %v2296 = vpop.f32.mrb[0].mxu0
        %v2297 = vadd.f32 %v2224, %v2296
        %v2298 = vpop.f32.mrb[0].mxu0
        %v2299 = vadd.f32 %v2226, %v2298
        %v2300 = vpop.f32.mrb[0].mxu0
        %v2301 = vadd.f32 %v2228, %v2300
        %2302 = vmatprep.mubr.bf16.mxu0 %v748
        %2303 = vmatmul.mubr.bf16.gmra.mrb[0].mxu0 %v747
        %v2304 = vpop.f32.mrb[0].mxu0
        %v2305 = vadd.f32 %v2232, %v2304
        %v2306 = vpop.f32.mrb[0].mxu0
        %v2307 = vadd.f32 %v2234, %v2306
        %v2308 = vpop.f32.mrb[0].mxu0
        %v2309 = vadd.f32 %v2236, %v2308
        %v2310 = vpop.f32.mrb[0].mxu0
        %v2311 = vadd.f32 %v2238, %v2310
        %2312 = vmatprep.mubr.bf16.mxu0 %v763
        %2313 = vmatmul.mubr.bf16.gmra.mrb[0].mxu0 %v762
        %v2314 = vpop.f32.mrb[0].mxu0
        %v2315 = vadd.f32 %v2242, %v2314
        %v2316 = vpop.f32.mrb[0].mxu0
        %v2317 = vadd.f32 %v2244, %v2316
        %v2318 = vpop.f32.mrb[0].mxu0
        %v2319 = vadd.f32 %v2246, %v2318
        %v2320 = vpop.f32.mrb[0].mxu0
        %v2321 = vadd.f32 %v2248, %v2320
        %2322 = vdwg.mxu0
        %2323 = vmatprep.subr.bf16.mxu0 %v1680
        %2324 = vmatpush1.bf16.msra.mxu0 %v1679
        %2325 = vmatprep.subr.bf16.mxu0 %v1682
        %2326 = vmatpush1.bf16.msra.mxu0 %v1681
        %2327 = vmatprep.subr.bf16.mxu0 %v1684
        %2328 = vmatpush1.bf16.msra.mxu0 %v1683
        %2329 = vmatprep.subr.bf16.mxu0 %v1686
        %2330 = vmatpush1.bf16.msra.mxu0 %v1685
        %2331 = vmatprep.subr.bf16.mxu0 %v1688
        %2332 = vmatpush1.bf16.msra.mxu0 %v1687
        %2333 = vmatprep.subr.bf16.mxu0 %v1690
        %2334 = vmatpush1.bf16.msra.mxu0 %v1689
        %2335 = vmatprep.subr.bf16.mxu0 %v1692
        %2336 = vmatpush1.bf16.msra.mxu0 %v1691
        %2337 = vmatprep.subr.bf16.mxu0 %v1694
        %2338 = vmatpush1.bf16.msra.mxu0 %v1693
        %2339 = vmatprep.subr.bf16.mxu0 %v1696
        %2340 = vmatpush1.bf16.msra.mxu0 %v1695
        %2341 = vmatprep.subr.bf16.mxu0 %v1698
        %2342 = vmatpush1.bf16.msra.mxu0 %v1697
        %2343 = vmatprep.subr.bf16.mxu0 %v1700
        %2344 = vmatpush1.bf16.msra.mxu0 %v1699
        %2345 = vmatprep.subr.bf16.mxu0 %v1702
        %2346 = vmatpush1.bf16.msra.mxu0 %v1701
        %2347 = vmatprep.subr.bf16.mxu0 %v1704
        %2348 = vmatpush1.bf16.msra.mxu0 %v1703
        %2349 = vmatprep.subr.bf16.mxu0 %v1706
        %2350 = vmatpush1.bf16.msra.mxu0 %v1705
        %2351 = vmatprep.subr.bf16.mxu0 %v1708
        %2352 = vmatpush1.bf16.msra.mxu0 %v1707
        %2353 = vmatprep.subr.bf16.mxu0 %v1710
        %2354 = vmatpush1.bf16.msra.mxu0 %v1709
        %2355 = vmatprep.mubr.bf16.mxu0 %v720
        %2356 = vmatmul.mubr.bf16.gmra.mrb[0].mxu0 %v719
        %v2357 = vpop.f32.mrb[0].mxu0
        %v2358 = vadd.f32 %v2285, %v2357
        %v2359 = vpop.f32.mrb[0].mxu0
        %v2360 = vadd.f32 %v2287, %v2359
        %v2361 = vpop.f32.mrb[0].mxu0
        %v2362 = vadd.f32 %v2289, %v2361
        %v2363 = vpop.f32.mrb[0].mxu0
        %v2364 = vadd.f32 %v2291, %v2363
        %2365 = vmatprep.mubr.bf16.mxu0 %v735
        %2366 = vmatmul.mubr.bf16.gmra.mrb[0].mxu0 %v734
        %v2367 = vpop.f32.mrb[0].mxu0
        %v2368 = vadd.f32 %v2295, %v2367
        %v2369 = vpop.f32.mrb[0].mxu0
        %v2370 = vadd.f32 %v2297, %v2369
        %v2371 = vpop.f32.mrb[0].mxu0
        %v2372 = vadd.f32 %v2299, %v2371
        %v2373 = vpop.f32.mrb[0].mxu0
        %v2374 = vadd.f32 %v2301, %v2373
        %2375 = vmatprep.mubr.bf16.mxu0 %v750
        %2376 = vmatmul.mubr.bf16.gmra.mrb[0].mxu0 %v749
        %v2377 = vpop.f32.mrb[0].mxu0
        %v2378 = vadd.f32 %v2305, %v2377
        %v2379 = vpop.f32.mrb[0].mxu0
        %v2380 = vadd.f32 %v2307, %v2379
        %v2381 = vpop.f32.mrb[0].mxu0
        %v2382 = vadd.f32 %v2309, %v2381
        %v2383 = vpop.f32.mrb[0].mxu0
        %v2384 = vadd.f32 %v2311, %v2383
        %2385 = vmatprep.mubr.bf16.mxu0 %v765
        %2386 = vmatmul.mubr.bf16.gmra.mrb[0].mxu0 %v764
        %v2387 = vpop.f32.mrb[0].mxu0
        %v2388 = vadd.f32 %v2315, %v2387
        %v2389 = vpop.f32.mrb[0].mxu0
        %v2390 = vadd.f32 %v2317, %v2389
        %v2391 = vpop.f32.mrb[0].mxu0
        %v2392 = vadd.f32 %v2319, %v2391
        %v2393 = vpop.f32.mrb[0].mxu0
        %v2394 = vadd.f32 %v2321, %v2393
        %2395 = vdwg.mxu0
        %2396 = vmatprep.subr.bf16.mxu0 %v1712
        %2397 = vmatpush1.bf16.msra.mxu0 %v1711
        %2398 = vmatprep.subr.bf16.mxu0 %v1714
        %2399 = vmatpush1.bf16.msra.mxu0 %v1713
        %2400 = vmatprep.subr.bf16.mxu0 %v1716
        %2401 = vmatpush1.bf16.msra.mxu0 %v1715
        %2402 = vmatprep.subr.bf16.mxu0 %v1718
        %2403 = vmatpush1.bf16.msra.mxu0 %v1717
        %2404 = vmatprep.subr.bf16.mxu0 %v1720
        %2405 = vmatpush1.bf16.msra.mxu0 %v1719
        %2406 = vmatprep.subr.bf16.mxu0 %v1722
        %2407 = vmatpush1.bf16.msra.mxu0 %v1721
        %2408 = vmatprep.subr.bf16.mxu0 %v1724
        %2409 = vmatpush1.bf16.msra.mxu0 %v1723
        %2410 = vmatprep.subr.bf16.mxu0 %v1726
        %2411 = vmatpush1.bf16.msra.mxu0 %v1725
        %2412 = vmatprep.subr.bf16.mxu0 %v1728
        %2413 = vmatpush1.bf16.msra.mxu0 %v1727
        %2414 = vmatprep.subr.bf16.mxu0 %v1730
        %2415 = vmatpush1.bf16.msra.mxu0 %v1729
        %2416 = vmatprep.subr.bf16.mxu0 %v1732
        %2417 = vmatpush1.bf16.msra.mxu0 %v1731
        %2418 = vmatprep.subr.bf16.mxu0 %v1734
        %2419 = vmatpush1.bf16.msra.mxu0 %v1733
        %2420 = vmatprep.subr.bf16.mxu0 %v1736
        %2421 = vmatpush1.bf16.msra.mxu0 %v1735
        %2422 = vmatprep.subr.bf16.mxu0 %v1738
        %2423 = vmatpush1.bf16.msra.mxu0 %v1737
        %2424 = vmatprep.subr.bf16.mxu0 %v1740
        %2425 = vmatpush1.bf16.msra.mxu0 %v1739
        %2426 = vmatprep.subr.bf16.mxu0 %v1742
        %2427 = vmatpush1.bf16.msra.mxu0 %v1741
        %2428 = vmatprep.mubr.bf16.mxu0 %v722
        %2429 = vmatmul.mubr.bf16.gmra.mrb[0].mxu0 %v721
        %v2430 = vpop.f32.mrb[0].mxu0
        %v2431 = vadd.f32 %v2358, %v2430
        %v2432 = vpop.f32.mrb[0].mxu0
        %v2433 = vadd.f32 %v2360, %v2432
        %v2434 = vpop.f32.mrb[0].mxu0
        %v2435 = vadd.f32 %v2362, %v2434
        %v2436 = vpop.f32.mrb[0].mxu0
        %v2437 = vadd.f32 %v2364, %v2436
        %2438 = vmatprep.mubr.bf16.mxu0 %v737
        %2439 = vmatmul.mubr.bf16.gmra.mrb[0].mxu0 %v736
        %v2440 = vpop.f32.mrb[0].mxu0
        %v2441 = vadd.f32 %v2368, %v2440
        %v2442 = vpop.f32.mrb[0].mxu0
        %v2443 = vadd.f32 %v2370, %v2442
        %v2444 = vpop.f32.mrb[0].mxu0
        %v2445 = vadd.f32 %v2372, %v2444
        %v2446 = vpop.f32.mrb[0].mxu0
        %v2447 = vadd.f32 %v2374, %v2446
        %2448 = vmatprep.mubr.bf16.mxu0 %v752
        %2449 = vmatmul.mubr.bf16.gmra.mrb[0].mxu0 %v751
        %v2450 = vpop.f32.mrb[0].mxu0
        %v2451 = vadd.f32 %v2378, %v2450
        %v2452 = vpop.f32.mrb[0].mxu0
        %v2453 = vadd.f32 %v2380, %v2452
        %v2454 = vpop.f32.mrb[0].mxu0
        %v2455 = vadd.f32 %v2382, %v2454
        %v2456 = vpop.f32.mrb[0].mxu0
        %v2457 = vadd.f32 %v2384, %v2456
        %2458 = vmatprep.mubr.bf16.mxu0 %v767
        %2459 = vmatmul.mubr.bf16.gmra.mrb[0].mxu0 %v766
        %v2460 = vpop.f32.mrb[0].mxu0
        %v2461 = vadd.f32 %v2388, %v2460
        %v2462 = vpop.f32.mrb[0].mxu0
        %v2463 = vadd.f32 %v2390, %v2462
        %v2464 = vpop.f32.mrb[0].mxu0
        %v2465 = vadd.f32 %v2392, %v2464
        %v2466 = vpop.f32.mrb[0].mxu0
        %v2467 = vadd.f32 %v2394, %v2466
        %2468 = vdwg.mxu0
        %2469 = vmatprep.subr.bf16.mxu0 %v1744
        %2470 = vmatpush1.bf16.msra.mxu0 %v1743
        %2471 = vmatprep.subr.bf16.mxu0 %v1746
        %2472 = vmatpush1.bf16.msra.mxu0 %v1745
        %2473 = vmatprep.subr.bf16.mxu0 %v1748
        %2474 = vmatpush1.bf16.msra.mxu0 %v1747
        %2475 = vmatprep.subr.bf16.mxu0 %v1750
        %2476 = vmatpush1.bf16.msra.mxu0 %v1749
        %2477 = vmatprep.subr.bf16.mxu0 %v1752
        %2478 = vmatpush1.bf16.msra.mxu0 %v1751
        %2479 = vmatprep.subr.bf16.mxu0 %v1754
        %2480 = vmatpush1.bf16.msra.mxu0 %v1753
        %2481 = vmatprep.subr.bf16.mxu0 %v1756
        %2482 = vmatpush1.bf16.msra.mxu0 %v1755
        %2483 = vmatprep.subr.bf16.mxu0 %v1758
        %2484 = vmatpush1.bf16.msra.mxu0 %v1757
        %2485 = vmatprep.subr.bf16.mxu0 %v1760
        %2486 = vmatpush1.bf16.msra.mxu0 %v1759
        %2487 = vmatprep.subr.bf16.mxu0 %v1762
        %2488 = vmatpush1.bf16.msra.mxu0 %v1761
        %2489 = vmatprep.subr.bf16.mxu0 %v1764
        %2490 = vmatpush1.bf16.msra.mxu0 %v1763
        %2491 = vmatprep.subr.bf16.mxu0 %v1766
        %2492 = vmatpush1.bf16.msra.mxu0 %v1765
        %2493 = vmatprep.subr.bf16.mxu0 %v1768
        %2494 = vmatpush1.bf16.msra.mxu0 %v1767
        %2495 = vmatprep.subr.bf16.mxu0 %v1770
        %2496 = vmatpush1.bf16.msra.mxu0 %v1769
        %2497 = vmatprep.subr.bf16.mxu0 %v1772
        %2498 = vmatpush1.bf16.msra.mxu0 %v1771
        %2499 = vmatprep.subr.bf16.mxu0 %v1774
        %2500 = vmatpush1.bf16.msra.mxu0 %v1773
        %2501 = vmatprep.mubr.bf16.mxu0 %v724
        %2502 = vmatmul.mubr.bf16.gmra.mrb[0].mxu0 %v723
        %v2503 = vpop.f32.mrb[0].mxu0
        %v2504 = vadd.f32 %v2431, %v2503
        %v2505 = vpop.f32.mrb[0].mxu0
        %v2506 = vadd.f32 %v2433, %v2505
        %v2507 = vpop.f32.mrb[0].mxu0
        %v2508 = vadd.f32 %v2435, %v2507
        %v2509 = vpop.f32.mrb[0].mxu0
        %v2510 = vadd.f32 %v2437, %v2509
        %2511 = vmatprep.mubr.bf16.mxu0 %v739
        %2512 = vmatmul.mubr.bf16.gmra.mrb[0].mxu0 %v738
        %v2513 = vpop.f32.mrb[0].mxu0
        %v2514 = vadd.f32 %v2441, %v2513
        %v2515 = vpop.f32.mrb[0].mxu0
        %v2516 = vadd.f32 %v2443, %v2515
        %v2517 = vpop.f32.mrb[0].mxu0
        %v2518 = vadd.f32 %v2445, %v2517
        %v2519 = vpop.f32.mrb[0].mxu0
        %v2520 = vadd.f32 %v2447, %v2519
        %2521 = vmatprep.mubr.bf16.mxu0 %v754
        %2522 = vmatmul.mubr.bf16.gmra.mrb[0].mxu0 %v753
        %v2523 = vpop.f32.mrb[0].mxu0
        %v2524 = vadd.f32 %v2451, %v2523
        %v2525 = vpop.f32.mrb[0].mxu0
        %v2526 = vadd.f32 %v2453, %v2525
        %v2527 = vpop.f32.mrb[0].mxu0
        %v2528 = vadd.f32 %v2455, %v2527
        %v2529 = vpop.f32.mrb[0].mxu0
        %v2530 = vadd.f32 %v2457, %v2529
        %2531 = vmatprep.mubr.bf16.mxu0 %v769
        %2532 = vmatmul.mubr.bf16.gmra.mrb[0].mxu0 %v768
        %v2533 = vpop.f32.mrb[0].mxu0
        %v2534 = vadd.f32 %v2461, %v2533
        %v2535 = vpop.f32.mrb[0].mxu0
        %v2536 = vadd.f32 %v2463, %v2535
        %v2537 = vpop.f32.mrb[0].mxu0
        %v2538 = vadd.f32 %v2465, %v2537
        %v2539 = vpop.f32.mrb[0].mxu0
        %v2540 = vadd.f32 %v2467, %v2539
        %2541 = vdwg.mxu0
        %2542 = vmatprep.subr.bf16.mxu0 %v1776
        %2543 = vmatpush1.bf16.msra.mxu0 %v1775
        %2544 = vmatprep.subr.bf16.mxu0 %v1778
        %2545 = vmatpush1.bf16.msra.mxu0 %v1777
        %2546 = vmatprep.subr.bf16.mxu0 %v1780
        %2547 = vmatpush1.bf16.msra.mxu0 %v1779
        %2548 = vmatprep.subr.bf16.mxu0 %v1782
        %2549 = vmatpush1.bf16.msra.mxu0 %v1781
        %2550 = vmatprep.subr.bf16.mxu0 %v1784
        %2551 = vmatpush1.bf16.msra.mxu0 %v1783
        %2552 = vmatprep.subr.bf16.mxu0 %v1786
        %2553 = vmatpush1.bf16.msra.mxu0 %v1785
        %2554 = vmatprep.subr.bf16.mxu0 %v1788
        %2555 = vmatpush1.bf16.msra.mxu0 %v1787
        %2556 = vmatprep.subr.bf16.mxu0 %v1790
        %2557 = vmatpush1.bf16.msra.mxu0 %v1789
        %2558 = vmatprep.subr.bf16.mxu0 0
        %2559 = vmatpush1.bf16.msra.mxu0 0
        %2560 = vmatprep.subr.bf16.mxu0 0
        %2561 = vmatpush1.bf16.msra.mxu0 0
        %2562 = vmatprep.subr.bf16.mxu0 0
        %2563 = vmatpush1.bf16.msra.mxu0 0
        %2564 = vmatprep.subr.bf16.mxu0 0
        %2565 = vmatpush1.bf16.msra.mxu0 0
        %2566 = vmatprep.subr.bf16.mxu0 0
        %2567 = vmatpush1.bf16.msra.mxu0 0
        %2568 = vmatprep.subr.bf16.mxu0 0
        %2569 = vmatpush1.bf16.msra.mxu0 0
        %2570 = vmatprep.subr.bf16.mxu0 0
        %2571 = vmatpush1.bf16.msra.mxu0 0
        %2572 = vmatprep.subr.bf16.mxu0 0
        %2573 = vmatpush1.bf16.msra.mxu0 0
        %2574 = vmatprep.mubr.bf16.mxu0 0
        %2575 = vmatmul.mubr.bf16.gmra.mrb[0].mxu0 %v725
        %v2576 = vpop.f32.mrb[0].mxu0
        %v2577 = vadd.f32 %v2504, %v2576
        %v2578 = vpop.f32.mrb[0].mxu0
        %v2579 = vadd.f32 %v2506, %v2578
        %v2580 = vpop.f32.mrb[0].mxu0
        %v2581 = vadd.f32 %v2508, %v2580
        %v2582 = vpop.f32.mrb[0].mxu0
        %v2583 = vadd.f32 %v2510, %v2582
        %2584 = vmatprep.mubr.bf16.mxu0 0
        %2585 = vmatmul.mubr.bf16.gmra.mrb[0].mxu0 %v740
        %v2586 = vpop.f32.mrb[0].mxu0
        %v2587 = vadd.f32 %v2514, %v2586
        %v2588 = vpop.f32.mrb[0].mxu0
        %v2589 = vadd.f32 %v2516, %v2588
        %v2590 = vpop.f32.mrb[0].mxu0
        %v2591 = vadd.f32 %v2518, %v2590
        %v2592 = vpop.f32.mrb[0].mxu0
        %v2593 = vadd.f32 %v2520, %v2592
        %2594 = vmatprep.mubr.bf16.mxu0 0
        %2595 = vmatmul.mubr.bf16.gmra.mrb[0].mxu0 %v755
        %v2596 = vpop.f32.mrb[0].mxu0
        %v2597 = vadd.f32 %v2524, %v2596
        %v2598 = vpop.f32.mrb[0].mxu0
        %v2599 = vadd.f32 %v2526, %v2598
        %v2600 = vpop.f32.mrb[0].mxu0
        %v2601 = vadd.f32 %v2528, %v2600
        %v2602 = vpop.f32.mrb[0].mxu0
        %v2603 = vadd.f32 %v2530, %v2602
        %2604 = vmatprep.mubr.bf16.mxu0 0
        %2605 = vmatmul.mubr.bf16.gmra.mrb[0].mxu0 %v770
        %v2606 = vpop.f32.mrb[0].mxu0
        %v2607 = vadd.f32 %v2534, %v2606
        %v2608 = vpop.f32.mrb[0].mxu0
        %v2609 = vadd.f32 %v2536, %v2608
        %v2610 = vpop.f32.mrb[0].mxu0
        %v2611 = vadd.f32 %v2538, %v2610
        %v2612 = vpop.f32.mrb[0].mxu0
        %v2613 = vadd.f32 %v2540, %v2612
        %2614 = vdwg.mxu0
        %s2615 = scalar_lea.vmem %s221, 480
        %v2616 = vld [vmem:[%s2615] sm:$0xff]
        %v2617 = vld [vmem:[%s2615 + $0x8] sm:$0xff]
        %v2618 = vld [vmem:[%s2615 + $0x10] sm:$0xff]
        %v2619 = vld [vmem:[%s2615 + $0x18] sm:$0xff]
        %v2620 = vld [vmem:[%s2615 + $0x20] sm:$0xff]
        %v2621 = vld [vmem:[%s2615 + $0x28] sm:$0xff]
        %v2622 = vld [vmem:[%s2615 + $0x30] sm:$0xff]
        %v2623 = vld [vmem:[%s2615 + $0x38] sm:$0xf]
        %v2624 = vld [vmem:[%s2615 + $0x3c] sm:$0xff]
        %v2625 = vld [vmem:[%s2615 + $0x44] sm:$0xff]
        %v2626 = vld [vmem:[%s2615 + $0x4c] sm:$0xff]
        %v2627 = vld [vmem:[%s2615 + $0x54] sm:$0xff]
        %v2628 = vld [vmem:[%s2615 + $0x5c] sm:$0xff]
        %v2629 = vld [vmem:[%s2615 + $0x64] sm:$0xff]
        %v2630 = vld [vmem:[%s2615 + $0x6c] sm:$0xff]
        %v2631 = vld [vmem:[%s2615 + $0x74] sm:$0xf]
        %v2632 = vld [vmem:[%s2615 + $0x78] sm:$0xff]
        %v2633 = vld [vmem:[%s2615 + $0x80] sm:$0xff]
        %v2634 = vld [vmem:[%s2615 + $0x88] sm:$0xff]
        %v2635 = vld [vmem:[%s2615 + $0x90] sm:$0xff]
        %v2636 = vld [vmem:[%s2615 + $0x98] sm:$0xff]
        %v2637 = vld [vmem:[%s2615 + $0xa0] sm:$0xff]
        %v2638 = vld [vmem:[%s2615 + $0xa8] sm:$0xff]
        %v2639 = vld [vmem:[%s2615 + $0xb0] sm:$0xf]
        %v2640 = vld [vmem:[%s2615 + $0xb4] sm:$0xff]
        %v2641 = vld [vmem:[%s2615 + $0xbc] sm:$0xff]
        %v2642 = vld [vmem:[%s2615 + $0xc4] sm:$0xff]
        %v2643 = vld [vmem:[%s2615 + $0xcc] sm:$0xff]
        %v2644 = vld [vmem:[%s2615 + $0xd4] sm:$0xff]
        %v2645 = vld [vmem:[%s2615 + $0xdc] sm:$0xff]
        %v2646 = vld [vmem:[%s2615 + $0xe4] sm:$0xff]
        %v2647 = vld [vmem:[%s2615 + $0xec] sm:$0xf]
        %v2648 = vld [vmem:[%s2615 + $0xf0] sm:$0xff]
        %v2649 = vld [vmem:[%s2615 + $0xf8] sm:$0xff]
        %v2650 = vld [vmem:[%s2615 + $0x100] sm:$0xff]
        %v2651 = vld [vmem:[%s2615 + $0x108] sm:$0xff]
        %v2652 = vld [vmem:[%s2615 + $0x110] sm:$0xff]
        %v2653 = vld [vmem:[%s2615 + $0x118] sm:$0xff]
        %v2654 = vld [vmem:[%s2615 + $0x120] sm:$0xff]
        %v2655 = vld [vmem:[%s2615 + $0x128] sm:$0xf]
        %v2656 = vld [vmem:[%s2615 + $0x12c] sm:$0xff]
        %v2657 = vld [vmem:[%s2615 + $0x134] sm:$0xff]
        %v2658 = vld [vmem:[%s2615 + $0x13c] sm:$0xff]
        %v2659 = vld [vmem:[%s2615 + $0x144] sm:$0xff]
        %v2660 = vld [vmem:[%s2615 + $0x14c] sm:$0xff]
        %v2661 = vld [vmem:[%s2615 + $0x154] sm:$0xff]
        %v2662 = vld [vmem:[%s2615 + $0x15c] sm:$0xff]
        %v2663 = vld [vmem:[%s2615 + $0x164] sm:$0xf]
        %v2664 = vld [vmem:[%s2615 + $0x168] sm:$0xff]
        %v2665 = vld [vmem:[%s2615 + $0x170] sm:$0xff]
        %v2666 = vld [vmem:[%s2615 + $0x178] sm:$0xff]
        %v2667 = vld [vmem:[%s2615 + $0x180] sm:$0xff]
        %v2668 = vld [vmem:[%s2615 + $0x188] sm:$0xff]
        %v2669 = vld [vmem:[%s2615 + $0x190] sm:$0xff]
        %v2670 = vld [vmem:[%s2615 + $0x198] sm:$0xff]
        %v2671 = vld [vmem:[%s2615 + $0x1a0] sm:$0xf]
        %v2672 = vld [vmem:[%s2615 + $0x1a4] sm:$0xff]
        %v2673 = vld [vmem:[%s2615 + $0x1ac] sm:$0xff]
        %v2674 = vld [vmem:[%s2615 + $0x1b4] sm:$0xff]
        %v2675 = vld [vmem:[%s2615 + $0x1bc] sm:$0xff]
        %v2676 = vld [vmem:[%s2615 + $0x1c4] sm:$0xff]
        %v2677 = vld [vmem:[%s2615 + $0x1cc] sm:$0xff]
        %v2678 = vld [vmem:[%s2615 + $0x1d4] sm:$0xff]
        %v2679 = vld [vmem:[%s2615 + $0x1dc] sm:$0xf]
        %v2744 = vunpack.c.l.b16 %v2616
        %v2745 = vunpack.c.h.b16 %v2616
        %v2746 = vunpack.c.l.b16 %v2617
        %v2747 = vunpack.c.h.b16 %v2617
        %v2748 = vunpack.c.l.b16 %v2618
        %v2749 = vunpack.c.h.b16 %v2618
        %v2750 = vunpack.c.l.b16 %v2619
        %v2751 = vunpack.c.h.b16 %v2619
        %v2752 = vunpack.c.l.b16 %v2620
        %v2753 = vunpack.c.h.b16 %v2620
        %v2754 = vunpack.c.l.b16 %v2621
        %v2755 = vunpack.c.h.b16 %v2621
        %v2756 = vunpack.c.l.b16 %v2622
        %v2757 = vunpack.c.h.b16 %v2622
        %v2758 = vunpack.c.l.b16 %v2623
        %v2759 = vunpack.c.l.b16 %v2624
        %v2760 = vunpack.c.h.b16 %v2624
        %v2761 = vunpack.c.l.b16 %v2625
        %v2762 = vunpack.c.h.b16 %v2625
        %v2763 = vunpack.c.l.b16 %v2626
        %v2764 = vunpack.c.h.b16 %v2626
        %v2765 = vunpack.c.l.b16 %v2627
        %v2766 = vunpack.c.h.b16 %v2627
        %v2767 = vunpack.c.l.b16 %v2628
        %v2768 = vunpack.c.h.b16 %v2628
        %v2769 = vunpack.c.l.b16 %v2629
        %v2770 = vunpack.c.h.b16 %v2629
        %v2771 = vunpack.c.l.b16 %v2630
        %v2772 = vunpack.c.h.b16 %v2630
        %v2773 = vunpack.c.l.b16 %v2631
        %v2774 = vunpack.c.l.b16 %v2632
        %v2775 = vunpack.c.h.b16 %v2632
        %v2776 = vunpack.c.l.b16 %v2633
        %v2777 = vunpack.c.h.b16 %v2633
        %v2778 = vunpack.c.l.b16 %v2634
        %v2779 = vunpack.c.h.b16 %v2634
        %v2780 = vunpack.c.l.b16 %v2635
        %v2781 = vunpack.c.h.b16 %v2635
        %v2782 = vunpack.c.l.b16 %v2636
        %v2783 = vunpack.c.h.b16 %v2636
        %v2784 = vunpack.c.l.b16 %v2637
        %v2785 = vunpack.c.h.b16 %v2637
        %v2786 = vunpack.c.l.b16 %v2638
        %v2787 = vunpack.c.h.b16 %v2638
        %v2788 = vunpack.c.l.b16 %v2639
        %v2789 = vunpack.c.l.b16 %v2640
        %v2790 = vunpack.c.h.b16 %v2640
        %v2791 = vunpack.c.l.b16 %v2641
        %v2792 = vunpack.c.h.b16 %v2641
        %v2793 = vunpack.c.l.b16 %v2642
        %v2794 = vunpack.c.h.b16 %v2642
        %v2795 = vunpack.c.l.b16 %v2643
        %v2796 = vunpack.c.h.b16 %v2643
        %v2797 = vunpack.c.l.b16 %v2644
        %v2798 = vunpack.c.h.b16 %v2644
        %v2799 = vunpack.c.l.b16 %v2645
        %v2800 = vunpack.c.h.b16 %v2645
        %v2801 = vunpack.c.l.b16 %v2646
        %v2802 = vunpack.c.h.b16 %v2646
        %v2803 = vunpack.c.l.b16 %v2647
        %v2804 = vunpack.c.l.b16 %v2648
        %v2805 = vunpack.c.h.b16 %v2648
        %v2806 = vunpack.c.l.b16 %v2649
        %v2807 = vunpack.c.h.b16 %v2649
        %v2808 = vunpack.c.l.b16 %v2650
        %v2809 = vunpack.c.h.b16 %v2650
        %v2810 = vunpack.c.l.b16 %v2651
        %v2811 = vunpack.c.h.b16 %v2651
        %v2812 = vunpack.c.l.b16 %v2652
        %v2813 = vunpack.c.h.b16 %v2652
        %v2814 = vunpack.c.l.b16 %v2653
        %v2815 = vunpack.c.h.b16 %v2653
        %v2816 = vunpack.c.l.b16 %v2654
        %v2817 = vunpack.c.h.b16 %v2654
        %v2818 = vunpack.c.l.b16 %v2655
        %v2819 = vunpack.c.l.b16 %v2656
        %v2820 = vunpack.c.h.b16 %v2656
        %v2821 = vunpack.c.l.b16 %v2657
        %v2822 = vunpack.c.h.b16 %v2657
        %v2823 = vunpack.c.l.b16 %v2658
        %v2824 = vunpack.c.h.b16 %v2658
        %v2825 = vunpack.c.l.b16 %v2659
        %v2826 = vunpack.c.h.b16 %v2659
        %v2827 = vunpack.c.l.b16 %v2660
        %v2828 = vunpack.c.h.b16 %v2660
        %v2829 = vunpack.c.l.b16 %v2661
        %v2830 = vunpack.c.h.b16 %v2661
        %v2831 = vunpack.c.l.b16 %v2662
        %v2832 = vunpack.c.h.b16 %v2662
        %v2833 = vunpack.c.l.b16 %v2663
        %v2834 = vunpack.c.l.b16 %v2664
        %v2835 = vunpack.c.h.b16 %v2664
        %v2836 = vunpack.c.l.b16 %v2665
        %v2837 = vunpack.c.h.b16 %v2665
        %v2838 = vunpack.c.l.b16 %v2666
        %v2839 = vunpack.c.h.b16 %v2666
        %v2840 = vunpack.c.l.b16 %v2667
        %v2841 = vunpack.c.h.b16 %v2667
        %v2842 = vunpack.c.l.b16 %v2668
        %v2843 = vunpack.c.h.b16 %v2668
        %v2844 = vunpack.c.l.b16 %v2669
        %v2845 = vunpack.c.h.b16 %v2669
        %v2846 = vunpack.c.l.b16 %v2670
        %v2847 = vunpack.c.h.b16 %v2670
        %v2848 = vunpack.c.l.b16 %v2671
        %v2849 = vunpack.c.l.b16 %v2672
        %v2850 = vunpack.c.h.b16 %v2672
        %v2851 = vunpack.c.l.b16 %v2673
        %v2852 = vunpack.c.h.b16 %v2673
        %v2853 = vunpack.c.l.b16 %v2674
        %v2854 = vunpack.c.h.b16 %v2674
        %v2855 = vunpack.c.l.b16 %v2675
        %v2856 = vunpack.c.h.b16 %v2675
        %v2857 = vunpack.c.l.b16 %v2676
        %v2858 = vunpack.c.h.b16 %v2676
        %v2859 = vunpack.c.l.b16 %v2677
        %v2860 = vunpack.c.h.b16 %v2677
        %v2861 = vunpack.c.l.b16 %v2678
        %v2862 = vunpack.c.h.b16 %v2678
        %v2863 = vunpack.c.l.b16 %v2679
        %v2864 = vpack.c.b16 %v2759, %v2744
        %v2865 = vpack.c.b16 %v2760, %v2745
        %v2866 = vpack.c.b16 %v2761, %v2746
        %v2867 = vpack.c.b16 %v2762, %v2747
        %v2868 = vpack.c.b16 %v2763, %v2748
        %v2869 = vpack.c.b16 %v2764, %v2749
        %v2870 = vpack.c.b16 %v2765, %v2750
        %v2871 = vpack.c.b16 %v2766, %v2751
        %v2872 = vpack.c.b16 %v2767, %v2752
        %v2873 = vpack.c.b16 %v2768, %v2753
        %v2874 = vpack.c.b16 %v2769, %v2754
        %v2875 = vpack.c.b16 %v2770, %v2755
        %v2876 = vpack.c.b16 %v2771, %v2756
        %v2877 = vpack.c.b16 %v2772, %v2757
        %v2878 = vpack.c.b16 %v2773, %v2758
        %v2879 = vpack.c.b16 %v2789, %v2774
        %v2880 = vpack.c.b16 %v2790, %v2775
        %v2881 = vpack.c.b16 %v2791, %v2776
        %v2882 = vpack.c.b16 %v2792, %v2777
        %v2883 = vpack.c.b16 %v2793, %v2778
        %v2884 = vpack.c.b16 %v2794, %v2779
        %v2885 = vpack.c.b16 %v2795, %v2780
        %v2886 = vpack.c.b16 %v2796, %v2781
        %v2887 = vpack.c.b16 %v2797, %v2782
        %v2888 = vpack.c.b16 %v2798, %v2783
        %v2889 = vpack.c.b16 %v2799, %v2784
        %v2890 = vpack.c.b16 %v2800, %v2785
        %v2891 = vpack.c.b16 %v2801, %v2786
        %v2892 = vpack.c.b16 %v2802, %v2787
        %v2893 = vpack.c.b16 %v2803, %v2788
        %v2894 = vpack.c.b16 %v2819, %v2804
        %v2895 = vpack.c.b16 %v2820, %v2805
        %v2896 = vpack.c.b16 %v2821, %v2806
        %v2897 = vpack.c.b16 %v2822, %v2807
        %v2898 = vpack.c.b16 %v2823, %v2808
        %v2899 = vpack.c.b16 %v2824, %v2809
        %v2900 = vpack.c.b16 %v2825, %v2810
        %v2901 = vpack.c.b16 %v2826, %v2811
        %v2902 = vpack.c.b16 %v2827, %v2812
        %v2903 = vpack.c.b16 %v2828, %v2813
        %v2904 = vpack.c.b16 %v2829, %v2814
        %v2905 = vpack.c.b16 %v2830, %v2815
        %v2906 = vpack.c.b16 %v2831, %v2816
        %v2907 = vpack.c.b16 %v2832, %v2817
        %v2908 = vpack.c.b16 %v2833, %v2818
        %v2909 = vpack.c.b16 %v2849, %v2834
        %v2910 = vpack.c.b16 %v2850, %v2835
        %v2911 = vpack.c.b16 %v2851, %v2836
        %v2912 = vpack.c.b16 %v2852, %v2837
        %v2913 = vpack.c.b16 %v2853, %v2838
        %v2914 = vpack.c.b16 %v2854, %v2839
        %v2915 = vpack.c.b16 %v2855, %v2840
        %v2916 = vpack.c.b16 %v2856, %v2841
        %v2917 = vpack.c.b16 %v2857, %v2842
        %v2918 = vpack.c.b16 %v2858, %v2843
        %v2919 = vpack.c.b16 %v2859, %v2844
        %v2920 = vpack.c.b16 %v2860, %v2845
        %v2921 = vpack.c.b16 %v2861, %v2846
        %v2922 = vpack.c.b16 %v2862, %v2847
        %v2923 = vpack.c.b16 %v2863, %v2848
        %2984 = vmatprep.subr.bf16.mxu0 %v1552
        %2985 = vmatpush1.bf16.msra.mxu0 %v1551
        %2986 = vmatprep.subr.bf16.mxu0 %v1554
        %2987 = vmatpush1.bf16.msra.mxu0 %v1553
        %2988 = vmatprep.subr.bf16.mxu0 %v1556
        %2989 = vmatpush1.bf16.msra.mxu0 %v1555
        %2990 = vmatprep.subr.bf16.mxu0 %v1558
        %2991 = vmatpush1.bf16.msra.mxu0 %v1557
        %2992 = vmatprep.subr.bf16.mxu0 %v1560
        %2993 = vmatpush1.bf16.msra.mxu0 %v1559
        %2994 = vmatprep.subr.bf16.mxu0 %v1562
        %2995 = vmatpush1.bf16.msra.mxu0 %v1561
        %2996 = vmatprep.subr.bf16.mxu0 %v1564
        %2997 = vmatpush1.bf16.msra.mxu0 %v1563
        %2998 = vmatprep.subr.bf16.mxu0 %v1566
        %2999 = vmatpush1.bf16.msra.mxu0 %v1565
        %3000 = vmatprep.subr.bf16.mxu0 %v1568
        %3001 = vmatpush1.bf16.msra.mxu0 %v1567
        %3002 = vmatprep.subr.bf16.mxu0 %v1570
        %3003 = vmatpush1.bf16.msra.mxu0 %v1569
        %3004 = vmatprep.subr.bf16.mxu0 %v1572
        %3005 = vmatpush1.bf16.msra.mxu0 %v1571
        %3006 = vmatprep.subr.bf16.mxu0 %v1574
        %3007 = vmatpush1.bf16.msra.mxu0 %v1573
        %3008 = vmatprep.subr.bf16.mxu0 %v1576
        %3009 = vmatpush1.bf16.msra.mxu0 %v1575
        %3010 = vmatprep.subr.bf16.mxu0 %v1578
        %3011 = vmatpush1.bf16.msra.mxu0 %v1577
        %3012 = vmatprep.subr.bf16.mxu0 %v1580
        %3013 = vmatpush1.bf16.msra.mxu0 %v1579
        %3014 = vmatprep.subr.bf16.mxu0 %v1582
        %3015 = vmatpush1.bf16.msra.mxu0 %v1581
        %3016 = vmatprep.mubr.bf16.mxu0 %v2865
        %3017 = vmatmul.mubr.bf16.gmra.mrb[0].mxu0 %v2864
        %v3018 = vpop.f32.mrb[0].mxu0
        %v3019 = vadd.f32 0.0, %v3018
        %v3020 = vpop.f32.mrb[0].mxu0
        %v3021 = vadd.f32 0.0, %v3020
        %v3022 = vpop.f32.mrb[0].mxu0
        %v3023 = vadd.f32 0.0, %v3022
        %v3024 = vpop.f32.mrb[0].mxu0
        %v3025 = vadd.f32 0.0, %v3024
        %3026 = vmatprep.mubr.bf16.mxu0 %v2880
        %3027 = vmatmul.mubr.bf16.gmra.mrb[0].mxu0 %v2879
        %v3028 = vpop.f32.mrb[0].mxu0
        %v3029 = vadd.f32 0.0, %v3028
        %v3030 = vpop.f32.mrb[0].mxu0
        %v3031 = vadd.f32 0.0, %v3030
        %v3032 = vpop.f32.mrb[0].mxu0
        %v3033 = vadd.f32 0.0, %v3032
        %v3034 = vpop.f32.mrb[0].mxu0
        %v3035 = vadd.f32 0.0, %v3034
        %3036 = vmatprep.mubr.bf16.mxu0 %v2895
        %3037 = vmatmul.mubr.bf16.gmra.mrb[0].mxu0 %v2894
        %v3038 = vpop.f32.mrb[0].mxu0
        %v3039 = vadd.f32 0.0, %v3038
        %v3040 = vpop.f32.mrb[0].mxu0
        %v3041 = vadd.f32 0.0, %v3040
        %v3042 = vpop.f32.mrb[0].mxu0
        %v3043 = vadd.f32 0.0, %v3042
        %v3044 = vpop.f32.mrb[0].mxu0
        %v3045 = vadd.f32 0.0, %v3044
        %3046 = vmatprep.mubr.bf16.mxu0 %v2910
        %3047 = vmatmul.mubr.bf16.gmra.mrb[0].mxu0 %v2909
        %v3048 = vpop.f32.mrb[0].mxu0
        %v3049 = vadd.f32 0.0, %v3048
        %v3050 = vpop.f32.mrb[0].mxu0
        %v3051 = vadd.f32 0.0, %v3050
        %v3052 = vpop.f32.mrb[0].mxu0
        %v3053 = vadd.f32 0.0, %v3052
        %v3054 = vpop.f32.mrb[0].mxu0
        %v3055 = vadd.f32 0.0, %v3054
        %3056 = vdwg.mxu0
        %3057 = vmatprep.subr.bf16.mxu0 %v1584
        %3058 = vmatpush1.bf16.msra.mxu0 %v1583
        %3059 = vmatprep.subr.bf16.mxu0 %v1586
        %3060 = vmatpush1.bf16.msra.mxu0 %v1585
        %3061 = vmatprep.subr.bf16.mxu0 %v1588
        %3062 = vmatpush1.bf16.msra.mxu0 %v1587
        %3063 = vmatprep.subr.bf16.mxu0 %v1590
        %3064 = vmatpush1.bf16.msra.mxu0 %v1589
        %3065 = vmatprep.subr.bf16.mxu0 %v1592
        %3066 = vmatpush1.bf16.msra.mxu0 %v1591
        %3067 = vmatprep.subr.bf16.mxu0 %v1594
        %3068 = vmatpush1.bf16.msra.mxu0 %v1593
        %3069 = vmatprep.subr.bf16.mxu0 %v1596
        %3070 = vmatpush1.bf16.msra.mxu0 %v1595
        %3071 = vmatprep.subr.bf16.mxu0 %v1598
        %3072 = vmatpush1.bf16.msra.mxu0 %v1597
        %3073 = vmatprep.subr.bf16.mxu0 %v1600
        %3074 = vmatpush1.bf16.msra.mxu0 %v1599
        %3075 = vmatprep.subr.bf16.mxu0 %v1602
        %3076 = vmatpush1.bf16.msra.mxu0 %v1601
        %3077 = vmatprep.subr.bf16.mxu0 %v1604
        %3078 = vmatpush1.bf16.msra.mxu0 %v1603
        %3079 = vmatprep.subr.bf16.mxu0 %v1606
        %3080 = vmatpush1.bf16.msra.mxu0 %v1605
        %3081 = vmatprep.subr.bf16.mxu0 %v1608
        %3082 = vmatpush1.bf16.msra.mxu0 %v1607
        %3083 = vmatprep.subr.bf16.mxu0 %v1610
        %3084 = vmatpush1.bf16.msra.mxu0 %v1609
        %3085 = vmatprep.subr.bf16.mxu0 %v1612
        %3086 = vmatpush1.bf16.msra.mxu0 %v1611
        %3087 = vmatprep.subr.bf16.mxu0 %v1614
        %3088 = vmatpush1.bf16.msra.mxu0 %v1613
        %3089 = vmatprep.mubr.bf16.mxu0 %v2867
        %3090 = vmatmul.mubr.bf16.gmra.mrb[0].mxu0 %v2866
        %v3091 = vpop.f32.mrb[0].mxu0
        %v3092 = vadd.f32 %v3019, %v3091
        %v3093 = vpop.f32.mrb[0].mxu0
        %v3094 = vadd.f32 %v3021, %v3093
        %v3095 = vpop.f32.mrb[0].mxu0
        %v3096 = vadd.f32 %v3023, %v3095
        %v3097 = vpop.f32.mrb[0].mxu0
        %v3098 = vadd.f32 %v3025, %v3097
        %3099 = vmatprep.mubr.bf16.mxu0 %v2882
        %3100 = vmatmul.mubr.bf16.gmra.mrb[0].mxu0 %v2881
        %v3101 = vpop.f32.mrb[0].mxu0
        %v3102 = vadd.f32 %v3029, %v3101
        %v3103 = vpop.f32.mrb[0].mxu0
        %v3104 = vadd.f32 %v3031, %v3103
        %v3105 = vpop.f32.mrb[0].mxu0
        %v3106 = vadd.f32 %v3033, %v3105
        %v3107 = vpop.f32.mrb[0].mxu0
        %v3108 = vadd.f32 %v3035, %v3107
        %3109 = vmatprep.mubr.bf16.mxu0 %v2897
        %3110 = vmatmul.mubr.bf16.gmra.mrb[0].mxu0 %v2896
        %v3111 = vpop.f32.mrb[0].mxu0
        %v3112 = vadd.f32 %v3039, %v3111
        %v3113 = vpop.f32.mrb[0].mxu0
        %v3114 = vadd.f32 %v3041, %v3113
        %v3115 = vpop.f32.mrb[0].mxu0
        %v3116 = vadd.f32 %v3043, %v3115
        %v3117 = vpop.f32.mrb[0].mxu0
        %v3118 = vadd.f32 %v3045, %v3117
        %3119 = vmatprep.mubr.bf16.mxu0 %v2912
        %3120 = vmatmul.mubr.bf16.gmra.mrb[0].mxu0 %v2911
        %v3121 = vpop.f32.mrb[0].mxu0
        %v3122 = vadd.f32 %v3049, %v3121
        %v3123 = vpop.f32.mrb[0].mxu0
        %v3124 = vadd.f32 %v3051, %v3123
        %v3125 = vpop.f32.mrb[0].mxu0
        %v3126 = vadd.f32 %v3053, %v3125
        %v3127 = vpop.f32.mrb[0].mxu0
        %v3128 = vadd.f32 %v3055, %v3127
        %3129 = vdwg.mxu0
        %3130 = vmatprep.subr.bf16.mxu0 %v1616
        %3131 = vmatpush1.bf16.msra.mxu0 %v1615
        %3132 = vmatprep.subr.bf16.mxu0 %v1618
        %3133 = vmatpush1.bf16.msra.mxu0 %v1617
        %3134 = vmatprep.subr.bf16.mxu0 %v1620
        %3135 = vmatpush1.bf16.msra.mxu0 %v1619
        %3136 = vmatprep.subr.bf16.mxu0 %v1622
        %3137 = vmatpush1.bf16.msra.mxu0 %v1621
        %3138 = vmatprep.subr.bf16.mxu0 %v1624
        %3139 = vmatpush1.bf16.msra.mxu0 %v1623
        %3140 = vmatprep.subr.bf16.mxu0 %v1626
        %3141 = vmatpush1.bf16.msra.mxu0 %v1625
        %3142 = vmatprep.subr.bf16.mxu0 %v1628
        %3143 = vmatpush1.bf16.msra.mxu0 %v1627
        %3144 = vmatprep.subr.bf16.mxu0 %v1630
        %3145 = vmatpush1.bf16.msra.mxu0 %v1629
        %3146 = vmatprep.subr.bf16.mxu0 %v1632
        %3147 = vmatpush1.bf16.msra.mxu0 %v1631
        %3148 = vmatprep.subr.bf16.mxu0 %v1634
        %3149 = vmatpush1.bf16.msra.mxu0 %v1633
        %3150 = vmatprep.subr.bf16.mxu0 %v1636
        %3151 = vmatpush1.bf16.msra.mxu0 %v1635
        %3152 = vmatprep.subr.bf16.mxu0 %v1638
        %3153 = vmatpush1.bf16.msra.mxu0 %v1637
        %3154 = vmatprep.subr.bf16.mxu0 %v1640
        %3155 = vmatpush1.bf16.msra.mxu0 %v1639
        %3156 = vmatprep.subr.bf16.mxu0 %v1642
        %3157 = vmatpush1.bf16.msra.mxu0 %v1641
        %3158 = vmatprep.subr.bf16.mxu0 %v1644
        %3159 = vmatpush1.bf16.msra.mxu0 %v1643
        %3160 = vmatprep.subr.bf16.mxu0 %v1646
        %3161 = vmatpush1.bf16.msra.mxu0 %v1645
        %3162 = vmatprep.mubr.bf16.mxu0 %v2869
        %3163 = vmatmul.mubr.bf16.gmra.mrb[0].mxu0 %v2868
        %v3164 = vpop.f32.mrb[0].mxu0
        %v3165 = vadd.f32 %v3092, %v3164
        %v3166 = vpop.f32.mrb[0].mxu0
        %v3167 = vadd.f32 %v3094, %v3166
        %v3168 = vpop.f32.mrb[0].mxu0
        %v3169 = vadd.f32 %v3096, %v3168
        %v3170 = vpop.f32.mrb[0].mxu0
        %v3171 = vadd.f32 %v3098, %v3170
        %3172 = vmatprep.mubr.bf16.mxu0 %v2884
        %3173 = vmatmul.mubr.bf16.gmra.mrb[0].mxu0 %v2883
        %v3174 = vpop.f32.mrb[0].mxu0
        %v3175 = vadd.f32 %v3102, %v3174
        %v3176 = vpop.f32.mrb[0].mxu0
        %v3177 = vadd.f32 %v3104, %v3176
        %v3178 = vpop.f32.mrb[0].mxu0
        %v3179 = vadd.f32 %v3106, %v3178
        %v3180 = vpop.f32.mrb[0].mxu0
        %v3181 = vadd.f32 %v3108, %v3180
        %3182 = vmatprep.mubr.bf16.mxu0 %v2899
        %3183 = vmatmul.mubr.bf16.gmra.mrb[0].mxu0 %v2898
        %v3184 = vpop.f32.mrb[0].mxu0
        %v3185 = vadd.f32 %v3112, %v3184
        %v3186 = vpop.f32.mrb[0].mxu0
        %v3187 = vadd.f32 %v3114, %v3186
        %v3188 = vpop.f32.mrb[0].mxu0
        %v3189 = vadd.f32 %v3116, %v3188
        %v3190 = vpop.f32.mrb[0].mxu0
        %v3191 = vadd.f32 %v3118, %v3190
        %3192 = vmatprep.mubr.bf16.mxu0 %v2914
        %3193 = vmatmul.mubr.bf16.gmra.mrb[0].mxu0 %v2913
        %v3194 = vpop.f32.mrb[0].mxu0
        %v3195 = vadd.f32 %v3122, %v3194
        %v3196 = vpop.f32.mrb[0].mxu0
        %v3197 = vadd.f32 %v3124, %v3196
        %v3198 = vpop.f32.mrb[0].mxu0
        %v3199 = vadd.f32 %v3126, %v3198
        %v3200 = vpop.f32.mrb[0].mxu0
        %v3201 = vadd.f32 %v3128, %v3200
        %3202 = vdwg.mxu0
        %3203 = vmatprep.subr.bf16.mxu0 %v1648
        %3204 = vmatpush1.bf16.msra.mxu0 %v1647
        %3205 = vmatprep.subr.bf16.mxu0 %v1650
        %3206 = vmatpush1.bf16.msra.mxu0 %v1649
        %3207 = vmatprep.subr.bf16.mxu0 %v1652
        %3208 = vmatpush1.bf16.msra.mxu0 %v1651
        %3209 = vmatprep.subr.bf16.mxu0 %v1654
        %3210 = vmatpush1.bf16.msra.mxu0 %v1653
        %3211 = vmatprep.subr.bf16.mxu0 %v1656
        %3212 = vmatpush1.bf16.msra.mxu0 %v1655
        %3213 = vmatprep.subr.bf16.mxu0 %v1658
        %3214 = vmatpush1.bf16.msra.mxu0 %v1657
        %3215 = vmatprep.subr.bf16.mxu0 %v1660
        %3216 = vmatpush1.bf16.msra.mxu0 %v1659
        %3217 = vmatprep.subr.bf16.mxu0 %v1662
        %3218 = vmatpush1.bf16.msra.mxu0 %v1661
        %3219 = vmatprep.subr.bf16.mxu0 %v1664
        %3220 = vmatpush1.bf16.msra.mxu0 %v1663
        %3221 = vmatprep.subr.bf16.mxu0 %v1666
        %3222 = vmatpush1.bf16.msra.mxu0 %v1665
        %3223 = vmatprep.subr.bf16.mxu0 %v1668
        %3224 = vmatpush1.bf16.msra.mxu0 %v1667
        %3225 = vmatprep.subr.bf16.mxu0 %v1670
        %3226 = vmatpush1.bf16.msra.mxu0 %v1669
        %3227 = vmatprep.subr.bf16.mxu0 %v1672
        %3228 = vmatpush1.bf16.msra.mxu0 %v1671
        %3229 = vmatprep.subr.bf16.mxu0 %v1674
        %3230 = vmatpush1.bf16.msra.mxu0 %v1673
        %3231 = vmatprep.subr.bf16.mxu0 %v1676
        %3232 = vmatpush1.bf16.msra.mxu0 %v1675
        %3233 = vmatprep.subr.bf16.mxu0 %v1678
        %3234 = vmatpush1.bf16.msra.mxu0 %v1677
        %3235 = vmatprep.mubr.bf16.mxu0 %v2871
        %3236 = vmatmul.mubr.bf16.gmra.mrb[0].mxu0 %v2870
        %v3237 = vpop.f32.mrb[0].mxu0
        %v3238 = vadd.f32 %v3165, %v3237
        %v3239 = vpop.f32.mrb[0].mxu0
        %v3240 = vadd.f32 %v3167, %v3239
        %v3241 = vpop.f32.mrb[0].mxu0
        %v3242 = vadd.f32 %v3169, %v3241
        %v3243 = vpop.f32.mrb[0].mxu0
        %v3244 = vadd.f32 %v3171, %v3243
        %3245 = vmatprep.mubr.bf16.mxu0 %v2886
        %3246 = vmatmul.mubr.bf16.gmra.mrb[0].mxu0 %v2885
        %v3247 = vpop.f32.mrb[0].mxu0
        %v3248 = vadd.f32 %v3175, %v3247
        %v3249 = vpop.f32.mrb[0].mxu0
        %v3250 = vadd.f32 %v3177, %v3249
        %v3251 = vpop.f32.mrb[0].mxu0
        %v3252 = vadd.f32 %v3179, %v3251
        %v3253 = vpop.f32.mrb[0].mxu0
        %v3254 = vadd.f32 %v3181, %v3253
        %3255 = vmatprep.mubr.bf16.mxu0 %v2901
        %3256 = vmatmul.mubr.bf16.gmra.mrb[0].mxu0 %v2900
        %v3257 = vpop.f32.mrb[0].mxu0
        %v3258 = vadd.f32 %v3185, %v3257
        %v3259 = vpop.f32.mrb[0].mxu0
        %v3260 = vadd.f32 %v3187, %v3259
        %v3261 = vpop.f32.mrb[0].mxu0
        %v3262 = vadd.f32 %v3189, %v3261
        %v3263 = vpop.f32.mrb[0].mxu0
        %v3264 = vadd.f32 %v3191, %v3263
        %3265 = vmatprep.mubr.bf16.mxu0 %v2916
        %3266 = vmatmul.mubr.bf16.gmra.mrb[0].mxu0 %v2915
        %v3267 = vpop.f32.mrb[0].mxu0
        %v3268 = vadd.f32 %v3195, %v3267
        %v3269 = vpop.f32.mrb[0].mxu0
        %v3270 = vadd.f32 %v3197, %v3269
        %v3271 = vpop.f32.mrb[0].mxu0
        %v3272 = vadd.f32 %v3199, %v3271
        %v3273 = vpop.f32.mrb[0].mxu0
        %v3274 = vadd.f32 %v3201, %v3273
        %3275 = vdwg.mxu0
        %3276 = vmatprep.subr.bf16.mxu0 %v1680
        %3277 = vmatpush1.bf16.msra.mxu0 %v1679
        %3278 = vmatprep.subr.bf16.mxu0 %v1682
        %3279 = vmatpush1.bf16.msra.mxu0 %v1681
        %3280 = vmatprep.subr.bf16.mxu0 %v1684
        %3281 = vmatpush1.bf16.msra.mxu0 %v1683
        %3282 = vmatprep.subr.bf16.mxu0 %v1686
        %3283 = vmatpush1.bf16.msra.mxu0 %v1685
        %3284 = vmatprep.subr.bf16.mxu0 %v1688
        %3285 = vmatpush1.bf16.msra.mxu0 %v1687
        %3286 = vmatprep.subr.bf16.mxu0 %v1690
        %3287 = vmatpush1.bf16.msra.mxu0 %v1689
        %3288 = vmatprep.subr.bf16.mxu0 %v1692
        %3289 = vmatpush1.bf16.msra.mxu0 %v1691
        %3290 = vmatprep.subr.bf16.mxu0 %v1694
        %3291 = vmatpush1.bf16.msra.mxu0 %v1693
        %3292 = vmatprep.subr.bf16.mxu0 %v1696
        %3293 = vmatpush1.bf16.msra.mxu0 %v1695
        %3294 = vmatprep.subr.bf16.mxu0 %v1698
        %3295 = vmatpush1.bf16.msra.mxu0 %v1697
        %3296 = vmatprep.subr.bf16.mxu0 %v1700
        %3297 = vmatpush1.bf16.msra.mxu0 %v1699
        %3298 = vmatprep.subr.bf16.mxu0 %v1702
        %3299 = vmatpush1.bf16.msra.mxu0 %v1701
        %3300 = vmatprep.subr.bf16.mxu0 %v1704
        %3301 = vmatpush1.bf16.msra.mxu0 %v1703
        %3302 = vmatprep.subr.bf16.mxu0 %v1706
        %3303 = vmatpush1.bf16.msra.mxu0 %v1705
        %3304 = vmatprep.subr.bf16.mxu0 %v1708
        %3305 = vmatpush1.bf16.msra.mxu0 %v1707
        %3306 = vmatprep.subr.bf16.mxu0 %v1710
        %3307 = vmatpush1.bf16.msra.mxu0 %v1709
        %3308 = vmatprep.mubr.bf16.mxu0 %v2873
        %3309 = vmatmul.mubr.bf16.gmra.mrb[0].mxu0 %v2872
        %v3310 = vpop.f32.mrb[0].mxu0
        %v3311 = vadd.f32 %v3238, %v3310
        %v3312 = vpop.f32.mrb[0].mxu0
        %v3313 = vadd.f32 %v3240, %v3312
        %v3314 = vpop.f32.mrb[0].mxu0
        %v3315 = vadd.f32 %v3242, %v3314
        %v3316 = vpop.f32.mrb[0].mxu0
        %v3317 = vadd.f32 %v3244, %v3316
        %3318 = vmatprep.mubr.bf16.mxu0 %v2888
        %3319 = vmatmul.mubr.bf16.gmra.mrb[0].mxu0 %v2887
        %v3320 = vpop.f32.mrb[0].mxu0
        %v3321 = vadd.f32 %v3248, %v3320
        %v3322 = vpop.f32.mrb[0].mxu0
        %v3323 = vadd.f32 %v3250, %v3322
        %v3324 = vpop.f32.mrb[0].mxu0
        %v3325 = vadd.f32 %v3252, %v3324
        %v3326 = vpop.f32.mrb[0].mxu0
        %v3327 = vadd.f32 %v3254, %v3326
        %3328 = vmatprep.mubr.bf16.mxu0 %v2903
        %3329 = vmatmul.mubr.bf16.gmra.mrb[0].mxu0 %v2902
        %v3330 = vpop.f32.mrb[0].mxu0
        %v3331 = vadd.f32 %v3258, %v3330
        %v3332 = vpop.f32.mrb[0].mxu0
        %v3333 = vadd.f32 %v3260, %v3332
        %v3334 = vpop.f32.mrb[0].mxu0
        %v3335 = vadd.f32 %v3262, %v3334
        %v3336 = vpop.f32.mrb[0].mxu0
        %v3337 = vadd.f32 %v3264, %v3336
        %3338 = vmatprep.mubr.bf16.mxu0 %v2918
        %3339 = vmatmul.mubr.bf16.gmra.mrb[0].mxu0 %v2917
        %v3340 = vpop.f32.mrb[0].mxu0
        %v3341 = vadd.f32 %v3268, %v3340
        %v3342 = vpop.f32.mrb[0].mxu0
        %v3343 = vadd.f32 %v3270, %v3342
        %v3344 = vpop.f32.mrb[0].mxu0
        %v3345 = vadd.f32 %v3272, %v3344
        %v3346 = vpop.f32.mrb[0].mxu0
        %v3347 = vadd.f32 %v3274, %v3346
        %3348 = vdwg.mxu0
        %3349 = vmatprep.subr.bf16.mxu0 %v1712
        %3350 = vmatpush1.bf16.msra.mxu0 %v1711
        %3351 = vmatprep.subr.bf16.mxu0 %v1714
        %3352 = vmatpush1.bf16.msra.mxu0 %v1713
        %3353 = vmatprep.subr.bf16.mxu0 %v1716
        %3354 = vmatpush1.bf16.msra.mxu0 %v1715
        %3355 = vmatprep.subr.bf16.mxu0 %v1718
        %3356 = vmatpush1.bf16.msra.mxu0 %v1717
        %3357 = vmatprep.subr.bf16.mxu0 %v1720
        %3358 = vmatpush1.bf16.msra.mxu0 %v1719
        %3359 = vmatprep.subr.bf16.mxu0 %v1722
        %3360 = vmatpush1.bf16.msra.mxu0 %v1721
        %3361 = vmatprep.subr.bf16.mxu0 %v1724
        %3362 = vmatpush1.bf16.msra.mxu0 %v1723
        %3363 = vmatprep.subr.bf16.mxu0 %v1726
        %3364 = vmatpush1.bf16.msra.mxu0 %v1725
        %3365 = vmatprep.subr.bf16.mxu0 %v1728
        %3366 = vmatpush1.bf16.msra.mxu0 %v1727
        %3367 = vmatprep.subr.bf16.mxu0 %v1730
        %3368 = vmatpush1.bf16.msra.mxu0 %v1729
        %3369 = vmatprep.subr.bf16.mxu0 %v1732
        %3370 = vmatpush1.bf16.msra.mxu0 %v1731
        %3371 = vmatprep.subr.bf16.mxu0 %v1734
        %3372 = vmatpush1.bf16.msra.mxu0 %v1733
        %3373 = vmatprep.subr.bf16.mxu0 %v1736
        %3374 = vmatpush1.bf16.msra.mxu0 %v1735
        %3375 = vmatprep.subr.bf16.mxu0 %v1738
        %3376 = vmatpush1.bf16.msra.mxu0 %v1737
        %3377 = vmatprep.subr.bf16.mxu0 %v1740
        %3378 = vmatpush1.bf16.msra.mxu0 %v1739
        %3379 = vmatprep.subr.bf16.mxu0 %v1742
        %3380 = vmatpush1.bf16.msra.mxu0 %v1741
        %3381 = vmatprep.mubr.bf16.mxu0 %v2875
        %3382 = vmatmul.mubr.bf16.gmra.mrb[0].mxu0 %v2874
        %v3383 = vpop.f32.mrb[0].mxu0
        %v3384 = vadd.f32 %v3311, %v3383
        %v3385 = vpop.f32.mrb[0].mxu0
        %v3386 = vadd.f32 %v3313, %v3385
        %v3387 = vpop.f32.mrb[0].mxu0
        %v3388 = vadd.f32 %v3315, %v3387
        %v3389 = vpop.f32.mrb[0].mxu0
        %v3390 = vadd.f32 %v3317, %v3389
        %3391 = vmatprep.mubr.bf16.mxu0 %v2890
        %3392 = vmatmul.mubr.bf16.gmra.mrb[0].mxu0 %v2889
        %v3393 = vpop.f32.mrb[0].mxu0
        %v3394 = vadd.f32 %v3321, %v3393
        %v3395 = vpop.f32.mrb[0].mxu0
        %v3396 = vadd.f32 %v3323, %v3395
        %v3397 = vpop.f32.mrb[0].mxu0
        %v3398 = vadd.f32 %v3325, %v3397
        %v3399 = vpop.f32.mrb[0].mxu0
        %v3400 = vadd.f32 %v3327, %v3399
        %3401 = vmatprep.mubr.bf16.mxu0 %v2905
        %3402 = vmatmul.mubr.bf16.gmra.mrb[0].mxu0 %v2904
        %v3403 = vpop.f32.mrb[0].mxu0
        %v3404 = vadd.f32 %v3331, %v3403
        %v3405 = vpop.f32.mrb[0].mxu0
        %v3406 = vadd.f32 %v3333, %v3405
        %v3407 = vpop.f32.mrb[0].mxu0
        %v3408 = vadd.f32 %v3335, %v3407
        %v3409 = vpop.f32.mrb[0].mxu0
        %v3410 = vadd.f32 %v3337, %v3409
        %3411 = vmatprep.mubr.bf16.mxu0 %v2920
        %3412 = vmatmul.mubr.bf16.gmra.mrb[0].mxu0 %v2919
        %v3413 = vpop.f32.mrb[0].mxu0
        %v3414 = vadd.f32 %v3341, %v3413
        %v3415 = vpop.f32.mrb[0].mxu0
        %v3416 = vadd.f32 %v3343, %v3415
        %v3417 = vpop.f32.mrb[0].mxu0
        %v3418 = vadd.f32 %v3345, %v3417
        %v3419 = vpop.f32.mrb[0].mxu0
        %v3420 = vadd.f32 %v3347, %v3419
        %3421 = vdwg.mxu0
        %3422 = vmatprep.subr.bf16.mxu0 %v1744
        %3423 = vmatpush1.bf16.msra.mxu0 %v1743
        %3424 = vmatprep.subr.bf16.mxu0 %v1746
        %3425 = vmatpush1.bf16.msra.mxu0 %v1745
        %3426 = vmatprep.subr.bf16.mxu0 %v1748
        %3427 = vmatpush1.bf16.msra.mxu0 %v1747
        %3428 = vmatprep.subr.bf16.mxu0 %v1750
        %3429 = vmatpush1.bf16.msra.mxu0 %v1749
        %3430 = vmatprep.subr.bf16.mxu0 %v1752
        %3431 = vmatpush1.bf16.msra.mxu0 %v1751
        %3432 = vmatprep.subr.bf16.mxu0 %v1754
        %3433 = vmatpush1.bf16.msra.mxu0 %v1753
        %3434 = vmatprep.subr.bf16.mxu0 %v1756
        %3435 = vmatpush1.bf16.msra.mxu0 %v1755
        %3436 = vmatprep.subr.bf16.mxu0 %v1758
        %3437 = vmatpush1.bf16.msra.mxu0 %v1757
        %3438 = vmatprep.subr.bf16.mxu0 %v1760
        %3439 = vmatpush1.bf16.msra.mxu0 %v1759
        %3440 = vmatprep.subr.bf16.mxu0 %v1762
        %3441 = vmatpush1.bf16.msra.mxu0 %v1761
        %3442 = vmatprep.subr.bf16.mxu0 %v1764
        %3443 = vmatpush1.bf16.msra.mxu0 %v1763
        %3444 = vmatprep.subr.bf16.mxu0 %v1766
        %3445 = vmatpush1.bf16.msra.mxu0 %v1765
        %3446 = vmatprep.subr.bf16.mxu0 %v1768
        %3447 = vmatpush1.bf16.msra.mxu0 %v1767
        %3448 = vmatprep.subr.bf16.mxu0 %v1770
        %3449 = vmatpush1.bf16.msra.mxu0 %v1769
        %3450 = vmatprep.subr.bf16.mxu0 %v1772
        %3451 = vmatpush1.bf16.msra.mxu0 %v1771
        %3452 = vmatprep.subr.bf16.mxu0 %v1774
        %3453 = vmatpush1.bf16.msra.mxu0 %v1773
        %3454 = vmatprep.mubr.bf16.mxu0 %v2877
        %3455 = vmatmul.mubr.bf16.gmra.mrb[0].mxu0 %v2876
        %v3456 = vpop.f32.mrb[0].mxu0
        %v3457 = vadd.f32 %v3384, %v3456
        %v3458 = vpop.f32.mrb[0].mxu0
        %v3459 = vadd.f32 %v3386, %v3458
        %v3460 = vpop.f32.mrb[0].mxu0
        %v3461 = vadd.f32 %v3388, %v3460
        %v3462 = vpop.f32.mrb[0].mxu0
        %v3463 = vadd.f32 %v3390, %v3462
        %3464 = vmatprep.mubr.bf16.mxu0 %v2892
        %3465 = vmatmul.mubr.bf16.gmra.mrb[0].mxu0 %v2891
        %v3466 = vpop.f32.mrb[0].mxu0
        %v3467 = vadd.f32 %v3394, %v3466
        %v3468 = vpop.f32.mrb[0].mxu0
        %v3469 = vadd.f32 %v3396, %v3468
        %v3470 = vpop.f32.mrb[0].mxu0
        %v3471 = vadd.f32 %v3398, %v3470
        %v3472 = vpop.f32.mrb[0].mxu0
        %v3473 = vadd.f32 %v3400, %v3472
        %3474 = vmatprep.mubr.bf16.mxu0 %v2907
        %3475 = vmatmul.mubr.bf16.gmra.mrb[0].mxu0 %v2906
        %v3476 = vpop.f32.mrb[0].mxu0
        %v3477 = vadd.f32 %v3404, %v3476
        %v3478 = vpop.f32.mrb[0].mxu0
        %v3479 = vadd.f32 %v3406, %v3478
        %v3480 = vpop.f32.mrb[0].mxu0
        %v3481 = vadd.f32 %v3408, %v3480
        %v3482 = vpop.f32.mrb[0].mxu0
        %v3483 = vadd.f32 %v3410, %v3482
        %3484 = vmatprep.mubr.bf16.mxu0 %v2922
        %3485 = vmatmul.mubr.bf16.gmra.mrb[0].mxu0 %v2921
        %v3486 = vpop.f32.mrb[0].mxu0
        %v3487 = vadd.f32 %v3414, %v3486
        %v3488 = vpop.f32.mrb[0].mxu0
        %v3489 = vadd.f32 %v3416, %v3488
        %v3490 = vpop.f32.mrb[0].mxu0
        %v3491 = vadd.f32 %v3418, %v3490
        %v3492 = vpop.f32.mrb[0].mxu0
        %v3493 = vadd.f32 %v3420, %v3492
        %3494 = vdwg.mxu0
        %3495 = vmatprep.subr.bf16.mxu0 %v1776
        %3496 = vmatpush1.bf16.msra.mxu0 %v1775
        %3497 = vmatprep.subr.bf16.mxu0 %v1778
        %3498 = vmatpush1.bf16.msra.mxu0 %v1777
        %3499 = vmatprep.subr.bf16.mxu0 %v1780
        %3500 = vmatpush1.bf16.msra.mxu0 %v1779
        %3501 = vmatprep.subr.bf16.mxu0 %v1782
        %3502 = vmatpush1.bf16.msra.mxu0 %v1781
        %3503 = vmatprep.subr.bf16.mxu0 %v1784
        %3504 = vmatpush1.bf16.msra.mxu0 %v1783
        %3505 = vmatprep.subr.bf16.mxu0 %v1786
        %3506 = vmatpush1.bf16.msra.mxu0 %v1785
        %3507 = vmatprep.subr.bf16.mxu0 %v1788
        %3508 = vmatpush1.bf16.msra.mxu0 %v1787
        %3509 = vmatprep.subr.bf16.mxu0 %v1790
        %3510 = vmatpush1.bf16.msra.mxu0 %v1789
        %3511 = vmatprep.subr.bf16.mxu0 0
        %3512 = vmatpush1.bf16.msra.mxu0 0
        %3513 = vmatprep.subr.bf16.mxu0 0
        %3514 = vmatpush1.bf16.msra.mxu0 0
        %3515 = vmatprep.subr.bf16.mxu0 0
        %3516 = vmatpush1.bf16.msra.mxu0 0
        %3517 = vmatprep.subr.bf16.mxu0 0
        %3518 = vmatpush1.bf16.msra.mxu0 0
        %3519 = vmatprep.subr.bf16.mxu0 0
        %3520 = vmatpush1.bf16.msra.mxu0 0
        %3521 = vmatprep.subr.bf16.mxu0 0
        %3522 = vmatpush1.bf16.msra.mxu0 0
        %3523 = vmatprep.subr.bf16.mxu0 0
        %3524 = vmatpush1.bf16.msra.mxu0 0
        %3525 = vmatprep.subr.bf16.mxu0 0
        %3526 = vmatpush1.bf16.msra.mxu0 0
        %3527 = vmatprep.mubr.bf16.mxu0 0
        %3528 = vmatmul.mubr.bf16.gmra.mrb[0].mxu0 %v2878
        %v3529 = vpop.f32.mrb[0].mxu0
        %v3530 = vadd.f32 %v3457, %v3529
        %v3531 = vpop.f32.mrb[0].mxu0
        %v3532 = vadd.f32 %v3459, %v3531
        %v3533 = vpop.f32.mrb[0].mxu0
        %v3534 = vadd.f32 %v3461, %v3533
        %v3535 = vpop.f32.mrb[0].mxu0
        %v3536 = vadd.f32 %v3463, %v3535
        %3537 = vmatprep.mubr.bf16.mxu0 0
        %3538 = vmatmul.mubr.bf16.gmra.mrb[0].mxu0 %v2893
        %v3539 = vpop.f32.mrb[0].mxu0
        %v3540 = vadd.f32 %v3467, %v3539
        %v3541 = vpop.f32.mrb[0].mxu0
        %v3542 = vadd.f32 %v3469, %v3541
        %v3543 = vpop.f32.mrb[0].mxu0
        %v3544 = vadd.f32 %v3471, %v3543
        %v3545 = vpop.f32.mrb[0].mxu0
        %v3546 = vadd.f32 %v3473, %v3545
        %3547 = vmatprep.mubr.bf16.mxu0 0
        %3548 = vmatmul.mubr.bf16.gmra.mrb[0].mxu0 %v2908
        %v3549 = vpop.f32.mrb[0].mxu0
        %v3550 = vadd.f32 %v3477, %v3549
        %v3551 = vpop.f32.mrb[0].mxu0
        %v3552 = vadd.f32 %v3479, %v3551
        %v3553 = vpop.f32.mrb[0].mxu0
        %v3554 = vadd.f32 %v3481, %v3553
        %v3555 = vpop.f32.mrb[0].mxu0
        %v3556 = vadd.f32 %v3483, %v3555
        %3557 = vmatprep.mubr.bf16.mxu0 0
        %3558 = vmatmul.mubr.bf16.gmra.mrb[0].mxu0 %v2923
        %v3559 = vpop.f32.mrb[0].mxu0
        %v3560 = vadd.f32 %v3487, %v3559
        %v3561 = vpop.f32.mrb[0].mxu0
        %v3562 = vadd.f32 %v3489, %v3561
        %v3563 = vpop.f32.mrb[0].mxu0
        %v3564 = vadd.f32 %v3491, %v3563
        %v3565 = vpop.f32.mrb[0].mxu0
        %v3566 = vadd.f32 %v3493, %v3565
        %3567 = vdwg.mxu0
        %v3568 = vmax.f32 %v2577, %v3530
        %v3569 = vmax.f32 %v2579, %v3532
        %v3570 = vmax.f32 %v2581, %v3534
        %v3571 = vmax.f32 %v2583, %v3536
        %v3572 = vmax.f32 %v2587, %v3540
        %v3573 = vmax.f32 %v2589, %v3542
        %v3574 = vmax.f32 %v2591, %v3544
        %v3575 = vmax.f32 %v2593, %v3546
        %v3576 = vmax.f32 %v2597, %v3550
        %v3577 = vmax.f32 %v2599, %v3552
        %v3578 = vmax.f32 %v2601, %v3554
        %v3579 = vmax.f32 %v2603, %v3556
        %v3580 = vmax.f32 %v2607, %v3560
        %v3581 = vmax.f32 %v2609, %v3562
        %v3582 = vmax.f32 %v2611, %v3564
        %v3583 = vmax.f32 %v2613, %v3566
        %v3584 = vld [vmem:[%s2] sm:$0x3]
        %v3586 = vlaneseq
        %v3587 = vshrl.u32 %v3586, 7
        %v3588 = vsub.s32 0, %v3587
        %v3589 = vrot.slane %v3584, %v3588
        %v3590 = vlaneseq
        %v3591 = vshrl.u32 %v3590, 7
        %v3592 = vsub.s32 1, %v3591
        %v3593 = vrot.slane %v3584, %v3592
        %v3596 = vadd.f32 %v3568, %v3589
        %v3597 = vadd.f32 %v3569, %v3593
        %v3598 = vadd.f32 %v3570, %v3589
        %v3599 = vadd.f32 %v3571, %v3593
        %v3600 = vadd.f32 %v3572, %v3589
        %v3601 = vadd.f32 %v3573, %v3593
        %v3602 = vadd.f32 %v3574, %v3589
        %v3603 = vadd.f32 %v3575, %v3593
        %v3604 = vadd.f32 %v3576, %v3589
        %v3605 = vadd.f32 %v3577, %v3593
        %v3606 = vadd.f32 %v3578, %v3589
        %v3607 = vadd.f32 %v3579, %v3593
        %v3608 = vadd.f32 %v3580, %v3589
        %v3609 = vadd.f32 %v3581, %v3593
        %v3610 = vadd.f32 %v3582, %v3589
        %v3611 = vadd.f32 %v3583, %v3593
        %v3612 = vmul.f32 %v3596, 0.01
        %v3613 = vmul.f32 %v3597, 0.01
        %v3614 = vmul.f32 %v3598, 0.01
        %v3615 = vmul.f32 %v3599, 0.01
        %v3616 = vmul.f32 %v3600, 0.01
        %v3617 = vmul.f32 %v3601, 0.01
        %v3618 = vmul.f32 %v3602, 0.01
        %v3619 = vmul.f32 %v3603, 0.01
        %v3620 = vmul.f32 %v3604, 0.01
        %v3621 = vmul.f32 %v3605, 0.01
        %v3622 = vmul.f32 %v3606, 0.01
        %v3623 = vmul.f32 %v3607, 0.01
        %v3624 = vmul.f32 %v3608, 0.01
        %v3625 = vmul.f32 %v3609, 0.01
        %v3626 = vmul.f32 %v3610, 0.01
        %v3627 = vmul.f32 %v3611, 0.01
        %v3628 = vmax.f32 %v3596, %v3612
        %v3629 = vmax.f32 %v3597, %v3613
        %v3630 = vmax.f32 %v3598, %v3614
        %v3631 = vmax.f32 %v3599, %v3615
        %v3632 = vmax.f32 %v3600, %v3616
        %v3633 = vmax.f32 %v3601, %v3617
        %v3634 = vmax.f32 %v3602, %v3618
        %v3635 = vmax.f32 %v3603, %v3619
        %v3636 = vmax.f32 %v3604, %v3620
        %v3637 = vmax.f32 %v3605, %v3621
        %v3638 = vmax.f32 %v3606, %v3622
        %v3639 = vmax.f32 %v3607, %v3623
        %v3640 = vmax.f32 %v3608, %v3624
        %v3641 = vmax.f32 %v3609, %v3625
        %v3642 = vmax.f32 %v3610, %v3626
        %v3643 = vmax.f32 %v3611, %v3627
        %v3644 = vld [vmem:[%s3] sm:$0xff]
        %v3645 = vld [vmem:[%s3 + $0x8] sm:$0xff]
        %v3646 = vld [vmem:[%s3 + $0x10] sm:$0xff]
        %v3647 = vld [vmem:[%s3 + $0x18] sm:$0xff]
        %v3648 = vld [vmem:[%s3 + $0x20] sm:$0xff]
        %v3649 = vld [vmem:[%s3 + $0x28] sm:$0xff]
        %v3650 = vld [vmem:[%s3 + $0x30] sm:$0xff]
        %v3651 = vld [vmem:[%s3 + $0x38] sm:$0xff]
        %v3652 = vld [vmem:[%s3 + $0x40] sm:$0xff]
        %v3653 = vld [vmem:[%s3 + $0x48] sm:$0xff]
        %v3654 = vld [vmem:[%s3 + $0x50] sm:$0xff]
        %v3655 = vld [vmem:[%s3 + $0x58] sm:$0xff]
        %v3656 = vld [vmem:[%s3 + $0x60] sm:$0xff]
        %v3657 = vld [vmem:[%s3 + $0x68] sm:$0xff]
        %v3658 = vld [vmem:[%s3 + $0x70] sm:$0xff]
        %v3659 = vld [vmem:[%s3 + $0x78] sm:$0xff]
        %v3660 = vmul.f32 %v3628, %v3644
        %v3661 = vmul.f32 %v3629, %v3645
        %v3662 = vmul.f32 %v3630, %v3646
        %v3663 = vmul.f32 %v3631, %v3647
        %v3664 = vmul.f32 %v3632, %v3648
        %v3665 = vmul.f32 %v3633, %v3649
        %v3666 = vmul.f32 %v3634, %v3650
        %v3667 = vmul.f32 %v3635, %v3651
        %v3668 = vmul.f32 %v3636, %v3652
        %v3669 = vmul.f32 %v3637, %v3653
        %v3670 = vmul.f32 %v3638, %v3654
        %v3671 = vmul.f32 %v3639, %v3655
        %v3672 = vmul.f32 %v3640, %v3656
        %v3673 = vmul.f32 %v3641, %v3657
        %v3674 = vmul.f32 %v3642, %v3658
        %v3675 = vmul.f32 %v3643, %v3659
        %v3676 = vadd.f32 %v3660, %v3662
        %v3677 = vadd.f32 %v3676, %v3664
        %v3678 = vadd.f32 %v3677, %v3666
        %v3679 = vadd.f32 %v3678, %v3668
        %v3680 = vadd.f32 %v3679, %v3670
        %v3681 = vadd.f32 %v3680, %v3672
        %v3682 = vadd.f32 %v3681, %v3674
        %v3683 = vrot.slane %v3682, 4
        %v3684 = vadd.f32 %v3682, %v3683
        %v3685 = vrot.slane %v3684, 2
        %v3686 = vadd.f32 %v3684, %v3685
        %v3687 = vrot.slane %v3686, 1
        %v3688 = vadd.f32 %v3686, %v3687
        %v3689 = vadd.f32 %v3661, %v3663
        %v3690 = vadd.f32 %v3689, %v3665
        %v3691 = vadd.f32 %v3690, %v3667
        %v3692 = vadd.f32 %v3691, %v3669
        %v3693 = vadd.f32 %v3692, %v3671
        %v3694 = vadd.f32 %v3693, %v3673
        %v3695 = vadd.f32 %v3694, %v3675
        %v3696 = vrot.slane %v3695, 4
        %v3697 = vadd.f32 %v3695, %v3696
        %v3698 = vrot.slane %v3697, 2
        %v3699 = vadd.f32 %v3697, %v3698
        %v3700 = vrot.slane %v3699, 1
        %v3701 = vadd.f32 %v3699, %v3700
        %v3702 = vadd.f32 %v3688, %v3701
        %3703 = vadd.xlane.f32.xlu0 %v3702
        %v3704 = vpop.xlane.xlu0 %3703
        %s3705 = scalar_lea.vmem %s3, 128
        %v3706 = vld [vmem:[%s3705] sm:$0xff]
        %v3707 = vld [vmem:[%s3705 + $0x8] sm:$0xff]
        %v3708 = vld [vmem:[%s3705 + $0x10] sm:$0xff]
        %v3709 = vld [vmem:[%s3705 + $0x18] sm:$0xff]
        %v3710 = vld [vmem:[%s3705 + $0x20] sm:$0xff]
        %v3711 = vld [vmem:[%s3705 + $0x28] sm:$0xff]
        %v3712 = vld [vmem:[%s3705 + $0x30] sm:$0xff]
        %v3713 = vld [vmem:[%s3705 + $0x38] sm:$0xff]
        %v3714 = vld [vmem:[%s3705 + $0x40] sm:$0xff]
        %v3715 = vld [vmem:[%s3705 + $0x48] sm:$0xff]
        %v3716 = vld [vmem:[%s3705 + $0x50] sm:$0xff]
        %v3717 = vld [vmem:[%s3705 + $0x58] sm:$0xff]
        %v3718 = vld [vmem:[%s3705 + $0x60] sm:$0xff]
        %v3719 = vld [vmem:[%s3705 + $0x68] sm:$0xff]
        %v3720 = vld [vmem:[%s3705 + $0x70] sm:$0xff]
        %v3721 = vld [vmem:[%s3705 + $0x78] sm:$0xff]
        %v3722 = vmul.f32 %v3628, %v3706
        %v3723 = vmul.f32 %v3629, %v3707
        %v3724 = vmul.f32 %v3630, %v3708
        %v3725 = vmul.f32 %v3631, %v3709
        %v3726 = vmul.f32 %v3632, %v3710
        %v3727 = vmul.f32 %v3633, %v3711
        %v3728 = vmul.f32 %v3634, %v3712
        %v3729 = vmul.f32 %v3635, %v3713
        %v3730 = vmul.f32 %v3636, %v3714
        %v3731 = vmul.f32 %v3637, %v3715
        %v3732 = vmul.f32 %v3638, %v3716
        %v3733 = vmul.f32 %v3639, %v3717
        %v3734 = vmul.f32 %v3640, %v3718
        %v3735 = vmul.f32 %v3641, %v3719
        %v3736 = vmul.f32 %v3642, %v3720
        %v3737 = vmul.f32 %v3643, %v3721
        %v3738 = vadd.f32 %v3722, %v3724
        %v3739 = vadd.f32 %v3738, %v3726
        %v3740 = vadd.f32 %v3739, %v3728
        %v3741 = vadd.f32 %v3740, %v3730
        %v3742 = vadd.f32 %v3741, %v3732
        %v3743 = vadd.f32 %v3742, %v3734
        %v3744 = vadd.f32 %v3743, %v3736
        %v3745 = vrot.slane %v3744, 4
        %v3746 = vadd.f32 %v3744, %v3745
        %v3747 = vrot.slane %v3746, 2
        %v3748 = vadd.f32 %v3746, %v3747
        %v3749 = vrot.slane %v3748, 1
        %v3750 = vadd.f32 %v3748, %v3749
        %v3751 = vadd.f32 %v3723, %v3725
        %v3752 = vadd.f32 %v3751, %v3727
        %v3753 = vadd.f32 %v3752, %v3729
        %v3754 = vadd.f32 %v3753, %v3731
        %v3755 = vadd.f32 %v3754, %v3733
        %v3756 = vadd.f32 %v3755, %v3735
        %v3757 = vadd.f32 %v3756, %v3737
        %v3758 = vrot.slane %v3757, 4
        %v3759 = vadd.f32 %v3757, %v3758
        %v3760 = vrot.slane %v3759, 2
        %v3761 = vadd.f32 %v3759, %v3760
        %v3762 = vrot.slane %v3761, 1
        %v3763 = vadd.f32 %v3761, %v3762
        %v3764 = vadd.f32 %v3750, %v3763
        %3765 = vadd.xlane.f32.xlu0 %v3764
        %v3766 = vpop.xlane.xlu0 %3765
        %v3767 = vlaneseq
        %v3768 = vand.u32 %v3767, 127
        %vm3769 = vcmp.eq.s32.totalorder %v3768, 0
        %v3770 = vsel %vm3769, %v3704, %v3766
        %v3771 = vld [vmem:[%s4] sm:$0x1]
        %v3772 = vadd.f32 %v3770, %v3771
        %vm3773 = vcmask 8192
        %v3774 = vsel %vm3773, %v3772, -inf
        %3775 = vmax.xlane.f32.xlu0 %v3774
        %v3776 = vpop.xlane.xlu0 %3775
        %v3777 = vsub.f32 %v3772, %v3776
        %v3778 = vmul.f32 %v3777, 1.442695
        %v3779 = vpow.pop %v3778
        %v3780 = vsel %vm3773, %v3779, 0.0
        %3781 = vadd.xlane.f32.xlu0 %v3780
        %v3782 = vpop.xlane.xlu0 %3781
        %v3783 = vrcp.pop %v3782
        %v3784 = vmul.f32 %v3779, %v3783
        %3785 = vst.msk [vmem:[%s216] sm:$0x1] %vm3773, %v3784
        %s3786 = sand.u32 %s137, 1
        %s3787 = scalar_lea.sflag [#allocation3], %s3786
        %s3788 = sand.u32 %s137, 1
        %s3789 = scalar_lea.vmem [#allocation2], %s3788
        // Predicated region
        $region41: #{cnn20_forward.5} parent=39 // pred_check
          %p3790 = pneg %p147
        $region42: #{cnn20_forward.5} parent=39 // pred_check_branch
          %3792 = sbr.rel (%p3790) target = $region44
        $region43: #{cnn20_forward.5} parent=39 // pred_region
          %s3794 = ssub.s32 16, 16
          %3795 = vsyncadd %s3787, %s3794
          %s3796 = smul.addr %s19, 16
          %s3797 = scalar_lea.hbm %s5, %s3796
          %s3799 = sshll.u32 %s3789, 4
          %s3800 = int_to_ptr.vmem [resolvable:$true] %s3799
          %3802 = dma.vmem_to_hbm [thread:$0]  %s3800, 16, %s3797, %s3787
        $region44: #{cnn20_forward.5} parent=39 // pred_fallthru
          _
      $region40: #{cnn20_forward.5} parent=5 // pred_fallthru
        _
      %p3803 = scmp.le.s32.totalorder 2, %s14
      // Predicated region
      $region45: #{cnn20_forward.5} parent=5 // pred_check
        %p3804 = pneg %p3803
      $region46: #{cnn20_forward.5} parent=5 // pred_check_branch
        %3806 = sbr.rel (%p3804) target = $region48
      $region47: #{cnn20_forward.5} parent=5 // pred_region
        %s3807 = ssub.s32 %s14, 2
        // Predicated region
        $region49: #{cnn20_forward.5} parent=47 // pred_check
          %p3808 = pneg %p153
        $region50: #{cnn20_forward.5} parent=47 // pred_check_branch
          %3810 = sbr.rel (%p3808) target = $region52
        $region51: #{cnn20_forward.5} parent=47 // pred_region
          %s3811 = sand.u32 %s138, 1
          %s3812 = scalar_lea.sflag [#allocation3], %s3811
          %s3813 = sand.u32 %s138, 1
          %s3814 = scalar_lea.vmem [#allocation2], %s3813
          %3815 = dma.done %s3812, 16
        $region52: #{cnn20_forward.5} parent=47 // pred_fallthru
          _
      $region48: #{cnn20_forward.5} parent=5 // pred_fallthru
        _
    $region6: #{cnn20_forward.5} parent=1 // loop_footer
      %s18 = sadd.s32 1, %s14
    $region7: #{cnn20_forward.5} parent=1 // loop_footer_branch
      %13 = sbr.rel target = $region3
    $region8: #{cnn20_forward.5} parent=1 // loop_exit
      _
    %3816 = vsyncpa [#allocation3], 1
    %s3817 = scalar_lea.sflag [#allocation3], 1
    %3818 = vsyncpa %s3817, 1

</llo_original>
